<compile_context>
chip_gen: v7x
topology: tpu7x:2x2x1
jax: 0.10.0
libtpu: 0.0.40
codegen_flags: <defaults>
</compile_context>

<pallas_src>
import numpy as np
import jax
import jax.numpy as jnp
from jax import lax
from jax.experimental import pallas as pl
from jax.experimental.pallas import tpu as pltpu

AUDIO_L = 128   # forced: cosine against the Linear(512,128) output (128-dim)
VIDEO_L = 512   # forced: nn.Linear(512, 128) in the video extractor

AUDIO_CH = [(32, 10), (64, 32), (32, 64), (1, 32)]              # (Cout, Cin)
VIDEO_CH = [(32, 10), (64, 32), (64, 64), (32, 64), (1, 32)]


# ---------------------------------------------------------------- utilities
def _pad8(c):
    return max(8, ((c + 7) // 8) * 8)


def _prep_conv_stacked(w, b, replicate_out=False):
    """torch Conv1d weight (Cout, Cin, 3), bias (Cout,) ->
       stacked weight (Cout_p, 3*Cin_p) = [W_k0 | W_k1 | W_k2], bias (Cout_p, 1).
       With replicate_out (last layer, Cout==1) the single real output channel
       is replicated over all padded rows instead of zero-padded, so the
       in-kernel lane->sublane regroup can use plain row selects."""
    cout, cin, _ = w.shape
    cout_p, cin_p = _pad8(cout), _pad8(cin)
    wk = [jnp.pad(w[:, :, k], ((0, 0), (0, cin_p - cin))) for k in range(3)]
    w_s = jnp.concatenate(wk, axis=1)                          # (cout, 3*cin_p)
    if replicate_out:
        assert cout == 1
        w_s = jnp.broadcast_to(w_s, (cout_p, 3 * cin_p))
        b_p = jnp.broadcast_to(b, (cout_p,))[:, None]
    else:
        w_s = jnp.pad(w_s, ((0, cout_p - cout), (0, 0)))
        b_p = jnp.pad(b, (0, cout_p - cout))[:, None]
    return w_s, b_p


def _fold_lanes(x, c_p):
    # (N, C, L) -> (C_p, N*L): channels on sublanes, batch folded onto lanes.
    n, c, l = x.shape
    xp = jnp.pad(x, ((0, 0), (0, c_p - c), (0, 0)))
    return jnp.transpose(xp, (1, 0, 2)).reshape(c_p, n * l)


def _boundary_masks(n, l):
    # (1, n*l) float masks that zero positions whose +-1 lane shift would read
    # across a sample boundary (reproduces the k=3 conv's zero padding).
    lane = np.arange(n * l)
    m_first = (lane % l != 0).astype(np.float32)[None, :]       # for x[l-1]
    m_last = (lane % l != l - 1).astype(np.float32)[None, :]    # for x[l+1]
    return jnp.asarray(m_first), jnp.asarray(m_last)


# ---------------------------------------------------------------- fused kernel
def _make_kernel(n_audio, n_video, batch, n_neg, la, lv, b_p, out_cols_p):
    def kernel(*refs):
        it = iter(refs)
        a_x = next(it)[...]                       # (16, (B+NNEG)*la)
        v_x = next(it)[...]                       # (16, B*lv)
        a_mf = next(it)[...]
        a_ml = next(it)[...]
        v_mf = next(it)[...]
        v_ml = next(it)[...]
        a_w = [(next(it), next(it)) for _ in range(n_audio)]
        v_w = [(next(it), next(it)) for _ in range(n_video)]
        wlin = next(it)[...]                      # (lv, 128)
        blin = next(it)[...]                      # (1, 128)
        out_ref = next(it)                        # (b_p, out_cols_p)

        def conv_stack(h, params, m_first, m_last):
            w_tot = h.shape[1]
            for w_ref, b_ref in params:
                # shifted copies of the sequence (per-sample zero padding via mask)
                h_prev = pltpu.roll(h, shift=1, axis=1) * m_first          # x[l-1]
                h_next = pltpu.roll(h, shift=w_tot - 1, axis=1) * m_last   # x[l+1]
                h3 = jnp.concatenate([h_prev, h, h_next], axis=0)  # (3*Cin_p, W)
                h = jnp.dot(w_ref[...], h3,
                            preferred_element_type=jnp.float32) + b_ref[...]
            return h      # (8, W): single real channel replicated across rows

        a_row = conv_stack(a_x, a_w, a_mf, a_ml)   # (8, (B+NNEG)*la)
        v_row = conv_stack(v_x, v_w, v_mf, v_ml)   # (8, B*lv)

        def regroup(row, l, pairs, rows_p, rid):
            # row: (8, n*l) with all sublanes equal.  Build (rows_p, l) where
            # result[r] = lane block `blk` of row for each (blk, r) in pairs.
            tiles = []
            for t in range(rows_p // 8):
                acc = jnp.zeros((8, l), jnp.float32)
                for blk, r in pairs:
                    if t * 8 <= r < (t + 1) * 8:
                        blk_vals = row[:, blk * l:(blk + 1) * l]
                        acc = jnp.where(rid == r - t * 8, blk_vals, acc)
                tiles.append(acc)
            return tiles[0] if len(tiles) == 1 else jnp.concatenate(tiles, axis=0)

        rid_a = lax.broadcasted_iota(jnp.int32, (8, la), 0)
        rid_v = lax.broadcasted_iota(jnp.int32, (8, lv), 0)

        # positives: row i <- audio sample i (i < batch)
        a_pos = regroup(a_row, la, [(i, i) for i in range(batch)], b_p, rid_a)
        # negatives: row 1+j <- audio sample batch+j (column 0 reserved for pos)
        a_neg = regroup(a_row, la,
                        [(batch + j, 1 + j) for j in range(n_neg)],
                        out_cols_p, rid_a)
        # video conv output: row i <- video sample i
        v_conv = regroup(v_row, lv, [(i, i) for i in range(batch)], b_p, rid_v)

        # Linear(512, 128)
        vemb = jnp.dot(v_conv, wlin, preferred_element_type=jnp.float32) + blin

        # cosine head (torch.cosine_similarity, eps=1e-8), rsqrt on the EUP
        eps2 = jnp.float32(1e-8) ** 2

        def norm_rows(x):
            sq = jnp.sum(x * x, axis=1, keepdims=True)
            return x * lax.rsqrt(jnp.maximum(sq, eps2))

        v_n = norm_rows(vemb)        # (b_p, 128)
        ap_n = norm_rows(a_pos)      # (b_p, 128)
        an_n = norm_rows(a_neg)      # (out_cols_p, 128); row 0 / tail rows are 0

        pos = jnp.sum(v_n * ap_n, axis=1, keepdims=True)                 # (b_p, 1)
        sims = lax.dot_general(v_n, an_n, (((1,), (1,)), ((), ())),
                               preferred_element_type=jnp.float32)       # (b_p, out_cols_p)
        col = lax.broadcasted_iota(jnp.int32, (b_p, out_cols_p), 1)
        cos = jnp.where(col == 0, pos, sims)     # col 0 = pos, col 1+j = neg j
        out_ref[...] = cos                       # single dense store

    return kernel


# ---------------------------------------------------------------- wrapper
def va_forward(afeat, vfeat, neg_afeat, aparams, vparams, lin):
    """Mirrors VAModel.forward(afeat, vfeat, neg_afeat) with neg_afeat not None."""
    # TODO(synk): the neg_afeat is None branch (return raw aemb/vemb) is not wired up.
    batch, cin, la = afeat.shape
    n_neg = neg_afeat.shape[0]
    lv = vfeat.shape[2]
    wl, bl = lin
    assert la == wl.shape[0]          # cosine pairs 128-dim audio emb vs Linear out

    cin_p = _pad8(cin)
    b_p = _pad8(batch)
    out_cols_p = _pad8(1 + n_neg)

    # fold batch onto the lane axis
    a_x = _fold_lanes(jnp.concatenate([afeat, neg_afeat], axis=0), cin_p)
    v_x = _fold_lanes(vfeat, cin_p)
    a_mf, a_ml = _boundary_masks(batch + n_neg, la)
    v_mf, v_ml = _boundary_masks(batch, lv)

    flat = [a_x, v_x, a_mf, a_ml, v_mf, v_ml]
    for i, (w, b) in enumerate(aparams):
        flat += list(_prep_conv_stacked(w, b, replicate_out=(i == len(aparams) - 1)))
    for i, (w, b) in enumerate(vparams):
        flat += list(_prep_conv_stacked(w, b, replicate_out=(i == len(vparams) - 1)))
    flat += [jnp.transpose(wl), bl[None, :]]          # (512,128), (1,128)

    kernel = _make_kernel(len(aparams), len(vparams), batch, n_neg,
                          la, lv, b_p, out_cols_p)
    out = pl.pallas_call(
        kernel,
        out_shape=jax.ShapeDtypeStruct((b_p, out_cols_p), jnp.float32),
    )(*flat)

    cos_sim = out[:batch, :1 + n_neg]
    labels = jnp.zeros((batch,), dtype=jnp.int32)     # torch.long -> int32 (x64 off)
    return cos_sim, labels


# ---------------------------------------------------------------- params / reference
def init_params(key):
    def conv_init(k, cout, cin, ksz=3):
        k1, k2 = jax.random.split(k)
        bound = 1.0 / float(cin * ksz) ** 0.5
        w = jax.random.uniform(k1, (cout, cin, ksz), jnp.float32, -bound, bound)
        b = jax.random.uniform(k2, (cout,), jnp.float32, -bound, bound)
        return w, b

    keys = jax.random.split(key, 10)
    aparams = [conv_init(keys[i], co, ci) for i, (co, ci) in enumerate(AUDIO_CH)]
    vparams = [conv_init(keys[4 + i], co, ci) for i, (co, ci) in enumerate(VIDEO_CH)]
    kl1, kl2 = jax.random.split(keys[9])
    bound = 1.0 / float(VIDEO_L) ** 0.5
    Wl = jax.random.uniform(kl1, (128, VIDEO_L), jnp.float32, -bound, bound)
    bl = jax.random.uniform(kl2, (128,), jnp.float32, -bound, bound)
    return aparams, vparams, (Wl, bl)


def _conv1d_ref(x, w, b):
    y = lax.conv_general_dilated(x, w, (1,), ((1, 1),),
                                 dimension_numbers=("NCH", "OIH", "NCH"),
                                 precision=lax.Precision.HIGHEST)
    return y + b[None, :, None]


def ref_forward(afeat, vfeat, neg_afeat, aparams, vparams, lin):
    def extract(x, params):
        for w, b in params:
            x = _conv1d_ref(x, w, b)
        return x[:, 0, :]

    aemb = extract(afeat, aparams)
    v = extract(vfeat, vparams)
    Wl, bl = lin
    vemb = jnp.dot(v, Wl.T, precision=lax.Precision.HIGHEST) + bl
    nemb = extract(neg_afeat, aparams)
    eps = 1e-8

    def normed(x):
        return x / jnp.maximum(jnp.linalg.norm(x, axis=-1, keepdims=True), eps)

    vh, ah, nh = normed(vemb), normed(aemb), normed(nemb)
    pos = jnp.sum(vh * ah, axis=1, keepdims=True)
    neg = jnp.dot(vh, nh.T, precision=lax.Precision.HIGHEST)
    return jnp.concatenate([pos, neg], axis=1)


# ---------------------------------------------------------------- main
if __name__ == "__main__":
    B, NNEG = 2, 3
    key = jax.random.PRNGKey(0)
    k_param, k_a, k_v, k_n = jax.random.split(key, 4)
    aparams, vparams, lin = init_params(k_param)

    afeat = jax.random.normal(k_a, (B, 10, AUDIO_L), jnp.float32)
    vfeat = jax.random.normal(k_v, (B, 10, VIDEO_L), jnp.float32)
    neg_afeat = jax.random.normal(k_n, (NNEG, 10, AUDIO_L), jnp.float32)

    fwd = jax.jit(va_forward)
    cos_sim, labels = jax.block_until_ready(
        fwd(afeat, vfeat, neg_afeat, aparams, vparams, lin))

    # sanity check against a pure-JAX reference of the same forward pass
    cos_ref = jax.block_until_ready(
        ref_forward(afeat, vfeat, neg_afeat, aparams, vparams, lin))
    # 5e-3 leaves headroom for MXU f32-emulation rounding; real bugs are >>1e-2.
    np.testing.assert_allclose(np.asarray(cos_sim), np.asarray(cos_ref),
                               rtol=5e-3, atol=5e-3)
    assert cos_sim.shape == (B, 1 + NNEG)
    assert labels.shape == (B,) and labels.dtype == jnp.int32

    print("KERNEL_OK")
</pallas_src>

<mosaic_0001>
module attributes {stable_mosaic.version = 11 : i64} {
  func.func @kernel(%arg0: memref<16x640xf32, #tpu.memory_space<vmem>>, %arg1: memref<16x1024xf32, #tpu.memory_space<vmem>>, %arg2: memref<1x640xf32, #tpu.memory_space<vmem>>, %arg3: memref<1x640xf32, #tpu.memory_space<vmem>>, %arg4: memref<1x1024xf32, #tpu.memory_space<vmem>>, %arg5: memref<1x1024xf32, #tpu.memory_space<vmem>>, %arg6: memref<32x48xf32, #tpu.memory_space<vmem>>, %arg7: memref<32x1xf32, #tpu.memory_space<vmem>>, %arg8: memref<64x96xf32, #tpu.memory_space<vmem>>, %arg9: memref<64x1xf32, #tpu.memory_space<vmem>>, %arg10: memref<32x192xf32, #tpu.memory_space<vmem>>, %arg11: memref<32x1xf32, #tpu.memory_space<vmem>>, %arg12: memref<8x96xf32, #tpu.memory_space<vmem>>, %arg13: memref<8x1xf32, #tpu.memory_space<vmem>>, %arg14: memref<32x48xf32, #tpu.memory_space<vmem>>, %arg15: memref<32x1xf32, #tpu.memory_space<vmem>>, %arg16: memref<64x96xf32, #tpu.memory_space<vmem>>, %arg17: memref<64x1xf32, #tpu.memory_space<vmem>>, %arg18: memref<64x192xf32, #tpu.memory_space<vmem>>, %arg19: memref<64x1xf32, #tpu.memory_space<vmem>>, %arg20: memref<32x192xf32, #tpu.memory_space<vmem>>, %arg21: memref<32x1xf32, #tpu.memory_space<vmem>>, %arg22: memref<8x96xf32, #tpu.memory_space<vmem>>, %arg23: memref<8x1xf32, #tpu.memory_space<vmem>>, %arg24: memref<512x128xf32, #tpu.memory_space<vmem>>, %arg25: memref<1x128xf32, #tpu.memory_space<vmem>>, %arg26: memref<8x8xf32, #tpu.memory_space<vmem>>) attributes {dimension_semantics = [], scalar_prefetch = 0 : i64, scratch_operands = 0 : i64, tpu.core_type = #tpu.core_type<tc>} {
    %c0 = arith.constant 0 : index
    %c0_0 = arith.constant 0 : index
    %0 = vector.load %arg0[%c0, %c0_0] : memref<16x640xf32, #tpu.memory_space<vmem>>, vector<16x640xf32>
    %c0_1 = arith.constant 0 : index
    %c0_2 = arith.constant 0 : index
    %1 = vector.load %arg1[%c0_1, %c0_2] : memref<16x1024xf32, #tpu.memory_space<vmem>>, vector<16x1024xf32>
    %c0_3 = arith.constant 0 : index
    %c0_4 = arith.constant 0 : index
    %2 = vector.load %arg2[%c0_3, %c0_4] : memref<1x640xf32, #tpu.memory_space<vmem>>, vector<1x640xf32>
    %c0_5 = arith.constant 0 : index
    %c0_6 = arith.constant 0 : index
    %3 = vector.load %arg3[%c0_5, %c0_6] : memref<1x640xf32, #tpu.memory_space<vmem>>, vector<1x640xf32>
    %c0_7 = arith.constant 0 : index
    %c0_8 = arith.constant 0 : index
    %4 = vector.load %arg4[%c0_7, %c0_8] : memref<1x1024xf32, #tpu.memory_space<vmem>>, vector<1x1024xf32>
    %c0_9 = arith.constant 0 : index
    %c0_10 = arith.constant 0 : index
    %5 = vector.load %arg5[%c0_9, %c0_10] : memref<1x1024xf32, #tpu.memory_space<vmem>>, vector<1x1024xf32>
    %c0_11 = arith.constant 0 : index
    %c0_12 = arith.constant 0 : index
    %6 = vector.load %arg24[%c0_11, %c0_12] : memref<512x128xf32, #tpu.memory_space<vmem>>, vector<512x128xf32>
    %c0_13 = arith.constant 0 : index
    %c0_14 = arith.constant 0 : index
    %7 = vector.load %arg25[%c0_13, %c0_14] : memref<1x128xf32, #tpu.memory_space<vmem>>, vector<1x128xf32>
    %c1_i32 = arith.constant 1 : i32
    %8 = tpu.dynamic_rotate %0 by %c1_i32 dim 1 : vector<16x640xf32>, i32 -> vector<16x640xf32>
    %9 = vector.broadcast %2 : vector<1x640xf32> to vector<16x640xf32>
    %10 = arith.mulf %8, %9 : vector<16x640xf32>
    %c639_i32 = arith.constant 639 : i32
    %11 = tpu.dynamic_rotate %0 by %c639_i32 dim 1 : vector<16x640xf32>, i32 -> vector<16x640xf32>
    %12 = vector.broadcast %3 : vector<1x640xf32> to vector<16x640xf32>
    %13 = arith.mulf %11, %12 : vector<16x640xf32>
    %14 = tpu.concatenate %10, %0, %13 in 0 : vector<16x640xf32>, vector<16x640xf32>, vector<16x640xf32> -> vector<48x640xf32>
    %c0_15 = arith.constant 0 : index
    %c0_16 = arith.constant 0 : index
    %15 = vector.load %arg6[%c0_15, %c0_16] : memref<32x48xf32, #tpu.memory_space<vmem>>, vector<32x48xf32>
    %cst = arith.constant dense<0.000000e+00> : vector<32x640xf32>
    %16 = tpu.matmul %15, %14, %cst {dimension_numbers = #tpu.dot_dimension_numbers<[1], [0], [0], [1], [0, 0, 1, 1], [], []>} : vector<32x48xf32>, vector<48x640xf32>, vector<32x640xf32> -> vector<32x640xf32>
    %c0_17 = arith.constant 0 : index
    %c0_18 = arith.constant 0 : index
    %17 = vector.load %arg7[%c0_17, %c0_18] : memref<32x1xf32, #tpu.memory_space<vmem>>, vector<32x1xf32>
    %18 = vector.broadcast %17 : vector<32x1xf32> to vector<32x640xf32>
    %19 = arith.addf %16, %18 : vector<32x640xf32>
    %c1_i32_19 = arith.constant 1 : i32
    %20 = tpu.dynamic_rotate %19 by %c1_i32_19 dim 1 : vector<32x640xf32>, i32 -> vector<32x640xf32>
    %21 = vector.broadcast %2 : vector<1x640xf32> to vector<32x640xf32>
    %22 = arith.mulf %20, %21 : vector<32x640xf32>
    %c639_i32_20 = arith.constant 639 : i32
    %23 = tpu.dynamic_rotate %19 by %c639_i32_20 dim 1 : vector<32x640xf32>, i32 -> vector<32x640xf32>
    %24 = vector.broadcast %3 : vector<1x640xf32> to vector<32x640xf32>
    %25 = arith.mulf %23, %24 : vector<32x640xf32>
    %26 = tpu.concatenate %22, %19, %25 in 0 : vector<32x640xf32>, vector<32x640xf32>, vector<32x640xf32> -> vector<96x640xf32>
    %c0_21 = arith.constant 0 : index
    %c0_22 = arith.constant 0 : index
    %27 = vector.load %arg8[%c0_21, %c0_22] : memref<64x96xf32, #tpu.memory_space<vmem>>, vector<64x96xf32>
    %cst_23 = arith.constant dense<0.000000e+00> : vector<64x640xf32>
    %28 = tpu.matmul %27, %26, %cst_23 {dimension_numbers = #tpu.dot_dimension_numbers<[1], [0], [0], [1], [0, 0, 1, 1], [], []>} : vector<64x96xf32>, vector<96x640xf32>, vector<64x640xf32> -> vector<64x640xf32>
    %c0_24 = arith.constant 0 : index
    %c0_25 = arith.constant 0 : index
    %29 = vector.load %arg9[%c0_24, %c0_25] : memref<64x1xf32, #tpu.memory_space<vmem>>, vector<64x1xf32>
    %30 = vector.broadcast %29 : vector<64x1xf32> to vector<64x640xf32>
    %31 = arith.addf %28, %30 : vector<64x640xf32>
    %c1_i32_26 = arith.constant 1 : i32
    %32 = tpu.dynamic_rotate %31 by %c1_i32_26 dim 1 : vector<64x640xf32>, i32 -> vector<64x640xf32>
    %33 = vector.broadcast %2 : vector<1x640xf32> to vector<64x640xf32>
    %34 = arith.mulf %32, %33 : vector<64x640xf32>
    %c639_i32_27 = arith.constant 639 : i32
    %35 = tpu.dynamic_rotate %31 by %c639_i32_27 dim 1 : vector<64x640xf32>, i32 -> vector<64x640xf32>
    %36 = vector.broadcast %3 : vector<1x640xf32> to vector<64x640xf32>
    %37 = arith.mulf %35, %36 : vector<64x640xf32>
    %38 = tpu.concatenate %34, %31, %37 in 0 : vector<64x640xf32>, vector<64x640xf32>, vector<64x640xf32> -> vector<192x640xf32>
    %c0_28 = arith.constant 0 : index
    %c0_29 = arith.constant 0 : index
    %39 = vector.load %arg10[%c0_28, %c0_29] : memref<32x192xf32, #tpu.memory_space<vmem>>, vector<32x192xf32>
    %cst_30 = arith.constant dense<0.000000e+00> : vector<32x640xf32>
    %40 = tpu.matmul %39, %38, %cst_30 {dimension_numbers = #tpu.dot_dimension_numbers<[1], [0], [0], [1], [0, 0, 1, 1], [], []>} : vector<32x192xf32>, vector<192x640xf32>, vector<32x640xf32> -> vector<32x640xf32>
    %c0_31 = arith.constant 0 : index
    %c0_32 = arith.constant 0 : index
    %41 = vector.load %arg11[%c0_31, %c0_32] : memref<32x1xf32, #tpu.memory_space<vmem>>, vector<32x1xf32>
    %42 = vector.broadcast %41 : vector<32x1xf32> to vector<32x640xf32>
    %43 = arith.addf %40, %42 : vector<32x640xf32>
    %c1_i32_33 = arith.constant 1 : i32
    %44 = tpu.dynamic_rotate %43 by %c1_i32_33 dim 1 : vector<32x640xf32>, i32 -> vector<32x640xf32>
    %45 = vector.broadcast %2 : vector<1x640xf32> to vector<32x640xf32>
    %46 = arith.mulf %44, %45 : vector<32x640xf32>
    %c639_i32_34 = arith.constant 639 : i32
    %47 = tpu.dynamic_rotate %43 by %c639_i32_34 dim 1 : vector<32x640xf32>, i32 -> vector<32x640xf32>
    %48 = vector.broadcast %3 : vector<1x640xf32> to vector<32x640xf32>
    %49 = arith.mulf %47, %48 : vector<32x640xf32>
    %50 = tpu.concatenate %46, %43, %49 in 0 : vector<32x640xf32>, vector<32x640xf32>, vector<32x640xf32> -> vector<96x640xf32>
    %c0_35 = arith.constant 0 : index
    %c0_36 = arith.constant 0 : index
    %51 = vector.load %arg12[%c0_35, %c0_36] : memref<8x96xf32, #tpu.memory_space<vmem>>, vector<8x96xf32>
    %cst_37 = arith.constant dense<0.000000e+00> : vector<8x640xf32>
    %52 = tpu.matmul %51, %50, %cst_37 {dimension_numbers = #tpu.dot_dimension_numbers<[1], [0], [0], [1], [0, 0, 1, 1], [], []>} : vector<8x96xf32>, vector<96x640xf32>, vector<8x640xf32> -> vector<8x640xf32>
    %c0_38 = arith.constant 0 : index
    %c0_39 = arith.constant 0 : index
    %53 = vector.load %arg13[%c0_38, %c0_39] : memref<8x1xf32, #tpu.memory_space<vmem>>, vector<8x1xf32>
    %54 = vector.broadcast %53 : vector<8x1xf32> to vector<8x640xf32>
    %55 = arith.addf %52, %54 : vector<8x640xf32>
    %c1_i32_40 = arith.constant 1 : i32
    %56 = tpu.dynamic_rotate %1 by %c1_i32_40 dim 1 : vector<16x1024xf32>, i32 -> vector<16x1024xf32>
    %57 = vector.broadcast %4 : vector<1x1024xf32> to vector<16x1024xf32>
    %58 = arith.mulf %56, %57 : vector<16x1024xf32>
    %c1023_i32 = arith.constant 1023 : i32
    %59 = tpu.dynamic_rotate %1 by %c1023_i32 dim 1 : vector<16x1024xf32>, i32 -> vector<16x1024xf32>
    %60 = vector.broadcast %5 : vector<1x1024xf32> to vector<16x1024xf32>
    %61 = arith.mulf %59, %60 : vector<16x1024xf32>
    %62 = tpu.concatenate %58, %1, %61 in 0 : vector<16x1024xf32>, vector<16x1024xf32>, vector<16x1024xf32> -> vector<48x1024xf32>
    %c0_41 = arith.constant 0 : index
    %c0_42 = arith.constant 0 : index
    %63 = vector.load %arg14[%c0_41, %c0_42] : memref<32x48xf32, #tpu.memory_space<vmem>>, vector<32x48xf32>
    %cst_43 = arith.constant dense<0.000000e+00> : vector<32x1024xf32>
    %64 = tpu.matmul %63, %62, %cst_43 {dimension_numbers = #tpu.dot_dimension_numbers<[1], [0], [0], [1], [0, 0, 1, 1], [], []>} : vector<32x48xf32>, vector<48x1024xf32>, vector<32x1024xf32> -> vector<32x1024xf32>
    %c0_44 = arith.constant 0 : index
    %c0_45 = arith.constant 0 : index
    %65 = vector.load %arg15[%c0_44, %c0_45] : memref<32x1xf32, #tpu.memory_space<vmem>>, vector<32x1xf32>
    %66 = vector.broadcast %65 : vector<32x1xf32> to vector<32x1024xf32>
    %67 = arith.addf %64, %66 : vector<32x1024xf32>
    %c1_i32_46 = arith.constant 1 : i32
    %68 = tpu.dynamic_rotate %67 by %c1_i32_46 dim 1 : vector<32x1024xf32>, i32 -> vector<32x1024xf32>
    %69 = vector.broadcast %4 : vector<1x1024xf32> to vector<32x1024xf32>
    %70 = arith.mulf %68, %69 : vector<32x1024xf32>
    %c1023_i32_47 = arith.constant 1023 : i32
    %71 = tpu.dynamic_rotate %67 by %c1023_i32_47 dim 1 : vector<32x1024xf32>, i32 -> vector<32x1024xf32>
    %72 = vector.broadcast %5 : vector<1x1024xf32> to vector<32x1024xf32>
    %73 = arith.mulf %71, %72 : vector<32x1024xf32>
    %74 = tpu.concatenate %70, %67, %73 in 0 : vector<32x1024xf32>, vector<32x1024xf32>, vector<32x1024xf32> -> vector<96x1024xf32>
    %c0_48 = arith.constant 0 : index
    %c0_49 = arith.constant 0 : index
    %75 = vector.load %arg16[%c0_48, %c0_49] : memref<64x96xf32, #tpu.memory_space<vmem>>, vector<64x96xf32>
    %cst_50 = arith.constant dense<0.000000e+00> : vector<64x1024xf32>
    %76 = tpu.matmul %75, %74, %cst_50 {dimension_numbers = #tpu.dot_dimension_numbers<[1], [0], [0], [1], [0, 0, 1, 1], [], []>} : vector<64x96xf32>, vector<96x1024xf32>, vector<64x1024xf32> -> vector<64x1024xf32>
    %c0_51 = arith.constant 0 : index
    %c0_52 = arith.constant 0 : index
    %77 = vector.load %arg17[%c0_51, %c0_52] : memref<64x1xf32, #tpu.memory_space<vmem>>, vector<64x1xf32>
    %78 = vector.broadcast %77 : vector<64x1xf32> to vector<64x1024xf32>
    %79 = arith.addf %76, %78 : vector<64x1024xf32>
    %c1_i32_53 = arith.constant 1 : i32
    %80 = tpu.dynamic_rotate %79 by %c1_i32_53 dim 1 : vector<64x1024xf32>, i32 -> vector<64x1024xf32>
    %81 = vector.broadcast %4 : vector<1x1024xf32> to vector<64x1024xf32>
    %82 = arith.mulf %80, %81 : vector<64x1024xf32>
    %c1023_i32_54 = arith.constant 1023 : i32
    %83 = tpu.dynamic_rotate %79 by %c1023_i32_54 dim 1 : vector<64x1024xf32>, i32 -> vector<64x1024xf32>
    %84 = vector.broadcast %5 : vector<1x1024xf32> to vector<64x1024xf32>
    %85 = arith.mulf %83, %84 : vector<64x1024xf32>
    %86 = tpu.concatenate %82, %79, %85 in 0 : vector<64x1024xf32>, vector<64x1024xf32>, vector<64x1024xf32> -> vector<192x1024xf32>
    %c0_55 = arith.constant 0 : index
    %c0_56 = arith.constant 0 : index
    %87 = vector.load %arg18[%c0_55, %c0_56] : memref<64x192xf32, #tpu.memory_space<vmem>>, vector<64x192xf32>
    %cst_57 = arith.constant dense<0.000000e+00> : vector<64x1024xf32>
    %88 = tpu.matmul %87, %86, %cst_57 {dimension_numbers = #tpu.dot_dimension_numbers<[1], [0], [0], [1], [0, 0, 1, 1], [], []>} : vector<64x192xf32>, vector<192x1024xf32>, vector<64x1024xf32> -> vector<64x1024xf32>
    %c0_58 = arith.constant 0 : index
    %c0_59 = arith.constant 0 : index
    %89 = vector.load %arg19[%c0_58, %c0_59] : memref<64x1xf32, #tpu.memory_space<vmem>>, vector<64x1xf32>
    %90 = vector.broadcast %89 : vector<64x1xf32> to vector<64x1024xf32>
    %91 = arith.addf %88, %90 : vector<64x1024xf32>
    %c1_i32_60 = arith.constant 1 : i32
    %92 = tpu.dynamic_rotate %91 by %c1_i32_60 dim 1 : vector<64x1024xf32>, i32 -> vector<64x1024xf32>
    %93 = vector.broadcast %4 : vector<1x1024xf32> to vector<64x1024xf32>
    %94 = arith.mulf %92, %93 : vector<64x1024xf32>
    %c1023_i32_61 = arith.constant 1023 : i32
    %95 = tpu.dynamic_rotate %91 by %c1023_i32_61 dim 1 : vector<64x1024xf32>, i32 -> vector<64x1024xf32>
    %96 = vector.broadcast %5 : vector<1x1024xf32> to vector<64x1024xf32>
    %97 = arith.mulf %95, %96 : vector<64x1024xf32>
    %98 = tpu.concatenate %94, %91, %97 in 0 : vector<64x1024xf32>, vector<64x1024xf32>, vector<64x1024xf32> -> vector<192x1024xf32>
    %c0_62 = arith.constant 0 : index
    %c0_63 = arith.constant 0 : index
    %99 = vector.load %arg20[%c0_62, %c0_63] : memref<32x192xf32, #tpu.memory_space<vmem>>, vector<32x192xf32>
    %cst_64 = arith.constant dense<0.000000e+00> : vector<32x1024xf32>
    %100 = tpu.matmul %99, %98, %cst_64 {dimension_numbers = #tpu.dot_dimension_numbers<[1], [0], [0], [1], [0, 0, 1, 1], [], []>} : vector<32x192xf32>, vector<192x1024xf32>, vector<32x1024xf32> -> vector<32x1024xf32>
    %c0_65 = arith.constant 0 : index
    %c0_66 = arith.constant 0 : index
    %101 = vector.load %arg21[%c0_65, %c0_66] : memref<32x1xf32, #tpu.memory_space<vmem>>, vector<32x1xf32>
    %102 = vector.broadcast %101 : vector<32x1xf32> to vector<32x1024xf32>
    %103 = arith.addf %100, %102 : vector<32x1024xf32>
    %c1_i32_67 = arith.constant 1 : i32
    %104 = tpu.dynamic_rotate %103 by %c1_i32_67 dim 1 : vector<32x1024xf32>, i32 -> vector<32x1024xf32>
    %105 = vector.broadcast %4 : vector<1x1024xf32> to vector<32x1024xf32>
    %106 = arith.mulf %104, %105 : vector<32x1024xf32>
    %c1023_i32_68 = arith.constant 1023 : i32
    %107 = tpu.dynamic_rotate %103 by %c1023_i32_68 dim 1 : vector<32x1024xf32>, i32 -> vector<32x1024xf32>
    %108 = vector.broadcast %5 : vector<1x1024xf32> to vector<32x1024xf32>
    %109 = arith.mulf %107, %108 : vector<32x1024xf32>
    %110 = tpu.concatenate %106, %103, %109 in 0 : vector<32x1024xf32>, vector<32x1024xf32>, vector<32x1024xf32> -> vector<96x1024xf32>
    %c0_69 = arith.constant 0 : index
    %c0_70 = arith.constant 0 : index
    %111 = vector.load %arg22[%c0_69, %c0_70] : memref<8x96xf32, #tpu.memory_space<vmem>>, vector<8x96xf32>
    %cst_71 = arith.constant dense<0.000000e+00> : vector<8x1024xf32>
    %112 = tpu.matmul %111, %110, %cst_71 {dimension_numbers = #tpu.dot_dimension_numbers<[1], [0], [0], [1], [0, 0, 1, 1], [], []>} : vector<8x96xf32>, vector<96x1024xf32>, vector<8x1024xf32> -> vector<8x1024xf32>
    %c0_72 = arith.constant 0 : index
    %c0_73 = arith.constant 0 : index
    %113 = vector.load %arg23[%c0_72, %c0_73] : memref<8x1xf32, #tpu.memory_space<vmem>>, vector<8x1xf32>
    %114 = vector.broadcast %113 : vector<8x1xf32> to vector<8x1024xf32>
    %115 = arith.addf %112, %114 : vector<8x1024xf32>
    %116 = tpu.iota {dimensions = array<i32: 0>} : vector<8x128xi32>
    %117 = tpu.iota {dimensions = array<i32: 0>} : vector<8x512xi32>
    %cst_74 = arith.constant 0.000000e+00 : f32
    %118 = vector.broadcast %cst_74 : f32 to vector<8x128xf32>
    %119 = vector.extract_strided_slice %55 {offsets = [0, 0], sizes = [8, 128], strides = [1, 1]} : vector<8x640xf32> to vector<8x128xf32>
    %c0_i32 = arith.constant 0 : i32
    %120 = vector.broadcast %c0_i32 : i32 to vector<8x128xi32>
    %121 = arith.cmpi eq, %116, %120 : vector<8x128xi32>
    %122 = arith.select %121, %119, %118 : vector<8x128xi1>, vector<8x128xf32>
    %123 = vector.extract_strided_slice %55 {offsets = [0, 128], sizes = [8, 128], strides = [1, 1]} : vector<8x640xf32> to vector<8x128xf32>
    %c1_i32_75 = arith.constant 1 : i32
    %124 = vector.broadcast %c1_i32_75 : i32 to vector<8x128xi32>
    %125 = arith.cmpi eq, %116, %124 : vector<8x128xi32>
    %126 = arith.select %125, %123, %122 : vector<8x128xi1>, vector<8x128xf32>
    %cst_76 = arith.constant 0.000000e+00 : f32
    %127 = vector.broadcast %cst_76 : f32 to vector<8x128xf32>
    %128 = vector.extract_strided_slice %55 {offsets = [0, 256], sizes = [8, 128], strides = [1, 1]} : vector<8x640xf32> to vector<8x128xf32>
    %c1_i32_77 = arith.constant 1 : i32
    %129 = vector.broadcast %c1_i32_77 : i32 to vector<8x128xi32>
    %130 = arith.cmpi eq, %116, %129 : vector<8x128xi32>
    %131 = arith.select %130, %128, %127 : vector<8x128xi1>, vector<8x128xf32>
    %132 = vector.extract_strided_slice %55 {offsets = [0, 384], sizes = [8, 128], strides = [1, 1]} : vector<8x640xf32> to vector<8x128xf32>
    %c2_i32 = arith.constant 2 : i32
    %133 = vector.broadcast %c2_i32 : i32 to vector<8x128xi32>
    %134 = arith.cmpi eq, %116, %133 : vector<8x128xi32>
    %135 = arith.select %134, %132, %131 : vector<8x128xi1>, vector<8x128xf32>
    %136 = vector.extract_strided_slice %55 {offsets = [0, 512], sizes = [8, 128], strides = [1, 1]} : vector<8x640xf32> to vector<8x128xf32>
    %c3_i32 = arith.constant 3 : i32
    %137 = vector.broadcast %c3_i32 : i32 to vector<8x128xi32>
    %138 = arith.cmpi eq, %116, %137 : vector<8x128xi32>
    %139 = arith.select %138, %136, %135 : vector<8x128xi1>, vector<8x128xf32>
    %cst_78 = arith.constant 0.000000e+00 : f32
    %140 = vector.broadcast %cst_78 : f32 to vector<8x512xf32>
    %141 = vector.extract_strided_slice %115 {offsets = [0, 0], sizes = [8, 512], strides = [1, 1]} : vector<8x1024xf32> to vector<8x512xf32>
    %c0_i32_79 = arith.constant 0 : i32
    %142 = vector.broadcast %c0_i32_79 : i32 to vector<8x512xi32>
    %143 = arith.cmpi eq, %117, %142 : vector<8x512xi32>
    %144 = arith.select %143, %141, %140 : vector<8x512xi1>, vector<8x512xf32>
    %145 = vector.extract_strided_slice %115 {offsets = [0, 512], sizes = [8, 512], strides = [1, 1]} : vector<8x1024xf32> to vector<8x512xf32>
    %c1_i32_80 = arith.constant 1 : i32
    %146 = vector.broadcast %c1_i32_80 : i32 to vector<8x512xi32>
    %147 = arith.cmpi eq, %117, %146 : vector<8x512xi32>
    %148 = arith.select %147, %145, %144 : vector<8x512xi1>, vector<8x512xf32>
    %cst_81 = arith.constant dense<0.000000e+00> : vector<8x128xf32>
    %149 = tpu.matmul %148, %6, %cst_81 {dimension_numbers = #tpu.dot_dimension_numbers<[1], [0], [0], [1], [0, 0, 1, 1], [], []>} : vector<8x512xf32>, vector<512x128xf32>, vector<8x128xf32> -> vector<8x128xf32>
    %150 = vector.broadcast %7 : vector<1x128xf32> to vector<8x128xf32>
    %151 = arith.addf %149, %150 : vector<8x128xf32>
    %cst_82 = arith.constant 9.99999993E-9 : f32
    %152 = arith.mulf %cst_82, %cst_82 : f32
    %153 = arith.mulf %151, %151 : vector<8x128xf32>
    %cst_83 = arith.constant dense<0.000000e+00> : vector<8xf32>
    %154 = vector.multi_reduction <add>, %153, %cst_83 [1] : vector<8x128xf32> to vector<8xf32>
    %155 = vector.shape_cast %154 : vector<8xf32> to vector<8x1xf32>
    %156 = vector.broadcast %152 : f32 to vector<8x1xf32>
    %157 = arith.maximumf %155, %156 : vector<8x1xf32>
    %158 = math.rsqrt %157 : vector<8x1xf32>
    %159 = vector.broadcast %158 : vector<8x1xf32> to vector<8x128xf32>
    %160 = arith.mulf %151, %159 : vector<8x128xf32>
    %161 = arith.mulf %126, %126 : vector<8x128xf32>
    %cst_84 = arith.constant dense<0.000000e+00> : vector<8xf32>
    %162 = vector.multi_reduction <add>, %161, %cst_84 [1] : vector<8x128xf32> to vector<8xf32>
    %163 = vector.shape_cast %162 : vector<8xf32> to vector<8x1xf32>
    %164 = vector.broadcast %152 : f32 to vector<8x1xf32>
    %165 = arith.maximumf %163, %164 : vector<8x1xf32>
    %166 = math.rsqrt %165 : vector<8x1xf32>
    %167 = vector.broadcast %166 : vector<8x1xf32> to vector<8x128xf32>
    %168 = arith.mulf %126, %167 : vector<8x128xf32>
    %169 = arith.mulf %139, %139 : vector<8x128xf32>
    %cst_85 = arith.constant dense<0.000000e+00> : vector<8xf32>
    %170 = vector.multi_reduction <add>, %169, %cst_85 [1] : vector<8x128xf32> to vector<8xf32>
    %171 = vector.shape_cast %170 : vector<8xf32> to vector<8x1xf32>
    %172 = vector.broadcast %152 : f32 to vector<8x1xf32>
    %173 = arith.maximumf %171, %172 : vector<8x1xf32>
    %174 = math.rsqrt %173 : vector<8x1xf32>
    %175 = vector.broadcast %174 : vector<8x1xf32> to vector<8x128xf32>
    %176 = arith.mulf %139, %175 : vector<8x128xf32>
    %177 = arith.mulf %160, %168 : vector<8x128xf32>
    %cst_86 = arith.constant dense<0.000000e+00> : vector<8xf32>
    %178 = vector.multi_reduction <add>, %177, %cst_86 [1] : vector<8x128xf32> to vector<8xf32>
    %179 = vector.shape_cast %178 : vector<8xf32> to vector<8x1xf32>
    %cst_87 = arith.constant dense<0.000000e+00> : vector<8x8xf32>
    %180 = tpu.matmul %160, %176, %cst_87 {dimension_numbers = #tpu.dot_dimension_numbers<[1], [1], [0], [0], [0, 0, 1, 0], [], []>} : vector<8x128xf32>, vector<8x128xf32>, vector<8x8xf32> -> vector<8x8xf32>
    %181 = tpu.iota {dimensions = array<i32: 1>} : vector<8x8xi32>
    %c0_i32_88 = arith.constant 0 : i32
    %182 = vector.broadcast %c0_i32_88 : i32 to vector<8x8xi32>
    %183 = arith.cmpi eq, %181, %182 : vector<8x8xi32>
    %184 = vector.shape_cast %179 : vector<8x1xf32> to vector<8x1xf32>
    %185 = vector.broadcast %184 : vector<8x1xf32> to vector<8x8xf32>
    %186 = arith.select %183, %185, %180 : vector<8x8xi1>, vector<8x8xf32>
    %c0_89 = arith.constant 0 : index
    %c0_90 = arith.constant 0 : index
    %187 = vector.load %arg26[%c0_89, %c0_90] : memref<8x8xf32, #tpu.memory_space<vmem>>, vector<8x8xf32>
    tpu.vector_store %arg26[%c0_89, %c0_90], %186 {strides = array<i32>} : memref<8x8xf32, #tpu.memory_space<vmem>>, vector<8x8xf32>,
    return
  }
}

</mosaic_0001>

<llo_original>
// kernel: va_forward.1
$region0: #{va_forward.1}
  #allocation0 [shape = 'u32[]', space=smem, size = 0x4, offset = 0x4, fixed_abs, tag = 'smem constant byte address 0x4 - core index']
  #allocation1 [shape = 'u32[144,128]{1,0:T(1,128)}', space=vmem, size = 0x12000, scoped, tag = 'internal scratch']
  %s0 = inlined_call_operand.vmem [shape: f32[16,640], index: 0, kind: input, shape index: {}]
  %s1 = inlined_call_operand.vmem [shape: f32[16,1024], index: 1, kind: input, shape index: {}]
  %s2 = inlined_call_operand.vmem [shape: f32[1,640], index: 2, kind: input, shape index: {}]
  %s3 = inlined_call_operand.vmem [shape: f32[1,640], index: 3, kind: input, shape index: {}]
  %s4 = inlined_call_operand.vmem [shape: f32[1,1024], index: 4, kind: input, shape index: {}]
  %s5 = inlined_call_operand.vmem [shape: f32[1,1024], index: 5, kind: input, shape index: {}]
  %s6 = inlined_call_operand.vmem [shape: f32[32,48], index: 6, kind: input, shape index: {}]
  %s7 = inlined_call_operand.vmem [shape: f32[32,1], index: 7, kind: input, shape index: {}]
  %s8 = inlined_call_operand.vmem [shape: f32[64,96], index: 8, kind: input, shape index: {}]
  %s9 = inlined_call_operand.vmem [shape: f32[64,1], index: 9, kind: input, shape index: {}]
  %s10 = inlined_call_operand.vmem [shape: f32[32,192], index: 10, kind: input, shape index: {}]
  %s11 = inlined_call_operand.vmem [shape: f32[32,1], index: 11, kind: input, shape index: {}]
  %s12 = inlined_call_operand.vmem [shape: f32[8,96], index: 12, kind: input, shape index: {}]
  %s13 = inlined_call_operand.vmem [shape: f32[8,1], index: 13, kind: input, shape index: {}]
  %s14 = inlined_call_operand.vmem [shape: f32[32,48], index: 14, kind: input, shape index: {}]
  %s15 = inlined_call_operand.vmem [shape: f32[32,1], index: 15, kind: input, shape index: {}]
  %s16 = inlined_call_operand.vmem [shape: f32[64,96], index: 16, kind: input, shape index: {}]
  %s17 = inlined_call_operand.vmem [shape: f32[64,1], index: 17, kind: input, shape index: {}]
  %s18 = inlined_call_operand.vmem [shape: f32[64,192], index: 18, kind: input, shape index: {}]
  %s19 = inlined_call_operand.vmem [shape: f32[64,1], index: 19, kind: input, shape index: {}]
  %s20 = inlined_call_operand.vmem [shape: f32[32,192], index: 20, kind: input, shape index: {}]
  %s21 = inlined_call_operand.vmem [shape: f32[32,1], index: 21, kind: input, shape index: {}]
  %s22 = inlined_call_operand.vmem [shape: f32[8,96], index: 22, kind: input, shape index: {}]
  %s23 = inlined_call_operand.vmem [shape: f32[8,1], index: 23, kind: input, shape index: {}]
  %s24 = inlined_call_operand.vmem [shape: f32[512,128], index: 24, kind: input, shape index: {}]
  %s25 = inlined_call_operand.vmem [shape: f32[1,128], index: 25, kind: input, shape index: {}]
  %s26 = inlined_call_operand.vmem [shape: f32[8,8], index: 26, kind: output, shape index: {}]
  %s27 = sld [smem:[#allocation0]]
  $region114: #{va_forward.1} parent=0
    _
  %s29 = ssub.s32 1, %s27
  %s30 = scalar_select 0, %s29, %s27
  // Predicated region
  $region2: #{va_forward.1} parent=0 // pred_check
    _
  $region3: #{va_forward.1} parent=0 // pred_check_branch
    %32 = sbr.rel (0) target = $region5
  $region4: #{va_forward.1} parent=0 // pred_region
    _
  $region5: #{va_forward.1} parent=0 // pred_fallthru
    _
  // Predicated region
  $region6: #{va_forward.1} parent=0 // pred_check
    _
  $region7: #{va_forward.1} parent=0 // pred_check_branch
    %34 = sbr.rel (0) target = $region9
  $region8: #{va_forward.1} parent=0 // pred_region
    _
  $region9: #{va_forward.1} parent=0 // pred_fallthru
    _
  // Predicated region
  $region10: #{va_forward.1} parent=0 // pred_check
    _
  $region11: #{va_forward.1} parent=0 // pred_check_branch
    %36 = sbr.rel (0) target = $region13
  $region12: #{va_forward.1} parent=0 // pred_region
    _
  $region13: #{va_forward.1} parent=0 // pred_fallthru
    _
  // Predicated region
  $region14: #{va_forward.1} parent=0 // pred_check
    _
  $region15: #{va_forward.1} parent=0 // pred_check_branch
    %38 = sbr.rel (0) target = $region17
  $region16: #{va_forward.1} parent=0 // pred_region
    _
  $region17: #{va_forward.1} parent=0 // pred_fallthru
    _
  // Predicated region
  $region18: #{va_forward.1} parent=0 // pred_check
    _
  $region19: #{va_forward.1} parent=0 // pred_check_branch
    %40 = sbr.rel (0) target = $region21
  $region20: #{va_forward.1} parent=0 // pred_region
    _
  $region21: #{va_forward.1} parent=0 // pred_fallthru
    _
  // Predicated region
  $region22: #{va_forward.1} parent=0 // pred_check
    _
  $region23: #{va_forward.1} parent=0 // pred_check_branch
    %42 = sbr.rel (0) target = $region25
  $region24: #{va_forward.1} parent=0 // pred_region
    _
  $region25: #{va_forward.1} parent=0 // pred_fallthru
    _
  // Predicated region
  $region26: #{va_forward.1} parent=0 // pred_check
    _
  $region27: #{va_forward.1} parent=0 // pred_check_branch
    %44 = sbr.rel (0) target = $region29
  $region28: #{va_forward.1} parent=0 // pred_region
    _
  $region29: #{va_forward.1} parent=0 // pred_fallthru
    _
  // Predicated region
  $region30: #{va_forward.1} parent=0 // pred_check
    _
  $region31: #{va_forward.1} parent=0 // pred_check_branch
    %46 = sbr.rel (0) target = $region33
  $region32: #{va_forward.1} parent=0 // pred_region
    _
  $region33: #{va_forward.1} parent=0 // pred_fallthru
    _
  // Predicated region
  $region34: #{va_forward.1} parent=0 // pred_check
    _
  $region35: #{va_forward.1} parent=0 // pred_check_branch
    %48 = sbr.rel (0) target = $region37
  $region36: #{va_forward.1} parent=0 // pred_region
    _
  $region37: #{va_forward.1} parent=0 // pred_fallthru
    _
  // Predicated region
  $region38: #{va_forward.1} parent=0 // pred_check
    _
  $region39: #{va_forward.1} parent=0 // pred_check_branch
    %50 = sbr.rel (0) target = $region41
  $region40: #{va_forward.1} parent=0 // pred_region
    _
  $region41: #{va_forward.1} parent=0 // pred_fallthru
    _
  // Predicated region
  $region42: #{va_forward.1} parent=0 // pred_check
    _
  $region43: #{va_forward.1} parent=0 // pred_check_branch
    %52 = sbr.rel (0) target = $region45
  $region44: #{va_forward.1} parent=0 // pred_region
    _
  $region45: #{va_forward.1} parent=0 // pred_fallthru
    _
  // Predicated region
  $region46: #{va_forward.1} parent=0 // pred_check
    _
  $region47: #{va_forward.1} parent=0 // pred_check_branch
    %54 = sbr.rel (0) target = $region49
  $region48: #{va_forward.1} parent=0 // pred_region
    _
  $region49: #{va_forward.1} parent=0 // pred_fallthru
    _
  // Predicated region
  $region50: #{va_forward.1} parent=0 // pred_check
    _
  $region51: #{va_forward.1} parent=0 // pred_check_branch
    %56 = sbr.rel (0) target = $region53
  $region52: #{va_forward.1} parent=0 // pred_region
    _
  $region53: #{va_forward.1} parent=0 // pred_fallthru
    _
  // Predicated region
  $region54: #{va_forward.1} parent=0 // pred_check
    _
  $region55: #{va_forward.1} parent=0 // pred_check_branch
    %58 = sbr.rel (0) target = $region57
  $region56: #{va_forward.1} parent=0 // pred_region
    _
  $region57: #{va_forward.1} parent=0 // pred_fallthru
    _
  // Predicated region
  $region58: #{va_forward.1} parent=0 // pred_check
    _
  $region59: #{va_forward.1} parent=0 // pred_check_branch
    %60 = sbr.rel (0) target = $region61
  $region60: #{va_forward.1} parent=0 // pred_region
    _
  $region61: #{va_forward.1} parent=0 // pred_fallthru
    _
  // Predicated region
  $region62: #{va_forward.1} parent=0 // pred_check
    _
  $region63: #{va_forward.1} parent=0 // pred_check_branch
    %62 = sbr.rel (0) target = $region65
  $region64: #{va_forward.1} parent=0 // pred_region
    _
  $region65: #{va_forward.1} parent=0 // pred_fallthru
    _
  // Predicated region
  $region66: #{va_forward.1} parent=0 // pred_check
    _
  $region67: #{va_forward.1} parent=0 // pred_check_branch
    %64 = sbr.rel (0) target = $region69
  $region68: #{va_forward.1} parent=0 // pred_region
    _
  $region69: #{va_forward.1} parent=0 // pred_fallthru
    _
  // Predicated region
  $region70: #{va_forward.1} parent=0 // pred_check
    _
  $region71: #{va_forward.1} parent=0 // pred_check_branch
    %66 = sbr.rel (0) target = $region73
  $region72: #{va_forward.1} parent=0 // pred_region
    _
  $region73: #{va_forward.1} parent=0 // pred_fallthru
    _
  // Predicated region
  $region74: #{va_forward.1} parent=0 // pred_check
    _
  $region75: #{va_forward.1} parent=0 // pred_check_branch
    %68 = sbr.rel (0) target = $region77
  $region76: #{va_forward.1} parent=0 // pred_region
    _
  $region77: #{va_forward.1} parent=0 // pred_fallthru
    _
  // Predicated region
  $region78: #{va_forward.1} parent=0 // pred_check
    _
  $region79: #{va_forward.1} parent=0 // pred_check_branch
    %70 = sbr.rel (0) target = $region81
  $region80: #{va_forward.1} parent=0 // pred_region
    _
  $region81: #{va_forward.1} parent=0 // pred_fallthru
    _
  // Predicated region
  $region82: #{va_forward.1} parent=0 // pred_check
    _
  $region83: #{va_forward.1} parent=0 // pred_check_branch
    %72 = sbr.rel (0) target = $region85
  $region84: #{va_forward.1} parent=0 // pred_region
    _
  $region85: #{va_forward.1} parent=0 // pred_fallthru
    _
  // Predicated region
  $region86: #{va_forward.1} parent=0 // pred_check
    _
  $region87: #{va_forward.1} parent=0 // pred_check_branch
    %74 = sbr.rel (0) target = $region89
  $region88: #{va_forward.1} parent=0 // pred_region
    _
  $region89: #{va_forward.1} parent=0 // pred_fallthru
    _
  // Predicated region
  $region90: #{va_forward.1} parent=0 // pred_check
    _
  $region91: #{va_forward.1} parent=0 // pred_check_branch
    %76 = sbr.rel (0) target = $region93
  $region92: #{va_forward.1} parent=0 // pred_region
    _
  $region93: #{va_forward.1} parent=0 // pred_fallthru
    _
  // Predicated region
  $region94: #{va_forward.1} parent=0 // pred_check
    _
  $region95: #{va_forward.1} parent=0 // pred_check_branch
    %78 = sbr.rel (0) target = $region97
  $region96: #{va_forward.1} parent=0 // pred_region
    _
  $region97: #{va_forward.1} parent=0 // pred_fallthru
    _
  // Predicated region
  $region98: #{va_forward.1} parent=0 // pred_check
    _
  $region99: #{va_forward.1} parent=0 // pred_check_branch
    %80 = sbr.rel (0) target = $region101
  $region100: #{va_forward.1} parent=0 // pred_region
    _
  $region101: #{va_forward.1} parent=0 // pred_fallthru
    _
  // Predicated region
  $region102: #{va_forward.1} parent=0 // pred_check
    _
  $region103: #{va_forward.1} parent=0 // pred_check_branch
    %82 = sbr.rel (0) target = $region105
  $region104: #{va_forward.1} parent=0 // pred_region
    _
  $region105: #{va_forward.1} parent=0 // pred_fallthru
    _
  %v83 = vld [vmem:[%s0] sm:$0xff]
  %v84 = vld [vmem:[%s0 + $0x8] sm:$0xff]
  %v85 = vld [vmem:[%s0 + $0x10] sm:$0xff]
  %v86 = vld [vmem:[%s0 + $0x18] sm:$0xff]
  %v87 = vld [vmem:[%s0 + $0x20] sm:$0xff]
  %v88 = vld [vmem:[%s0 + $0x28] sm:$0xff]
  %v89 = vld [vmem:[%s0 + $0x30] sm:$0xff]
  %v90 = vld [vmem:[%s0 + $0x38] sm:$0xff]
  %v91 = vld [vmem:[%s0 + $0x40] sm:$0xff]
  %v92 = vld [vmem:[%s0 + $0x48] sm:$0xff]
  %v93 = vld [vmem:[%s1] sm:$0xff]
  %v94 = vld [vmem:[%s1 + $0x8] sm:$0xff]
  %v95 = vld [vmem:[%s1 + $0x10] sm:$0xff]
  %v96 = vld [vmem:[%s1 + $0x18] sm:$0xff]
  %v97 = vld [vmem:[%s1 + $0x20] sm:$0xff]
  %v98 = vld [vmem:[%s1 + $0x28] sm:$0xff]
  %v99 = vld [vmem:[%s1 + $0x30] sm:$0xff]
  %v100 = vld [vmem:[%s1 + $0x38] sm:$0xff]
  %v101 = vld [vmem:[%s1 + $0x40] sm:$0xff]
  %v102 = vld [vmem:[%s1 + $0x48] sm:$0xff]
  %v103 = vld [vmem:[%s1 + $0x50] sm:$0xff]
  %v104 = vld [vmem:[%s1 + $0x58] sm:$0xff]
  %v105 = vld [vmem:[%s1 + $0x60] sm:$0xff]
  %v106 = vld [vmem:[%s1 + $0x68] sm:$0xff]
  %v107 = vld [vmem:[%s1 + $0x70] sm:$0xff]
  %v108 = vld [vmem:[%s1 + $0x78] sm:$0xff]
  %v109 = vld [vmem:[%s2] sm:$0x1f]
  %v110 = vld [vmem:[%s3] sm:$0x1f]
  %v111 = vld [vmem:[%s4] sm:$0xff]
  %v112 = vld [vmem:[%s5] sm:$0xff]
  %v113 = vld [vmem:[%s24] sm:$0xff]
  %v114 = vld [vmem:[%s24 + $0x8] sm:$0xff]
  %v115 = vld [vmem:[%s24 + $0x10] sm:$0xff]
  %v116 = vld [vmem:[%s24 + $0x18] sm:$0xff]
  %v117 = vld [vmem:[%s24 + $0x20] sm:$0xff]
  %v118 = vld [vmem:[%s24 + $0x28] sm:$0xff]
  %v119 = vld [vmem:[%s24 + $0x30] sm:$0xff]
  %v120 = vld [vmem:[%s24 + $0x38] sm:$0xff]
  %v121 = vld [vmem:[%s24 + $0x40] sm:$0xff]
  %v122 = vld [vmem:[%s24 + $0x48] sm:$0xff]
  %v123 = vld [vmem:[%s24 + $0x50] sm:$0xff]
  %v124 = vld [vmem:[%s24 + $0x58] sm:$0xff]
  %v125 = vld [vmem:[%s24 + $0x60] sm:$0xff]
  %v126 = vld [vmem:[%s24 + $0x68] sm:$0xff]
  %v127 = vld [vmem:[%s24 + $0x70] sm:$0xff]
  %v128 = vld [vmem:[%s24 + $0x78] sm:$0xff]
  %v129 = vld [vmem:[%s24 + $0x80] sm:$0xff]
  %v130 = vld [vmem:[%s24 + $0x88] sm:$0xff]
  %v131 = vld [vmem:[%s24 + $0x90] sm:$0xff]
  %v132 = vld [vmem:[%s24 + $0x98] sm:$0xff]
  %v133 = vld [vmem:[%s24 + $0xa0] sm:$0xff]
  %v134 = vld [vmem:[%s24 + $0xa8] sm:$0xff]
  %v135 = vld [vmem:[%s24 + $0xb0] sm:$0xff]
  %v136 = vld [vmem:[%s24 + $0xb8] sm:$0xff]
  %v137 = vld [vmem:[%s24 + $0xc0] sm:$0xff]
  %v138 = vld [vmem:[%s24 + $0xc8] sm:$0xff]
  %v139 = vld [vmem:[%s24 + $0xd0] sm:$0xff]
  %v140 = vld [vmem:[%s24 + $0xd8] sm:$0xff]
  %v141 = vld [vmem:[%s24 + $0xe0] sm:$0xff]
  %v142 = vld [vmem:[%s24 + $0xe8] sm:$0xff]
  %v143 = vld [vmem:[%s24 + $0xf0] sm:$0xff]
  %v144 = vld [vmem:[%s24 + $0xf8] sm:$0xff]
  %v145 = vld [vmem:[%s24 + $0x100] sm:$0xff]
  %v146 = vld [vmem:[%s24 + $0x108] sm:$0xff]
  %v147 = vld [vmem:[%s24 + $0x110] sm:$0xff]
  %v148 = vld [vmem:[%s24 + $0x118] sm:$0xff]
  %v149 = vld [vmem:[%s24 + $0x120] sm:$0xff]
  %v150 = vld [vmem:[%s24 + $0x128] sm:$0xff]
  %v151 = vld [vmem:[%s24 + $0x130] sm:$0xff]
  %v152 = vld [vmem:[%s24 + $0x138] sm:$0xff]
  %v153 = vld [vmem:[%s24 + $0x140] sm:$0xff]
  %v154 = vld [vmem:[%s24 + $0x148] sm:$0xff]
  %v155 = vld [vmem:[%s24 + $0x150] sm:$0xff]
  %v156 = vld [vmem:[%s24 + $0x158] sm:$0xff]
  %v157 = vld [vmem:[%s24 + $0x160] sm:$0xff]
  %v158 = vld [vmem:[%s24 + $0x168] sm:$0xff]
  %v159 = vld [vmem:[%s24 + $0x170] sm:$0xff]
  %v160 = vld [vmem:[%s24 + $0x178] sm:$0xff]
  %v161 = vld [vmem:[%s24 + $0x180] sm:$0xff]
  %v162 = vld [vmem:[%s24 + $0x188] sm:$0xff]
  %v163 = vld [vmem:[%s24 + $0x190] sm:$0xff]
  %v164 = vld [vmem:[%s24 + $0x198] sm:$0xff]
  %v165 = vld [vmem:[%s24 + $0x1a0] sm:$0xff]
  %v166 = vld [vmem:[%s24 + $0x1a8] sm:$0xff]
  %v167 = vld [vmem:[%s24 + $0x1b0] sm:$0xff]
  %v168 = vld [vmem:[%s24 + $0x1b8] sm:$0xff]
  %v169 = vld [vmem:[%s24 + $0x1c0] sm:$0xff]
  %v170 = vld [vmem:[%s24 + $0x1c8] sm:$0xff]
  %v171 = vld [vmem:[%s24 + $0x1d0] sm:$0xff]
  %v172 = vld [vmem:[%s24 + $0x1d8] sm:$0xff]
  %v173 = vld [vmem:[%s24 + $0x1e0] sm:$0xff]
  %v174 = vld [vmem:[%s24 + $0x1e8] sm:$0xff]
  %v175 = vld [vmem:[%s24 + $0x1f0] sm:$0xff]
  %v176 = vld [vmem:[%s24 + $0x1f8] sm:$0xff]
  %v177 = vld [vmem:[%s25] sm:$0x1]
  %178 = vrot.lane.b32.xlu0 %v83, 1
  %v179 = vpop.permute.xlu0 %178
  %180 = vrot.lane.b32.xlu0 %v88, 1
  %v181 = vpop.permute.xlu0 %180
  %182 = vrot.lane.b32.xlu0 %v84, 1
  %v183 = vpop.permute.xlu0 %182
  %184 = vrot.lane.b32.xlu0 %v89, 1
  %v185 = vpop.permute.xlu0 %184
  %186 = vrot.lane.b32.xlu0 %v85, 1
  %v187 = vpop.permute.xlu0 %186
  %188 = vrot.lane.b32.xlu0 %v90, 1
  %v189 = vpop.permute.xlu0 %188
  %190 = vrot.lane.b32.xlu0 %v86, 1
  %v191 = vpop.permute.xlu0 %190
  %192 = vrot.lane.b32.xlu0 %v91, 1
  %v193 = vpop.permute.xlu0 %192
  %194 = vrot.lane.b32.xlu0 %v87, 1
  %v195 = vpop.permute.xlu0 %194
  %196 = vrot.lane.b32.xlu0 %v92, 1
  %v197 = vpop.permute.xlu0 %196
  %v198 = vlaneseq
  %v199 = vand.u32 %v198, 127
  %vm200 = vcmp.lt.s32.totalorder %v199, 1
  %v201 = vsel %vm200, %v191, %v195
  %v202 = vsel %vm200, %v193, %v197
  %v203 = vsel %vm200, %v187, %v191
  %v204 = vsel %vm200, %v189, %v193
  %v205 = vsel %vm200, %v183, %v187
  %v206 = vsel %vm200, %v185, %v189
  %v207 = vsel %vm200, %v179, %v183
  %v208 = vsel %vm200, %v181, %v185
  %v209 = vsel %vm200, %v195, %v179
  %v210 = vsel %vm200, %v197, %v181
  %v212 = vlaneseq
  %v213 = vshrl.u32 %v212, 7
  %v214 = vsub.s32 0, %v213
  %v215 = vrot.slane %v109, %v214
  %v216 = vlaneseq
  %v217 = vshrl.u32 %v216, 7
  %v218 = vsub.s32 1, %v217
  %v219 = vrot.slane %v109, %v218
  %v220 = vlaneseq
  %v221 = vshrl.u32 %v220, 7
  %v222 = vsub.s32 2, %v221
  %v223 = vrot.slane %v109, %v222
  %v224 = vlaneseq
  %v225 = vshrl.u32 %v224, 7
  %v226 = vsub.s32 3, %v225
  %v227 = vrot.slane %v109, %v226
  %v228 = vlaneseq
  %v229 = vshrl.u32 %v228, 7
  %v230 = vsub.s32 4, %v229
  %v231 = vrot.slane %v109, %v230
  %v237 = vmul.f32 %v209, %v215
  %v238 = vmul.f32 %v207, %v219
  %v239 = vmul.f32 %v205, %v223
  %v240 = vmul.f32 %v203, %v227
  %v241 = vmul.f32 %v201, %v231
  %v242 = vmul.f32 %v210, %v215
  %v243 = vmul.f32 %v208, %v219
  %v244 = vmul.f32 %v206, %v223
  %v245 = vmul.f32 %v204, %v227
  %v246 = vmul.f32 %v202, %v231
  %247 = vrot.lane.b32.xlu0 %v83, 127
  %v248 = vpop.permute.xlu0 %247
  %249 = vrot.lane.b32.xlu0 %v88, 127
  %v250 = vpop.permute.xlu0 %249
  %251 = vrot.lane.b32.xlu0 %v84, 127
  %v252 = vpop.permute.xlu0 %251
  %253 = vrot.lane.b32.xlu0 %v89, 127
  %v254 = vpop.permute.xlu0 %253
  %255 = vrot.lane.b32.xlu0 %v85, 127
  %v256 = vpop.permute.xlu0 %255
  %257 = vrot.lane.b32.xlu0 %v90, 127
  %v258 = vpop.permute.xlu0 %257
  %259 = vrot.lane.b32.xlu0 %v86, 127
  %v260 = vpop.permute.xlu0 %259
  %261 = vrot.lane.b32.xlu0 %v91, 127
  %v262 = vpop.permute.xlu0 %261
  %263 = vrot.lane.b32.xlu0 %v87, 127
  %v264 = vpop.permute.xlu0 %263
  %265 = vrot.lane.b32.xlu0 %v92, 127
  %v266 = vpop.permute.xlu0 %265
  %vm267 = vcmp.lt.s32.totalorder %v199, 127
  %v268 = vsel %vm267, %v260, %v264
  %v269 = vsel %vm267, %v262, %v266
  %v270 = vsel %vm267, %v256, %v260
  %v271 = vsel %vm267, %v258, %v262
  %v272 = vsel %vm267, %v252, %v256
  %v273 = vsel %vm267, %v254, %v258
  %v274 = vsel %vm267, %v248, %v252
  %v275 = vsel %vm267, %v250, %v254
  %v276 = vsel %vm267, %v264, %v248
  %v277 = vsel %vm267, %v266, %v250
  %v279 = vlaneseq
  %v280 = vshrl.u32 %v279, 7
  %v281 = vsub.s32 0, %v280
  %v282 = vrot.slane %v110, %v281
  %v283 = vlaneseq
  %v284 = vshrl.u32 %v283, 7
  %v285 = vsub.s32 1, %v284
  %v286 = vrot.slane %v110, %v285
  %v287 = vlaneseq
  %v288 = vshrl.u32 %v287, 7
  %v289 = vsub.s32 2, %v288
  %v290 = vrot.slane %v110, %v289
  %v291 = vlaneseq
  %v292 = vshrl.u32 %v291, 7
  %v293 = vsub.s32 3, %v292
  %v294 = vrot.slane %v110, %v293
  %v295 = vlaneseq
  %v296 = vshrl.u32 %v295, 7
  %v297 = vsub.s32 4, %v296
  %v298 = vrot.slane %v110, %v297
  %v304 = vmul.f32 %v274, %v282
  %v305 = vmul.f32 %v272, %v286
  %v306 = vmul.f32 %v270, %v290
  %v307 = vmul.f32 %v268, %v294
  %v308 = vmul.f32 %v276, %v298
  %v309 = vmul.f32 %v275, %v282
  %v310 = vmul.f32 %v273, %v286
  %v311 = vmul.f32 %v271, %v290
  %v312 = vmul.f32 %v269, %v294
  %v313 = vmul.f32 %v277, %v298
  %v314 = vld [vmem:[%s6] sm:$0xff]
  %v315 = vld [vmem:[%s6 + $0x8] sm:$0xff]
  %v316 = vld [vmem:[%s6 + $0x10] sm:$0xff]
  %v317 = vld [vmem:[%s6 + $0x18] sm:$0xff]
  %v318 = vld [vmem:[%s7] sm:$0xff]
  %v319 = vld [vmem:[%s7 + $0x8] sm:$0xff]
  %v320 = vld [vmem:[%s7 + $0x10] sm:$0xff]
  %v321 = vld [vmem:[%s7 + $0x18] sm:$0xff]
  %323 = vset.pattern.permute.xlu0 0
  %324 = vperm.xlu0 %323, %v318
  %v325 = vpop.permute.xlu0 %324
  %328 = vset.pattern.permute.xlu0 0
  %329 = vperm.xlu0 %328, %v319
  %v330 = vpop.permute.xlu0 %329
  %333 = vset.pattern.permute.xlu0 0
  %334 = vperm.xlu0 %333, %v320
  %v335 = vpop.permute.xlu0 %334
  %338 = vset.pattern.permute.xlu0 0
  %339 = vperm.xlu0 %338, %v321
  %v340 = vpop.permute.xlu0 %339
  %vm342 = vcmask 392192
  %v344 = vsel %vm342, %v314, 0
  %v347 = vsel %vm342, %v315, 0
  %v350 = vsel %vm342, %v316, 0
  %v353 = vsel %vm342, %v317, 0
  %355 = vmatprep.subr.mxu0 %v238
  %356 = vmatpush1.msra.mxu0 %v237
  %357 = vmatprep.subr.mxu0 %v243
  %358 = vmatpush1.msra.mxu0 %v242
  %359 = vmatprep.subr.mxu0 %v84
  %360 = vmatpush1.msra.mxu0 %v83
  %361 = vmatprep.subr.mxu0 %v89
  %362 = vmatpush1.msra.mxu0 %v88
  %363 = vmatprep.subr.mxu0 %v305
  %364 = vmatpush1.msra.mxu0 %v304
  %365 = vmatprep.subr.mxu0 %v310
  %366 = vmatpush1.msra.mxu0 %v309
  %367 = vmatprep.subr.mxu0 0.0
  %368 = vmatpush1.msra.mxu0 0.0
  %369 = vmatprep.subr.mxu0 0.0
  %370 = vmatpush1.msra.mxu0 0.0
  %371 = vmatprep.subr.mxu0 0.0
  %372 = vmatpush1.msra.mxu0 0.0
  %373 = vmatprep.subr.mxu0 0.0
  %374 = vmatpush1.msra.mxu0 0.0
  %375 = vmatprep.subr.mxu0 0.0
  %376 = vmatpush1.msra.mxu0 0.0
  %377 = vmatprep.subr.mxu0 0.0
  %378 = vmatpush1.msra.mxu0 0.0
  %379 = vmatprep.subr.mxu0 0.0
  %380 = vmatpush1.msra.mxu0 0.0
  %381 = vmatprep.subr.mxu0 0.0
  %382 = vmatpush1.msra.mxu0 0.0
  %383 = vmatprep.subr.mxu0 0.0
  %384 = vmatpush1.msra.mxu0 0.0
  %385 = vmatprep.subr.mxu0 0.0
  %386 = vmatpush1.msra.mxu0 0.0
  %387 = vmatprep.subr.mxu0 0.0
  %388 = vmatpush1.msra.mxu0 0.0
  %389 = vmatprep.subr.mxu0 0.0
  %390 = vmatpush1.msra.mxu0 0.0
  %391 = vmatprep.subr.mxu0 0.0
  %392 = vmatpush1.msra.mxu0 0.0
  %393 = vmatprep.subr.mxu0 0.0
  %394 = vmatpush1.msra.mxu0 0.0
  %395 = vmatprep.subr.mxu0 0.0
  %396 = vmatpush1.msra.mxu0 0.0
  %397 = vmatprep.subr.mxu0 0.0
  %398 = vmatpush1.msra.mxu0 0.0
  %399 = vmatprep.subr.mxu0 0.0
  %400 = vmatpush1.msra.mxu0 0.0
  %401 = vmatprep.subr.mxu0 0.0
  %402 = vmatpush1.msra.mxu0 0.0
  %403 = vmatprep.subr.mxu0 0.0
  %404 = vmatpush1.msra.mxu0 0.0
  %405 = vmatprep.subr.mxu0 0.0
  %406 = vmatpush1.msra.mxu0 0.0
  %407 = vmatprep.subr.mxu0 0.0
  %408 = vmatpush1.msra.mxu0 0.0
  %409 = vmatprep.subr.mxu0 0.0
  %410 = vmatpush1.msra.mxu0 0.0
  %411 = vmatprep.subr.mxu0 0.0
  %412 = vmatpush1.msra.mxu0 0.0
  %413 = vmatprep.subr.mxu0 0.0
  %414 = vmatpush1.msra.mxu0 0.0
  %415 = vmatprep.subr.mxu0 0.0
  %416 = vmatpush1.msra.mxu0 0.0
  %417 = vmatprep.subr.mxu0 0.0
  %418 = vmatpush1.msra.mxu0 0.0
  %419 = vmatprep.mubr.f32.mxu0 0.0
  %420 = vmatmul.mubr.f32.gmra.mrb[0].mxu0 %v344
  %v421 = vpop.f32.mrb[0].mxu0
  %v422 = vadd.f32 %v325, %v421
  %v423 = vpop.f32.mrb[0].mxu0
  %v424 = vadd.f32 %v325, %v423
  %425 = vmatprep.mubr.f32.mxu0 0.0
  %426 = vmatmul.mubr.f32.gmra.mrb[0].mxu0 %v347
  %v427 = vpop.f32.mrb[0].mxu0
  %v428 = vadd.f32 %v330, %v427
  %v429 = vpop.f32.mrb[0].mxu0
  %v430 = vadd.f32 %v330, %v429
  %431 = vmatprep.mubr.f32.mxu0 0.0
  %432 = vmatmul.mubr.f32.gmra.mrb[0].mxu0 %v350
  %v433 = vpop.f32.mrb[0].mxu0
  %v434 = vadd.f32 %v335, %v433
  %v435 = vpop.f32.mrb[0].mxu0
  %v436 = vadd.f32 %v335, %v435
  %437 = vmatprep.mubr.f32.mxu0 0.0
  %438 = vmatmul.mubr.f32.gmra.mrb[0].mxu0 %v353
  %v439 = vpop.f32.mrb[0].mxu0
  %v440 = vadd.f32 %v340, %v439
  %v441 = vpop.f32.mrb[0].mxu0
  %v442 = vadd.f32 %v340, %v441
  %443 = vdwg.mxu0
  %444 = vmatprep.subr.mxu0 %v240
  %445 = vmatpush1.msra.mxu0 %v239
  %446 = vmatprep.subr.mxu0 %v245
  %447 = vmatpush1.msra.mxu0 %v244
  %448 = vmatprep.subr.mxu0 %v86
  %449 = vmatpush1.msra.mxu0 %v85
  %450 = vmatprep.subr.mxu0 %v91
  %451 = vmatpush1.msra.mxu0 %v90
  %452 = vmatprep.subr.mxu0 %v307
  %453 = vmatpush1.msra.mxu0 %v306
  %454 = vmatprep.subr.mxu0 %v312
  %455 = vmatpush1.msra.mxu0 %v311
  %456 = vmatprep.subr.mxu0 0.0
  %457 = vmatpush1.msra.mxu0 0.0
  %458 = vmatprep.subr.mxu0 0.0
  %459 = vmatpush1.msra.mxu0 0.0
  %460 = vmatprep.subr.mxu0 0.0
  %461 = vmatpush1.msra.mxu0 0.0
  %462 = vmatprep.subr.mxu0 0.0
  %463 = vmatpush1.msra.mxu0 0.0
  %464 = vmatprep.subr.mxu0 0.0
  %465 = vmatpush1.msra.mxu0 0.0
  %466 = vmatprep.subr.mxu0 0.0
  %467 = vmatpush1.msra.mxu0 0.0
  %468 = vmatprep.subr.mxu0 0.0
  %469 = vmatpush1.msra.mxu0 0.0
  %470 = vmatprep.subr.mxu0 0.0
  %471 = vmatpush1.msra.mxu0 0.0
  %472 = vmatprep.subr.mxu0 0.0
  %473 = vmatpush1.msra.mxu0 0.0
  %474 = vmatprep.subr.mxu0 0.0
  %475 = vmatpush1.msra.mxu0 0.0
  %476 = vmatprep.subr.mxu0 0.0
  %477 = vmatpush1.msra.mxu0 0.0
  %478 = vmatprep.subr.mxu0 0.0
  %479 = vmatpush1.msra.mxu0 0.0
  %480 = vmatprep.subr.mxu0 0.0
  %481 = vmatpush1.msra.mxu0 0.0
  %482 = vmatprep.subr.mxu0 0.0
  %483 = vmatpush1.msra.mxu0 0.0
  %484 = vmatprep.subr.mxu0 0.0
  %485 = vmatpush1.msra.mxu0 0.0
  %486 = vmatprep.subr.mxu0 0.0
  %487 = vmatpush1.msra.mxu0 0.0
  %488 = vmatprep.subr.mxu0 0.0
  %489 = vmatpush1.msra.mxu0 0.0
  %490 = vmatprep.subr.mxu0 0.0
  %491 = vmatpush1.msra.mxu0 0.0
  %492 = vmatprep.subr.mxu0 0.0
  %493 = vmatpush1.msra.mxu0 0.0
  %494 = vmatprep.subr.mxu0 0.0
  %495 = vmatpush1.msra.mxu0 0.0
  %496 = vmatprep.subr.mxu0 0.0
  %497 = vmatpush1.msra.mxu0 0.0
  %498 = vmatprep.subr.mxu0 0.0
  %499 = vmatpush1.msra.mxu0 0.0
  %500 = vmatprep.subr.mxu0 0.0
  %501 = vmatpush1.msra.mxu0 0.0
  %502 = vmatprep.subr.mxu0 0.0
  %503 = vmatpush1.msra.mxu0 0.0
  %504 = vmatprep.subr.mxu0 0.0
  %505 = vmatpush1.msra.mxu0 0.0
  %506 = vmatprep.subr.mxu0 0.0
  %507 = vmatpush1.msra.mxu0 0.0
  %508 = vmatprep.mubr.f32.mxu0 0.0
  %509 = vmatmul.mubr.f32.gmra.mrb[0].mxu0 %v344
  %v510 = vpop.f32.mrb[0].mxu0
  %v511 = vadd.f32 %v325, %v510
  %v512 = vpop.f32.mrb[0].mxu0
  %v513 = vadd.f32 %v325, %v512
  %514 = vmatprep.mubr.f32.mxu0 0.0
  %515 = vmatmul.mubr.f32.gmra.mrb[0].mxu0 %v347
  %v516 = vpop.f32.mrb[0].mxu0
  %v517 = vadd.f32 %v330, %v516
  %v518 = vpop.f32.mrb[0].mxu0
  %v519 = vadd.f32 %v330, %v518
  %520 = vmatprep.mubr.f32.mxu0 0.0
  %521 = vmatmul.mubr.f32.gmra.mrb[0].mxu0 %v350
  %v522 = vpop.f32.mrb[0].mxu0
  %v523 = vadd.f32 %v335, %v522
  %v524 = vpop.f32.mrb[0].mxu0
  %v525 = vadd.f32 %v335, %v524
  %526 = vmatprep.mubr.f32.mxu0 0.0
  %527 = vmatmul.mubr.f32.gmra.mrb[0].mxu0 %v353
  %v528 = vpop.f32.mrb[0].mxu0
  %v529 = vadd.f32 %v340, %v528
  %v530 = vpop.f32.mrb[0].mxu0
  %v531 = vadd.f32 %v340, %v530
  %532 = vdwg.mxu0
  %533 = vmatprep.subr.mxu0 0.0
  %534 = vmatpush1.msra.mxu0 %v241
  %535 = vmatprep.subr.mxu0 0.0
  %536 = vmatpush1.msra.mxu0 %v246
  %537 = vmatprep.subr.mxu0 0.0
  %538 = vmatpush1.msra.mxu0 %v87
  %539 = vmatprep.subr.mxu0 0.0
  %540 = vmatpush1.msra.mxu0 %v92
  %541 = vmatprep.subr.mxu0 0.0
  %542 = vmatpush1.msra.mxu0 %v308
  %543 = vmatprep.subr.mxu0 0.0
  %544 = vmatpush1.msra.mxu0 %v313
  %545 = vmatprep.subr.mxu0 0.0
  %546 = vmatpush1.msra.mxu0 0.0
  %547 = vmatprep.subr.mxu0 0.0
  %548 = vmatpush1.msra.mxu0 0.0
  %549 = vmatprep.subr.mxu0 0.0
  %550 = vmatpush1.msra.mxu0 0.0
  %551 = vmatprep.subr.mxu0 0.0
  %552 = vmatpush1.msra.mxu0 0.0
  %553 = vmatprep.subr.mxu0 0.0
  %554 = vmatpush1.msra.mxu0 0.0
  %555 = vmatprep.subr.mxu0 0.0
  %556 = vmatpush1.msra.mxu0 0.0
  %557 = vmatprep.subr.mxu0 0.0
  %558 = vmatpush1.msra.mxu0 0.0
  %559 = vmatprep.subr.mxu0 0.0
  %560 = vmatpush1.msra.mxu0 0.0
  %561 = vmatprep.subr.mxu0 0.0
  %562 = vmatpush1.msra.mxu0 0.0
  %563 = vmatprep.subr.mxu0 0.0
  %564 = vmatpush1.msra.mxu0 0.0
  %565 = vmatprep.subr.mxu0 0.0
  %566 = vmatpush1.msra.mxu0 0.0
  %567 = vmatprep.subr.mxu0 0.0
  %568 = vmatpush1.msra.mxu0 0.0
  %569 = vmatprep.subr.mxu0 0.0
  %570 = vmatpush1.msra.mxu0 0.0
  %571 = vmatprep.subr.mxu0 0.0
  %572 = vmatpush1.msra.mxu0 0.0
  %573 = vmatprep.subr.mxu0 0.0
  %574 = vmatpush1.msra.mxu0 0.0
  %575 = vmatprep.subr.mxu0 0.0
  %576 = vmatpush1.msra.mxu0 0.0
  %577 = vmatprep.subr.mxu0 0.0
  %578 = vmatpush1.msra.mxu0 0.0
  %579 = vmatprep.subr.mxu0 0.0
  %580 = vmatpush1.msra.mxu0 0.0
  %581 = vmatprep.subr.mxu0 0.0
  %582 = vmatpush1.msra.mxu0 0.0
  %583 = vmatprep.subr.mxu0 0.0
  %584 = vmatpush1.msra.mxu0 0.0
  %585 = vmatprep.subr.mxu0 0.0
  %586 = vmatpush1.msra.mxu0 0.0
  %587 = vmatprep.subr.mxu0 0.0
  %588 = vmatpush1.msra.mxu0 0.0
  %589 = vmatprep.subr.mxu0 0.0
  %590 = vmatpush1.msra.mxu0 0.0
  %591 = vmatprep.subr.mxu0 0.0
  %592 = vmatpush1.msra.mxu0 0.0
  %593 = vmatprep.subr.mxu0 0.0
  %594 = vmatpush1.msra.mxu0 0.0
  %595 = vmatprep.subr.mxu0 0.0
  %596 = vmatpush1.msra.mxu0 0.0
  %597 = vmatprep.mubr.f32.mxu0 0.0
  %598 = vmatmul.mubr.f32.gmra.mrb[0].mxu0 %v344
  %v599 = vpop.f32.mrb[0].mxu0
  %v600 = vadd.f32 %v325, %v599
  %v601 = vpop.f32.mrb[0].mxu0
  %602 = vmatprep.mubr.f32.mxu0 0.0
  %603 = vmatmul.mubr.f32.gmra.mrb[0].mxu0 %v347
  %v604 = vpop.f32.mrb[0].mxu0
  %v605 = vadd.f32 %v330, %v604
  %v606 = vpop.f32.mrb[0].mxu0
  %607 = vmatprep.mubr.f32.mxu0 0.0
  %608 = vmatmul.mubr.f32.gmra.mrb[0].mxu0 %v350
  %v609 = vpop.f32.mrb[0].mxu0
  %v610 = vadd.f32 %v335, %v609
  %v611 = vpop.f32.mrb[0].mxu0
  %612 = vmatprep.mubr.f32.mxu0 0.0
  %613 = vmatmul.mubr.f32.gmra.mrb[0].mxu0 %v353
  %v614 = vpop.f32.mrb[0].mxu0
  %v615 = vadd.f32 %v340, %v614
  %v616 = vpop.f32.mrb[0].mxu0
  %617 = vdwg.mxu0
  %618 = vrot.lane.b32.xlu0 %v422, 1
  %v619 = vpop.permute.xlu0 %618
  %620 = vrot.lane.b32.xlu0 %v428, 1
  %v621 = vpop.permute.xlu0 %620
  %622 = vrot.lane.b32.xlu0 %v434, 1
  %v623 = vpop.permute.xlu0 %622
  %624 = vrot.lane.b32.xlu0 %v440, 1
  %v625 = vpop.permute.xlu0 %624
  %626 = vrot.lane.b32.xlu0 %v424, 1
  %v627 = vpop.permute.xlu0 %626
  %628 = vrot.lane.b32.xlu0 %v430, 1
  %v629 = vpop.permute.xlu0 %628
  %630 = vrot.lane.b32.xlu0 %v436, 1
  %v631 = vpop.permute.xlu0 %630
  %632 = vrot.lane.b32.xlu0 %v442, 1
  %v633 = vpop.permute.xlu0 %632
  %634 = vrot.lane.b32.xlu0 %v511, 1
  %v635 = vpop.permute.xlu0 %634
  %636 = vrot.lane.b32.xlu0 %v517, 1
  %v637 = vpop.permute.xlu0 %636
  %638 = vrot.lane.b32.xlu0 %v523, 1
  %v639 = vpop.permute.xlu0 %638
  %640 = vrot.lane.b32.xlu0 %v529, 1
  %v641 = vpop.permute.xlu0 %640
  %642 = vrot.lane.b32.xlu0 %v513, 1
  %v643 = vpop.permute.xlu0 %642
  %644 = vrot.lane.b32.xlu0 %v519, 1
  %v645 = vpop.permute.xlu0 %644
  %646 = vrot.lane.b32.xlu0 %v525, 1
  %v647 = vpop.permute.xlu0 %646
  %648 = vrot.lane.b32.xlu0 %v531, 1
  %v649 = vpop.permute.xlu0 %648
  %650 = vrot.lane.b32.xlu0 %v600, 1
  %v651 = vpop.permute.xlu0 %650
  %652 = vrot.lane.b32.xlu0 %v605, 1
  %v653 = vpop.permute.xlu0 %652
  %654 = vrot.lane.b32.xlu0 %v610, 1
  %v655 = vpop.permute.xlu0 %654
  %656 = vrot.lane.b32.xlu0 %v615, 1
  %v657 = vpop.permute.xlu0 %656
  %v658 = vsel %vm200, %v643, %v651
  %v659 = vsel %vm200, %v645, %v653
  %v660 = vsel %vm200, %v647, %v655
  %v661 = vsel %vm200, %v649, %v657
  %v662 = vsel %vm200, %v635, %v643
  %v663 = vsel %vm200, %v637, %v645
  %v664 = vsel %vm200, %v639, %v647
  %v665 = vsel %vm200, %v641, %v649
  %v666 = vsel %vm200, %v627, %v635
  %v667 = vsel %vm200, %v629, %v637
  %v668 = vsel %vm200, %v631, %v639
  %v669 = vsel %vm200, %v633, %v641
  %v670 = vsel %vm200, %v619, %v627
  %v671 = vsel %vm200, %v621, %v629
  %v672 = vsel %vm200, %v623, %v631
  %v673 = vsel %vm200, %v625, %v633
  %v674 = vsel %vm200, %v651, %v619
  %v675 = vsel %vm200, %v653, %v621
  %v676 = vsel %vm200, %v655, %v623
  %v677 = vsel %vm200, %v657, %v625
  %v678 = vmul.f32 %v674, %v215
  %v679 = vmul.f32 %v670, %v219
  %v680 = vmul.f32 %v666, %v223
  %v681 = vmul.f32 %v662, %v227
  %v682 = vmul.f32 %v658, %v231
  %v683 = vmul.f32 %v675, %v215
  %v684 = vmul.f32 %v671, %v219
  %v685 = vmul.f32 %v667, %v223
  %v686 = vmul.f32 %v663, %v227
  %v687 = vmul.f32 %v659, %v231
  %v688 = vmul.f32 %v676, %v215
  %v689 = vmul.f32 %v672, %v219
  %v690 = vmul.f32 %v668, %v223
  %v691 = vmul.f32 %v664, %v227
  %v692 = vmul.f32 %v660, %v231
  %v693 = vmul.f32 %v677, %v215
  %v694 = vmul.f32 %v673, %v219
  %v695 = vmul.f32 %v669, %v223
  %v696 = vmul.f32 %v665, %v227
  %v697 = vmul.f32 %v661, %v231
  %698 = vrot.lane.b32.xlu0 %v422, 127
  %v699 = vpop.permute.xlu0 %698
  %700 = vrot.lane.b32.xlu0 %v428, 127
  %v701 = vpop.permute.xlu0 %700
  %702 = vrot.lane.b32.xlu0 %v434, 127
  %v703 = vpop.permute.xlu0 %702
  %704 = vrot.lane.b32.xlu0 %v440, 127
  %v705 = vpop.permute.xlu0 %704
  %706 = vrot.lane.b32.xlu0 %v424, 127
  %v707 = vpop.permute.xlu0 %706
  %708 = vrot.lane.b32.xlu0 %v430, 127
  %v709 = vpop.permute.xlu0 %708
  %710 = vrot.lane.b32.xlu0 %v436, 127
  %v711 = vpop.permute.xlu0 %710
  %712 = vrot.lane.b32.xlu0 %v442, 127
  %v713 = vpop.permute.xlu0 %712
  %714 = vrot.lane.b32.xlu0 %v511, 127
  %v715 = vpop.permute.xlu0 %714
  %716 = vrot.lane.b32.xlu0 %v517, 127
  %v717 = vpop.permute.xlu0 %716
  %718 = vrot.lane.b32.xlu0 %v523, 127
  %v719 = vpop.permute.xlu0 %718
  %720 = vrot.lane.b32.xlu0 %v529, 127
  %v721 = vpop.permute.xlu0 %720
  %722 = vrot.lane.b32.xlu0 %v513, 127
  %v723 = vpop.permute.xlu0 %722
  %724 = vrot.lane.b32.xlu0 %v519, 127
  %v725 = vpop.permute.xlu0 %724
  %726 = vrot.lane.b32.xlu0 %v525, 127
  %v727 = vpop.permute.xlu0 %726
  %728 = vrot.lane.b32.xlu0 %v531, 127
  %v729 = vpop.permute.xlu0 %728
  %730 = vrot.lane.b32.xlu0 %v600, 127
  %v731 = vpop.permute.xlu0 %730
  %732 = vrot.lane.b32.xlu0 %v605, 127
  %v733 = vpop.permute.xlu0 %732
  %734 = vrot.lane.b32.xlu0 %v610, 127
  %v735 = vpop.permute.xlu0 %734
  %736 = vrot.lane.b32.xlu0 %v615, 127
  %v737 = vpop.permute.xlu0 %736
  %v738 = vsel %vm267, %v723, %v731
  %v739 = vsel %vm267, %v725, %v733
  %v740 = vsel %vm267, %v727, %v735
  %v741 = vsel %vm267, %v729, %v737
  %v742 = vsel %vm267, %v715, %v723
  %v743 = vsel %vm267, %v717, %v725
  %v744 = vsel %vm267, %v719, %v727
  %v745 = vsel %vm267, %v721, %v729
  %v746 = vsel %vm267, %v707, %v715
  %v747 = vsel %vm267, %v709, %v717
  %v748 = vsel %vm267, %v711, %v719
  %v749 = vsel %vm267, %v713, %v721
  %v750 = vsel %vm267, %v699, %v707
  %v751 = vsel %vm267, %v701, %v709
  %v752 = vsel %vm267, %v703, %v711
  %v753 = vsel %vm267, %v705, %v713
  %v754 = vsel %vm267, %v731, %v699
  %v755 = vsel %vm267, %v733, %v701
  %v756 = vsel %vm267, %v735, %v703
  %v757 = vsel %vm267, %v737, %v705
  %v758 = vmul.f32 %v750, %v282
  %v759 = vmul.f32 %v746, %v286
  %v760 = vmul.f32 %v742, %v290
  %v761 = vmul.f32 %v738, %v294
  %v762 = vmul.f32 %v754, %v298
  %v763 = vmul.f32 %v751, %v282
  %v764 = vmul.f32 %v747, %v286
  %v765 = vmul.f32 %v743, %v290
  %v766 = vmul.f32 %v739, %v294
  %v767 = vmul.f32 %v755, %v298
  %v768 = vmul.f32 %v752, %v282
  %v769 = vmul.f32 %v748, %v286
  %v770 = vmul.f32 %v744, %v290
  %v771 = vmul.f32 %v740, %v294
  %v772 = vmul.f32 %v756, %v298
  %v773 = vmul.f32 %v753, %v282
  %v774 = vmul.f32 %v749, %v286
  %v775 = vmul.f32 %v745, %v290
  %v776 = vmul.f32 %v741, %v294
  %v777 = vmul.f32 %v757, %v298
  %v778 = vld [vmem:[%s8] sm:$0xff]
  %v779 = vld [vmem:[%s8 + $0x8] sm:$0xff]
  %v780 = vld [vmem:[%s8 + $0x10] sm:$0xff]
  %v781 = vld [vmem:[%s8 + $0x18] sm:$0xff]
  %v782 = vld [vmem:[%s8 + $0x20] sm:$0xff]
  %v783 = vld [vmem:[%s8 + $0x28] sm:$0xff]
  %v784 = vld [vmem:[%s8 + $0x30] sm:$0xff]
  %v785 = vld [vmem:[%s8 + $0x38] sm:$0xff]
  %v786 = vld [vmem:[%s9] sm:$0xff]
  %v787 = vld [vmem:[%s9 + $0x8] sm:$0xff]
  %v788 = vld [vmem:[%s9 + $0x10] sm:$0xff]
  %v789 = vld [vmem:[%s9 + $0x18] sm:$0xff]
  %v790 = vld [vmem:[%s9 + $0x20] sm:$0xff]
  %v791 = vld [vmem:[%s9 + $0x28] sm:$0xff]
  %v792 = vld [vmem:[%s9 + $0x30] sm:$0xff]
  %v793 = vld [vmem:[%s9 + $0x38] sm:$0xff]
  %795 = vset.pattern.permute.xlu0 0
  %796 = vperm.xlu0 %795, %v786
  %v797 = vpop.permute.xlu0 %796
  %800 = vset.pattern.permute.xlu0 0
  %801 = vperm.xlu0 %800, %v787
  %v802 = vpop.permute.xlu0 %801
  %805 = vset.pattern.permute.xlu0 0
  %806 = vperm.xlu0 %805, %v788
  %v807 = vpop.permute.xlu0 %806
  %810 = vset.pattern.permute.xlu0 0
  %811 = vperm.xlu0 %810, %v789
  %v812 = vpop.permute.xlu0 %811
  %815 = vset.pattern.permute.xlu0 0
  %816 = vperm.xlu0 %815, %v790
  %v817 = vpop.permute.xlu0 %816
  %820 = vset.pattern.permute.xlu0 0
  %821 = vperm.xlu0 %820, %v791
  %v822 = vpop.permute.xlu0 %821
  %825 = vset.pattern.permute.xlu0 0
  %826 = vperm.xlu0 %825, %v792
  %v827 = vpop.permute.xlu0 %826
  %830 = vset.pattern.permute.xlu0 0
  %831 = vperm.xlu0 %830, %v793
  %v832 = vpop.permute.xlu0 %831
  %vm834 = vcmask 785408
  %v836 = vsel %vm834, %v778, 0
  %v839 = vsel %vm834, %v779, 0
  %v842 = vsel %vm834, %v780, 0
  %v845 = vsel %vm834, %v781, 0
  %v848 = vsel %vm834, %v782, 0
  %v851 = vsel %vm834, %v783, 0
  %v854 = vsel %vm834, %v784, 0
  %v857 = vsel %vm834, %v785, 0
  %859 = vmatprep.subr.mxu0 %v679
  %860 = vmatpush1.msra.mxu0 %v678
  %861 = vmatprep.subr.mxu0 %v684
  %862 = vmatpush1.msra.mxu0 %v683
  %863 = vmatprep.subr.mxu0 %v689
  %864 = vmatpush1.msra.mxu0 %v688
  %865 = vmatprep.subr.mxu0 %v694
  %866 = vmatpush1.msra.mxu0 %v693
  %867 = vmatprep.subr.mxu0 %v424
  %868 = vmatpush1.msra.mxu0 %v422
  %869 = vmatprep.subr.mxu0 %v430
  %870 = vmatpush1.msra.mxu0 %v428
  %871 = vmatprep.subr.mxu0 %v436
  %872 = vmatpush1.msra.mxu0 %v434
  %873 = vmatprep.subr.mxu0 %v442
  %874 = vmatpush1.msra.mxu0 %v440
  %875 = vmatprep.subr.mxu0 %v759
  %876 = vmatpush1.msra.mxu0 %v758
  %877 = vmatprep.subr.mxu0 %v764
  %878 = vmatpush1.msra.mxu0 %v763
  %879 = vmatprep.subr.mxu0 %v769
  %880 = vmatpush1.msra.mxu0 %v768
  %881 = vmatprep.subr.mxu0 %v774
  %882 = vmatpush1.msra.mxu0 %v773
  %883 = vmatprep.subr.mxu0 0.0
  %884 = vmatpush1.msra.mxu0 0.0
  %885 = vmatprep.subr.mxu0 0.0
  %886 = vmatpush1.msra.mxu0 0.0
  %887 = vmatprep.subr.mxu0 0.0
  %888 = vmatpush1.msra.mxu0 0.0
  %889 = vmatprep.subr.mxu0 0.0
  %890 = vmatpush1.msra.mxu0 0.0
  %891 = vmatprep.subr.mxu0 0.0
  %892 = vmatpush1.msra.mxu0 0.0
  %893 = vmatprep.subr.mxu0 0.0
  %894 = vmatpush1.msra.mxu0 0.0
  %895 = vmatprep.subr.mxu0 0.0
  %896 = vmatpush1.msra.mxu0 0.0
  %897 = vmatprep.subr.mxu0 0.0
  %898 = vmatpush1.msra.mxu0 0.0
  %899 = vmatprep.subr.mxu0 0.0
  %900 = vmatpush1.msra.mxu0 0.0
  %901 = vmatprep.subr.mxu0 0.0
  %902 = vmatpush1.msra.mxu0 0.0
  %903 = vmatprep.subr.mxu0 0.0
  %904 = vmatpush1.msra.mxu0 0.0
  %905 = vmatprep.subr.mxu0 0.0
  %906 = vmatpush1.msra.mxu0 0.0
  %907 = vmatprep.subr.mxu0 0.0
  %908 = vmatpush1.msra.mxu0 0.0
  %909 = vmatprep.subr.mxu0 0.0
  %910 = vmatpush1.msra.mxu0 0.0
  %911 = vmatprep.subr.mxu0 0.0
  %912 = vmatpush1.msra.mxu0 0.0
  %913 = vmatprep.subr.mxu0 0.0
  %914 = vmatpush1.msra.mxu0 0.0
  %915 = vmatprep.subr.mxu0 0.0
  %916 = vmatpush1.msra.mxu0 0.0
  %917 = vmatprep.subr.mxu0 0.0
  %918 = vmatpush1.msra.mxu0 0.0
  %919 = vmatprep.subr.mxu0 0.0
  %920 = vmatpush1.msra.mxu0 0.0
  %921 = vmatprep.subr.mxu0 0.0
  %922 = vmatpush1.msra.mxu0 0.0
  %923 = vmatprep.mubr.f32.mxu0 0.0
  %924 = vmatmul.mubr.f32.gmra.mrb[0].mxu0 %v836
  %v925 = vpop.f32.mrb[0].mxu0
  %v926 = vadd.f32 %v797, %v925
  %v927 = vpop.f32.mrb[0].mxu0
  %v928 = vadd.f32 %v797, %v927
  %929 = vmatprep.mubr.f32.mxu0 0.0
  %930 = vmatmul.mubr.f32.gmra.mrb[0].mxu0 %v839
  %v931 = vpop.f32.mrb[0].mxu0
  %v932 = vadd.f32 %v802, %v931
  %v933 = vpop.f32.mrb[0].mxu0
  %v934 = vadd.f32 %v802, %v933
  %935 = vmatprep.mubr.f32.mxu0 0.0
  %936 = vmatmul.mubr.f32.gmra.mrb[0].mxu0 %v842
  %v937 = vpop.f32.mrb[0].mxu0
  %v938 = vadd.f32 %v807, %v937
  %v939 = vpop.f32.mrb[0].mxu0
  %v940 = vadd.f32 %v807, %v939
  %941 = vmatprep.mubr.f32.mxu0 0.0
  %942 = vmatmul.mubr.f32.gmra.mrb[0].mxu0 %v845
  %v943 = vpop.f32.mrb[0].mxu0
  %v944 = vadd.f32 %v812, %v943
  %v945 = vpop.f32.mrb[0].mxu0
  %v946 = vadd.f32 %v812, %v945
  %947 = vmatprep.mubr.f32.mxu0 0.0
  %948 = vmatmul.mubr.f32.gmra.mrb[0].mxu0 %v848
  %v949 = vpop.f32.mrb[0].mxu0
  %v950 = vadd.f32 %v817, %v949
  %v951 = vpop.f32.mrb[0].mxu0
  %v952 = vadd.f32 %v817, %v951
  %953 = vmatprep.mubr.f32.mxu0 0.0
  %954 = vmatmul.mubr.f32.gmra.mrb[0].mxu0 %v851
  %v955 = vpop.f32.mrb[0].mxu0
  %v956 = vadd.f32 %v822, %v955
  %v957 = vpop.f32.mrb[0].mxu0
  %v958 = vadd.f32 %v822, %v957
  %959 = vmatprep.mubr.f32.mxu0 0.0
  %960 = vmatmul.mubr.f32.gmra.mrb[0].mxu0 %v854
  %v961 = vpop.f32.mrb[0].mxu0
  %v962 = vadd.f32 %v827, %v961
  %v963 = vpop.f32.mrb[0].mxu0
  %v964 = vadd.f32 %v827, %v963
  %965 = vmatprep.mubr.f32.mxu0 0.0
  %966 = vmatmul.mubr.f32.gmra.mrb[0].mxu0 %v857
  %v967 = vpop.f32.mrb[0].mxu0
  %v968 = vadd.f32 %v832, %v967
  %v969 = vpop.f32.mrb[0].mxu0
  %v970 = vadd.f32 %v832, %v969
  %971 = vdwg.mxu0
  %972 = vmatprep.subr.mxu0 %v681
  %973 = vmatpush1.msra.mxu0 %v680
  %974 = vmatprep.subr.mxu0 %v686
  %975 = vmatpush1.msra.mxu0 %v685
  %976 = vmatprep.subr.mxu0 %v691
  %977 = vmatpush1.msra.mxu0 %v690
  %978 = vmatprep.subr.mxu0 %v696
  %979 = vmatpush1.msra.mxu0 %v695
  %980 = vmatprep.subr.mxu0 %v513
  %981 = vmatpush1.msra.mxu0 %v511
  %982 = vmatprep.subr.mxu0 %v519
  %983 = vmatpush1.msra.mxu0 %v517
  %984 = vmatprep.subr.mxu0 %v525
  %985 = vmatpush1.msra.mxu0 %v523
  %986 = vmatprep.subr.mxu0 %v531
  %987 = vmatpush1.msra.mxu0 %v529
  %988 = vmatprep.subr.mxu0 %v761
  %989 = vmatpush1.msra.mxu0 %v760
  %990 = vmatprep.subr.mxu0 %v766
  %991 = vmatpush1.msra.mxu0 %v765
  %992 = vmatprep.subr.mxu0 %v771
  %993 = vmatpush1.msra.mxu0 %v770
  %994 = vmatprep.subr.mxu0 %v776
  %995 = vmatpush1.msra.mxu0 %v775
  %996 = vmatprep.subr.mxu0 0.0
  %997 = vmatpush1.msra.mxu0 0.0
  %998 = vmatprep.subr.mxu0 0.0
  %999 = vmatpush1.msra.mxu0 0.0
  %1000 = vmatprep.subr.mxu0 0.0
  %1001 = vmatpush1.msra.mxu0 0.0
  %1002 = vmatprep.subr.mxu0 0.0
  %1003 = vmatpush1.msra.mxu0 0.0
  %1004 = vmatprep.subr.mxu0 0.0
  %1005 = vmatpush1.msra.mxu0 0.0
  %1006 = vmatprep.subr.mxu0 0.0
  %1007 = vmatpush1.msra.mxu0 0.0
  %1008 = vmatprep.subr.mxu0 0.0
  %1009 = vmatpush1.msra.mxu0 0.0
  %1010 = vmatprep.subr.mxu0 0.0
  %1011 = vmatpush1.msra.mxu0 0.0
  %1012 = vmatprep.subr.mxu0 0.0
  %1013 = vmatpush1.msra.mxu0 0.0
  %1014 = vmatprep.subr.mxu0 0.0
  %1015 = vmatpush1.msra.mxu0 0.0
  %1016 = vmatprep.subr.mxu0 0.0
  %1017 = vmatpush1.msra.mxu0 0.0
  %1018 = vmatprep.subr.mxu0 0.0
  %1019 = vmatpush1.msra.mxu0 0.0
  %1020 = vmatprep.subr.mxu0 0.0
  %1021 = vmatpush1.msra.mxu0 0.0
  %1022 = vmatprep.subr.mxu0 0.0
  %1023 = vmatpush1.msra.mxu0 0.0
  %1024 = vmatprep.subr.mxu0 0.0
  %1025 = vmatpush1.msra.mxu0 0.0
  %1026 = vmatprep.subr.mxu0 0.0
  %1027 = vmatpush1.msra.mxu0 0.0
  %1028 = vmatprep.subr.mxu0 0.0
  %1029 = vmatpush1.msra.mxu0 0.0
  %1030 = vmatprep.subr.mxu0 0.0
  %1031 = vmatpush1.msra.mxu0 0.0
  %1032 = vmatprep.subr.mxu0 0.0
  %1033 = vmatpush1.msra.mxu0 0.0
  %1034 = vmatprep.subr.mxu0 0.0
  %1035 = vmatpush1.msra.mxu0 0.0
  %1036 = vmatprep.mubr.f32.mxu0 0.0
  %1037 = vmatmul.mubr.f32.gmra.mrb[0].mxu0 %v836
  %v1038 = vpop.f32.mrb[0].mxu0
  %v1039 = vadd.f32 %v797, %v1038
  %v1040 = vpop.f32.mrb[0].mxu0
  %v1041 = vadd.f32 %v797, %v1040
  %1042 = vmatprep.mubr.f32.mxu0 0.0
  %1043 = vmatmul.mubr.f32.gmra.mrb[0].mxu0 %v839
  %v1044 = vpop.f32.mrb[0].mxu0
  %v1045 = vadd.f32 %v802, %v1044
  %v1046 = vpop.f32.mrb[0].mxu0
  %v1047 = vadd.f32 %v802, %v1046
  %1048 = vmatprep.mubr.f32.mxu0 0.0
  %1049 = vmatmul.mubr.f32.gmra.mrb[0].mxu0 %v842
  %v1050 = vpop.f32.mrb[0].mxu0
  %v1051 = vadd.f32 %v807, %v1050
  %v1052 = vpop.f32.mrb[0].mxu0
  %v1053 = vadd.f32 %v807, %v1052
  %1054 = vmatprep.mubr.f32.mxu0 0.0
  %1055 = vmatmul.mubr.f32.gmra.mrb[0].mxu0 %v845
  %v1056 = vpop.f32.mrb[0].mxu0
  %v1057 = vadd.f32 %v812, %v1056
  %v1058 = vpop.f32.mrb[0].mxu0
  %v1059 = vadd.f32 %v812, %v1058
  %1060 = vmatprep.mubr.f32.mxu0 0.0
  %1061 = vmatmul.mubr.f32.gmra.mrb[0].mxu0 %v848
  %v1062 = vpop.f32.mrb[0].mxu0
  %v1063 = vadd.f32 %v817, %v1062
  %v1064 = vpop.f32.mrb[0].mxu0
  %v1065 = vadd.f32 %v817, %v1064
  %1066 = vmatprep.mubr.f32.mxu0 0.0
  %1067 = vmatmul.mubr.f32.gmra.mrb[0].mxu0 %v851
  %v1068 = vpop.f32.mrb[0].mxu0
  %v1069 = vadd.f32 %v822, %v1068
  %v1070 = vpop.f32.mrb[0].mxu0
  %v1071 = vadd.f32 %v822, %v1070
  %1072 = vmatprep.mubr.f32.mxu0 0.0
  %1073 = vmatmul.mubr.f32.gmra.mrb[0].mxu0 %v854
  %v1074 = vpop.f32.mrb[0].mxu0
  %v1075 = vadd.f32 %v827, %v1074
  %v1076 = vpop.f32.mrb[0].mxu0
  %v1077 = vadd.f32 %v827, %v1076
  %1078 = vmatprep.mubr.f32.mxu0 0.0
  %1079 = vmatmul.mubr.f32.gmra.mrb[0].mxu0 %v857
  %v1080 = vpop.f32.mrb[0].mxu0
  %v1081 = vadd.f32 %v832, %v1080
  %v1082 = vpop.f32.mrb[0].mxu0
  %v1083 = vadd.f32 %v832, %v1082
  %1084 = vdwg.mxu0
  %1085 = vmatprep.subr.mxu0 0.0
  %1086 = vmatpush1.msra.mxu0 %v682
  %1087 = vmatprep.subr.mxu0 0.0
  %1088 = vmatpush1.msra.mxu0 %v687
  %1089 = vmatprep.subr.mxu0 0.0
  %1090 = vmatpush1.msra.mxu0 %v692
  %1091 = vmatprep.subr.mxu0 0.0
  %1092 = vmatpush1.msra.mxu0 %v697
  %1093 = vmatprep.subr.mxu0 0.0
  %1094 = vmatpush1.msra.mxu0 %v600
  %1095 = vmatprep.subr.mxu0 0.0
  %1096 = vmatpush1.msra.mxu0 %v605
  %1097 = vmatprep.subr.mxu0 0.0
  %1098 = vmatpush1.msra.mxu0 %v610
  %1099 = vmatprep.subr.mxu0 0.0
  %1100 = vmatpush1.msra.mxu0 %v615
  %1101 = vmatprep.subr.mxu0 0.0
  %1102 = vmatpush1.msra.mxu0 %v762
  %1103 = vmatprep.subr.mxu0 0.0
  %1104 = vmatpush1.msra.mxu0 %v767
  %1105 = vmatprep.subr.mxu0 0.0
  %1106 = vmatpush1.msra.mxu0 %v772
  %1107 = vmatprep.subr.mxu0 0.0
  %1108 = vmatpush1.msra.mxu0 %v777
  %1109 = vmatprep.subr.mxu0 0.0
  %1110 = vmatpush1.msra.mxu0 0.0
  %1111 = vmatprep.subr.mxu0 0.0
  %1112 = vmatpush1.msra.mxu0 0.0
  %1113 = vmatprep.subr.mxu0 0.0
  %1114 = vmatpush1.msra.mxu0 0.0
  %1115 = vmatprep.subr.mxu0 0.0
  %1116 = vmatpush1.msra.mxu0 0.0
  %1117 = vmatprep.subr.mxu0 0.0
  %1118 = vmatpush1.msra.mxu0 0.0
  %1119 = vmatprep.subr.mxu0 0.0
  %1120 = vmatpush1.msra.mxu0 0.0
  %1121 = vmatprep.subr.mxu0 0.0
  %1122 = vmatpush1.msra.mxu0 0.0
  %1123 = vmatprep.subr.mxu0 0.0
  %1124 = vmatpush1.msra.mxu0 0.0
  %1125 = vmatprep.subr.mxu0 0.0
  %1126 = vmatpush1.msra.mxu0 0.0
  %1127 = vmatprep.subr.mxu0 0.0
  %1128 = vmatpush1.msra.mxu0 0.0
  %1129 = vmatprep.subr.mxu0 0.0
  %1130 = vmatpush1.msra.mxu0 0.0
  %1131 = vmatprep.subr.mxu0 0.0
  %1132 = vmatpush1.msra.mxu0 0.0
  %1133 = vmatprep.subr.mxu0 0.0
  %1134 = vmatpush1.msra.mxu0 0.0
  %1135 = vmatprep.subr.mxu0 0.0
  %1136 = vmatpush1.msra.mxu0 0.0
  %1137 = vmatprep.subr.mxu0 0.0
  %1138 = vmatpush1.msra.mxu0 0.0
  %1139 = vmatprep.subr.mxu0 0.0
  %1140 = vmatpush1.msra.mxu0 0.0
  %1141 = vmatprep.subr.mxu0 0.0
  %1142 = vmatpush1.msra.mxu0 0.0
  %1143 = vmatprep.subr.mxu0 0.0
  %1144 = vmatpush1.msra.mxu0 0.0
  %1145 = vmatprep.subr.mxu0 0.0
  %1146 = vmatpush1.msra.mxu0 0.0
  %1147 = vmatprep.subr.mxu0 0.0
  %1148 = vmatpush1.msra.mxu0 0.0
  %1149 = vmatprep.mubr.f32.mxu0 0.0
  %1150 = vmatmul.mubr.f32.gmra.mrb[0].mxu0 %v836
  %v1151 = vpop.f32.mrb[0].mxu0
  %v1152 = vadd.f32 %v797, %v1151
  %v1153 = vpop.f32.mrb[0].mxu0
  %1154 = vmatprep.mubr.f32.mxu0 0.0
  %1155 = vmatmul.mubr.f32.gmra.mrb[0].mxu0 %v839
  %v1156 = vpop.f32.mrb[0].mxu0
  %v1157 = vadd.f32 %v802, %v1156
  %v1158 = vpop.f32.mrb[0].mxu0
  %1159 = vmatprep.mubr.f32.mxu0 0.0
  %1160 = vmatmul.mubr.f32.gmra.mrb[0].mxu0 %v842
  %v1161 = vpop.f32.mrb[0].mxu0
  %v1162 = vadd.f32 %v807, %v1161
  %v1163 = vpop.f32.mrb[0].mxu0
  %1164 = vmatprep.mubr.f32.mxu0 0.0
  %1165 = vmatmul.mubr.f32.gmra.mrb[0].mxu0 %v845
  %v1166 = vpop.f32.mrb[0].mxu0
  %v1167 = vadd.f32 %v812, %v1166
  %v1168 = vpop.f32.mrb[0].mxu0
  %1169 = vmatprep.mubr.f32.mxu0 0.0
  %1170 = vmatmul.mubr.f32.gmra.mrb[0].mxu0 %v848
  %v1171 = vpop.f32.mrb[0].mxu0
  %v1172 = vadd.f32 %v817, %v1171
  %v1173 = vpop.f32.mrb[0].mxu0
  %1174 = vmatprep.mubr.f32.mxu0 0.0
  %1175 = vmatmul.mubr.f32.gmra.mrb[0].mxu0 %v851
  %v1176 = vpop.f32.mrb[0].mxu0
  %v1177 = vadd.f32 %v822, %v1176
  %v1178 = vpop.f32.mrb[0].mxu0
  %1179 = vmatprep.mubr.f32.mxu0 0.0
  %1180 = vmatmul.mubr.f32.gmra.mrb[0].mxu0 %v854
  %v1181 = vpop.f32.mrb[0].mxu0
  %v1182 = vadd.f32 %v827, %v1181
  %v1183 = vpop.f32.mrb[0].mxu0
  %1184 = vmatprep.mubr.f32.mxu0 0.0
  %1185 = vmatmul.mubr.f32.gmra.mrb[0].mxu0 %v857
  %v1186 = vpop.f32.mrb[0].mxu0
  %v1187 = vadd.f32 %v832, %v1186
  %v1188 = vpop.f32.mrb[0].mxu0
  %1189 = vdwg.mxu0
  %1190 = vrot.lane.b32.xlu0 %v926, 1
  %v1191 = vpop.permute.xlu0 %1190
  %1192 = vrot.lane.b32.xlu0 %v932, 1
  %v1193 = vpop.permute.xlu0 %1192
  %1194 = vrot.lane.b32.xlu0 %v938, 1
  %v1195 = vpop.permute.xlu0 %1194
  %1196 = vrot.lane.b32.xlu0 %v944, 1
  %v1197 = vpop.permute.xlu0 %1196
  %1198 = vrot.lane.b32.xlu0 %v950, 1
  %v1199 = vpop.permute.xlu0 %1198
  %1200 = vrot.lane.b32.xlu0 %v956, 1
  %v1201 = vpop.permute.xlu0 %1200
  %1202 = vrot.lane.b32.xlu0 %v962, 1
  %v1203 = vpop.permute.xlu0 %1202
  %1204 = vrot.lane.b32.xlu0 %v968, 1
  %v1205 = vpop.permute.xlu0 %1204
  %1206 = vrot.lane.b32.xlu0 %v928, 1
  %v1207 = vpop.permute.xlu0 %1206
  %1208 = vrot.lane.b32.xlu0 %v934, 1
  %v1209 = vpop.permute.xlu0 %1208
  %1210 = vrot.lane.b32.xlu0 %v940, 1
  %v1211 = vpop.permute.xlu0 %1210
  %1212 = vrot.lane.b32.xlu0 %v946, 1
  %v1213 = vpop.permute.xlu0 %1212
  %1214 = vrot.lane.b32.xlu0 %v952, 1
  %v1215 = vpop.permute.xlu0 %1214
  %1216 = vrot.lane.b32.xlu0 %v958, 1
  %v1217 = vpop.permute.xlu0 %1216
  %1218 = vrot.lane.b32.xlu0 %v964, 1
  %v1219 = vpop.permute.xlu0 %1218
  %1220 = vrot.lane.b32.xlu0 %v970, 1
  %v1221 = vpop.permute.xlu0 %1220
  %1222 = vrot.lane.b32.xlu0 %v1039, 1
  %v1223 = vpop.permute.xlu0 %1222
  %1224 = vrot.lane.b32.xlu0 %v1045, 1
  %v1225 = vpop.permute.xlu0 %1224
  %1226 = vrot.lane.b32.xlu0 %v1051, 1
  %v1227 = vpop.permute.xlu0 %1226
  %1228 = vrot.lane.b32.xlu0 %v1057, 1
  %v1229 = vpop.permute.xlu0 %1228
  %1230 = vrot.lane.b32.xlu0 %v1063, 1
  %v1231 = vpop.permute.xlu0 %1230
  %1232 = vrot.lane.b32.xlu0 %v1069, 1
  %v1233 = vpop.permute.xlu0 %1232
  %1234 = vrot.lane.b32.xlu0 %v1075, 1
  %v1235 = vpop.permute.xlu0 %1234
  %1236 = vrot.lane.b32.xlu0 %v1081, 1
  %v1237 = vpop.permute.xlu0 %1236
  %1238 = vrot.lane.b32.xlu0 %v1041, 1
  %v1239 = vpop.permute.xlu0 %1238
  %1240 = vrot.lane.b32.xlu0 %v1047, 1
  %v1241 = vpop.permute.xlu0 %1240
  %1242 = vrot.lane.b32.xlu0 %v1053, 1
  %v1243 = vpop.permute.xlu0 %1242
  %1244 = vrot.lane.b32.xlu0 %v1059, 1
  %v1245 = vpop.permute.xlu0 %1244
  %1246 = vrot.lane.b32.xlu0 %v1065, 1
  %v1247 = vpop.permute.xlu0 %1246
  %1248 = vrot.lane.b32.xlu0 %v1071, 1
  %v1249 = vpop.permute.xlu0 %1248
  %1250 = vrot.lane.b32.xlu0 %v1077, 1
  %v1251 = vpop.permute.xlu0 %1250
  %1252 = vrot.lane.b32.xlu0 %v1083, 1
  %v1253 = vpop.permute.xlu0 %1252
  %1254 = vrot.lane.b32.xlu0 %v1152, 1
  %v1255 = vpop.permute.xlu0 %1254
  %1256 = vrot.lane.b32.xlu0 %v1157, 1
  %v1257 = vpop.permute.xlu0 %1256
  %1258 = vrot.lane.b32.xlu0 %v1162, 1
  %v1259 = vpop.permute.xlu0 %1258
  %1260 = vrot.lane.b32.xlu0 %v1167, 1
  %v1261 = vpop.permute.xlu0 %1260
  %1262 = vrot.lane.b32.xlu0 %v1172, 1
  %v1263 = vpop.permute.xlu0 %1262
  %1264 = vrot.lane.b32.xlu0 %v1177, 1
  %v1265 = vpop.permute.xlu0 %1264
  %1266 = vrot.lane.b32.xlu0 %v1182, 1
  %v1267 = vpop.permute.xlu0 %1266
  %1268 = vrot.lane.b32.xlu0 %v1187, 1
  %v1269 = vpop.permute.xlu0 %1268
  %v1270 = vsel %vm200, %v1239, %v1255
  %v1271 = vsel %vm200, %v1241, %v1257
  %v1272 = vsel %vm200, %v1243, %v1259
  %v1273 = vsel %vm200, %v1245, %v1261
  %v1274 = vsel %vm200, %v1247, %v1263
  %v1275 = vsel %vm200, %v1249, %v1265
  %v1276 = vsel %vm200, %v1251, %v1267
  %v1277 = vsel %vm200, %v1253, %v1269
  %v1278 = vsel %vm200, %v1223, %v1239
  %v1279 = vsel %vm200, %v1225, %v1241
  %v1280 = vsel %vm200, %v1227, %v1243
  %v1281 = vsel %vm200, %v1229, %v1245
  %v1282 = vsel %vm200, %v1231, %v1247
  %v1283 = vsel %vm200, %v1233, %v1249
  %v1284 = vsel %vm200, %v1235, %v1251
  %v1285 = vsel %vm200, %v1237, %v1253
  %v1286 = vsel %vm200, %v1207, %v1223
  %v1287 = vsel %vm200, %v1209, %v1225
  %v1288 = vsel %vm200, %v1211, %v1227
  %v1289 = vsel %vm200, %v1213, %v1229
  %v1290 = vsel %vm200, %v1215, %v1231
  %v1291 = vsel %vm200, %v1217, %v1233
  %v1292 = vsel %vm200, %v1219, %v1235
  %v1293 = vsel %vm200, %v1221, %v1237
  %v1294 = vsel %vm200, %v1191, %v1207
  %v1295 = vsel %vm200, %v1193, %v1209
  %v1296 = vsel %vm200, %v1195, %v1211
  %v1297 = vsel %vm200, %v1197, %v1213
  %v1298 = vsel %vm200, %v1199, %v1215
  %v1299 = vsel %vm200, %v1201, %v1217
  %v1300 = vsel %vm200, %v1203, %v1219
  %v1301 = vsel %vm200, %v1205, %v1221
  %v1302 = vsel %vm200, %v1255, %v1191
  %v1303 = vsel %vm200, %v1257, %v1193
  %v1304 = vsel %vm200, %v1259, %v1195
  %v1305 = vsel %vm200, %v1261, %v1197
  %v1306 = vsel %vm200, %v1263, %v1199
  %v1307 = vsel %vm200, %v1265, %v1201
  %v1308 = vsel %vm200, %v1267, %v1203
  %v1309 = vsel %vm200, %v1269, %v1205
  %v1310 = vmul.f32 %v1302, %v215
  %v1311 = vmul.f32 %v1294, %v219
  %v1312 = vmul.f32 %v1286, %v223
  %v1313 = vmul.f32 %v1278, %v227
  %v1314 = vmul.f32 %v1270, %v231
  %v1315 = vmul.f32 %v1303, %v215
  %v1316 = vmul.f32 %v1295, %v219
  %v1317 = vmul.f32 %v1287, %v223
  %v1318 = vmul.f32 %v1279, %v227
  %v1319 = vmul.f32 %v1271, %v231
  %v1320 = vmul.f32 %v1304, %v215
  %v1321 = vmul.f32 %v1296, %v219
  %v1322 = vmul.f32 %v1288, %v223
  %v1323 = vmul.f32 %v1280, %v227
  %v1324 = vmul.f32 %v1272, %v231
  %v1325 = vmul.f32 %v1305, %v215
  %v1326 = vmul.f32 %v1297, %v219
  %v1327 = vmul.f32 %v1289, %v223
  %v1328 = vmul.f32 %v1281, %v227
  %v1329 = vmul.f32 %v1273, %v231
  %v1330 = vmul.f32 %v1306, %v215
  %v1331 = vmul.f32 %v1298, %v219
  %v1332 = vmul.f32 %v1290, %v223
  %v1333 = vmul.f32 %v1282, %v227
  %v1334 = vmul.f32 %v1274, %v231
  %v1335 = vmul.f32 %v1307, %v215
  %v1336 = vmul.f32 %v1299, %v219
  %v1337 = vmul.f32 %v1291, %v223
  %v1338 = vmul.f32 %v1283, %v227
  %v1339 = vmul.f32 %v1275, %v231
  %v1340 = vmul.f32 %v1308, %v215
  %v1341 = vmul.f32 %v1300, %v219
  %v1342 = vmul.f32 %v1292, %v223
  %v1343 = vmul.f32 %v1284, %v227
  %v1344 = vmul.f32 %v1276, %v231
  %v1345 = vmul.f32 %v1309, %v215
  %v1346 = vmul.f32 %v1301, %v219
  %v1347 = vmul.f32 %v1293, %v223
  %v1348 = vmul.f32 %v1285, %v227
  %v1349 = vmul.f32 %v1277, %v231
  %1350 = vrot.lane.b32.xlu0 %v926, 127
  %v1351 = vpop.permute.xlu0 %1350
  %1352 = vrot.lane.b32.xlu0 %v932, 127
  %v1353 = vpop.permute.xlu0 %1352
  %1354 = vrot.lane.b32.xlu0 %v938, 127
  %v1355 = vpop.permute.xlu0 %1354
  %1356 = vrot.lane.b32.xlu0 %v944, 127
  %v1357 = vpop.permute.xlu0 %1356
  %1358 = vrot.lane.b32.xlu0 %v950, 127
  %v1359 = vpop.permute.xlu0 %1358
  %1360 = vrot.lane.b32.xlu0 %v956, 127
  %v1361 = vpop.permute.xlu0 %1360
  %1362 = vrot.lane.b32.xlu0 %v962, 127
  %v1363 = vpop.permute.xlu0 %1362
  %1364 = vrot.lane.b32.xlu0 %v968, 127
  %v1365 = vpop.permute.xlu0 %1364
  %1366 = vrot.lane.b32.xlu0 %v928, 127
  %v1367 = vpop.permute.xlu0 %1366
  %1368 = vrot.lane.b32.xlu0 %v934, 127
  %v1369 = vpop.permute.xlu0 %1368
  %1370 = vrot.lane.b32.xlu0 %v940, 127
  %v1371 = vpop.permute.xlu0 %1370
  %1372 = vrot.lane.b32.xlu0 %v946, 127
  %v1373 = vpop.permute.xlu0 %1372
  %1374 = vrot.lane.b32.xlu0 %v952, 127
  %v1375 = vpop.permute.xlu0 %1374
  %1376 = vrot.lane.b32.xlu0 %v958, 127
  %v1377 = vpop.permute.xlu0 %1376
  %1378 = vrot.lane.b32.xlu0 %v964, 127
  %v1379 = vpop.permute.xlu0 %1378
  %1380 = vrot.lane.b32.xlu0 %v970, 127
  %v1381 = vpop.permute.xlu0 %1380
  %1382 = vrot.lane.b32.xlu0 %v1039, 127
  %v1383 = vpop.permute.xlu0 %1382
  %1384 = vrot.lane.b32.xlu0 %v1045, 127
  %v1385 = vpop.permute.xlu0 %1384
  %1386 = vrot.lane.b32.xlu0 %v1051, 127
  %v1387 = vpop.permute.xlu0 %1386
  %1388 = vrot.lane.b32.xlu0 %v1057, 127
  %v1389 = vpop.permute.xlu0 %1388
  %1390 = vrot.lane.b32.xlu0 %v1063, 127
  %v1391 = vpop.permute.xlu0 %1390
  %1392 = vrot.lane.b32.xlu0 %v1069, 127
  %v1393 = vpop.permute.xlu0 %1392
  %1394 = vrot.lane.b32.xlu0 %v1075, 127
  %v1395 = vpop.permute.xlu0 %1394
  %1396 = vrot.lane.b32.xlu0 %v1081, 127
  %v1397 = vpop.permute.xlu0 %1396
  %1398 = vrot.lane.b32.xlu0 %v1041, 127
  %v1399 = vpop.permute.xlu0 %1398
  %1400 = vrot.lane.b32.xlu0 %v1047, 127
  %v1401 = vpop.permute.xlu0 %1400
  %1402 = vrot.lane.b32.xlu0 %v1053, 127
  %v1403 = vpop.permute.xlu0 %1402
  %1404 = vrot.lane.b32.xlu0 %v1059, 127
  %v1405 = vpop.permute.xlu0 %1404
  %1406 = vrot.lane.b32.xlu0 %v1065, 127
  %v1407 = vpop.permute.xlu0 %1406
  %1408 = vrot.lane.b32.xlu0 %v1071, 127
  %v1409 = vpop.permute.xlu0 %1408
  %1410 = vrot.lane.b32.xlu0 %v1077, 127
  %v1411 = vpop.permute.xlu0 %1410
  %1412 = vrot.lane.b32.xlu0 %v1083, 127
  %v1413 = vpop.permute.xlu0 %1412
  %1414 = vrot.lane.b32.xlu0 %v1152, 127
  %v1415 = vpop.permute.xlu0 %1414
  %1416 = vrot.lane.b32.xlu0 %v1157, 127
  %v1417 = vpop.permute.xlu0 %1416
  %1418 = vrot.lane.b32.xlu0 %v1162, 127
  %v1419 = vpop.permute.xlu0 %1418
  %1420 = vrot.lane.b32.xlu0 %v1167, 127
  %v1421 = vpop.permute.xlu0 %1420
  %1422 = vrot.lane.b32.xlu0 %v1172, 127
  %v1423 = vpop.permute.xlu0 %1422
  %1424 = vrot.lane.b32.xlu0 %v1177, 127
  %v1425 = vpop.permute.xlu0 %1424
  %1426 = vrot.lane.b32.xlu0 %v1182, 127
  %v1427 = vpop.permute.xlu0 %1426
  %1428 = vrot.lane.b32.xlu0 %v1187, 127
  %v1429 = vpop.permute.xlu0 %1428
  %v1430 = vsel %vm267, %v1399, %v1415
  %v1431 = vsel %vm267, %v1401, %v1417
  %v1432 = vsel %vm267, %v1403, %v1419
  %v1433 = vsel %vm267, %v1405, %v1421
  %v1434 = vsel %vm267, %v1407, %v1423
  %v1435 = vsel %vm267, %v1409, %v1425
  %v1436 = vsel %vm267, %v1411, %v1427
  %v1437 = vsel %vm267, %v1413, %v1429
  %v1438 = vsel %vm267, %v1383, %v1399
  %v1439 = vsel %vm267, %v1385, %v1401
  %v1440 = vsel %vm267, %v1387, %v1403
  %v1441 = vsel %vm267, %v1389, %v1405
  %v1442 = vsel %vm267, %v1391, %v1407
  %v1443 = vsel %vm267, %v1393, %v1409
  %v1444 = vsel %vm267, %v1395, %v1411
  %v1445 = vsel %vm267, %v1397, %v1413
  %v1446 = vsel %vm267, %v1367, %v1383
  %v1447 = vsel %vm267, %v1369, %v1385
  %v1448 = vsel %vm267, %v1371, %v1387
  %v1449 = vsel %vm267, %v1373, %v1389
  %v1450 = vsel %vm267, %v1375, %v1391
  %v1451 = vsel %vm267, %v1377, %v1393
  %v1452 = vsel %vm267, %v1379, %v1395
  %v1453 = vsel %vm267, %v1381, %v1397
  %v1454 = vsel %vm267, %v1351, %v1367
  %v1455 = vsel %vm267, %v1353, %v1369
  %v1456 = vsel %vm267, %v1355, %v1371
  %v1457 = vsel %vm267, %v1357, %v1373
  %v1458 = vsel %vm267, %v1359, %v1375
  %v1459 = vsel %vm267, %v1361, %v1377
  %v1460 = vsel %vm267, %v1363, %v1379
  %v1461 = vsel %vm267, %v1365, %v1381
  %v1462 = vsel %vm267, %v1415, %v1351
  %v1463 = vsel %vm267, %v1417, %v1353
  %v1464 = vsel %vm267, %v1419, %v1355
  %v1465 = vsel %vm267, %v1421, %v1357
  %v1466 = vsel %vm267, %v1423, %v1359
  %v1467 = vsel %vm267, %v1425, %v1361
  %v1468 = vsel %vm267, %v1427, %v1363
  %v1469 = vsel %vm267, %v1429, %v1365
  %v1470 = vmul.f32 %v1454, %v282
  %v1471 = vmul.f32 %v1446, %v286
  %v1472 = vmul.f32 %v1438, %v290
  %v1473 = vmul.f32 %v1430, %v294
  %v1474 = vmul.f32 %v1462, %v298
  %v1475 = vmul.f32 %v1455, %v282
  %v1476 = vmul.f32 %v1447, %v286
  %v1477 = vmul.f32 %v1439, %v290
  %v1478 = vmul.f32 %v1431, %v294
  %v1479 = vmul.f32 %v1463, %v298
  %v1480 = vmul.f32 %v1456, %v282
  %v1481 = vmul.f32 %v1448, %v286
  %v1482 = vmul.f32 %v1440, %v290
  %v1483 = vmul.f32 %v1432, %v294
  %v1484 = vmul.f32 %v1464, %v298
  %v1485 = vmul.f32 %v1457, %v282
  %v1486 = vmul.f32 %v1449, %v286
  %v1487 = vmul.f32 %v1441, %v290
  %v1488 = vmul.f32 %v1433, %v294
  %v1489 = vmul.f32 %v1465, %v298
  %v1490 = vmul.f32 %v1458, %v282
  %v1491 = vmul.f32 %v1450, %v286
  %v1492 = vmul.f32 %v1442, %v290
  %v1493 = vmul.f32 %v1434, %v294
  %v1494 = vmul.f32 %v1466, %v298
  %v1495 = vmul.f32 %v1459, %v282
  %v1496 = vmul.f32 %v1451, %v286
  %v1497 = vmul.f32 %v1443, %v290
  %v1498 = vmul.f32 %v1435, %v294
  %v1499 = vmul.f32 %v1467, %v298
  %v1500 = vmul.f32 %v1460, %v282
  %v1501 = vmul.f32 %v1452, %v286
  %v1502 = vmul.f32 %v1444, %v290
  %v1503 = vmul.f32 %v1436, %v294
  %v1504 = vmul.f32 %v1468, %v298
  %v1505 = vmul.f32 %v1461, %v282
  %v1506 = vmul.f32 %v1453, %v286
  %v1507 = vmul.f32 %v1445, %v290
  %v1508 = vmul.f32 %v1437, %v294
  %v1509 = vmul.f32 %v1469, %v298
  %v1510 = vld [vmem:[%s10] sm:$0xff]
  %v1511 = vld [vmem:[%s10 + $0x8] sm:$0xff]
  %v1512 = vld [vmem:[%s10 + $0x10] sm:$0xff]
  %v1513 = vld [vmem:[%s10 + $0x18] sm:$0xff]
  %v1514 = vld [vmem:[%s10 + $0x20] sm:$0xff]
  %v1515 = vld [vmem:[%s10 + $0x28] sm:$0xff]
  %v1516 = vld [vmem:[%s10 + $0x30] sm:$0xff]
  %v1517 = vld [vmem:[%s10 + $0x38] sm:$0xff]
  %v1518 = vld [vmem:[%s11] sm:$0xff]
  %v1519 = vld [vmem:[%s11 + $0x8] sm:$0xff]
  %v1520 = vld [vmem:[%s11 + $0x10] sm:$0xff]
  %v1521 = vld [vmem:[%s11 + $0x18] sm:$0xff]
  %1523 = vset.pattern.permute.xlu0 0
  %1524 = vperm.xlu0 %1523, %v1518
  %v1525 = vpop.permute.xlu0 %1524
  %1528 = vset.pattern.permute.xlu0 0
  %1529 = vperm.xlu0 %1528, %v1519
  %v1530 = vpop.permute.xlu0 %1529
  %1533 = vset.pattern.permute.xlu0 0
  %1534 = vperm.xlu0 %1533, %v1520
  %v1535 = vpop.permute.xlu0 %1534
  %1538 = vset.pattern.permute.xlu0 0
  %1539 = vperm.xlu0 %1538, %v1521
  %v1540 = vpop.permute.xlu0 %1539
  %vm1542 = vcmask 523264
  %v1544 = vsel %vm1542, %v1511, 0
  %v1547 = vsel %vm1542, %v1513, 0
  %v1550 = vsel %vm1542, %v1515, 0
  %v1553 = vsel %vm1542, %v1517, 0
  %1555 = vmatprep.subr.mxu0 %v1311
  %1556 = vmatpush1.msra.mxu0 %v1310
  %1557 = vmatprep.subr.mxu0 %v1316
  %1558 = vmatpush1.msra.mxu0 %v1315
  %1559 = vmatprep.subr.mxu0 %v1321
  %1560 = vmatpush1.msra.mxu0 %v1320
  %1561 = vmatprep.subr.mxu0 %v1326
  %1562 = vmatpush1.msra.mxu0 %v1325
  %1563 = vmatprep.subr.mxu0 %v1331
  %1564 = vmatpush1.msra.mxu0 %v1330
  %1565 = vmatprep.subr.mxu0 %v1336
  %1566 = vmatpush1.msra.mxu0 %v1335
  %1567 = vmatprep.subr.mxu0 %v1341
  %1568 = vmatpush1.msra.mxu0 %v1340
  %1569 = vmatprep.subr.mxu0 %v1346
  %1570 = vmatpush1.msra.mxu0 %v1345
  %1571 = vmatprep.subr.mxu0 %v928
  %1572 = vmatpush1.msra.mxu0 %v926
  %1573 = vmatprep.subr.mxu0 %v934
  %1574 = vmatpush1.msra.mxu0 %v932
  %1575 = vmatprep.subr.mxu0 %v940
  %1576 = vmatpush1.msra.mxu0 %v938
  %1577 = vmatprep.subr.mxu0 %v946
  %1578 = vmatpush1.msra.mxu0 %v944
  %1579 = vmatprep.subr.mxu0 %v952
  %1580 = vmatpush1.msra.mxu0 %v950
  %1581 = vmatprep.subr.mxu0 %v958
  %1582 = vmatpush1.msra.mxu0 %v956
  %1583 = vmatprep.subr.mxu0 %v964
  %1584 = vmatpush1.msra.mxu0 %v962
  %1585 = vmatprep.subr.mxu0 %v970
  %1586 = vmatpush1.msra.mxu0 %v968
  %1587 = vmatprep.subr.mxu0 %v1471
  %1588 = vmatpush1.msra.mxu0 %v1470
  %1589 = vmatprep.subr.mxu0 %v1476
  %1590 = vmatpush1.msra.mxu0 %v1475
  %1591 = vmatprep.subr.mxu0 %v1481
  %1592 = vmatpush1.msra.mxu0 %v1480
  %1593 = vmatprep.subr.mxu0 %v1486
  %1594 = vmatpush1.msra.mxu0 %v1485
  %1595 = vmatprep.subr.mxu0 %v1491
  %1596 = vmatpush1.msra.mxu0 %v1490
  %1597 = vmatprep.subr.mxu0 %v1496
  %1598 = vmatpush1.msra.mxu0 %v1495
  %1599 = vmatprep.subr.mxu0 %v1501
  %1600 = vmatpush1.msra.mxu0 %v1500
  %1601 = vmatprep.subr.mxu0 %v1506
  %1602 = vmatpush1.msra.mxu0 %v1505
  %1603 = vmatprep.subr.mxu0 0.0
  %1604 = vmatpush1.msra.mxu0 0.0
  %1605 = vmatprep.subr.mxu0 0.0
  %1606 = vmatpush1.msra.mxu0 0.0
  %1607 = vmatprep.subr.mxu0 0.0
  %1608 = vmatpush1.msra.mxu0 0.0
  %1609 = vmatprep.subr.mxu0 0.0
  %1610 = vmatpush1.msra.mxu0 0.0
  %1611 = vmatprep.subr.mxu0 0.0
  %1612 = vmatpush1.msra.mxu0 0.0
  %1613 = vmatprep.subr.mxu0 0.0
  %1614 = vmatpush1.msra.mxu0 0.0
  %1615 = vmatprep.subr.mxu0 0.0
  %1616 = vmatpush1.msra.mxu0 0.0
  %1617 = vmatprep.subr.mxu0 0.0
  %1618 = vmatpush1.msra.mxu0 0.0
  %1619 = vmatprep.mubr.f32.mxu0 %v1544
  %1620 = vmatmul.mubr.f32.gmra.mrb[0].mxu0 %v1510
  %v1621 = vpop.f32.mrb[0].mxu0
  %v1622 = vadd.f32 %v1525, %v1621
  %v1623 = vpop.f32.mrb[0].mxu0
  %v1624 = vadd.f32 %v1525, %v1623
  %1625 = vmatprep.mubr.f32.mxu0 %v1547
  %1626 = vmatmul.mubr.f32.gmra.mrb[0].mxu0 %v1512
  %v1627 = vpop.f32.mrb[0].mxu0
  %v1628 = vadd.f32 %v1530, %v1627
  %v1629 = vpop.f32.mrb[0].mxu0
  %v1630 = vadd.f32 %v1530, %v1629
  %1631 = vmatprep.mubr.f32.mxu0 %v1550
  %1632 = vmatmul.mubr.f32.gmra.mrb[0].mxu0 %v1514
  %v1633 = vpop.f32.mrb[0].mxu0
  %v1634 = vadd.f32 %v1535, %v1633
  %v1635 = vpop.f32.mrb[0].mxu0
  %v1636 = vadd.f32 %v1535, %v1635
  %1637 = vmatprep.mubr.f32.mxu0 %v1553
  %1638 = vmatmul.mubr.f32.gmra.mrb[0].mxu0 %v1516
  %v1639 = vpop.f32.mrb[0].mxu0
  %v1640 = vadd.f32 %v1540, %v1639
  %v1641 = vpop.f32.mrb[0].mxu0
  %v1642 = vadd.f32 %v1540, %v1641
  %1643 = vdwg.mxu0
  %1644 = vmatprep.subr.mxu0 %v1313
  %1645 = vmatpush1.msra.mxu0 %v1312
  %1646 = vmatprep.subr.mxu0 %v1318
  %1647 = vmatpush1.msra.mxu0 %v1317
  %1648 = vmatprep.subr.mxu0 %v1323
  %1649 = vmatpush1.msra.mxu0 %v1322
  %1650 = vmatprep.subr.mxu0 %v1328
  %1651 = vmatpush1.msra.mxu0 %v1327
  %1652 = vmatprep.subr.mxu0 %v1333
  %1653 = vmatpush1.msra.mxu0 %v1332
  %1654 = vmatprep.subr.mxu0 %v1338
  %1655 = vmatpush1.msra.mxu0 %v1337
  %1656 = vmatprep.subr.mxu0 %v1343
  %1657 = vmatpush1.msra.mxu0 %v1342
  %1658 = vmatprep.subr.mxu0 %v1348
  %1659 = vmatpush1.msra.mxu0 %v1347
  %1660 = vmatprep.subr.mxu0 %v1041
  %1661 = vmatpush1.msra.mxu0 %v1039
  %1662 = vmatprep.subr.mxu0 %v1047
  %1663 = vmatpush1.msra.mxu0 %v1045
  %1664 = vmatprep.subr.mxu0 %v1053
  %1665 = vmatpush1.msra.mxu0 %v1051
  %1666 = vmatprep.subr.mxu0 %v1059
  %1667 = vmatpush1.msra.mxu0 %v1057
  %1668 = vmatprep.subr.mxu0 %v1065
  %1669 = vmatpush1.msra.mxu0 %v1063
  %1670 = vmatprep.subr.mxu0 %v1071
  %1671 = vmatpush1.msra.mxu0 %v1069
  %1672 = vmatprep.subr.mxu0 %v1077
  %1673 = vmatpush1.msra.mxu0 %v1075
  %1674 = vmatprep.subr.mxu0 %v1083
  %1675 = vmatpush1.msra.mxu0 %v1081
  %1676 = vmatprep.subr.mxu0 %v1473
  %1677 = vmatpush1.msra.mxu0 %v1472
  %1678 = vmatprep.subr.mxu0 %v1478
  %1679 = vmatpush1.msra.mxu0 %v1477
  %1680 = vmatprep.subr.mxu0 %v1483
  %1681 = vmatpush1.msra.mxu0 %v1482
  %1682 = vmatprep.subr.mxu0 %v1488
  %1683 = vmatpush1.msra.mxu0 %v1487
  %1684 = vmatprep.subr.mxu0 %v1493
  %1685 = vmatpush1.msra.mxu0 %v1492
  %1686 = vmatprep.subr.mxu0 %v1498
  %1687 = vmatpush1.msra.mxu0 %v1497
  %1688 = vmatprep.subr.mxu0 %v1503
  %1689 = vmatpush1.msra.mxu0 %v1502
  %1690 = vmatprep.subr.mxu0 %v1508
  %1691 = vmatpush1.msra.mxu0 %v1507
  %1692 = vmatprep.subr.mxu0 0.0
  %1693 = vmatpush1.msra.mxu0 0.0
  %1694 = vmatprep.subr.mxu0 0.0
  %1695 = vmatpush1.msra.mxu0 0.0
  %1696 = vmatprep.subr.mxu0 0.0
  %1697 = vmatpush1.msra.mxu0 0.0
  %1698 = vmatprep.subr.mxu0 0.0
  %1699 = vmatpush1.msra.mxu0 0.0
  %1700 = vmatprep.subr.mxu0 0.0
  %1701 = vmatpush1.msra.mxu0 0.0
  %1702 = vmatprep.subr.mxu0 0.0
  %1703 = vmatpush1.msra.mxu0 0.0
  %1704 = vmatprep.subr.mxu0 0.0
  %1705 = vmatpush1.msra.mxu0 0.0
  %1706 = vmatprep.subr.mxu0 0.0
  %1707 = vmatpush1.msra.mxu0 0.0
  %1708 = vmatprep.mubr.f32.mxu0 %v1544
  %1709 = vmatmul.mubr.f32.gmra.mrb[0].mxu0 %v1510
  %v1710 = vpop.f32.mrb[0].mxu0
  %v1711 = vadd.f32 %v1525, %v1710
  %v1712 = vpop.f32.mrb[0].mxu0
  %v1713 = vadd.f32 %v1525, %v1712
  %1714 = vmatprep.mubr.f32.mxu0 %v1547
  %1715 = vmatmul.mubr.f32.gmra.mrb[0].mxu0 %v1512
  %v1716 = vpop.f32.mrb[0].mxu0
  %v1717 = vadd.f32 %v1530, %v1716
  %v1718 = vpop.f32.mrb[0].mxu0
  %v1719 = vadd.f32 %v1530, %v1718
  %1720 = vmatprep.mubr.f32.mxu0 %v1550
  %1721 = vmatmul.mubr.f32.gmra.mrb[0].mxu0 %v1514
  %v1722 = vpop.f32.mrb[0].mxu0
  %v1723 = vadd.f32 %v1535, %v1722
  %v1724 = vpop.f32.mrb[0].mxu0
  %v1725 = vadd.f32 %v1535, %v1724
  %1726 = vmatprep.mubr.f32.mxu0 %v1553
  %1727 = vmatmul.mubr.f32.gmra.mrb[0].mxu0 %v1516
  %v1728 = vpop.f32.mrb[0].mxu0
  %v1729 = vadd.f32 %v1540, %v1728
  %v1730 = vpop.f32.mrb[0].mxu0
  %v1731 = vadd.f32 %v1540, %v1730
  %1732 = vdwg.mxu0
  %1733 = vmatprep.subr.mxu0 0.0
  %1734 = vmatpush1.msra.mxu0 %v1314
  %1735 = vmatprep.subr.mxu0 0.0
  %1736 = vmatpush1.msra.mxu0 %v1319
  %1737 = vmatprep.subr.mxu0 0.0
  %1738 = vmatpush1.msra.mxu0 %v1324
  %1739 = vmatprep.subr.mxu0 0.0
  %1740 = vmatpush1.msra.mxu0 %v1329
  %1741 = vmatprep.subr.mxu0 0.0
  %1742 = vmatpush1.msra.mxu0 %v1334
  %1743 = vmatprep.subr.mxu0 0.0
  %1744 = vmatpush1.msra.mxu0 %v1339
  %1745 = vmatprep.subr.mxu0 0.0
  %1746 = vmatpush1.msra.mxu0 %v1344
  %1747 = vmatprep.subr.mxu0 0.0
  %1748 = vmatpush1.msra.mxu0 %v1349
  %1749 = vmatprep.subr.mxu0 0.0
  %1750 = vmatpush1.msra.mxu0 %v1152
  %1751 = vmatprep.subr.mxu0 0.0
  %1752 = vmatpush1.msra.mxu0 %v1157
  %1753 = vmatprep.subr.mxu0 0.0
  %1754 = vmatpush1.msra.mxu0 %v1162
  %1755 = vmatprep.subr.mxu0 0.0
  %1756 = vmatpush1.msra.mxu0 %v1167
  %1757 = vmatprep.subr.mxu0 0.0
  %1758 = vmatpush1.msra.mxu0 %v1172
  %1759 = vmatprep.subr.mxu0 0.0
  %1760 = vmatpush1.msra.mxu0 %v1177
  %1761 = vmatprep.subr.mxu0 0.0
  %1762 = vmatpush1.msra.mxu0 %v1182
  %1763 = vmatprep.subr.mxu0 0.0
  %1764 = vmatpush1.msra.mxu0 %v1187
  %1765 = vmatprep.subr.mxu0 0.0
  %1766 = vmatpush1.msra.mxu0 %v1474
  %1767 = vmatprep.subr.mxu0 0.0
  %1768 = vmatpush1.msra.mxu0 %v1479
  %1769 = vmatprep.subr.mxu0 0.0
  %1770 = vmatpush1.msra.mxu0 %v1484
  %1771 = vmatprep.subr.mxu0 0.0
  %1772 = vmatpush1.msra.mxu0 %v1489
  %1773 = vmatprep.subr.mxu0 0.0
  %1774 = vmatpush1.msra.mxu0 %v1494
  %1775 = vmatprep.subr.mxu0 0.0
  %1776 = vmatpush1.msra.mxu0 %v1499
  %1777 = vmatprep.subr.mxu0 0.0
  %1778 = vmatpush1.msra.mxu0 %v1504
  %1779 = vmatprep.subr.mxu0 0.0
  %1780 = vmatpush1.msra.mxu0 %v1509
  %1781 = vmatprep.subr.mxu0 0.0
  %1782 = vmatpush1.msra.mxu0 0.0
  %1783 = vmatprep.subr.mxu0 0.0
  %1784 = vmatpush1.msra.mxu0 0.0
  %1785 = vmatprep.subr.mxu0 0.0
  %1786 = vmatpush1.msra.mxu0 0.0
  %1787 = vmatprep.subr.mxu0 0.0
  %1788 = vmatpush1.msra.mxu0 0.0
  %1789 = vmatprep.subr.mxu0 0.0
  %1790 = vmatpush1.msra.mxu0 0.0
  %1791 = vmatprep.subr.mxu0 0.0
  %1792 = vmatpush1.msra.mxu0 0.0
  %1793 = vmatprep.subr.mxu0 0.0
  %1794 = vmatpush1.msra.mxu0 0.0
  %1795 = vmatprep.subr.mxu0 0.0
  %1796 = vmatpush1.msra.mxu0 0.0
  %1797 = vmatprep.mubr.f32.mxu0 %v1544
  %1798 = vmatmul.mubr.f32.gmra.mrb[0].mxu0 %v1510
  %v1799 = vpop.f32.mrb[0].mxu0
  %v1800 = vadd.f32 %v1525, %v1799
  %v1801 = vpop.f32.mrb[0].mxu0
  %1802 = vmatprep.mubr.f32.mxu0 %v1547
  %1803 = vmatmul.mubr.f32.gmra.mrb[0].mxu0 %v1512
  %v1804 = vpop.f32.mrb[0].mxu0
  %v1805 = vadd.f32 %v1530, %v1804
  %v1806 = vpop.f32.mrb[0].mxu0
  %1807 = vmatprep.mubr.f32.mxu0 %v1550
  %1808 = vmatmul.mubr.f32.gmra.mrb[0].mxu0 %v1514
  %v1809 = vpop.f32.mrb[0].mxu0
  %v1810 = vadd.f32 %v1535, %v1809
  %v1811 = vpop.f32.mrb[0].mxu0
  %1812 = vmatprep.mubr.f32.mxu0 %v1553
  %1813 = vmatmul.mubr.f32.gmra.mrb[0].mxu0 %v1516
  %v1814 = vpop.f32.mrb[0].mxu0
  %v1815 = vadd.f32 %v1540, %v1814
  %v1816 = vpop.f32.mrb[0].mxu0
  %1817 = vdwg.mxu0
  %1818 = vrot.lane.b32.xlu0 %v1622, 1
  %v1819 = vpop.permute.xlu0 %1818
  %1820 = vrot.lane.b32.xlu0 %v1628, 1
  %v1821 = vpop.permute.xlu0 %1820
  %1822 = vrot.lane.b32.xlu0 %v1634, 1
  %v1823 = vpop.permute.xlu0 %1822
  %1824 = vrot.lane.b32.xlu0 %v1640, 1
  %v1825 = vpop.permute.xlu0 %1824
  %1826 = vrot.lane.b32.xlu0 %v1624, 1
  %v1827 = vpop.permute.xlu0 %1826
  %1828 = vrot.lane.b32.xlu0 %v1630, 1
  %v1829 = vpop.permute.xlu0 %1828
  %1830 = vrot.lane.b32.xlu0 %v1636, 1
  %v1831 = vpop.permute.xlu0 %1830
  %1832 = vrot.lane.b32.xlu0 %v1642, 1
  %v1833 = vpop.permute.xlu0 %1832
  %1834 = vrot.lane.b32.xlu0 %v1711, 1
  %v1835 = vpop.permute.xlu0 %1834
  %1836 = vrot.lane.b32.xlu0 %v1717, 1
  %v1837 = vpop.permute.xlu0 %1836
  %1838 = vrot.lane.b32.xlu0 %v1723, 1
  %v1839 = vpop.permute.xlu0 %1838
  %1840 = vrot.lane.b32.xlu0 %v1729, 1
  %v1841 = vpop.permute.xlu0 %1840
  %1842 = vrot.lane.b32.xlu0 %v1713, 1
  %v1843 = vpop.permute.xlu0 %1842
  %1844 = vrot.lane.b32.xlu0 %v1719, 1
  %v1845 = vpop.permute.xlu0 %1844
  %1846 = vrot.lane.b32.xlu0 %v1725, 1
  %v1847 = vpop.permute.xlu0 %1846
  %1848 = vrot.lane.b32.xlu0 %v1731, 1
  %v1849 = vpop.permute.xlu0 %1848
  %1850 = vrot.lane.b32.xlu0 %v1800, 1
  %v1851 = vpop.permute.xlu0 %1850
  %1852 = vrot.lane.b32.xlu0 %v1805, 1
  %v1853 = vpop.permute.xlu0 %1852
  %1854 = vrot.lane.b32.xlu0 %v1810, 1
  %v1855 = vpop.permute.xlu0 %1854
  %1856 = vrot.lane.b32.xlu0 %v1815, 1
  %v1857 = vpop.permute.xlu0 %1856
  %v1858 = vsel %vm200, %v1843, %v1851
  %v1859 = vsel %vm200, %v1845, %v1853
  %v1860 = vsel %vm200, %v1847, %v1855
  %v1861 = vsel %vm200, %v1849, %v1857
  %v1862 = vsel %vm200, %v1835, %v1843
  %v1863 = vsel %vm200, %v1837, %v1845
  %v1864 = vsel %vm200, %v1839, %v1847
  %v1865 = vsel %vm200, %v1841, %v1849
  %v1866 = vsel %vm200, %v1827, %v1835
  %v1867 = vsel %vm200, %v1829, %v1837
  %v1868 = vsel %vm200, %v1831, %v1839
  %v1869 = vsel %vm200, %v1833, %v1841
  %v1870 = vsel %vm200, %v1819, %v1827
  %v1871 = vsel %vm200, %v1821, %v1829
  %v1872 = vsel %vm200, %v1823, %v1831
  %v1873 = vsel %vm200, %v1825, %v1833
  %v1874 = vsel %vm200, %v1851, %v1819
  %v1875 = vsel %vm200, %v1853, %v1821
  %v1876 = vsel %vm200, %v1855, %v1823
  %v1877 = vsel %vm200, %v1857, %v1825
  %v1878 = vmul.f32 %v1874, %v215
  %v1879 = vmul.f32 %v1870, %v219
  %v1880 = vmul.f32 %v1866, %v223
  %v1881 = vmul.f32 %v1862, %v227
  %v1882 = vmul.f32 %v1858, %v231
  %v1883 = vmul.f32 %v1875, %v215
  %v1884 = vmul.f32 %v1871, %v219
  %v1885 = vmul.f32 %v1867, %v223
  %v1886 = vmul.f32 %v1863, %v227
  %v1887 = vmul.f32 %v1859, %v231
  %v1888 = vmul.f32 %v1876, %v215
  %v1889 = vmul.f32 %v1872, %v219
  %v1890 = vmul.f32 %v1868, %v223
  %v1891 = vmul.f32 %v1864, %v227
  %v1892 = vmul.f32 %v1860, %v231
  %v1893 = vmul.f32 %v1877, %v215
  %v1894 = vmul.f32 %v1873, %v219
  %v1895 = vmul.f32 %v1869, %v223
  %v1896 = vmul.f32 %v1865, %v227
  %v1897 = vmul.f32 %v1861, %v231
  %1898 = vrot.lane.b32.xlu0 %v1622, 127
  %v1899 = vpop.permute.xlu0 %1898
  %1900 = vrot.lane.b32.xlu0 %v1628, 127
  %v1901 = vpop.permute.xlu0 %1900
  %1902 = vrot.lane.b32.xlu0 %v1634, 127
  %v1903 = vpop.permute.xlu0 %1902
  %1904 = vrot.lane.b32.xlu0 %v1640, 127
  %v1905 = vpop.permute.xlu0 %1904
  %1906 = vrot.lane.b32.xlu0 %v1624, 127
  %v1907 = vpop.permute.xlu0 %1906
  %1908 = vrot.lane.b32.xlu0 %v1630, 127
  %v1909 = vpop.permute.xlu0 %1908
  %1910 = vrot.lane.b32.xlu0 %v1636, 127
  %v1911 = vpop.permute.xlu0 %1910
  %1912 = vrot.lane.b32.xlu0 %v1642, 127
  %v1913 = vpop.permute.xlu0 %1912
  %1914 = vrot.lane.b32.xlu0 %v1711, 127
  %v1915 = vpop.permute.xlu0 %1914
  %1916 = vrot.lane.b32.xlu0 %v1717, 127
  %v1917 = vpop.permute.xlu0 %1916
  %1918 = vrot.lane.b32.xlu0 %v1723, 127
  %v1919 = vpop.permute.xlu0 %1918
  %1920 = vrot.lane.b32.xlu0 %v1729, 127
  %v1921 = vpop.permute.xlu0 %1920
  %1922 = vrot.lane.b32.xlu0 %v1713, 127
  %v1923 = vpop.permute.xlu0 %1922
  %1924 = vrot.lane.b32.xlu0 %v1719, 127
  %v1925 = vpop.permute.xlu0 %1924
  %1926 = vrot.lane.b32.xlu0 %v1725, 127
  %v1927 = vpop.permute.xlu0 %1926
  %1928 = vrot.lane.b32.xlu0 %v1731, 127
  %v1929 = vpop.permute.xlu0 %1928
  %1930 = vrot.lane.b32.xlu0 %v1800, 127
  %v1931 = vpop.permute.xlu0 %1930
  %1932 = vrot.lane.b32.xlu0 %v1805, 127
  %v1933 = vpop.permute.xlu0 %1932
  %1934 = vrot.lane.b32.xlu0 %v1810, 127
  %v1935 = vpop.permute.xlu0 %1934
  %1936 = vrot.lane.b32.xlu0 %v1815, 127
  %v1937 = vpop.permute.xlu0 %1936
  %v1938 = vsel %vm267, %v1923, %v1931
  %v1939 = vsel %vm267, %v1925, %v1933
  %v1940 = vsel %vm267, %v1927, %v1935
  %v1941 = vsel %vm267, %v1929, %v1937
  %v1942 = vsel %vm267, %v1915, %v1923
  %v1943 = vsel %vm267, %v1917, %v1925
  %v1944 = vsel %vm267, %v1919, %v1927
  %v1945 = vsel %vm267, %v1921, %v1929
  %v1946 = vsel %vm267, %v1907, %v1915
  %v1947 = vsel %vm267, %v1909, %v1917
  %v1948 = vsel %vm267, %v1911, %v1919
  %v1949 = vsel %vm267, %v1913, %v1921
  %v1950 = vsel %vm267, %v1899, %v1907
  %v1951 = vsel %vm267, %v1901, %v1909
  %v1952 = vsel %vm267, %v1903, %v1911
  %v1953 = vsel %vm267, %v1905, %v1913
  %v1954 = vsel %vm267, %v1931, %v1899
  %v1955 = vsel %vm267, %v1933, %v1901
  %v1956 = vsel %vm267, %v1935, %v1903
  %v1957 = vsel %vm267, %v1937, %v1905
  %v1958 = vmul.f32 %v1950, %v282
  %v1959 = vmul.f32 %v1946, %v286
  %v1960 = vmul.f32 %v1942, %v290
  %v1961 = vmul.f32 %v1938, %v294
  %v1962 = vmul.f32 %v1954, %v298
  %v1963 = vmul.f32 %v1951, %v282
  %v1964 = vmul.f32 %v1947, %v286
  %v1965 = vmul.f32 %v1943, %v290
  %v1966 = vmul.f32 %v1939, %v294
  %v1967 = vmul.f32 %v1955, %v298
  %v1968 = vmul.f32 %v1952, %v282
  %v1969 = vmul.f32 %v1948, %v286
  %v1970 = vmul.f32 %v1944, %v290
  %v1971 = vmul.f32 %v1940, %v294
  %v1972 = vmul.f32 %v1956, %v298
  %v1973 = vmul.f32 %v1953, %v282
  %v1974 = vmul.f32 %v1949, %v286
  %v1975 = vmul.f32 %v1945, %v290
  %v1976 = vmul.f32 %v1941, %v294
  %v1977 = vmul.f32 %v1957, %v298
  %v1978 = vld [vmem:[%s12] sm:$0xff]
  %v1979 = vld [vmem:[%s13] sm:$0xff]
  %1981 = vset.pattern.permute.xlu0 0
  %1982 = vperm.xlu0 %1981, %v1979
  %v1983 = vpop.permute.xlu0 %1982
  %v1986 = vsel %vm834, %v1978, 0
  %1988 = vmatprep.subr.mxu0 %v1879
  %1989 = vmatpush1.msra.mxu0 %v1878
  %1990 = vmatprep.subr.mxu0 %v1884
  %1991 = vmatpush1.msra.mxu0 %v1883
  %1992 = vmatprep.subr.mxu0 %v1889
  %1993 = vmatpush1.msra.mxu0 %v1888
  %1994 = vmatprep.subr.mxu0 %v1894
  %1995 = vmatpush1.msra.mxu0 %v1893
  %1996 = vmatprep.subr.mxu0 %v1624
  %1997 = vmatpush1.msra.mxu0 %v1622
  %1998 = vmatprep.subr.mxu0 %v1630
  %1999 = vmatpush1.msra.mxu0 %v1628
  %2000 = vmatprep.subr.mxu0 %v1636
  %2001 = vmatpush1.msra.mxu0 %v1634
  %2002 = vmatprep.subr.mxu0 %v1642
  %2003 = vmatpush1.msra.mxu0 %v1640
  %2004 = vmatprep.subr.mxu0 %v1959
  %2005 = vmatpush1.msra.mxu0 %v1958
  %2006 = vmatprep.subr.mxu0 %v1964
  %2007 = vmatpush1.msra.mxu0 %v1963
  %2008 = vmatprep.subr.mxu0 %v1969
  %2009 = vmatpush1.msra.mxu0 %v1968
  %2010 = vmatprep.subr.mxu0 %v1974
  %2011 = vmatpush1.msra.mxu0 %v1973
  %2012 = vmatprep.subr.mxu0 0.0
  %2013 = vmatpush1.msra.mxu0 0.0
  %2014 = vmatprep.subr.mxu0 0.0
  %2015 = vmatpush1.msra.mxu0 0.0
  %2016 = vmatprep.subr.mxu0 0.0
  %2017 = vmatpush1.msra.mxu0 0.0
  %2018 = vmatprep.subr.mxu0 0.0
  %2019 = vmatpush1.msra.mxu0 0.0
  %2020 = vmatprep.subr.mxu0 0.0
  %2021 = vmatpush1.msra.mxu0 0.0
  %2022 = vmatprep.subr.mxu0 0.0
  %2023 = vmatpush1.msra.mxu0 0.0
  %2024 = vmatprep.subr.mxu0 0.0
  %2025 = vmatpush1.msra.mxu0 0.0
  %2026 = vmatprep.subr.mxu0 0.0
  %2027 = vmatpush1.msra.mxu0 0.0
  %2028 = vmatprep.subr.mxu0 0.0
  %2029 = vmatpush1.msra.mxu0 0.0
  %2030 = vmatprep.subr.mxu0 0.0
  %2031 = vmatpush1.msra.mxu0 0.0
  %2032 = vmatprep.subr.mxu0 0.0
  %2033 = vmatpush1.msra.mxu0 0.0
  %2034 = vmatprep.subr.mxu0 0.0
  %2035 = vmatpush1.msra.mxu0 0.0
  %2036 = vmatprep.subr.mxu0 0.0
  %2037 = vmatpush1.msra.mxu0 0.0
  %2038 = vmatprep.subr.mxu0 0.0
  %2039 = vmatpush1.msra.mxu0 0.0
  %2040 = vmatprep.subr.mxu0 0.0
  %2041 = vmatpush1.msra.mxu0 0.0
  %2042 = vmatprep.subr.mxu0 0.0
  %2043 = vmatpush1.msra.mxu0 0.0
  %2044 = vmatprep.subr.mxu0 0.0
  %2045 = vmatpush1.msra.mxu0 0.0
  %2046 = vmatprep.subr.mxu0 0.0
  %2047 = vmatpush1.msra.mxu0 0.0
  %2048 = vmatprep.subr.mxu0 0.0
  %2049 = vmatpush1.msra.mxu0 0.0
  %2050 = vmatprep.subr.mxu0 0.0
  %2051 = vmatpush1.msra.mxu0 0.0
  %2052 = vmatprep.mubr.f32.mxu0 0.0
  %2053 = vmatmul.mubr.f32.gmra.mrb[0].mxu0 %v1986
  %v2054 = vpop.f32.mrb[0].mxu0
  %v2055 = vadd.f32 %v1983, %v2054
  %v2056 = vpop.f32.mrb[0].mxu0
  %v2057 = vadd.f32 %v1983, %v2056
  %2058 = vdwg.mxu0
  %2059 = vmatprep.subr.mxu0 %v1881
  %2060 = vmatpush1.msra.mxu0 %v1880
  %2061 = vmatprep.subr.mxu0 %v1886
  %2062 = vmatpush1.msra.mxu0 %v1885
  %2063 = vmatprep.subr.mxu0 %v1891
  %2064 = vmatpush1.msra.mxu0 %v1890
  %2065 = vmatprep.subr.mxu0 %v1896
  %2066 = vmatpush1.msra.mxu0 %v1895
  %2067 = vmatprep.subr.mxu0 %v1713
  %2068 = vmatpush1.msra.mxu0 %v1711
  %2069 = vmatprep.subr.mxu0 %v1719
  %2070 = vmatpush1.msra.mxu0 %v1717
  %2071 = vmatprep.subr.mxu0 %v1725
  %2072 = vmatpush1.msra.mxu0 %v1723
  %2073 = vmatprep.subr.mxu0 %v1731
  %2074 = vmatpush1.msra.mxu0 %v1729
  %2075 = vmatprep.subr.mxu0 %v1961
  %2076 = vmatpush1.msra.mxu0 %v1960
  %2077 = vmatprep.subr.mxu0 %v1966
  %2078 = vmatpush1.msra.mxu0 %v1965
  %2079 = vmatprep.subr.mxu0 %v1971
  %2080 = vmatpush1.msra.mxu0 %v1970
  %2081 = vmatprep.subr.mxu0 %v1976
  %2082 = vmatpush1.msra.mxu0 %v1975
  %2083 = vmatprep.subr.mxu0 0.0
  %2084 = vmatpush1.msra.mxu0 0.0
  %2085 = vmatprep.subr.mxu0 0.0
  %2086 = vmatpush1.msra.mxu0 0.0
  %2087 = vmatprep.subr.mxu0 0.0
  %2088 = vmatpush1.msra.mxu0 0.0
  %2089 = vmatprep.subr.mxu0 0.0
  %2090 = vmatpush1.msra.mxu0 0.0
  %2091 = vmatprep.subr.mxu0 0.0
  %2092 = vmatpush1.msra.mxu0 0.0
  %2093 = vmatprep.subr.mxu0 0.0
  %2094 = vmatpush1.msra.mxu0 0.0
  %2095 = vmatprep.subr.mxu0 0.0
  %2096 = vmatpush1.msra.mxu0 0.0
  %2097 = vmatprep.subr.mxu0 0.0
  %2098 = vmatpush1.msra.mxu0 0.0
  %2099 = vmatprep.subr.mxu0 0.0
  %2100 = vmatpush1.msra.mxu0 0.0
  %2101 = vmatprep.subr.mxu0 0.0
  %2102 = vmatpush1.msra.mxu0 0.0
  %2103 = vmatprep.subr.mxu0 0.0
  %2104 = vmatpush1.msra.mxu0 0.0
  %2105 = vmatprep.subr.mxu0 0.0
  %2106 = vmatpush1.msra.mxu0 0.0
  %2107 = vmatprep.subr.mxu0 0.0
  %2108 = vmatpush1.msra.mxu0 0.0
  %2109 = vmatprep.subr.mxu0 0.0
  %2110 = vmatpush1.msra.mxu0 0.0
  %2111 = vmatprep.subr.mxu0 0.0
  %2112 = vmatpush1.msra.mxu0 0.0
  %2113 = vmatprep.subr.mxu0 0.0
  %2114 = vmatpush1.msra.mxu0 0.0
  %2115 = vmatprep.subr.mxu0 0.0
  %2116 = vmatpush1.msra.mxu0 0.0
  %2117 = vmatprep.subr.mxu0 0.0
  %2118 = vmatpush1.msra.mxu0 0.0
  %2119 = vmatprep.subr.mxu0 0.0
  %2120 = vmatpush1.msra.mxu0 0.0
  %2121 = vmatprep.subr.mxu0 0.0
  %2122 = vmatpush1.msra.mxu0 0.0
  %2123 = vmatprep.mubr.f32.mxu0 0.0
  %2124 = vmatmul.mubr.f32.gmra.mrb[0].mxu0 %v1986
  %v2125 = vpop.f32.mrb[0].mxu0
  %v2126 = vadd.f32 %v1983, %v2125
  %v2127 = vpop.f32.mrb[0].mxu0
  %v2128 = vadd.f32 %v1983, %v2127
  %2129 = vdwg.mxu0
  %2130 = vmatprep.subr.mxu0 0.0
  %2131 = vmatpush1.msra.mxu0 %v1882
  %2132 = vmatprep.subr.mxu0 0.0
  %2133 = vmatpush1.msra.mxu0 %v1887
  %2134 = vmatprep.subr.mxu0 0.0
  %2135 = vmatpush1.msra.mxu0 %v1892
  %2136 = vmatprep.subr.mxu0 0.0
  %2137 = vmatpush1.msra.mxu0 %v1897
  %2138 = vmatprep.subr.mxu0 0.0
  %2139 = vmatpush1.msra.mxu0 %v1800
  %2140 = vmatprep.subr.mxu0 0.0
  %2141 = vmatpush1.msra.mxu0 %v1805
  %2142 = vmatprep.subr.mxu0 0.0
  %2143 = vmatpush1.msra.mxu0 %v1810
  %2144 = vmatprep.subr.mxu0 0.0
  %2145 = vmatpush1.msra.mxu0 %v1815
  %2146 = vmatprep.subr.mxu0 0.0
  %2147 = vmatpush1.msra.mxu0 %v1962
  %2148 = vmatprep.subr.mxu0 0.0
  %2149 = vmatpush1.msra.mxu0 %v1967
  %2150 = vmatprep.subr.mxu0 0.0
  %2151 = vmatpush1.msra.mxu0 %v1972
  %2152 = vmatprep.subr.mxu0 0.0
  %2153 = vmatpush1.msra.mxu0 %v1977
  %2154 = vmatprep.subr.mxu0 0.0
  %2155 = vmatpush1.msra.mxu0 0.0
  %2156 = vmatprep.subr.mxu0 0.0
  %2157 = vmatpush1.msra.mxu0 0.0
  %2158 = vmatprep.subr.mxu0 0.0
  %2159 = vmatpush1.msra.mxu0 0.0
  %2160 = vmatprep.subr.mxu0 0.0
  %2161 = vmatpush1.msra.mxu0 0.0
  %2162 = vmatprep.subr.mxu0 0.0
  %2163 = vmatpush1.msra.mxu0 0.0
  %2164 = vmatprep.subr.mxu0 0.0
  %2165 = vmatpush1.msra.mxu0 0.0
  %2166 = vmatprep.subr.mxu0 0.0
  %2167 = vmatpush1.msra.mxu0 0.0
  %2168 = vmatprep.subr.mxu0 0.0
  %2169 = vmatpush1.msra.mxu0 0.0
  %2170 = vmatprep.subr.mxu0 0.0
  %2171 = vmatpush1.msra.mxu0 0.0
  %2172 = vmatprep.subr.mxu0 0.0
  %2173 = vmatpush1.msra.mxu0 0.0
  %2174 = vmatprep.subr.mxu0 0.0
  %2175 = vmatpush1.msra.mxu0 0.0
  %2176 = vmatprep.subr.mxu0 0.0
  %2177 = vmatpush1.msra.mxu0 0.0
  %2178 = vmatprep.subr.mxu0 0.0
  %2179 = vmatpush1.msra.mxu0 0.0
  %2180 = vmatprep.subr.mxu0 0.0
  %2181 = vmatpush1.msra.mxu0 0.0
  %2182 = vmatprep.subr.mxu0 0.0
  %2183 = vmatpush1.msra.mxu0 0.0
  %2184 = vmatprep.subr.mxu0 0.0
  %2185 = vmatpush1.msra.mxu0 0.0
  %2186 = vmatprep.subr.mxu0 0.0
  %2187 = vmatpush1.msra.mxu0 0.0
  %2188 = vmatprep.subr.mxu0 0.0
  %2189 = vmatpush1.msra.mxu0 0.0
  %2190 = vmatprep.subr.mxu0 0.0
  %2191 = vmatpush1.msra.mxu0 0.0
  %2192 = vmatprep.subr.mxu0 0.0
  %2193 = vmatpush1.msra.mxu0 0.0
  %2194 = vmatprep.mubr.f32.mxu0 0.0
  %2195 = vmatmul.mubr.f32.gmra.mrb[0].mxu0 %v1986
  %v2196 = vpop.f32.mrb[0].mxu0
  %v2197 = vadd.f32 %v1983, %v2196
  %v2198 = vpop.f32.mrb[0].mxu0
  %2199 = vdwg.mxu0
  %2200 = vrot.lane.b32.xlu0 %v93, 1
  %v2201 = vpop.permute.xlu0 %2200
  %2202 = vrot.lane.b32.xlu0 %v101, 1
  %v2203 = vpop.permute.xlu0 %2202
  %2204 = vrot.lane.b32.xlu0 %v94, 1
  %v2205 = vpop.permute.xlu0 %2204
  %2206 = vrot.lane.b32.xlu0 %v102, 1
  %v2207 = vpop.permute.xlu0 %2206
  %2208 = vrot.lane.b32.xlu0 %v95, 1
  %v2209 = vpop.permute.xlu0 %2208
  %2210 = vrot.lane.b32.xlu0 %v103, 1
  %v2211 = vpop.permute.xlu0 %2210
  %2212 = vrot.lane.b32.xlu0 %v96, 1
  %v2213 = vpop.permute.xlu0 %2212
  %2214 = vrot.lane.b32.xlu0 %v104, 1
  %v2215 = vpop.permute.xlu0 %2214
  %2216 = vrot.lane.b32.xlu0 %v97, 1
  %v2217 = vpop.permute.xlu0 %2216
  %2218 = vrot.lane.b32.xlu0 %v105, 1
  %v2219 = vpop.permute.xlu0 %2218
  %2220 = vrot.lane.b32.xlu0 %v98, 1
  %v2221 = vpop.permute.xlu0 %2220
  %2222 = vrot.lane.b32.xlu0 %v106, 1
  %v2223 = vpop.permute.xlu0 %2222
  %2224 = vrot.lane.b32.xlu0 %v99, 1
  %v2225 = vpop.permute.xlu0 %2224
  %2226 = vrot.lane.b32.xlu0 %v107, 1
  %v2227 = vpop.permute.xlu0 %2226
  %2228 = vrot.lane.b32.xlu0 %v100, 1
  %v2229 = vpop.permute.xlu0 %2228
  %2230 = vrot.lane.b32.xlu0 %v108, 1
  %v2231 = vpop.permute.xlu0 %2230
  %v2232 = vsel %vm200, %v2225, %v2229
  %v2233 = vsel %vm200, %v2227, %v2231
  %v2234 = vsel %vm200, %v2221, %v2225
  %v2235 = vsel %vm200, %v2223, %v2227
  %v2236 = vsel %vm200, %v2217, %v2221
  %v2237 = vsel %vm200, %v2219, %v2223
  %v2238 = vsel %vm200, %v2213, %v2217
  %v2239 = vsel %vm200, %v2215, %v2219
  %v2240 = vsel %vm200, %v2209, %v2213
  %v2241 = vsel %vm200, %v2211, %v2215
  %v2242 = vsel %vm200, %v2205, %v2209
  %v2243 = vsel %vm200, %v2207, %v2211
  %v2244 = vsel %vm200, %v2201, %v2205
  %v2245 = vsel %vm200, %v2203, %v2207
  %v2246 = vsel %vm200, %v2229, %v2201
  %v2247 = vsel %vm200, %v2231, %v2203
  %v2249 = vlaneseq
  %v2250 = vshrl.u32 %v2249, 7
  %v2251 = vsub.s32 0, %v2250
  %v2252 = vrot.slane %v111, %v2251
  %v2253 = vlaneseq
  %v2254 = vshrl.u32 %v2253, 7
  %v2255 = vsub.s32 1, %v2254
  %v2256 = vrot.slane %v111, %v2255
  %v2257 = vlaneseq
  %v2258 = vshrl.u32 %v2257, 7
  %v2259 = vsub.s32 2, %v2258
  %v2260 = vrot.slane %v111, %v2259
  %v2261 = vlaneseq
  %v2262 = vshrl.u32 %v2261, 7
  %v2263 = vsub.s32 3, %v2262
  %v2264 = vrot.slane %v111, %v2263
  %v2265 = vlaneseq
  %v2266 = vshrl.u32 %v2265, 7
  %v2267 = vsub.s32 4, %v2266
  %v2268 = vrot.slane %v111, %v2267
  %v2269 = vlaneseq
  %v2270 = vshrl.u32 %v2269, 7
  %v2271 = vsub.s32 5, %v2270
  %v2272 = vrot.slane %v111, %v2271
  %v2273 = vlaneseq
  %v2274 = vshrl.u32 %v2273, 7
  %v2275 = vsub.s32 6, %v2274
  %v2276 = vrot.slane %v111, %v2275
  %v2277 = vlaneseq
  %v2278 = vshrl.u32 %v2277, 7
  %v2279 = vsub.s32 7, %v2278
  %v2280 = vrot.slane %v111, %v2279
  %v2289 = vmul.f32 %v2246, %v2252
  %v2290 = vmul.f32 %v2244, %v2256
  %v2291 = vmul.f32 %v2242, %v2260
  %v2292 = vmul.f32 %v2240, %v2264
  %v2293 = vmul.f32 %v2238, %v2268
  %v2294 = vmul.f32 %v2236, %v2272
  %v2295 = vmul.f32 %v2234, %v2276
  %v2296 = vmul.f32 %v2232, %v2280
  %v2297 = vmul.f32 %v2247, %v2252
  %v2298 = vmul.f32 %v2245, %v2256
  %v2299 = vmul.f32 %v2243, %v2260
  %v2300 = vmul.f32 %v2241, %v2264
  %v2301 = vmul.f32 %v2239, %v2268
  %v2302 = vmul.f32 %v2237, %v2272
  %v2303 = vmul.f32 %v2235, %v2276
  %v2304 = vmul.f32 %v2233, %v2280
  %2305 = vrot.lane.b32.xlu0 %v93, 127
  %v2306 = vpop.permute.xlu0 %2305
  %2307 = vrot.lane.b32.xlu0 %v101, 127
  %v2308 = vpop.permute.xlu0 %2307
  %2309 = vrot.lane.b32.xlu0 %v94, 127
  %v2310 = vpop.permute.xlu0 %2309
  %2311 = vrot.lane.b32.xlu0 %v102, 127
  %v2312 = vpop.permute.xlu0 %2311
  %2313 = vrot.lane.b32.xlu0 %v95, 127
  %v2314 = vpop.permute.xlu0 %2313
  %2315 = vrot.lane.b32.xlu0 %v103, 127
  %v2316 = vpop.permute.xlu0 %2315
  %2317 = vrot.lane.b32.xlu0 %v96, 127
  %v2318 = vpop.permute.xlu0 %2317
  %2319 = vrot.lane.b32.xlu0 %v104, 127
  %v2320 = vpop.permute.xlu0 %2319
  %2321 = vrot.lane.b32.xlu0 %v97, 127
  %v2322 = vpop.permute.xlu0 %2321
  %2323 = vrot.lane.b32.xlu0 %v105, 127
  %v2324 = vpop.permute.xlu0 %2323
  %2325 = vrot.lane.b32.xlu0 %v98, 127
  %v2326 = vpop.permute.xlu0 %2325
  %2327 = vrot.lane.b32.xlu0 %v106, 127
  %v2328 = vpop.permute.xlu0 %2327
  %2329 = vrot.lane.b32.xlu0 %v99, 127
  %v2330 = vpop.permute.xlu0 %2329
  %2331 = vrot.lane.b32.xlu0 %v107, 127
  %v2332 = vpop.permute.xlu0 %2331
  %2333 = vrot.lane.b32.xlu0 %v100, 127
  %v2334 = vpop.permute.xlu0 %2333
  %2335 = vrot.lane.b32.xlu0 %v108, 127
  %v2336 = vpop.permute.xlu0 %2335
  %v2337 = vsel %vm267, %v2330, %v2334
  %v2338 = vsel %vm267, %v2332, %v2336
  %v2339 = vsel %vm267, %v2326, %v2330
  %v2340 = vsel %vm267, %v2328, %v2332
  %v2341 = vsel %vm267, %v2322, %v2326
  %v2342 = vsel %vm267, %v2324, %v2328
  %v2343 = vsel %vm267, %v2318, %v2322
  %v2344 = vsel %vm267, %v2320, %v2324
  %v2345 = vsel %vm267, %v2314, %v2318
  %v2346 = vsel %vm267, %v2316, %v2320
  %v2347 = vsel %vm267, %v2310, %v2314
  %v2348 = vsel %vm267, %v2312, %v2316
  %v2349 = vsel %vm267, %v2306, %v2310
  %v2350 = vsel %vm267, %v2308, %v2312
  %v2351 = vsel %vm267, %v2334, %v2306
  %v2352 = vsel %vm267, %v2336, %v2308
  %v2354 = vlaneseq
  %v2355 = vshrl.u32 %v2354, 7
  %v2356 = vsub.s32 0, %v2355
  %v2357 = vrot.slane %v112, %v2356
  %v2358 = vlaneseq
  %v2359 = vshrl.u32 %v2358, 7
  %v2360 = vsub.s32 1, %v2359
  %v2361 = vrot.slane %v112, %v2360
  %v2362 = vlaneseq
  %v2363 = vshrl.u32 %v2362, 7
  %v2364 = vsub.s32 2, %v2363
  %v2365 = vrot.slane %v112, %v2364
  %v2366 = vlaneseq
  %v2367 = vshrl.u32 %v2366, 7
  %v2368 = vsub.s32 3, %v2367
  %v2369 = vrot.slane %v112, %v2368
  %v2370 = vlaneseq
  %v2371 = vshrl.u32 %v2370, 7
  %v2372 = vsub.s32 4, %v2371
  %v2373 = vrot.slane %v112, %v2372
  %v2374 = vlaneseq
  %v2375 = vshrl.u32 %v2374, 7
  %v2376 = vsub.s32 5, %v2375
  %v2377 = vrot.slane %v112, %v2376
  %v2378 = vlaneseq
  %v2379 = vshrl.u32 %v2378, 7
  %v2380 = vsub.s32 6, %v2379
  %v2381 = vrot.slane %v112, %v2380
  %v2382 = vlaneseq
  %v2383 = vshrl.u32 %v2382, 7
  %v2384 = vsub.s32 7, %v2383
  %v2385 = vrot.slane %v112, %v2384
  %v2394 = vmul.f32 %v2349, %v2357
  %v2395 = vmul.f32 %v2347, %v2361
  %v2396 = vmul.f32 %v2345, %v2365
  %v2397 = vmul.f32 %v2343, %v2369
  %v2398 = vmul.f32 %v2341, %v2373
  %v2399 = vmul.f32 %v2339, %v2377
  %v2400 = vmul.f32 %v2337, %v2381
  %v2401 = vmul.f32 %v2351, %v2385
  %v2402 = vmul.f32 %v2350, %v2357
  %v2403 = vmul.f32 %v2348, %v2361
  %v2404 = vmul.f32 %v2346, %v2365
  %v2405 = vmul.f32 %v2344, %v2369
  %v2406 = vmul.f32 %v2342, %v2373
  %v2407 = vmul.f32 %v2340, %v2377
  %v2408 = vmul.f32 %v2338, %v2381
  %v2409 = vmul.f32 %v2352, %v2385
  %v2410 = vld [vmem:[%s14] sm:$0xff]
  %v2411 = vld [vmem:[%s14 + $0x8] sm:$0xff]
  %v2412 = vld [vmem:[%s14 + $0x10] sm:$0xff]
  %v2413 = vld [vmem:[%s14 + $0x18] sm:$0xff]
  %v2414 = vld [vmem:[%s15] sm:$0xff]
  %v2415 = vld [vmem:[%s15 + $0x8] sm:$0xff]
  %v2416 = vld [vmem:[%s15 + $0x10] sm:$0xff]
  %v2417 = vld [vmem:[%s15 + $0x18] sm:$0xff]
  %2419 = vset.pattern.permute.xlu0 0
  %2420 = vperm.xlu0 %2419, %v2414
  %v2421 = vpop.permute.xlu0 %2420
  %2424 = vset.pattern.permute.xlu0 0
  %2425 = vperm.xlu0 %2424, %v2415
  %v2426 = vpop.permute.xlu0 %2425
  %2429 = vset.pattern.permute.xlu0 0
  %2430 = vperm.xlu0 %2429, %v2416
  %v2431 = vpop.permute.xlu0 %2430
  %2434 = vset.pattern.permute.xlu0 0
  %2435 = vperm.xlu0 %2434, %v2417
  %v2436 = vpop.permute.xlu0 %2435
  %v2439 = vsel %vm342, %v2410, 0
  %v2442 = vsel %vm342, %v2411, 0
  %v2445 = vsel %vm342, %v2412, 0
  %v2448 = vsel %vm342, %v2413, 0
  %2450 = vmatprep.subr.mxu0 %v2290
  %2451 = vmatpush1.msra.mxu0 %v2289
  %2452 = vmatprep.subr.mxu0 %v2298
  %2453 = vmatpush1.msra.mxu0 %v2297
  %2454 = vmatprep.subr.mxu0 %v94
  %2455 = vmatpush1.msra.mxu0 %v93
  %2456 = vmatprep.subr.mxu0 %v102
  %2457 = vmatpush1.msra.mxu0 %v101
  %2458 = vmatprep.subr.mxu0 %v2395
  %2459 = vmatpush1.msra.mxu0 %v2394
  %2460 = vmatprep.subr.mxu0 %v2403
  %2461 = vmatpush1.msra.mxu0 %v2402
  %2462 = vmatprep.subr.mxu0 0.0
  %2463 = vmatpush1.msra.mxu0 0.0
  %2464 = vmatprep.subr.mxu0 0.0
  %2465 = vmatpush1.msra.mxu0 0.0
  %2466 = vmatprep.subr.mxu0 0.0
  %2467 = vmatpush1.msra.mxu0 0.0
  %2468 = vmatprep.subr.mxu0 0.0
  %2469 = vmatpush1.msra.mxu0 0.0
  %2470 = vmatprep.subr.mxu0 0.0
  %2471 = vmatpush1.msra.mxu0 0.0
  %2472 = vmatprep.subr.mxu0 0.0
  %2473 = vmatpush1.msra.mxu0 0.0
  %2474 = vmatprep.subr.mxu0 0.0
  %2475 = vmatpush1.msra.mxu0 0.0
  %2476 = vmatprep.subr.mxu0 0.0
  %2477 = vmatpush1.msra.mxu0 0.0
  %2478 = vmatprep.subr.mxu0 0.0
  %2479 = vmatpush1.msra.mxu0 0.0
  %2480 = vmatprep.subr.mxu0 0.0
  %2481 = vmatpush1.msra.mxu0 0.0
  %2482 = vmatprep.subr.mxu0 0.0
  %2483 = vmatpush1.msra.mxu0 0.0
  %2484 = vmatprep.subr.mxu0 0.0
  %2485 = vmatpush1.msra.mxu0 0.0
  %2486 = vmatprep.subr.mxu0 0.0
  %2487 = vmatpush1.msra.mxu0 0.0
  %2488 = vmatprep.subr.mxu0 0.0
  %2489 = vmatpush1.msra.mxu0 0.0
  %2490 = vmatprep.subr.mxu0 0.0
  %2491 = vmatpush1.msra.mxu0 0.0
  %2492 = vmatprep.subr.mxu0 0.0
  %2493 = vmatpush1.msra.mxu0 0.0
  %2494 = vmatprep.subr.mxu0 0.0
  %2495 = vmatpush1.msra.mxu0 0.0
  %2496 = vmatprep.subr.mxu0 0.0
  %2497 = vmatpush1.msra.mxu0 0.0
  %2498 = vmatprep.subr.mxu0 0.0
  %2499 = vmatpush1.msra.mxu0 0.0
  %2500 = vmatprep.subr.mxu0 0.0
  %2501 = vmatpush1.msra.mxu0 0.0
  %2502 = vmatprep.subr.mxu0 0.0
  %2503 = vmatpush1.msra.mxu0 0.0
  %2504 = vmatprep.subr.mxu0 0.0
  %2505 = vmatpush1.msra.mxu0 0.0
  %2506 = vmatprep.subr.mxu0 0.0
  %2507 = vmatpush1.msra.mxu0 0.0
  %2508 = vmatprep.subr.mxu0 0.0
  %2509 = vmatpush1.msra.mxu0 0.0
  %2510 = vmatprep.subr.mxu0 0.0
  %2511 = vmatpush1.msra.mxu0 0.0
  %2512 = vmatprep.subr.mxu0 0.0
  %2513 = vmatpush1.msra.mxu0 0.0
  %2514 = vmatprep.mubr.f32.mxu0 0.0
  %2515 = vmatmul.mubr.f32.gmra.mrb[0].mxu0 %v2439
  %v2516 = vpop.f32.mrb[0].mxu0
  %v2517 = vadd.f32 %v2421, %v2516
  %v2518 = vpop.f32.mrb[0].mxu0
  %v2519 = vadd.f32 %v2421, %v2518
  %2520 = vmatprep.mubr.f32.mxu0 0.0
  %2521 = vmatmul.mubr.f32.gmra.mrb[0].mxu0 %v2442
  %v2522 = vpop.f32.mrb[0].mxu0
  %v2523 = vadd.f32 %v2426, %v2522
  %v2524 = vpop.f32.mrb[0].mxu0
  %v2525 = vadd.f32 %v2426, %v2524
  %2526 = vmatprep.mubr.f32.mxu0 0.0
  %2527 = vmatmul.mubr.f32.gmra.mrb[0].mxu0 %v2445
  %v2528 = vpop.f32.mrb[0].mxu0
  %v2529 = vadd.f32 %v2431, %v2528
  %v2530 = vpop.f32.mrb[0].mxu0
  %v2531 = vadd.f32 %v2431, %v2530
  %2532 = vmatprep.mubr.f32.mxu0 0.0
  %2533 = vmatmul.mubr.f32.gmra.mrb[0].mxu0 %v2448
  %v2534 = vpop.f32.mrb[0].mxu0
  %v2535 = vadd.f32 %v2436, %v2534
  %v2536 = vpop.f32.mrb[0].mxu0
  %v2537 = vadd.f32 %v2436, %v2536
  %2538 = vdwg.mxu0
  %2539 = vmatprep.subr.mxu0 %v2292
  %2540 = vmatpush1.msra.mxu0 %v2291
  %2541 = vmatprep.subr.mxu0 %v2300
  %2542 = vmatpush1.msra.mxu0 %v2299
  %2543 = vmatprep.subr.mxu0 %v96
  %2544 = vmatpush1.msra.mxu0 %v95
  %2545 = vmatprep.subr.mxu0 %v104
  %2546 = vmatpush1.msra.mxu0 %v103
  %2547 = vmatprep.subr.mxu0 %v2397
  %2548 = vmatpush1.msra.mxu0 %v2396
  %2549 = vmatprep.subr.mxu0 %v2405
  %2550 = vmatpush1.msra.mxu0 %v2404
  %2551 = vmatprep.subr.mxu0 0.0
  %2552 = vmatpush1.msra.mxu0 0.0
  %2553 = vmatprep.subr.mxu0 0.0
  %2554 = vmatpush1.msra.mxu0 0.0
  %2555 = vmatprep.subr.mxu0 0.0
  %2556 = vmatpush1.msra.mxu0 0.0
  %2557 = vmatprep.subr.mxu0 0.0
  %2558 = vmatpush1.msra.mxu0 0.0
  %2559 = vmatprep.subr.mxu0 0.0
  %2560 = vmatpush1.msra.mxu0 0.0
  %2561 = vmatprep.subr.mxu0 0.0
  %2562 = vmatpush1.msra.mxu0 0.0
  %2563 = vmatprep.subr.mxu0 0.0
  %2564 = vmatpush1.msra.mxu0 0.0
  %2565 = vmatprep.subr.mxu0 0.0
  %2566 = vmatpush1.msra.mxu0 0.0
  %2567 = vmatprep.subr.mxu0 0.0
  %2568 = vmatpush1.msra.mxu0 0.0
  %2569 = vmatprep.subr.mxu0 0.0
  %2570 = vmatpush1.msra.mxu0 0.0
  %2571 = vmatprep.subr.mxu0 0.0
  %2572 = vmatpush1.msra.mxu0 0.0
  %2573 = vmatprep.subr.mxu0 0.0
  %2574 = vmatpush1.msra.mxu0 0.0
  %2575 = vmatprep.subr.mxu0 0.0
  %2576 = vmatpush1.msra.mxu0 0.0
  %2577 = vmatprep.subr.mxu0 0.0
  %2578 = vmatpush1.msra.mxu0 0.0
  %2579 = vmatprep.subr.mxu0 0.0
  %2580 = vmatpush1.msra.mxu0 0.0
  %2581 = vmatprep.subr.mxu0 0.0
  %2582 = vmatpush1.msra.mxu0 0.0
  %2583 = vmatprep.subr.mxu0 0.0
  %2584 = vmatpush1.msra.mxu0 0.0
  %2585 = vmatprep.subr.mxu0 0.0
  %2586 = vmatpush1.msra.mxu0 0.0
  %2587 = vmatprep.subr.mxu0 0.0
  %2588 = vmatpush1.msra.mxu0 0.0
  %2589 = vmatprep.subr.mxu0 0.0
  %2590 = vmatpush1.msra.mxu0 0.0
  %2591 = vmatprep.subr.mxu0 0.0
  %2592 = vmatpush1.msra.mxu0 0.0
  %2593 = vmatprep.subr.mxu0 0.0
  %2594 = vmatpush1.msra.mxu0 0.0
  %2595 = vmatprep.subr.mxu0 0.0
  %2596 = vmatpush1.msra.mxu0 0.0
  %2597 = vmatprep.subr.mxu0 0.0
  %2598 = vmatpush1.msra.mxu0 0.0
  %2599 = vmatprep.subr.mxu0 0.0
  %2600 = vmatpush1.msra.mxu0 0.0
  %2601 = vmatprep.subr.mxu0 0.0
  %2602 = vmatpush1.msra.mxu0 0.0
  %2603 = vmatprep.mubr.f32.mxu0 0.0
  %2604 = vmatmul.mubr.f32.gmra.mrb[0].mxu0 %v2439
  %v2605 = vpop.f32.mrb[0].mxu0
  %v2606 = vadd.f32 %v2421, %v2605
  %v2607 = vpop.f32.mrb[0].mxu0
  %v2608 = vadd.f32 %v2421, %v2607
  %2609 = vmatprep.mubr.f32.mxu0 0.0
  %2610 = vmatmul.mubr.f32.gmra.mrb[0].mxu0 %v2442
  %v2611 = vpop.f32.mrb[0].mxu0
  %v2612 = vadd.f32 %v2426, %v2611
  %v2613 = vpop.f32.mrb[0].mxu0
  %v2614 = vadd.f32 %v2426, %v2613
  %2615 = vmatprep.mubr.f32.mxu0 0.0
  %2616 = vmatmul.mubr.f32.gmra.mrb[0].mxu0 %v2445
  %v2617 = vpop.f32.mrb[0].mxu0
  %v2618 = vadd.f32 %v2431, %v2617
  %v2619 = vpop.f32.mrb[0].mxu0
  %v2620 = vadd.f32 %v2431, %v2619
  %2621 = vmatprep.mubr.f32.mxu0 0.0
  %2622 = vmatmul.mubr.f32.gmra.mrb[0].mxu0 %v2448
  %v2623 = vpop.f32.mrb[0].mxu0
  %v2624 = vadd.f32 %v2436, %v2623
  %v2625 = vpop.f32.mrb[0].mxu0
  %v2626 = vadd.f32 %v2436, %v2625
  %2627 = vdwg.mxu0
  %2628 = vmatprep.subr.mxu0 %v2294
  %2629 = vmatpush1.msra.mxu0 %v2293
  %2630 = vmatprep.subr.mxu0 %v2302
  %2631 = vmatpush1.msra.mxu0 %v2301
  %2632 = vmatprep.subr.mxu0 %v98
  %2633 = vmatpush1.msra.mxu0 %v97
  %2634 = vmatprep.subr.mxu0 %v106
  %2635 = vmatpush1.msra.mxu0 %v105
  %2636 = vmatprep.subr.mxu0 %v2399
  %2637 = vmatpush1.msra.mxu0 %v2398
  %2638 = vmatprep.subr.mxu0 %v2407
  %2639 = vmatpush1.msra.mxu0 %v2406
  %2640 = vmatprep.subr.mxu0 0.0
  %2641 = vmatpush1.msra.mxu0 0.0
  %2642 = vmatprep.subr.mxu0 0.0
  %2643 = vmatpush1.msra.mxu0 0.0
  %2644 = vmatprep.subr.mxu0 0.0
  %2645 = vmatpush1.msra.mxu0 0.0
  %2646 = vmatprep.subr.mxu0 0.0
  %2647 = vmatpush1.msra.mxu0 0.0
  %2648 = vmatprep.subr.mxu0 0.0
  %2649 = vmatpush1.msra.mxu0 0.0
  %2650 = vmatprep.subr.mxu0 0.0
  %2651 = vmatpush1.msra.mxu0 0.0
  %2652 = vmatprep.subr.mxu0 0.0
  %2653 = vmatpush1.msra.mxu0 0.0
  %2654 = vmatprep.subr.mxu0 0.0
  %2655 = vmatpush1.msra.mxu0 0.0
  %2656 = vmatprep.subr.mxu0 0.0
  %2657 = vmatpush1.msra.mxu0 0.0
  %2658 = vmatprep.subr.mxu0 0.0
  %2659 = vmatpush1.msra.mxu0 0.0
  %2660 = vmatprep.subr.mxu0 0.0
  %2661 = vmatpush1.msra.mxu0 0.0
  %2662 = vmatprep.subr.mxu0 0.0
  %2663 = vmatpush1.msra.mxu0 0.0
  %2664 = vmatprep.subr.mxu0 0.0
  %2665 = vmatpush1.msra.mxu0 0.0
  %2666 = vmatprep.subr.mxu0 0.0
  %2667 = vmatpush1.msra.mxu0 0.0
  %2668 = vmatprep.subr.mxu0 0.0
  %2669 = vmatpush1.msra.mxu0 0.0
  %2670 = vmatprep.subr.mxu0 0.0
  %2671 = vmatpush1.msra.mxu0 0.0
  %2672 = vmatprep.subr.mxu0 0.0
  %2673 = vmatpush1.msra.mxu0 0.0
  %2674 = vmatprep.subr.mxu0 0.0
  %2675 = vmatpush1.msra.mxu0 0.0
  %2676 = vmatprep.subr.mxu0 0.0
  %2677 = vmatpush1.msra.mxu0 0.0
  %2678 = vmatprep.subr.mxu0 0.0
  %2679 = vmatpush1.msra.mxu0 0.0
  %2680 = vmatprep.subr.mxu0 0.0
  %2681 = vmatpush1.msra.mxu0 0.0
  %2682 = vmatprep.subr.mxu0 0.0
  %2683 = vmatpush1.msra.mxu0 0.0
  %2684 = vmatprep.subr.mxu0 0.0
  %2685 = vmatpush1.msra.mxu0 0.0
  %2686 = vmatprep.subr.mxu0 0.0
  %2687 = vmatpush1.msra.mxu0 0.0
  %2688 = vmatprep.subr.mxu0 0.0
  %2689 = vmatpush1.msra.mxu0 0.0
  %2690 = vmatprep.subr.mxu0 0.0
  %2691 = vmatpush1.msra.mxu0 0.0
  %2692 = vmatprep.mubr.f32.mxu0 0.0
  %2693 = vmatmul.mubr.f32.gmra.mrb[0].mxu0 %v2439
  %v2694 = vpop.f32.mrb[0].mxu0
  %v2695 = vadd.f32 %v2421, %v2694
  %v2696 = vpop.f32.mrb[0].mxu0
  %v2697 = vadd.f32 %v2421, %v2696
  %2698 = vmatprep.mubr.f32.mxu0 0.0
  %2699 = vmatmul.mubr.f32.gmra.mrb[0].mxu0 %v2442
  %v2700 = vpop.f32.mrb[0].mxu0
  %v2701 = vadd.f32 %v2426, %v2700
  %v2702 = vpop.f32.mrb[0].mxu0
  %v2703 = vadd.f32 %v2426, %v2702
  %2704 = vmatprep.mubr.f32.mxu0 0.0
  %2705 = vmatmul.mubr.f32.gmra.mrb[0].mxu0 %v2445
  %v2706 = vpop.f32.mrb[0].mxu0
  %v2707 = vadd.f32 %v2431, %v2706
  %v2708 = vpop.f32.mrb[0].mxu0
  %v2709 = vadd.f32 %v2431, %v2708
  %2710 = vmatprep.mubr.f32.mxu0 0.0
  %2711 = vmatmul.mubr.f32.gmra.mrb[0].mxu0 %v2448
  %v2712 = vpop.f32.mrb[0].mxu0
  %v2713 = vadd.f32 %v2436, %v2712
  %v2714 = vpop.f32.mrb[0].mxu0
  %v2715 = vadd.f32 %v2436, %v2714
  %2716 = vdwg.mxu0
  %2717 = vmatprep.subr.mxu0 %v2296
  %2718 = vmatpush1.msra.mxu0 %v2295
  %2719 = vmatprep.subr.mxu0 %v2304
  %2720 = vmatpush1.msra.mxu0 %v2303
  %2721 = vmatprep.subr.mxu0 %v100
  %2722 = vmatpush1.msra.mxu0 %v99
  %2723 = vmatprep.subr.mxu0 %v108
  %2724 = vmatpush1.msra.mxu0 %v107
  %2725 = vmatprep.subr.mxu0 %v2401
  %2726 = vmatpush1.msra.mxu0 %v2400
  %2727 = vmatprep.subr.mxu0 %v2409
  %2728 = vmatpush1.msra.mxu0 %v2408
  %2729 = vmatprep.subr.mxu0 0.0
  %2730 = vmatpush1.msra.mxu0 0.0
  %2731 = vmatprep.subr.mxu0 0.0
  %2732 = vmatpush1.msra.mxu0 0.0
  %2733 = vmatprep.subr.mxu0 0.0
  %2734 = vmatpush1.msra.mxu0 0.0
  %2735 = vmatprep.subr.mxu0 0.0
  %2736 = vmatpush1.msra.mxu0 0.0
  %2737 = vmatprep.subr.mxu0 0.0
  %2738 = vmatpush1.msra.mxu0 0.0
  %2739 = vmatprep.subr.mxu0 0.0
  %2740 = vmatpush1.msra.mxu0 0.0
  %2741 = vmatprep.subr.mxu0 0.0
  %2742 = vmatpush1.msra.mxu0 0.0
  %2743 = vmatprep.subr.mxu0 0.0
  %2744 = vmatpush1.msra.mxu0 0.0
  %2745 = vmatprep.subr.mxu0 0.0
  %2746 = vmatpush1.msra.mxu0 0.0
  %2747 = vmatprep.subr.mxu0 0.0
  %2748 = vmatpush1.msra.mxu0 0.0
  %2749 = vmatprep.subr.mxu0 0.0
  %2750 = vmatpush1.msra.mxu0 0.0
  %2751 = vmatprep.subr.mxu0 0.0
  %2752 = vmatpush1.msra.mxu0 0.0
  %2753 = vmatprep.subr.mxu0 0.0
  %2754 = vmatpush1.msra.mxu0 0.0
  %2755 = vmatprep.subr.mxu0 0.0
  %2756 = vmatpush1.msra.mxu0 0.0
  %2757 = vmatprep.subr.mxu0 0.0
  %2758 = vmatpush1.msra.mxu0 0.0
  %2759 = vmatprep.subr.mxu0 0.0
  %2760 = vmatpush1.msra.mxu0 0.0
  %2761 = vmatprep.subr.mxu0 0.0
  %2762 = vmatpush1.msra.mxu0 0.0
  %2763 = vmatprep.subr.mxu0 0.0
  %2764 = vmatpush1.msra.mxu0 0.0
  %2765 = vmatprep.subr.mxu0 0.0
  %2766 = vmatpush1.msra.mxu0 0.0
  %2767 = vmatprep.subr.mxu0 0.0
  %2768 = vmatpush1.msra.mxu0 0.0
  %2769 = vmatprep.subr.mxu0 0.0
  %2770 = vmatpush1.msra.mxu0 0.0
  %2771 = vmatprep.subr.mxu0 0.0
  %2772 = vmatpush1.msra.mxu0 0.0
  %2773 = vmatprep.subr.mxu0 0.0
  %2774 = vmatpush1.msra.mxu0 0.0
  %2775 = vmatprep.subr.mxu0 0.0
  %2776 = vmatpush1.msra.mxu0 0.0
  %2777 = vmatprep.subr.mxu0 0.0
  %2778 = vmatpush1.msra.mxu0 0.0
  %2779 = vmatprep.subr.mxu0 0.0
  %2780 = vmatpush1.msra.mxu0 0.0
  %2781 = vmatprep.mubr.f32.mxu0 0.0
  %2782 = vmatmul.mubr.f32.gmra.mrb[0].mxu0 %v2439
  %v2783 = vpop.f32.mrb[0].mxu0
  %v2784 = vadd.f32 %v2421, %v2783
  %v2785 = vpop.f32.mrb[0].mxu0
  %v2786 = vadd.f32 %v2421, %v2785
  %2787 = vmatprep.mubr.f32.mxu0 0.0
  %2788 = vmatmul.mubr.f32.gmra.mrb[0].mxu0 %v2442
  %v2789 = vpop.f32.mrb[0].mxu0
  %v2790 = vadd.f32 %v2426, %v2789
  %v2791 = vpop.f32.mrb[0].mxu0
  %v2792 = vadd.f32 %v2426, %v2791
  %2793 = vmatprep.mubr.f32.mxu0 0.0
  %2794 = vmatmul.mubr.f32.gmra.mrb[0].mxu0 %v2445
  %v2795 = vpop.f32.mrb[0].mxu0
  %v2796 = vadd.f32 %v2431, %v2795
  %v2797 = vpop.f32.mrb[0].mxu0
  %v2798 = vadd.f32 %v2431, %v2797
  %2799 = vmatprep.mubr.f32.mxu0 0.0
  %2800 = vmatmul.mubr.f32.gmra.mrb[0].mxu0 %v2448
  %v2801 = vpop.f32.mrb[0].mxu0
  %v2802 = vadd.f32 %v2436, %v2801
  %v2803 = vpop.f32.mrb[0].mxu0
  %v2804 = vadd.f32 %v2436, %v2803
  %2805 = vdwg.mxu0
  %2806 = vrot.lane.b32.xlu0 %v2517, 1
  %v2807 = vpop.permute.xlu0 %2806
  %2808 = vrot.lane.b32.xlu0 %v2523, 1
  %v2809 = vpop.permute.xlu0 %2808
  %2810 = vrot.lane.b32.xlu0 %v2529, 1
  %v2811 = vpop.permute.xlu0 %2810
  %2812 = vrot.lane.b32.xlu0 %v2535, 1
  %v2813 = vpop.permute.xlu0 %2812
  %2814 = vrot.lane.b32.xlu0 %v2519, 1
  %v2815 = vpop.permute.xlu0 %2814
  %2816 = vrot.lane.b32.xlu0 %v2525, 1
  %v2817 = vpop.permute.xlu0 %2816
  %2818 = vrot.lane.b32.xlu0 %v2531, 1
  %v2819 = vpop.permute.xlu0 %2818
  %2820 = vrot.lane.b32.xlu0 %v2537, 1
  %v2821 = vpop.permute.xlu0 %2820
  %2822 = vrot.lane.b32.xlu0 %v2606, 1
  %v2823 = vpop.permute.xlu0 %2822
  %2824 = vrot.lane.b32.xlu0 %v2612, 1
  %v2825 = vpop.permute.xlu0 %2824
  %2826 = vrot.lane.b32.xlu0 %v2618, 1
  %v2827 = vpop.permute.xlu0 %2826
  %2828 = vrot.lane.b32.xlu0 %v2624, 1
  %v2829 = vpop.permute.xlu0 %2828
  %2830 = vrot.lane.b32.xlu0 %v2608, 1
  %v2831 = vpop.permute.xlu0 %2830
  %2832 = vrot.lane.b32.xlu0 %v2614, 1
  %v2833 = vpop.permute.xlu0 %2832
  %2834 = vrot.lane.b32.xlu0 %v2620, 1
  %v2835 = vpop.permute.xlu0 %2834
  %2836 = vrot.lane.b32.xlu0 %v2626, 1
  %v2837 = vpop.permute.xlu0 %2836
  %2838 = vrot.lane.b32.xlu0 %v2695, 1
  %v2839 = vpop.permute.xlu0 %2838
  %2840 = vrot.lane.b32.xlu0 %v2701, 1
  %v2841 = vpop.permute.xlu0 %2840
  %2842 = vrot.lane.b32.xlu0 %v2707, 1
  %v2843 = vpop.permute.xlu0 %2842
  %2844 = vrot.lane.b32.xlu0 %v2713, 1
  %v2845 = vpop.permute.xlu0 %2844
  %2846 = vrot.lane.b32.xlu0 %v2697, 1
  %v2847 = vpop.permute.xlu0 %2846
  %2848 = vrot.lane.b32.xlu0 %v2703, 1
  %v2849 = vpop.permute.xlu0 %2848
  %2850 = vrot.lane.b32.xlu0 %v2709, 1
  %v2851 = vpop.permute.xlu0 %2850
  %2852 = vrot.lane.b32.xlu0 %v2715, 1
  %v2853 = vpop.permute.xlu0 %2852
  %2854 = vrot.lane.b32.xlu0 %v2784, 1
  %v2855 = vpop.permute.xlu0 %2854
  %2856 = vrot.lane.b32.xlu0 %v2790, 1
  %v2857 = vpop.permute.xlu0 %2856
  %2858 = vrot.lane.b32.xlu0 %v2796, 1
  %v2859 = vpop.permute.xlu0 %2858
  %2860 = vrot.lane.b32.xlu0 %v2802, 1
  %v2861 = vpop.permute.xlu0 %2860
  %2862 = vrot.lane.b32.xlu0 %v2786, 1
  %v2863 = vpop.permute.xlu0 %2862
  %2864 = vrot.lane.b32.xlu0 %v2792, 1
  %v2865 = vpop.permute.xlu0 %2864
  %2866 = vrot.lane.b32.xlu0 %v2798, 1
  %v2867 = vpop.permute.xlu0 %2866
  %2868 = vrot.lane.b32.xlu0 %v2804, 1
  %v2869 = vpop.permute.xlu0 %2868
  %v2870 = vsel %vm200, %v2855, %v2863
  %v2871 = vsel %vm200, %v2857, %v2865
  %v2872 = vsel %vm200, %v2859, %v2867
  %v2873 = vsel %vm200, %v2861, %v2869
  %v2874 = vsel %vm200, %v2847, %v2855
  %v2875 = vsel %vm200, %v2849, %v2857
  %v2876 = vsel %vm200, %v2851, %v2859
  %v2877 = vsel %vm200, %v2853, %v2861
  %v2878 = vsel %vm200, %v2839, %v2847
  %v2879 = vsel %vm200, %v2841, %v2849
  %v2880 = vsel %vm200, %v2843, %v2851
  %v2881 = vsel %vm200, %v2845, %v2853
  %v2882 = vsel %vm200, %v2831, %v2839
  %v2883 = vsel %vm200, %v2833, %v2841
  %v2884 = vsel %vm200, %v2835, %v2843
  %v2885 = vsel %vm200, %v2837, %v2845
  %v2886 = vsel %vm200, %v2823, %v2831
  %v2887 = vsel %vm200, %v2825, %v2833
  %v2888 = vsel %vm200, %v2827, %v2835
  %v2889 = vsel %vm200, %v2829, %v2837
  %v2890 = vsel %vm200, %v2815, %v2823
  %v2891 = vsel %vm200, %v2817, %v2825
  %v2892 = vsel %vm200, %v2819, %v2827
  %v2893 = vsel %vm200, %v2821, %v2829
  %v2894 = vsel %vm200, %v2807, %v2815
  %v2895 = vsel %vm200, %v2809, %v2817
  %v2896 = vsel %vm200, %v2811, %v2819
  %v2897 = vsel %vm200, %v2813, %v2821
  %v2898 = vsel %vm200, %v2863, %v2807
  %v2899 = vsel %vm200, %v2865, %v2809
  %v2900 = vsel %vm200, %v2867, %v2811
  %v2901 = vsel %vm200, %v2869, %v2813
  %v2902 = vmul.f32 %v2898, %v2252
  %v2903 = vmul.f32 %v2894, %v2256
  %v2904 = vmul.f32 %v2890, %v2260
  %v2905 = vmul.f32 %v2886, %v2264
  %v2906 = vmul.f32 %v2882, %v2268
  %v2907 = vmul.f32 %v2878, %v2272
  %v2908 = vmul.f32 %v2874, %v2276
  %v2909 = vmul.f32 %v2870, %v2280
  %v2910 = vmul.f32 %v2899, %v2252
  %v2911 = vmul.f32 %v2895, %v2256
  %v2912 = vmul.f32 %v2891, %v2260
  %v2913 = vmul.f32 %v2887, %v2264
  %v2914 = vmul.f32 %v2883, %v2268
  %v2915 = vmul.f32 %v2879, %v2272
  %v2916 = vmul.f32 %v2875, %v2276
  %v2917 = vmul.f32 %v2871, %v2280
  %v2918 = vmul.f32 %v2900, %v2252
  %v2919 = vmul.f32 %v2896, %v2256
  %v2920 = vmul.f32 %v2892, %v2260
  %v2921 = vmul.f32 %v2888, %v2264
  %v2922 = vmul.f32 %v2884, %v2268
  %v2923 = vmul.f32 %v2880, %v2272
  %v2924 = vmul.f32 %v2876, %v2276
  %v2925 = vmul.f32 %v2872, %v2280
  %v2926 = vmul.f32 %v2901, %v2252
  %v2927 = vmul.f32 %v2897, %v2256
  %v2928 = vmul.f32 %v2893, %v2260
  %v2929 = vmul.f32 %v2889, %v2264
  %v2930 = vmul.f32 %v2885, %v2268
  %v2931 = vmul.f32 %v2881, %v2272
  %v2932 = vmul.f32 %v2877, %v2276
  %v2933 = vmul.f32 %v2873, %v2280
  %2934 = vrot.lane.b32.xlu0 %v2517, 127
  %v2935 = vpop.permute.xlu0 %2934
  %2936 = vrot.lane.b32.xlu0 %v2523, 127
  %v2937 = vpop.permute.xlu0 %2936
  %2938 = vrot.lane.b32.xlu0 %v2529, 127
  %v2939 = vpop.permute.xlu0 %2938
  %2940 = vrot.lane.b32.xlu0 %v2535, 127
  %v2941 = vpop.permute.xlu0 %2940
  %2942 = vrot.lane.b32.xlu0 %v2519, 127
  %v2943 = vpop.permute.xlu0 %2942
  %2944 = vrot.lane.b32.xlu0 %v2525, 127
  %v2945 = vpop.permute.xlu0 %2944
  %2946 = vrot.lane.b32.xlu0 %v2531, 127
  %v2947 = vpop.permute.xlu0 %2946
  %2948 = vrot.lane.b32.xlu0 %v2537, 127
  %v2949 = vpop.permute.xlu0 %2948
  %2950 = vrot.lane.b32.xlu0 %v2606, 127
  %v2951 = vpop.permute.xlu0 %2950
  %2952 = vrot.lane.b32.xlu0 %v2612, 127
  %v2953 = vpop.permute.xlu0 %2952
  %2954 = vrot.lane.b32.xlu0 %v2618, 127
  %v2955 = vpop.permute.xlu0 %2954
  %2956 = vrot.lane.b32.xlu0 %v2624, 127
  %v2957 = vpop.permute.xlu0 %2956
  %2958 = vrot.lane.b32.xlu0 %v2608, 127
  %v2959 = vpop.permute.xlu0 %2958
  %2960 = vrot.lane.b32.xlu0 %v2614, 127
  %v2961 = vpop.permute.xlu0 %2960
  %2962 = vrot.lane.b32.xlu0 %v2620, 127
  %v2963 = vpop.permute.xlu0 %2962
  %2964 = vrot.lane.b32.xlu0 %v2626, 127
  %v2965 = vpop.permute.xlu0 %2964
  %2966 = vrot.lane.b32.xlu0 %v2695, 127
  %v2967 = vpop.permute.xlu0 %2966
  %2968 = vrot.lane.b32.xlu0 %v2701, 127
  %v2969 = vpop.permute.xlu0 %2968
  %2970 = vrot.lane.b32.xlu0 %v2707, 127
  %v2971 = vpop.permute.xlu0 %2970
  %2972 = vrot.lane.b32.xlu0 %v2713, 127
  %v2973 = vpop.permute.xlu0 %2972
  %2974 = vrot.lane.b32.xlu0 %v2697, 127
  %v2975 = vpop.permute.xlu0 %2974
  %2976 = vrot.lane.b32.xlu0 %v2703, 127
  %v2977 = vpop.permute.xlu0 %2976
  %2978 = vrot.lane.b32.xlu0 %v2709, 127
  %v2979 = vpop.permute.xlu0 %2978
  %2980 = vrot.lane.b32.xlu0 %v2715, 127
  %v2981 = vpop.permute.xlu0 %2980
  %2982 = vrot.lane.b32.xlu0 %v2784, 127
  %v2983 = vpop.permute.xlu0 %2982
  %2984 = vrot.lane.b32.xlu0 %v2790, 127
  %v2985 = vpop.permute.xlu0 %2984
  %2986 = vrot.lane.b32.xlu0 %v2796, 127
  %v2987 = vpop.permute.xlu0 %2986
  %2988 = vrot.lane.b32.xlu0 %v2802, 127
  %v2989 = vpop.permute.xlu0 %2988
  %2990 = vrot.lane.b32.xlu0 %v2786, 127
  %v2991 = vpop.permute.xlu0 %2990
  %2992 = vrot.lane.b32.xlu0 %v2792, 127
  %v2993 = vpop.permute.xlu0 %2992
  %2994 = vrot.lane.b32.xlu0 %v2798, 127
  %v2995 = vpop.permute.xlu0 %2994
  %2996 = vrot.lane.b32.xlu0 %v2804, 127
  %v2997 = vpop.permute.xlu0 %2996
  %v2998 = vsel %vm267, %v2983, %v2991
  %v2999 = vsel %vm267, %v2985, %v2993
  %v3000 = vsel %vm267, %v2987, %v2995
  %v3001 = vsel %vm267, %v2989, %v2997
  %v3002 = vsel %vm267, %v2975, %v2983
  %v3003 = vsel %vm267, %v2977, %v2985
  %v3004 = vsel %vm267, %v2979, %v2987
  %v3005 = vsel %vm267, %v2981, %v2989
  %v3006 = vsel %vm267, %v2967, %v2975
  %v3007 = vsel %vm267, %v2969, %v2977
  %v3008 = vsel %vm267, %v2971, %v2979
  %v3009 = vsel %vm267, %v2973, %v2981
  %v3010 = vsel %vm267, %v2959, %v2967
  %v3011 = vsel %vm267, %v2961, %v2969
  %v3012 = vsel %vm267, %v2963, %v2971
  %v3013 = vsel %vm267, %v2965, %v2973
  %v3014 = vsel %vm267, %v2951, %v2959
  %v3015 = vsel %vm267, %v2953, %v2961
  %v3016 = vsel %vm267, %v2955, %v2963
  %v3017 = vsel %vm267, %v2957, %v2965
  %v3018 = vsel %vm267, %v2943, %v2951
  %v3019 = vsel %vm267, %v2945, %v2953
  %v3020 = vsel %vm267, %v2947, %v2955
  %v3021 = vsel %vm267, %v2949, %v2957
  %v3022 = vsel %vm267, %v2935, %v2943
  %v3023 = vsel %vm267, %v2937, %v2945
  %v3024 = vsel %vm267, %v2939, %v2947
  %v3025 = vsel %vm267, %v2941, %v2949
  %v3026 = vsel %vm267, %v2991, %v2935
  %v3027 = vsel %vm267, %v2993, %v2937
  %v3028 = vsel %vm267, %v2995, %v2939
  %v3029 = vsel %vm267, %v2997, %v2941
  %v3030 = vmul.f32 %v3022, %v2357
  %v3031 = vmul.f32 %v3018, %v2361
  %v3032 = vmul.f32 %v3014, %v2365
  %v3033 = vmul.f32 %v3010, %v2369
  %v3034 = vmul.f32 %v3006, %v2373
  %v3035 = vmul.f32 %v3002, %v2377
  %v3036 = vmul.f32 %v2998, %v2381
  %v3037 = vmul.f32 %v3026, %v2385
  %v3038 = vmul.f32 %v3023, %v2357
  %v3039 = vmul.f32 %v3019, %v2361
  %v3040 = vmul.f32 %v3015, %v2365
  %v3041 = vmul.f32 %v3011, %v2369
  %v3042 = vmul.f32 %v3007, %v2373
  %v3043 = vmul.f32 %v3003, %v2377
  %v3044 = vmul.f32 %v2999, %v2381
  %v3045 = vmul.f32 %v3027, %v2385
  %v3046 = vmul.f32 %v3024, %v2357
  %v3047 = vmul.f32 %v3020, %v2361
  %v3048 = vmul.f32 %v3016, %v2365
  %v3049 = vmul.f32 %v3012, %v2369
  %v3050 = vmul.f32 %v3008, %v2373
  %v3051 = vmul.f32 %v3004, %v2377
  %v3052 = vmul.f32 %v3000, %v2381
  %v3053 = vmul.f32 %v3028, %v2385
  %v3054 = vmul.f32 %v3025, %v2357
  %v3055 = vmul.f32 %v3021, %v2361
  %v3056 = vmul.f32 %v3017, %v2365
  %v3057 = vmul.f32 %v3013, %v2369
  %v3058 = vmul.f32 %v3009, %v2373
  %v3059 = vmul.f32 %v3005, %v2377
  %v3060 = vmul.f32 %v3001, %v2381
  %v3061 = vmul.f32 %v3029, %v2385
  %v3062 = vld [vmem:[%s16] sm:$0xff]
  %v3063 = vld [vmem:[%s16 + $0x8] sm:$0xff]
  %v3064 = vld [vmem:[%s16 + $0x10] sm:$0xff]
  %v3065 = vld [vmem:[%s16 + $0x18] sm:$0xff]
  %v3066 = vld [vmem:[%s16 + $0x20] sm:$0xff]
  %v3067 = vld [vmem:[%s16 + $0x28] sm:$0xff]
  %v3068 = vld [vmem:[%s16 + $0x30] sm:$0xff]
  %v3069 = vld [vmem:[%s16 + $0x38] sm:$0xff]
  %v3070 = vld [vmem:[%s17] sm:$0xff]
  %v3071 = vld [vmem:[%s17 + $0x8] sm:$0xff]
  %v3072 = vld [vmem:[%s17 + $0x10] sm:$0xff]
  %v3073 = vld [vmem:[%s17 + $0x18] sm:$0xff]
  %v3074 = vld [vmem:[%s17 + $0x20] sm:$0xff]
  %v3075 = vld [vmem:[%s17 + $0x28] sm:$0xff]
  %v3076 = vld [vmem:[%s17 + $0x30] sm:$0xff]
  %v3077 = vld [vmem:[%s17 + $0x38] sm:$0xff]
  %3079 = vset.pattern.permute.xlu0 0
  %3080 = vperm.xlu0 %3079, %v3070
  %v3081 = vpop.permute.xlu0 %3080
  %3084 = vset.pattern.permute.xlu0 0
  %3085 = vperm.xlu0 %3084, %v3071
  %v3086 = vpop.permute.xlu0 %3085
  %3089 = vset.pattern.permute.xlu0 0
  %3090 = vperm.xlu0 %3089, %v3072
  %v3091 = vpop.permute.xlu0 %3090
  %3094 = vset.pattern.permute.xlu0 0
  %3095 = vperm.xlu0 %3094, %v3073
  %v3096 = vpop.permute.xlu0 %3095
  %3099 = vset.pattern.permute.xlu0 0
  %3100 = vperm.xlu0 %3099, %v3074
  %v3101 = vpop.permute.xlu0 %3100
  %3104 = vset.pattern.permute.xlu0 0
  %3105 = vperm.xlu0 %3104, %v3075
  %v3106 = vpop.permute.xlu0 %3105
  %3109 = vset.pattern.permute.xlu0 0
  %3110 = vperm.xlu0 %3109, %v3076
  %v3111 = vpop.permute.xlu0 %3110
  %3114 = vset.pattern.permute.xlu0 0
  %3115 = vperm.xlu0 %3114, %v3077
  %v3116 = vpop.permute.xlu0 %3115
  %v3119 = vsel %vm834, %v3062, 0
  %v3122 = vsel %vm834, %v3063, 0
  %v3125 = vsel %vm834, %v3064, 0
  %v3128 = vsel %vm834, %v3065, 0
  %v3131 = vsel %vm834, %v3066, 0
  %v3134 = vsel %vm834, %v3067, 0
  %v3137 = vsel %vm834, %v3068, 0
  %v3140 = vsel %vm834, %v3069, 0
  %3142 = vmatprep.subr.mxu0 %v2903
  %3143 = vmatpush1.msra.mxu0 %v2902
  %3144 = vmatprep.subr.mxu0 %v2911
  %3145 = vmatpush1.msra.mxu0 %v2910
  %3146 = vmatprep.subr.mxu0 %v2919
  %3147 = vmatpush1.msra.mxu0 %v2918
  %3148 = vmatprep.subr.mxu0 %v2927
  %3149 = vmatpush1.msra.mxu0 %v2926
  %3150 = vmatprep.subr.mxu0 %v2519
  %3151 = vmatpush1.msra.mxu0 %v2517
  %3152 = vmatprep.subr.mxu0 %v2525
  %3153 = vmatpush1.msra.mxu0 %v2523
  %3154 = vmatprep.subr.mxu0 %v2531
  %3155 = vmatpush1.msra.mxu0 %v2529
  %3156 = vmatprep.subr.mxu0 %v2537
  %3157 = vmatpush1.msra.mxu0 %v2535
  %3158 = vmatprep.subr.mxu0 %v3031
  %3159 = vmatpush1.msra.mxu0 %v3030
  %3160 = vmatprep.subr.mxu0 %v3039
  %3161 = vmatpush1.msra.mxu0 %v3038
  %3162 = vmatprep.subr.mxu0 %v3047
  %3163 = vmatpush1.msra.mxu0 %v3046
  %3164 = vmatprep.subr.mxu0 %v3055
  %3165 = vmatpush1.msra.mxu0 %v3054
  %3166 = vmatprep.subr.mxu0 0.0
  %3167 = vmatpush1.msra.mxu0 0.0
  %3168 = vmatprep.subr.mxu0 0.0
  %3169 = vmatpush1.msra.mxu0 0.0
  %3170 = vmatprep.subr.mxu0 0.0
  %3171 = vmatpush1.msra.mxu0 0.0
  %3172 = vmatprep.subr.mxu0 0.0
  %3173 = vmatpush1.msra.mxu0 0.0
  %3174 = vmatprep.subr.mxu0 0.0
  %3175 = vmatpush1.msra.mxu0 0.0
  %3176 = vmatprep.subr.mxu0 0.0
  %3177 = vmatpush1.msra.mxu0 0.0
  %3178 = vmatprep.subr.mxu0 0.0
  %3179 = vmatpush1.msra.mxu0 0.0
  %3180 = vmatprep.subr.mxu0 0.0
  %3181 = vmatpush1.msra.mxu0 0.0
  %3182 = vmatprep.subr.mxu0 0.0
  %3183 = vmatpush1.msra.mxu0 0.0
  %3184 = vmatprep.subr.mxu0 0.0
  %3185 = vmatpush1.msra.mxu0 0.0
  %3186 = vmatprep.subr.mxu0 0.0
  %3187 = vmatpush1.msra.mxu0 0.0
  %3188 = vmatprep.subr.mxu0 0.0
  %3189 = vmatpush1.msra.mxu0 0.0
  %3190 = vmatprep.subr.mxu0 0.0
  %3191 = vmatpush1.msra.mxu0 0.0
  %3192 = vmatprep.subr.mxu0 0.0
  %3193 = vmatpush1.msra.mxu0 0.0
  %3194 = vmatprep.subr.mxu0 0.0
  %3195 = vmatpush1.msra.mxu0 0.0
  %3196 = vmatprep.subr.mxu0 0.0
  %3197 = vmatpush1.msra.mxu0 0.0
  %3198 = vmatprep.subr.mxu0 0.0
  %3199 = vmatpush1.msra.mxu0 0.0
  %3200 = vmatprep.subr.mxu0 0.0
  %3201 = vmatpush1.msra.mxu0 0.0
  %3202 = vmatprep.subr.mxu0 0.0
  %3203 = vmatpush1.msra.mxu0 0.0
  %3204 = vmatprep.subr.mxu0 0.0
  %3205 = vmatpush1.msra.mxu0 0.0
  %3206 = vmatprep.mubr.f32.mxu0 0.0
  %3207 = vmatmul.mubr.f32.gmra.mrb[0].mxu0 %v3119
  %v3208 = vpop.f32.mrb[0].mxu0
  %v3209 = vadd.f32 %v3081, %v3208
  %v3210 = vpop.f32.mrb[0].mxu0
  %v3211 = vadd.f32 %v3081, %v3210
  %3212 = vmatprep.mubr.f32.mxu0 0.0
  %3213 = vmatmul.mubr.f32.gmra.mrb[0].mxu0 %v3122
  %v3214 = vpop.f32.mrb[0].mxu0
  %v3215 = vadd.f32 %v3086, %v3214
  %v3216 = vpop.f32.mrb[0].mxu0
  %v3217 = vadd.f32 %v3086, %v3216
  %3218 = vmatprep.mubr.f32.mxu0 0.0
  %3219 = vmatmul.mubr.f32.gmra.mrb[0].mxu0 %v3125
  %v3220 = vpop.f32.mrb[0].mxu0
  %v3221 = vadd.f32 %v3091, %v3220
  %v3222 = vpop.f32.mrb[0].mxu0
  %v3223 = vadd.f32 %v3091, %v3222
  %3224 = vmatprep.mubr.f32.mxu0 0.0
  %3225 = vmatmul.mubr.f32.gmra.mrb[0].mxu0 %v3128
  %v3226 = vpop.f32.mrb[0].mxu0
  %v3227 = vadd.f32 %v3096, %v3226
  %v3228 = vpop.f32.mrb[0].mxu0
  %v3229 = vadd.f32 %v3096, %v3228
  %3230 = vmatprep.mubr.f32.mxu0 0.0
  %3231 = vmatmul.mubr.f32.gmra.mrb[0].mxu0 %v3131
  %v3232 = vpop.f32.mrb[0].mxu0
  %v3233 = vadd.f32 %v3101, %v3232
  %v3234 = vpop.f32.mrb[0].mxu0
  %v3235 = vadd.f32 %v3101, %v3234
  %3236 = vmatprep.mubr.f32.mxu0 0.0
  %3237 = vmatmul.mubr.f32.gmra.mrb[0].mxu0 %v3134
  %v3238 = vpop.f32.mrb[0].mxu0
  %v3239 = vadd.f32 %v3106, %v3238
  %v3240 = vpop.f32.mrb[0].mxu0
  %v3241 = vadd.f32 %v3106, %v3240
  %3242 = vmatprep.mubr.f32.mxu0 0.0
  %3243 = vmatmul.mubr.f32.gmra.mrb[0].mxu0 %v3137
  %v3244 = vpop.f32.mrb[0].mxu0
  %v3245 = vadd.f32 %v3111, %v3244
  %v3246 = vpop.f32.mrb[0].mxu0
  %v3247 = vadd.f32 %v3111, %v3246
  %3248 = vmatprep.mubr.f32.mxu0 0.0
  %3249 = vmatmul.mubr.f32.gmra.mrb[0].mxu0 %v3140
  %v3250 = vpop.f32.mrb[0].mxu0
  %v3251 = vadd.f32 %v3116, %v3250
  %v3252 = vpop.f32.mrb[0].mxu0
  %v3253 = vadd.f32 %v3116, %v3252
  %3254 = vdwg.mxu0
  %3255 = vmatprep.subr.mxu0 %v2905
  %3256 = vmatpush1.msra.mxu0 %v2904
  %3257 = vmatprep.subr.mxu0 %v2913
  %3258 = vmatpush1.msra.mxu0 %v2912
  %3259 = vmatprep.subr.mxu0 %v2921
  %3260 = vmatpush1.msra.mxu0 %v2920
  %3261 = vmatprep.subr.mxu0 %v2929
  %3262 = vmatpush1.msra.mxu0 %v2928
  %3263 = vmatprep.subr.mxu0 %v2608
  %3264 = vmatpush1.msra.mxu0 %v2606
  %3265 = vmatprep.subr.mxu0 %v2614
  %3266 = vmatpush1.msra.mxu0 %v2612
  %3267 = vmatprep.subr.mxu0 %v2620
  %3268 = vmatpush1.msra.mxu0 %v2618
  %3269 = vmatprep.subr.mxu0 %v2626
  %3270 = vmatpush1.msra.mxu0 %v2624
  %3271 = vmatprep.subr.mxu0 %v3033
  %3272 = vmatpush1.msra.mxu0 %v3032
  %3273 = vmatprep.subr.mxu0 %v3041
  %3274 = vmatpush1.msra.mxu0 %v3040
  %3275 = vmatprep.subr.mxu0 %v3049
  %3276 = vmatpush1.msra.mxu0 %v3048
  %3277 = vmatprep.subr.mxu0 %v3057
  %3278 = vmatpush1.msra.mxu0 %v3056
  %3279 = vmatprep.subr.mxu0 0.0
  %3280 = vmatpush1.msra.mxu0 0.0
  %3281 = vmatprep.subr.mxu0 0.0
  %3282 = vmatpush1.msra.mxu0 0.0
  %3283 = vmatprep.subr.mxu0 0.0
  %3284 = vmatpush1.msra.mxu0 0.0
  %3285 = vmatprep.subr.mxu0 0.0
  %3286 = vmatpush1.msra.mxu0 0.0
  %3287 = vmatprep.subr.mxu0 0.0
  %3288 = vmatpush1.msra.mxu0 0.0
  %3289 = vmatprep.subr.mxu0 0.0
  %3290 = vmatpush1.msra.mxu0 0.0
  %3291 = vmatprep.subr.mxu0 0.0
  %3292 = vmatpush1.msra.mxu0 0.0
  %3293 = vmatprep.subr.mxu0 0.0
  %3294 = vmatpush1.msra.mxu0 0.0
  %3295 = vmatprep.subr.mxu0 0.0
  %3296 = vmatpush1.msra.mxu0 0.0
  %3297 = vmatprep.subr.mxu0 0.0
  %3298 = vmatpush1.msra.mxu0 0.0
  %3299 = vmatprep.subr.mxu0 0.0
  %3300 = vmatpush1.msra.mxu0 0.0
  %3301 = vmatprep.subr.mxu0 0.0
  %3302 = vmatpush1.msra.mxu0 0.0
  %3303 = vmatprep.subr.mxu0 0.0
  %3304 = vmatpush1.msra.mxu0 0.0
  %3305 = vmatprep.subr.mxu0 0.0
  %3306 = vmatpush1.msra.mxu0 0.0
  %3307 = vmatprep.subr.mxu0 0.0
  %3308 = vmatpush1.msra.mxu0 0.0
  %3309 = vmatprep.subr.mxu0 0.0
  %3310 = vmatpush1.msra.mxu0 0.0
  %3311 = vmatprep.subr.mxu0 0.0
  %3312 = vmatpush1.msra.mxu0 0.0
  %3313 = vmatprep.subr.mxu0 0.0
  %3314 = vmatpush1.msra.mxu0 0.0
  %3315 = vmatprep.subr.mxu0 0.0
  %3316 = vmatpush1.msra.mxu0 0.0
  %3317 = vmatprep.subr.mxu0 0.0
  %3318 = vmatpush1.msra.mxu0 0.0
  %3319 = vmatprep.mubr.f32.mxu0 0.0
  %3320 = vmatmul.mubr.f32.gmra.mrb[0].mxu0 %v3119
  %v3321 = vpop.f32.mrb[0].mxu0
  %v3322 = vadd.f32 %v3081, %v3321
  %v3323 = vpop.f32.mrb[0].mxu0
  %v3324 = vadd.f32 %v3081, %v3323
  %3325 = vmatprep.mubr.f32.mxu0 0.0
  %3326 = vmatmul.mubr.f32.gmra.mrb[0].mxu0 %v3122
  %v3327 = vpop.f32.mrb[0].mxu0
  %v3328 = vadd.f32 %v3086, %v3327
  %v3329 = vpop.f32.mrb[0].mxu0
  %v3330 = vadd.f32 %v3086, %v3329
  %3331 = vmatprep.mubr.f32.mxu0 0.0
  %3332 = vmatmul.mubr.f32.gmra.mrb[0].mxu0 %v3125
  %v3333 = vpop.f32.mrb[0].mxu0
  %v3334 = vadd.f32 %v3091, %v3333
  %v3335 = vpop.f32.mrb[0].mxu0
  %v3336 = vadd.f32 %v3091, %v3335
  %3337 = vmatprep.mubr.f32.mxu0 0.0
  %3338 = vmatmul.mubr.f32.gmra.mrb[0].mxu0 %v3128
  %v3339 = vpop.f32.mrb[0].mxu0
  %v3340 = vadd.f32 %v3096, %v3339
  %v3341 = vpop.f32.mrb[0].mxu0
  %v3342 = vadd.f32 %v3096, %v3341
  %3343 = vmatprep.mubr.f32.mxu0 0.0
  %3344 = vmatmul.mubr.f32.gmra.mrb[0].mxu0 %v3131
  %v3345 = vpop.f32.mrb[0].mxu0
  %v3346 = vadd.f32 %v3101, %v3345
  %v3347 = vpop.f32.mrb[0].mxu0
  %v3348 = vadd.f32 %v3101, %v3347
  %3349 = vmatprep.mubr.f32.mxu0 0.0
  %3350 = vmatmul.mubr.f32.gmra.mrb[0].mxu0 %v3134
  %v3351 = vpop.f32.mrb[0].mxu0
  %v3352 = vadd.f32 %v3106, %v3351
  %v3353 = vpop.f32.mrb[0].mxu0
  %v3354 = vadd.f32 %v3106, %v3353
  %3355 = vmatprep.mubr.f32.mxu0 0.0
  %3356 = vmatmul.mubr.f32.gmra.mrb[0].mxu0 %v3137
  %v3357 = vpop.f32.mrb[0].mxu0
  %v3358 = vadd.f32 %v3111, %v3357
  %v3359 = vpop.f32.mrb[0].mxu0
  %v3360 = vadd.f32 %v3111, %v3359
  %3361 = vmatprep.mubr.f32.mxu0 0.0
  %3362 = vmatmul.mubr.f32.gmra.mrb[0].mxu0 %v3140
  %v3363 = vpop.f32.mrb[0].mxu0
  %v3364 = vadd.f32 %v3116, %v3363
  %v3365 = vpop.f32.mrb[0].mxu0
  %v3366 = vadd.f32 %v3116, %v3365
  %3367 = vdwg.mxu0
  %3368 = vmatprep.subr.mxu0 %v2907
  %3369 = vmatpush1.msra.mxu0 %v2906
  %3370 = vmatprep.subr.mxu0 %v2915
  %3371 = vmatpush1.msra.mxu0 %v2914
  %3372 = vmatprep.subr.mxu0 %v2923
  %3373 = vmatpush1.msra.mxu0 %v2922
  %3374 = vmatprep.subr.mxu0 %v2931
  %3375 = vmatpush1.msra.mxu0 %v2930
  %3376 = vmatprep.subr.mxu0 %v2697
  %3377 = vmatpush1.msra.mxu0 %v2695
  %3378 = vmatprep.subr.mxu0 %v2703
  %3379 = vmatpush1.msra.mxu0 %v2701
  %3380 = vmatprep.subr.mxu0 %v2709
  %3381 = vmatpush1.msra.mxu0 %v2707
  %3382 = vmatprep.subr.mxu0 %v2715
  %3383 = vmatpush1.msra.mxu0 %v2713
  %3384 = vmatprep.subr.mxu0 %v3035
  %3385 = vmatpush1.msra.mxu0 %v3034
  %3386 = vmatprep.subr.mxu0 %v3043
  %3387 = vmatpush1.msra.mxu0 %v3042
  %3388 = vmatprep.subr.mxu0 %v3051
  %3389 = vmatpush1.msra.mxu0 %v3050
  %3390 = vmatprep.subr.mxu0 %v3059
  %3391 = vmatpush1.msra.mxu0 %v3058
  %3392 = vmatprep.subr.mxu0 0.0
  %3393 = vmatpush1.msra.mxu0 0.0
  %3394 = vmatprep.subr.mxu0 0.0
  %3395 = vmatpush1.msra.mxu0 0.0
  %3396 = vmatprep.subr.mxu0 0.0
  %3397 = vmatpush1.msra.mxu0 0.0
  %3398 = vmatprep.subr.mxu0 0.0
  %3399 = vmatpush1.msra.mxu0 0.0
  %3400 = vmatprep.subr.mxu0 0.0
  %3401 = vmatpush1.msra.mxu0 0.0
  %3402 = vmatprep.subr.mxu0 0.0
  %3403 = vmatpush1.msra.mxu0 0.0
  %3404 = vmatprep.subr.mxu0 0.0
  %3405 = vmatpush1.msra.mxu0 0.0
  %3406 = vmatprep.subr.mxu0 0.0
  %3407 = vmatpush1.msra.mxu0 0.0
  %3408 = vmatprep.subr.mxu0 0.0
  %3409 = vmatpush1.msra.mxu0 0.0
  %3410 = vmatprep.subr.mxu0 0.0
  %3411 = vmatpush1.msra.mxu0 0.0
  %3412 = vmatprep.subr.mxu0 0.0
  %3413 = vmatpush1.msra.mxu0 0.0
  %3414 = vmatprep.subr.mxu0 0.0
  %3415 = vmatpush1.msra.mxu0 0.0
  %3416 = vmatprep.subr.mxu0 0.0
  %3417 = vmatpush1.msra.mxu0 0.0
  %3418 = vmatprep.subr.mxu0 0.0
  %3419 = vmatpush1.msra.mxu0 0.0
  %3420 = vmatprep.subr.mxu0 0.0
  %3421 = vmatpush1.msra.mxu0 0.0
  %3422 = vmatprep.subr.mxu0 0.0
  %3423 = vmatpush1.msra.mxu0 0.0
  %3424 = vmatprep.subr.mxu0 0.0
  %3425 = vmatpush1.msra.mxu0 0.0
  %3426 = vmatprep.subr.mxu0 0.0
  %3427 = vmatpush1.msra.mxu0 0.0
  %3428 = vmatprep.subr.mxu0 0.0
  %3429 = vmatpush1.msra.mxu0 0.0
  %3430 = vmatprep.subr.mxu0 0.0
  %3431 = vmatpush1.msra.mxu0 0.0
  %3432 = vmatprep.mubr.f32.mxu0 0.0
  %3433 = vmatmul.mubr.f32.gmra.mrb[0].mxu0 %v3119
  %v3434 = vpop.f32.mrb[0].mxu0
  %v3435 = vadd.f32 %v3081, %v3434
  %v3436 = vpop.f32.mrb[0].mxu0
  %v3437 = vadd.f32 %v3081, %v3436
  %3438 = vmatprep.mubr.f32.mxu0 0.0
  %3439 = vmatmul.mubr.f32.gmra.mrb[0].mxu0 %v3122
  %v3440 = vpop.f32.mrb[0].mxu0
  %v3441 = vadd.f32 %v3086, %v3440
  %v3442 = vpop.f32.mrb[0].mxu0
  %v3443 = vadd.f32 %v3086, %v3442
  %3444 = vmatprep.mubr.f32.mxu0 0.0
  %3445 = vmatmul.mubr.f32.gmra.mrb[0].mxu0 %v3125
  %v3446 = vpop.f32.mrb[0].mxu0
  %v3447 = vadd.f32 %v3091, %v3446
  %v3448 = vpop.f32.mrb[0].mxu0
  %v3449 = vadd.f32 %v3091, %v3448
  %3450 = vmatprep.mubr.f32.mxu0 0.0
  %3451 = vmatmul.mubr.f32.gmra.mrb[0].mxu0 %v3128
  %v3452 = vpop.f32.mrb[0].mxu0
  %v3453 = vadd.f32 %v3096, %v3452
  %v3454 = vpop.f32.mrb[0].mxu0
  %v3455 = vadd.f32 %v3096, %v3454
  %3456 = vmatprep.mubr.f32.mxu0 0.0
  %3457 = vmatmul.mubr.f32.gmra.mrb[0].mxu0 %v3131
  %v3458 = vpop.f32.mrb[0].mxu0
  %v3459 = vadd.f32 %v3101, %v3458
  %v3460 = vpop.f32.mrb[0].mxu0
  %v3461 = vadd.f32 %v3101, %v3460
  %3462 = vmatprep.mubr.f32.mxu0 0.0
  %3463 = vmatmul.mubr.f32.gmra.mrb[0].mxu0 %v3134
  %v3464 = vpop.f32.mrb[0].mxu0
  %v3465 = vadd.f32 %v3106, %v3464
  %v3466 = vpop.f32.mrb[0].mxu0
  %v3467 = vadd.f32 %v3106, %v3466
  %3468 = vmatprep.mubr.f32.mxu0 0.0
  %3469 = vmatmul.mubr.f32.gmra.mrb[0].mxu0 %v3137
  %v3470 = vpop.f32.mrb[0].mxu0
  %v3471 = vadd.f32 %v3111, %v3470
  %v3472 = vpop.f32.mrb[0].mxu0
  %v3473 = vadd.f32 %v3111, %v3472
  %3474 = vmatprep.mubr.f32.mxu0 0.0
  %3475 = vmatmul.mubr.f32.gmra.mrb[0].mxu0 %v3140
  %v3476 = vpop.f32.mrb[0].mxu0
  %v3477 = vadd.f32 %v3116, %v3476
  %v3478 = vpop.f32.mrb[0].mxu0
  %v3479 = vadd.f32 %v3116, %v3478
  %3480 = vdwg.mxu0
  %3481 = vmatprep.subr.mxu0 %v2909
  %3482 = vmatpush1.msra.mxu0 %v2908
  %3483 = vmatprep.subr.mxu0 %v2917
  %3484 = vmatpush1.msra.mxu0 %v2916
  %3485 = vmatprep.subr.mxu0 %v2925
  %3486 = vmatpush1.msra.mxu0 %v2924
  %3487 = vmatprep.subr.mxu0 %v2933
  %3488 = vmatpush1.msra.mxu0 %v2932
  %3489 = vmatprep.subr.mxu0 %v2786
  %3490 = vmatpush1.msra.mxu0 %v2784
  %3491 = vmatprep.subr.mxu0 %v2792
  %3492 = vmatpush1.msra.mxu0 %v2790
  %3493 = vmatprep.subr.mxu0 %v2798
  %3494 = vmatpush1.msra.mxu0 %v2796
  %3495 = vmatprep.subr.mxu0 %v2804
  %3496 = vmatpush1.msra.mxu0 %v2802
  %3497 = vmatprep.subr.mxu0 %v3037
  %3498 = vmatpush1.msra.mxu0 %v3036
  %3499 = vmatprep.subr.mxu0 %v3045
  %3500 = vmatpush1.msra.mxu0 %v3044
  %3501 = vmatprep.subr.mxu0 %v3053
  %3502 = vmatpush1.msra.mxu0 %v3052
  %3503 = vmatprep.subr.mxu0 %v3061
  %3504 = vmatpush1.msra.mxu0 %v3060
  %3505 = vmatprep.subr.mxu0 0.0
  %3506 = vmatpush1.msra.mxu0 0.0
  %3507 = vmatprep.subr.mxu0 0.0
  %3508 = vmatpush1.msra.mxu0 0.0
  %3509 = vmatprep.subr.mxu0 0.0
  %3510 = vmatpush1.msra.mxu0 0.0
  %3511 = vmatprep.subr.mxu0 0.0
  %3512 = vmatpush1.msra.mxu0 0.0
  %3513 = vmatprep.subr.mxu0 0.0
  %3514 = vmatpush1.msra.mxu0 0.0
  %3515 = vmatprep.subr.mxu0 0.0
  %3516 = vmatpush1.msra.mxu0 0.0
  %3517 = vmatprep.subr.mxu0 0.0
  %3518 = vmatpush1.msra.mxu0 0.0
  %3519 = vmatprep.subr.mxu0 0.0
  %3520 = vmatpush1.msra.mxu0 0.0
  %3521 = vmatprep.subr.mxu0 0.0
  %3522 = vmatpush1.msra.mxu0 0.0
  %3523 = vmatprep.subr.mxu0 0.0
  %3524 = vmatpush1.msra.mxu0 0.0
  %3525 = vmatprep.subr.mxu0 0.0
  %3526 = vmatpush1.msra.mxu0 0.0
  %3527 = vmatprep.subr.mxu0 0.0
  %3528 = vmatpush1.msra.mxu0 0.0
  %3529 = vmatprep.subr.mxu0 0.0
  %3530 = vmatpush1.msra.mxu0 0.0
  %3531 = vmatprep.subr.mxu0 0.0
  %3532 = vmatpush1.msra.mxu0 0.0
  %3533 = vmatprep.subr.mxu0 0.0
  %3534 = vmatpush1.msra.mxu0 0.0
  %3535 = vmatprep.subr.mxu0 0.0
  %3536 = vmatpush1.msra.mxu0 0.0
  %3537 = vmatprep.subr.mxu0 0.0
  %3538 = vmatpush1.msra.mxu0 0.0
  %3539 = vmatprep.subr.mxu0 0.0
  %3540 = vmatpush1.msra.mxu0 0.0
  %3541 = vmatprep.subr.mxu0 0.0
  %3542 = vmatpush1.msra.mxu0 0.0
  %3543 = vmatprep.subr.mxu0 0.0
  %3544 = vmatpush1.msra.mxu0 0.0
  %3545 = vmatprep.mubr.f32.mxu0 0.0
  %3546 = vmatmul.mubr.f32.gmra.mrb[0].mxu0 %v3119
  %v3547 = vpop.f32.mrb[0].mxu0
  %v3548 = vadd.f32 %v3081, %v3547
  %v3549 = vpop.f32.mrb[0].mxu0
  %v3550 = vadd.f32 %v3081, %v3549
  %3551 = vmatprep.mubr.f32.mxu0 0.0
  %3552 = vmatmul.mubr.f32.gmra.mrb[0].mxu0 %v3122
  %v3553 = vpop.f32.mrb[0].mxu0
  %v3554 = vadd.f32 %v3086, %v3553
  %v3555 = vpop.f32.mrb[0].mxu0
  %v3556 = vadd.f32 %v3086, %v3555
  %3557 = vmatprep.mubr.f32.mxu0 0.0
  %3558 = vmatmul.mubr.f32.gmra.mrb[0].mxu0 %v3125
  %v3559 = vpop.f32.mrb[0].mxu0
  %v3560 = vadd.f32 %v3091, %v3559
  %v3561 = vpop.f32.mrb[0].mxu0
  %v3562 = vadd.f32 %v3091, %v3561
  %3563 = vmatprep.mubr.f32.mxu0 0.0
  %3564 = vmatmul.mubr.f32.gmra.mrb[0].mxu0 %v3128
  %v3565 = vpop.f32.mrb[0].mxu0
  %v3566 = vadd.f32 %v3096, %v3565
  %v3567 = vpop.f32.mrb[0].mxu0
  %v3568 = vadd.f32 %v3096, %v3567
  %3569 = vmatprep.mubr.f32.mxu0 0.0
  %3570 = vmatmul.mubr.f32.gmra.mrb[0].mxu0 %v3131
  %v3571 = vpop.f32.mrb[0].mxu0
  %v3572 = vadd.f32 %v3101, %v3571
  %v3573 = vpop.f32.mrb[0].mxu0
  %v3574 = vadd.f32 %v3101, %v3573
  %3575 = vmatprep.mubr.f32.mxu0 0.0
  %3576 = vmatmul.mubr.f32.gmra.mrb[0].mxu0 %v3134
  %v3577 = vpop.f32.mrb[0].mxu0
  %v3578 = vadd.f32 %v3106, %v3577
  %v3579 = vpop.f32.mrb[0].mxu0
  %v3580 = vadd.f32 %v3106, %v3579
  %3581 = vmatprep.mubr.f32.mxu0 0.0
  %3582 = vmatmul.mubr.f32.gmra.mrb[0].mxu0 %v3137
  %v3583 = vpop.f32.mrb[0].mxu0
  %v3584 = vadd.f32 %v3111, %v3583
  %v3585 = vpop.f32.mrb[0].mxu0
  %v3586 = vadd.f32 %v3111, %v3585
  %3587 = vmatprep.mubr.f32.mxu0 0.0
  %3588 = vmatmul.mubr.f32.gmra.mrb[0].mxu0 %v3140
  %v3589 = vpop.f32.mrb[0].mxu0
  %v3590 = vadd.f32 %v3116, %v3589
  %v3591 = vpop.f32.mrb[0].mxu0
  %v3592 = vadd.f32 %v3116, %v3591
  %3593 = vdwg.mxu0
  %3594 = vrot.lane.b32.xlu0 %v3209, 1
  %v3595 = vpop.permute.xlu0 %3594
  %3596 = vrot.lane.b32.xlu0 %v3215, 1
  %v3597 = vpop.permute.xlu0 %3596
  %3598 = vrot.lane.b32.xlu0 %v3221, 1
  %v3599 = vpop.permute.xlu0 %3598
  %3600 = vrot.lane.b32.xlu0 %v3227, 1
  %v3601 = vpop.permute.xlu0 %3600
  %3602 = vrot.lane.b32.xlu0 %v3233, 1
  %v3603 = vpop.permute.xlu0 %3602
  %3604 = vrot.lane.b32.xlu0 %v3239, 1
  %v3605 = vpop.permute.xlu0 %3604
  %3606 = vrot.lane.b32.xlu0 %v3245, 1
  %v3607 = vpop.permute.xlu0 %3606
  %3608 = vrot.lane.b32.xlu0 %v3251, 1
  %v3609 = vpop.permute.xlu0 %3608
  %3610 = vrot.lane.b32.xlu0 %v3211, 1
  %v3611 = vpop.permute.xlu0 %3610
  %3612 = vrot.lane.b32.xlu0 %v3217, 1
  %v3613 = vpop.permute.xlu0 %3612
  %3614 = vrot.lane.b32.xlu0 %v3223, 1
  %v3615 = vpop.permute.xlu0 %3614
  %3616 = vrot.lane.b32.xlu0 %v3229, 1
  %v3617 = vpop.permute.xlu0 %3616
  %3618 = vrot.lane.b32.xlu0 %v3235, 1
  %v3619 = vpop.permute.xlu0 %3618
  %3620 = vrot.lane.b32.xlu0 %v3241, 1
  %v3621 = vpop.permute.xlu0 %3620
  %3622 = vrot.lane.b32.xlu0 %v3247, 1
  %v3623 = vpop.permute.xlu0 %3622
  %3624 = vrot.lane.b32.xlu0 %v3253, 1
  %v3625 = vpop.permute.xlu0 %3624
  %3626 = vrot.lane.b32.xlu0 %v3322, 1
  %v3627 = vpop.permute.xlu0 %3626
  %3628 = vrot.lane.b32.xlu0 %v3328, 1
  %v3629 = vpop.permute.xlu0 %3628
  %3630 = vrot.lane.b32.xlu0 %v3334, 1
  %v3631 = vpop.permute.xlu0 %3630
  %3632 = vrot.lane.b32.xlu0 %v3340, 1
  %v3633 = vpop.permute.xlu0 %3632
  %3634 = vrot.lane.b32.xlu0 %v3346, 1
  %v3635 = vpop.permute.xlu0 %3634
  %3636 = vrot.lane.b32.xlu0 %v3352, 1
  %v3637 = vpop.permute.xlu0 %3636
  %3638 = vrot.lane.b32.xlu0 %v3358, 1
  %v3639 = vpop.permute.xlu0 %3638
  %3640 = vrot.lane.b32.xlu0 %v3364, 1
  %v3641 = vpop.permute.xlu0 %3640
  %3642 = vrot.lane.b32.xlu0 %v3324, 1
  %v3643 = vpop.permute.xlu0 %3642
  %3644 = vrot.lane.b32.xlu0 %v3330, 1
  %v3645 = vpop.permute.xlu0 %3644
  %3646 = vrot.lane.b32.xlu0 %v3336, 1
  %v3647 = vpop.permute.xlu0 %3646
  %3648 = vrot.lane.b32.xlu0 %v3342, 1
  %v3649 = vpop.permute.xlu0 %3648
  %3650 = vrot.lane.b32.xlu0 %v3348, 1
  %v3651 = vpop.permute.xlu0 %3650
  %3652 = vrot.lane.b32.xlu0 %v3354, 1
  %v3653 = vpop.permute.xlu0 %3652
  %3654 = vrot.lane.b32.xlu0 %v3360, 1
  %v3655 = vpop.permute.xlu0 %3654
  %3656 = vrot.lane.b32.xlu0 %v3366, 1
  %v3657 = vpop.permute.xlu0 %3656
  %3658 = vrot.lane.b32.xlu0 %v3435, 1
  %v3659 = vpop.permute.xlu0 %3658
  %3660 = vrot.lane.b32.xlu0 %v3441, 1
  %v3661 = vpop.permute.xlu0 %3660
  %3662 = vrot.lane.b32.xlu0 %v3447, 1
  %v3663 = vpop.permute.xlu0 %3662
  %3664 = vrot.lane.b32.xlu0 %v3453, 1
  %v3665 = vpop.permute.xlu0 %3664
  %3666 = vrot.lane.b32.xlu0 %v3459, 1
  %v3667 = vpop.permute.xlu0 %3666
  %3668 = vrot.lane.b32.xlu0 %v3465, 1
  %v3669 = vpop.permute.xlu0 %3668
  %3670 = vrot.lane.b32.xlu0 %v3471, 1
  %v3671 = vpop.permute.xlu0 %3670
  %3672 = vrot.lane.b32.xlu0 %v3477, 1
  %v3673 = vpop.permute.xlu0 %3672
  %3674 = vrot.lane.b32.xlu0 %v3437, 1
  %v3675 = vpop.permute.xlu0 %3674
  %3676 = vrot.lane.b32.xlu0 %v3443, 1
  %v3677 = vpop.permute.xlu0 %3676
  %3678 = vrot.lane.b32.xlu0 %v3449, 1
  %v3679 = vpop.permute.xlu0 %3678
  %3680 = vrot.lane.b32.xlu0 %v3455, 1
  %v3681 = vpop.permute.xlu0 %3680
  %3682 = vrot.lane.b32.xlu0 %v3461, 1
  %v3683 = vpop.permute.xlu0 %3682
  %3684 = vrot.lane.b32.xlu0 %v3467, 1
  %v3685 = vpop.permute.xlu0 %3684
  %3686 = vrot.lane.b32.xlu0 %v3473, 1
  %v3687 = vpop.permute.xlu0 %3686
  %3688 = vrot.lane.b32.xlu0 %v3479, 1
  %v3689 = vpop.permute.xlu0 %3688
  %3690 = vrot.lane.b32.xlu0 %v3548, 1
  %v3691 = vpop.permute.xlu0 %3690
  %3692 = vrot.lane.b32.xlu0 %v3554, 1
  %v3693 = vpop.permute.xlu0 %3692
  %3694 = vrot.lane.b32.xlu0 %v3560, 1
  %v3695 = vpop.permute.xlu0 %3694
  %3696 = vrot.lane.b32.xlu0 %v3566, 1
  %v3697 = vpop.permute.xlu0 %3696
  %3698 = vrot.lane.b32.xlu0 %v3572, 1
  %v3699 = vpop.permute.xlu0 %3698
  %3700 = vrot.lane.b32.xlu0 %v3578, 1
  %v3701 = vpop.permute.xlu0 %3700
  %3702 = vrot.lane.b32.xlu0 %v3584, 1
  %v3703 = vpop.permute.xlu0 %3702
  %3704 = vrot.lane.b32.xlu0 %v3590, 1
  %v3705 = vpop.permute.xlu0 %3704
  %3706 = vrot.lane.b32.xlu0 %v3550, 1
  %v3707 = vpop.permute.xlu0 %3706
  %3708 = vrot.lane.b32.xlu0 %v3556, 1
  %v3709 = vpop.permute.xlu0 %3708
  %3710 = vrot.lane.b32.xlu0 %v3562, 1
  %v3711 = vpop.permute.xlu0 %3710
  %3712 = vrot.lane.b32.xlu0 %v3568, 1
  %v3713 = vpop.permute.xlu0 %3712
  %3714 = vrot.lane.b32.xlu0 %v3574, 1
  %v3715 = vpop.permute.xlu0 %3714
  %3716 = vrot.lane.b32.xlu0 %v3580, 1
  %v3717 = vpop.permute.xlu0 %3716
  %3718 = vrot.lane.b32.xlu0 %v3586, 1
  %v3719 = vpop.permute.xlu0 %3718
  %3720 = vrot.lane.b32.xlu0 %v3592, 1
  %v3721 = vpop.permute.xlu0 %3720
  %v3722 = vsel %vm200, %v3691, %v3707
  %v3723 = vsel %vm200, %v3693, %v3709
  %v3724 = vsel %vm200, %v3695, %v3711
  %v3725 = vsel %vm200, %v3697, %v3713
  %v3726 = vsel %vm200, %v3699, %v3715
  %v3727 = vsel %vm200, %v3701, %v3717
  %v3728 = vsel %vm200, %v3703, %v3719
  %v3729 = vsel %vm200, %v3705, %v3721
  %v3730 = vsel %vm200, %v3675, %v3691
  %v3731 = vsel %vm200, %v3677, %v3693
  %v3732 = vsel %vm200, %v3679, %v3695
  %v3733 = vsel %vm200, %v3681, %v3697
  %v3734 = vsel %vm200, %v3683, %v3699
  %v3735 = vsel %vm200, %v3685, %v3701
  %v3736 = vsel %vm200, %v3687, %v3703
  %v3737 = vsel %vm200, %v3689, %v3705
  %v3738 = vsel %vm200, %v3659, %v3675
  %v3739 = vsel %vm200, %v3661, %v3677
  %v3740 = vsel %vm200, %v3663, %v3679
  %v3741 = vsel %vm200, %v3665, %v3681
  %v3742 = vsel %vm200, %v3667, %v3683
  %v3743 = vsel %vm200, %v3669, %v3685
  %v3744 = vsel %vm200, %v3671, %v3687
  %v3745 = vsel %vm200, %v3673, %v3689
  %v3746 = vsel %vm200, %v3643, %v3659
  %v3747 = vsel %vm200, %v3645, %v3661
  %v3748 = vsel %vm200, %v3647, %v3663
  %v3749 = vsel %vm200, %v3649, %v3665
  %v3750 = vsel %vm200, %v3651, %v3667
  %v3751 = vsel %vm200, %v3653, %v3669
  %v3752 = vsel %vm200, %v3655, %v3671
  %v3753 = vsel %vm200, %v3657, %v3673
  %v3754 = vsel %vm200, %v3627, %v3643
  %v3755 = vsel %vm200, %v3629, %v3645
  %v3756 = vsel %vm200, %v3631, %v3647
  %v3757 = vsel %vm200, %v3633, %v3649
  %v3758 = vsel %vm200, %v3635, %v3651
  %v3759 = vsel %vm200, %v3637, %v3653
  %v3760 = vsel %vm200, %v3639, %v3655
  %v3761 = vsel %vm200, %v3641, %v3657
  %v3762 = vsel %vm200, %v3611, %v3627
  %v3763 = vsel %vm200, %v3613, %v3629
  %v3764 = vsel %vm200, %v3615, %v3631
  %v3765 = vsel %vm200, %v3617, %v3633
  %v3766 = vsel %vm200, %v3619, %v3635
  %v3767 = vsel %vm200, %v3621, %v3637
  %v3768 = vsel %vm200, %v3623, %v3639
  %v3769 = vsel %vm200, %v3625, %v3641
  %v3770 = vsel %vm200, %v3595, %v3611
  %v3771 = vsel %vm200, %v3597, %v3613
  %v3772 = vsel %vm200, %v3599, %v3615
  %v3773 = vsel %vm200, %v3601, %v3617
  %v3774 = vsel %vm200, %v3603, %v3619
  %v3775 = vsel %vm200, %v3605, %v3621
  %v3776 = vsel %vm200, %v3607, %v3623
  %v3777 = vsel %vm200, %v3609, %v3625
  %v3778 = vsel %vm200, %v3707, %v3595
  %v3779 = vsel %vm200, %v3709, %v3597
  %v3780 = vsel %vm200, %v3711, %v3599
  %v3781 = vsel %vm200, %v3713, %v3601
  %v3782 = vsel %vm200, %v3715, %v3603
  %v3783 = vsel %vm200, %v3717, %v3605
  %v3784 = vsel %vm200, %v3719, %v3607
  %v3785 = vsel %vm200, %v3721, %v3609
  %v3786 = vmul.f32 %v3778, %v2252
  %v3787 = vmul.f32 %v3770, %v2256
  %v3788 = vmul.f32 %v3762, %v2260
  %v3789 = vmul.f32 %v3754, %v2264
  %v3790 = vmul.f32 %v3746, %v2268
  %v3791 = vmul.f32 %v3738, %v2272
  %v3792 = vmul.f32 %v3730, %v2276
  %v3793 = vmul.f32 %v3722, %v2280
  %v3794 = vmul.f32 %v3779, %v2252
  %v3795 = vmul.f32 %v3771, %v2256
  %v3796 = vmul.f32 %v3763, %v2260
  %v3797 = vmul.f32 %v3755, %v2264
  %v3798 = vmul.f32 %v3747, %v2268
  %v3799 = vmul.f32 %v3739, %v2272
  %v3800 = vmul.f32 %v3731, %v2276
  %v3801 = vmul.f32 %v3723, %v2280
  %v3802 = vmul.f32 %v3780, %v2252
  %v3803 = vmul.f32 %v3772, %v2256
  %v3804 = vmul.f32 %v3764, %v2260
  %v3805 = vmul.f32 %v3756, %v2264
  %v3806 = vmul.f32 %v3748, %v2268
  %v3807 = vmul.f32 %v3740, %v2272
  %v3808 = vmul.f32 %v3732, %v2276
  %v3809 = vmul.f32 %v3724, %v2280
  %v3810 = vmul.f32 %v3781, %v2252
  %v3811 = vmul.f32 %v3773, %v2256
  %v3812 = vmul.f32 %v3765, %v2260
  %v3813 = vmul.f32 %v3757, %v2264
  %v3814 = vmul.f32 %v3749, %v2268
  %v3815 = vmul.f32 %v3741, %v2272
  %v3816 = vmul.f32 %v3733, %v2276
  %v3817 = vmul.f32 %v3725, %v2280
  %v3818 = vmul.f32 %v3782, %v2252
  %v3819 = vmul.f32 %v3774, %v2256
  %v3820 = vmul.f32 %v3766, %v2260
  %v3821 = vmul.f32 %v3758, %v2264
  %v3822 = vmul.f32 %v3750, %v2268
  %v3823 = vmul.f32 %v3742, %v2272
  %v3824 = vmul.f32 %v3734, %v2276
  %v3825 = vmul.f32 %v3726, %v2280
  %v3826 = vmul.f32 %v3783, %v2252
  %v3827 = vmul.f32 %v3775, %v2256
  %v3828 = vmul.f32 %v3767, %v2260
  %v3829 = vmul.f32 %v3759, %v2264
  %v3830 = vmul.f32 %v3751, %v2268
  %v3831 = vmul.f32 %v3743, %v2272
  %v3832 = vmul.f32 %v3735, %v2276
  %v3833 = vmul.f32 %v3727, %v2280
  %v3834 = vmul.f32 %v3784, %v2252
  %v3835 = vmul.f32 %v3776, %v2256
  %v3836 = vmul.f32 %v3768, %v2260
  %v3837 = vmul.f32 %v3760, %v2264
  %v3838 = vmul.f32 %v3752, %v2268
  %v3839 = vmul.f32 %v3744, %v2272
  %v3840 = vmul.f32 %v3736, %v2276
  %v3841 = vmul.f32 %v3728, %v2280
  %v3842 = vmul.f32 %v3785, %v2252
  %v3843 = vmul.f32 %v3777, %v2256
  %v3844 = vmul.f32 %v3769, %v2260
  %v3845 = vmul.f32 %v3761, %v2264
  %v3846 = vmul.f32 %v3753, %v2268
  %v3847 = vmul.f32 %v3745, %v2272
  %v3848 = vmul.f32 %v3737, %v2276
  %v3849 = vmul.f32 %v3729, %v2280
  %3850 = vrot.lane.b32.xlu0 %v3209, 127
  %v3851 = vpop.permute.xlu0 %3850
  %3852 = vrot.lane.b32.xlu0 %v3215, 127
  %v3853 = vpop.permute.xlu0 %3852
  %3854 = vrot.lane.b32.xlu0 %v3221, 127
  %v3855 = vpop.permute.xlu0 %3854
  %3856 = vrot.lane.b32.xlu0 %v3227, 127
  %v3857 = vpop.permute.xlu0 %3856
  %3858 = vrot.lane.b32.xlu0 %v3233, 127
  %v3859 = vpop.permute.xlu0 %3858
  %3860 = vrot.lane.b32.xlu0 %v3239, 127
  %v3861 = vpop.permute.xlu0 %3860
  %3862 = vrot.lane.b32.xlu0 %v3245, 127
  %v3863 = vpop.permute.xlu0 %3862
  %3864 = vrot.lane.b32.xlu0 %v3251, 127
  %v3865 = vpop.permute.xlu0 %3864
  %3866 = vrot.lane.b32.xlu0 %v3211, 127
  %v3867 = vpop.permute.xlu0 %3866
  %3868 = vrot.lane.b32.xlu0 %v3217, 127
  %v3869 = vpop.permute.xlu0 %3868
  %3870 = vrot.lane.b32.xlu0 %v3223, 127
  %v3871 = vpop.permute.xlu0 %3870
  %3872 = vrot.lane.b32.xlu0 %v3229, 127
  %v3873 = vpop.permute.xlu0 %3872
  %3874 = vrot.lane.b32.xlu0 %v3235, 127
  %v3875 = vpop.permute.xlu0 %3874
  %3876 = vrot.lane.b32.xlu0 %v3241, 127
  %v3877 = vpop.permute.xlu0 %3876
  %3878 = vrot.lane.b32.xlu0 %v3247, 127
  %v3879 = vpop.permute.xlu0 %3878
  %3880 = vrot.lane.b32.xlu0 %v3253, 127
  %v3881 = vpop.permute.xlu0 %3880
  %3882 = vrot.lane.b32.xlu0 %v3322, 127
  %v3883 = vpop.permute.xlu0 %3882
  %3884 = vrot.lane.b32.xlu0 %v3328, 127
  %v3885 = vpop.permute.xlu0 %3884
  %3886 = vrot.lane.b32.xlu0 %v3334, 127
  %v3887 = vpop.permute.xlu0 %3886
  %3888 = vrot.lane.b32.xlu0 %v3340, 127
  %v3889 = vpop.permute.xlu0 %3888
  %3890 = vrot.lane.b32.xlu0 %v3346, 127
  %v3891 = vpop.permute.xlu0 %3890
  %3892 = vrot.lane.b32.xlu0 %v3352, 127
  %v3893 = vpop.permute.xlu0 %3892
  %3894 = vrot.lane.b32.xlu0 %v3358, 127
  %v3895 = vpop.permute.xlu0 %3894
  %3896 = vrot.lane.b32.xlu0 %v3364, 127
  %v3897 = vpop.permute.xlu0 %3896
  %3898 = vrot.lane.b32.xlu0 %v3324, 127
  %v3899 = vpop.permute.xlu0 %3898
  %3900 = vrot.lane.b32.xlu0 %v3330, 127
  %v3901 = vpop.permute.xlu0 %3900
  %3902 = vrot.lane.b32.xlu0 %v3336, 127
  %v3903 = vpop.permute.xlu0 %3902
  %3904 = vrot.lane.b32.xlu0 %v3342, 127
  %v3905 = vpop.permute.xlu0 %3904
  %3906 = vrot.lane.b32.xlu0 %v3348, 127
  %v3907 = vpop.permute.xlu0 %3906
  %3908 = vrot.lane.b32.xlu0 %v3354, 127
  %v3909 = vpop.permute.xlu0 %3908
  %3910 = vrot.lane.b32.xlu0 %v3360, 127
  %v3911 = vpop.permute.xlu0 %3910
  %3912 = vrot.lane.b32.xlu0 %v3366, 127
  %v3913 = vpop.permute.xlu0 %3912
  %3914 = vrot.lane.b32.xlu0 %v3435, 127
  %v3915 = vpop.permute.xlu0 %3914
  %3916 = vrot.lane.b32.xlu0 %v3441, 127
  %v3917 = vpop.permute.xlu0 %3916
  %3918 = vrot.lane.b32.xlu0 %v3447, 127
  %v3919 = vpop.permute.xlu0 %3918
  %3920 = vrot.lane.b32.xlu0 %v3453, 127
  %v3921 = vpop.permute.xlu0 %3920
  %3922 = vrot.lane.b32.xlu0 %v3459, 127
  %v3923 = vpop.permute.xlu0 %3922
  %3924 = vrot.lane.b32.xlu0 %v3465, 127
  %v3925 = vpop.permute.xlu0 %3924
  %3926 = vrot.lane.b32.xlu0 %v3471, 127
  %v3927 = vpop.permute.xlu0 %3926
  %3928 = vrot.lane.b32.xlu0 %v3477, 127
  %v3929 = vpop.permute.xlu0 %3928
  %3930 = vrot.lane.b32.xlu0 %v3437, 127
  %v3931 = vpop.permute.xlu0 %3930
  %3932 = vrot.lane.b32.xlu0 %v3443, 127
  %v3933 = vpop.permute.xlu0 %3932
  %3934 = vrot.lane.b32.xlu0 %v3449, 127
  %v3935 = vpop.permute.xlu0 %3934
  %3936 = vrot.lane.b32.xlu0 %v3455, 127
  %v3937 = vpop.permute.xlu0 %3936
  %3938 = vrot.lane.b32.xlu0 %v3461, 127
  %v3939 = vpop.permute.xlu0 %3938
  %3940 = vrot.lane.b32.xlu0 %v3467, 127
  %v3941 = vpop.permute.xlu0 %3940
  %3942 = vrot.lane.b32.xlu0 %v3473, 127
  %v3943 = vpop.permute.xlu0 %3942
  %3944 = vrot.lane.b32.xlu0 %v3479, 127
  %v3945 = vpop.permute.xlu0 %3944
  %3946 = vrot.lane.b32.xlu0 %v3548, 127
  %v3947 = vpop.permute.xlu0 %3946
  %3948 = vrot.lane.b32.xlu0 %v3554, 127
  %v3949 = vpop.permute.xlu0 %3948
  %3950 = vrot.lane.b32.xlu0 %v3560, 127
  %v3951 = vpop.permute.xlu0 %3950
  %3952 = vrot.lane.b32.xlu0 %v3566, 127
  %v3953 = vpop.permute.xlu0 %3952
  %3954 = vrot.lane.b32.xlu0 %v3572, 127
  %v3955 = vpop.permute.xlu0 %3954
  %3956 = vrot.lane.b32.xlu0 %v3578, 127
  %v3957 = vpop.permute.xlu0 %3956
  %3958 = vrot.lane.b32.xlu0 %v3584, 127
  %v3959 = vpop.permute.xlu0 %3958
  %3960 = vrot.lane.b32.xlu0 %v3590, 127
  %v3961 = vpop.permute.xlu0 %3960
  %3962 = vrot.lane.b32.xlu0 %v3550, 127
  %v3963 = vpop.permute.xlu0 %3962
  %3964 = vrot.lane.b32.xlu0 %v3556, 127
  %v3965 = vpop.permute.xlu0 %3964
  %3966 = vrot.lane.b32.xlu0 %v3562, 127
  %v3967 = vpop.permute.xlu0 %3966
  %3968 = vrot.lane.b32.xlu0 %v3568, 127
  %v3969 = vpop.permute.xlu0 %3968
  %3970 = vrot.lane.b32.xlu0 %v3574, 127
  %v3971 = vpop.permute.xlu0 %3970
  %3972 = vrot.lane.b32.xlu0 %v3580, 127
  %v3973 = vpop.permute.xlu0 %3972
  %3974 = vrot.lane.b32.xlu0 %v3586, 127
  %v3975 = vpop.permute.xlu0 %3974
  %3976 = vrot.lane.b32.xlu0 %v3592, 127
  %v3977 = vpop.permute.xlu0 %3976
  %v3978 = vsel %vm267, %v3947, %v3963
  %v3979 = vsel %vm267, %v3949, %v3965
  %v3980 = vsel %vm267, %v3951, %v3967
  %v3981 = vsel %vm267, %v3953, %v3969
  %v3982 = vsel %vm267, %v3955, %v3971
  %v3983 = vsel %vm267, %v3957, %v3973
  %v3984 = vsel %vm267, %v3959, %v3975
  %v3985 = vsel %vm267, %v3961, %v3977
  %v3986 = vsel %vm267, %v3931, %v3947
  %v3987 = vsel %vm267, %v3933, %v3949
  %v3988 = vsel %vm267, %v3935, %v3951
  %v3989 = vsel %vm267, %v3937, %v3953
  %v3990 = vsel %vm267, %v3939, %v3955
  %v3991 = vsel %vm267, %v3941, %v3957
  %v3992 = vsel %vm267, %v3943, %v3959
  %v3993 = vsel %vm267, %v3945, %v3961
  %v3994 = vsel %vm267, %v3915, %v3931
  %v3995 = vsel %vm267, %v3917, %v3933
  %v3996 = vsel %vm267, %v3919, %v3935
  %v3997 = vsel %vm267, %v3921, %v3937
  %v3998 = vsel %vm267, %v3923, %v3939
  %v3999 = vsel %vm267, %v3925, %v3941
  %v4000 = vsel %vm267, %v3927, %v3943
  %v4001 = vsel %vm267, %v3929, %v3945
  %v4002 = vsel %vm267, %v3899, %v3915
  %v4003 = vsel %vm267, %v3901, %v3917
  %v4004 = vsel %vm267, %v3903, %v3919
  %v4005 = vsel %vm267, %v3905, %v3921
  %v4006 = vsel %vm267, %v3907, %v3923
  %v4007 = vsel %vm267, %v3909, %v3925
  %v4008 = vsel %vm267, %v3911, %v3927
  %v4009 = vsel %vm267, %v3913, %v3929
  %v4010 = vsel %vm267, %v3883, %v3899
  %v4011 = vsel %vm267, %v3885, %v3901
  %v4012 = vsel %vm267, %v3887, %v3903
  %v4013 = vsel %vm267, %v3889, %v3905
  %v4014 = vsel %vm267, %v3891, %v3907
  %v4015 = vsel %vm267, %v3893, %v3909
  %v4016 = vsel %vm267, %v3895, %v3911
  %v4017 = vsel %vm267, %v3897, %v3913
  %v4018 = vsel %vm267, %v3867, %v3883
  %v4019 = vsel %vm267, %v3869, %v3885
  %v4020 = vsel %vm267, %v3871, %v3887
  %v4021 = vsel %vm267, %v3873, %v3889
  %v4022 = vsel %vm267, %v3875, %v3891
  %v4023 = vsel %vm267, %v3877, %v3893
  %v4024 = vsel %vm267, %v3879, %v3895
  %v4025 = vsel %vm267, %v3881, %v3897
  %v4026 = vsel %vm267, %v3851, %v3867
  %v4027 = vsel %vm267, %v3853, %v3869
  %v4028 = vsel %vm267, %v3855, %v3871
  %v4029 = vsel %vm267, %v3857, %v3873
  %v4030 = vsel %vm267, %v3859, %v3875
  %v4031 = vsel %vm267, %v3861, %v3877
  %v4032 = vsel %vm267, %v3863, %v3879
  %v4033 = vsel %vm267, %v3865, %v3881
  %v4034 = vsel %vm267, %v3963, %v3851
  %v4035 = vsel %vm267, %v3965, %v3853
  %v4036 = vsel %vm267, %v3967, %v3855
  %v4037 = vsel %vm267, %v3969, %v3857
  %v4038 = vsel %vm267, %v3971, %v3859
  %v4039 = vsel %vm267, %v3973, %v3861
  %v4040 = vsel %vm267, %v3975, %v3863
  %v4041 = vsel %vm267, %v3977, %v3865
  %v4042 = vmul.f32 %v4026, %v2357
  %v4043 = vmul.f32 %v4018, %v2361
  %v4044 = vmul.f32 %v4010, %v2365
  %v4045 = vmul.f32 %v4002, %v2369
  %v4046 = vmul.f32 %v3994, %v2373
  %v4047 = vmul.f32 %v3986, %v2377
  %v4048 = vmul.f32 %v3978, %v2381
  %v4049 = vmul.f32 %v4034, %v2385
  %v4050 = vmul.f32 %v4027, %v2357
  %v4051 = vmul.f32 %v4019, %v2361
  %v4052 = vmul.f32 %v4011, %v2365
  %v4053 = vmul.f32 %v4003, %v2369
  %v4054 = vmul.f32 %v3995, %v2373
  %v4055 = vmul.f32 %v3987, %v2377
  %v4056 = vmul.f32 %v3979, %v2381
  %v4057 = vmul.f32 %v4035, %v2385
  %v4058 = vmul.f32 %v4028, %v2357
  %v4059 = vmul.f32 %v4020, %v2361
  %v4060 = vmul.f32 %v4012, %v2365
  %v4061 = vmul.f32 %v4004, %v2369
  %v4062 = vmul.f32 %v3996, %v2373
  %v4063 = vmul.f32 %v3988, %v2377
  %v4064 = vmul.f32 %v3980, %v2381
  %v4065 = vmul.f32 %v4036, %v2385
  %v4066 = vmul.f32 %v4029, %v2357
  %v4067 = vmul.f32 %v4021, %v2361
  %v4068 = vmul.f32 %v4013, %v2365
  %v4069 = vmul.f32 %v4005, %v2369
  %v4070 = vmul.f32 %v3997, %v2373
  %v4071 = vmul.f32 %v3989, %v2377
  %v4072 = vmul.f32 %v3981, %v2381
  %v4073 = vmul.f32 %v4037, %v2385
  %v4074 = vmul.f32 %v4030, %v2357
  %v4075 = vmul.f32 %v4022, %v2361
  %v4076 = vmul.f32 %v4014, %v2365
  %v4077 = vmul.f32 %v4006, %v2369
  %v4078 = vmul.f32 %v3998, %v2373
  %v4079 = vmul.f32 %v3990, %v2377
  %v4080 = vmul.f32 %v3982, %v2381
  %v4081 = vmul.f32 %v4038, %v2385
  %v4082 = vmul.f32 %v4031, %v2357
  %v4083 = vmul.f32 %v4023, %v2361
  %v4084 = vmul.f32 %v4015, %v2365
  %v4085 = vmul.f32 %v4007, %v2369
  %v4086 = vmul.f32 %v3999, %v2373
  %v4087 = vmul.f32 %v3991, %v2377
  %v4088 = vmul.f32 %v3983, %v2381
  %v4089 = vmul.f32 %v4039, %v2385
  %v4090 = vmul.f32 %v4032, %v2357
  %v4091 = vmul.f32 %v4024, %v2361
  %v4092 = vmul.f32 %v4016, %v2365
  %v4093 = vmul.f32 %v4008, %v2369
  %v4094 = vmul.f32 %v4000, %v2373
  %v4095 = vmul.f32 %v3992, %v2377
  %v4096 = vmul.f32 %v3984, %v2381
  %v4097 = vmul.f32 %v4040, %v2385
  %v4098 = vmul.f32 %v4033, %v2357
  %v4099 = vmul.f32 %v4025, %v2361
  %v4100 = vmul.f32 %v4017, %v2365
  %v4101 = vmul.f32 %v4009, %v2369
  %v4102 = vmul.f32 %v4001, %v2373
  %v4103 = vmul.f32 %v3993, %v2377
  %v4104 = vmul.f32 %v3985, %v2381
  %v4105 = vmul.f32 %v4041, %v2385
  %v4106 = vld [vmem:[%s18] sm:$0xff]
  %v4107 = vld [vmem:[%s18 + $0x8] sm:$0xff]
  %v4108 = vld [vmem:[%s18 + $0x10] sm:$0xff]
  %v4109 = vld [vmem:[%s18 + $0x18] sm:$0xff]
  %v4110 = vld [vmem:[%s18 + $0x20] sm:$0xff]
  %v4111 = vld [vmem:[%s18 + $0x28] sm:$0xff]
  %v4112 = vld [vmem:[%s18 + $0x30] sm:$0xff]
  %v4113 = vld [vmem:[%s18 + $0x38] sm:$0xff]
  %v4114 = vld [vmem:[%s18 + $0x40] sm:$0xff]
  %v4115 = vld [vmem:[%s18 + $0x48] sm:$0xff]
  %v4116 = vld [vmem:[%s18 + $0x50] sm:$0xff]
  %v4117 = vld [vmem:[%s18 + $0x58] sm:$0xff]
  %v4118 = vld [vmem:[%s18 + $0x60] sm:$0xff]
  %v4119 = vld [vmem:[%s18 + $0x68] sm:$0xff]
  %v4120 = vld [vmem:[%s18 + $0x70] sm:$0xff]
  %v4121 = vld [vmem:[%s18 + $0x78] sm:$0xff]
  %v4122 = vld [vmem:[%s19] sm:$0xff]
  %v4123 = vld [vmem:[%s19 + $0x8] sm:$0xff]
  %v4124 = vld [vmem:[%s19 + $0x10] sm:$0xff]
  %v4125 = vld [vmem:[%s19 + $0x18] sm:$0xff]
  %v4126 = vld [vmem:[%s19 + $0x20] sm:$0xff]
  %v4127 = vld [vmem:[%s19 + $0x28] sm:$0xff]
  %v4128 = vld [vmem:[%s19 + $0x30] sm:$0xff]
  %v4129 = vld [vmem:[%s19 + $0x38] sm:$0xff]
  %4131 = vset.pattern.permute.xlu0 0
  %4132 = vperm.xlu0 %4131, %v4122
  %v4133 = vpop.permute.xlu0 %4132
  %4136 = vset.pattern.permute.xlu0 0
  %4137 = vperm.xlu0 %4136, %v4123
  %v4138 = vpop.permute.xlu0 %4137
  %4141 = vset.pattern.permute.xlu0 0
  %4142 = vperm.xlu0 %4141, %v4124
  %v4143 = vpop.permute.xlu0 %4142
  %4146 = vset.pattern.permute.xlu0 0
  %4147 = vperm.xlu0 %4146, %v4125
  %v4148 = vpop.permute.xlu0 %4147
  %4151 = vset.pattern.permute.xlu0 0
  %4152 = vperm.xlu0 %4151, %v4126
  %v4153 = vpop.permute.xlu0 %4152
  %4156 = vset.pattern.permute.xlu0 0
  %4157 = vperm.xlu0 %4156, %v4127
  %v4158 = vpop.permute.xlu0 %4157
  %4161 = vset.pattern.permute.xlu0 0
  %4162 = vperm.xlu0 %4161, %v4128
  %v4163 = vpop.permute.xlu0 %4162
  %4166 = vset.pattern.permute.xlu0 0
  %4167 = vperm.xlu0 %4166, %v4129
  %v4168 = vpop.permute.xlu0 %4167
  %v4171 = vsel %vm1542, %v4107, 0
  %v4174 = vsel %vm1542, %v4109, 0
  %v4177 = vsel %vm1542, %v4111, 0
  %v4180 = vsel %vm1542, %v4113, 0
  %v4183 = vsel %vm1542, %v4115, 0
  %v4186 = vsel %vm1542, %v4117, 0
  %v4189 = vsel %vm1542, %v4119, 0
  %v4192 = vsel %vm1542, %v4121, 0
  %4194 = vmatprep.subr.mxu0 %v3787
  %4195 = vmatpush1.msra.mxu0 %v3786
  %4196 = vmatprep.subr.mxu0 %v3795
  %4197 = vmatpush1.msra.mxu0 %v3794
  %4198 = vmatprep.subr.mxu0 %v3803
  %4199 = vmatpush1.msra.mxu0 %v3802
  %4200 = vmatprep.subr.mxu0 %v3811
  %4201 = vmatpush1.msra.mxu0 %v3810
  %4202 = vmatprep.subr.mxu0 %v3819
  %4203 = vmatpush1.msra.mxu0 %v3818
  %4204 = vmatprep.subr.mxu0 %v3827
  %4205 = vmatpush1.msra.mxu0 %v3826
  %4206 = vmatprep.subr.mxu0 %v3835
  %4207 = vmatpush1.msra.mxu0 %v3834
  %4208 = vmatprep.subr.mxu0 %v3843
  %4209 = vmatpush1.msra.mxu0 %v3842
  %4210 = vmatprep.subr.mxu0 %v3211
  %4211 = vmatpush1.msra.mxu0 %v3209
  %4212 = vmatprep.subr.mxu0 %v3217
  %4213 = vmatpush1.msra.mxu0 %v3215
  %4214 = vmatprep.subr.mxu0 %v3223
  %4215 = vmatpush1.msra.mxu0 %v3221
  %4216 = vmatprep.subr.mxu0 %v3229
  %4217 = vmatpush1.msra.mxu0 %v3227
  %4218 = vmatprep.subr.mxu0 %v3235
  %4219 = vmatpush1.msra.mxu0 %v3233
  %4220 = vmatprep.subr.mxu0 %v3241
  %4221 = vmatpush1.msra.mxu0 %v3239
  %4222 = vmatprep.subr.mxu0 %v3247
  %4223 = vmatpush1.msra.mxu0 %v3245
  %4224 = vmatprep.subr.mxu0 %v3253
  %4225 = vmatpush1.msra.mxu0 %v3251
  %4226 = vmatprep.subr.mxu0 %v4043
  %4227 = vmatpush1.msra.mxu0 %v4042
  %4228 = vmatprep.subr.mxu0 %v4051
  %4229 = vmatpush1.msra.mxu0 %v4050
  %4230 = vmatprep.subr.mxu0 %v4059
  %4231 = vmatpush1.msra.mxu0 %v4058
  %4232 = vmatprep.subr.mxu0 %v4067
  %4233 = vmatpush1.msra.mxu0 %v4066
  %4234 = vmatprep.subr.mxu0 %v4075
  %4235 = vmatpush1.msra.mxu0 %v4074
  %4236 = vmatprep.subr.mxu0 %v4083
  %4237 = vmatpush1.msra.mxu0 %v4082
  %4238 = vmatprep.subr.mxu0 %v4091
  %4239 = vmatpush1.msra.mxu0 %v4090
  %4240 = vmatprep.subr.mxu0 %v4099
  %4241 = vmatpush1.msra.mxu0 %v4098
  %4242 = vmatprep.subr.mxu0 0.0
  %4243 = vmatpush1.msra.mxu0 0.0
  %4244 = vmatprep.subr.mxu0 0.0
  %4245 = vmatpush1.msra.mxu0 0.0
  %4246 = vmatprep.subr.mxu0 0.0
  %4247 = vmatpush1.msra.mxu0 0.0
  %4248 = vmatprep.subr.mxu0 0.0
  %4249 = vmatpush1.msra.mxu0 0.0
  %4250 = vmatprep.subr.mxu0 0.0
  %4251 = vmatpush1.msra.mxu0 0.0
  %4252 = vmatprep.subr.mxu0 0.0
  %4253 = vmatpush1.msra.mxu0 0.0
  %4254 = vmatprep.subr.mxu0 0.0
  %4255 = vmatpush1.msra.mxu0 0.0
  %4256 = vmatprep.subr.mxu0 0.0
  %4257 = vmatpush1.msra.mxu0 0.0
  %4258 = vmatprep.mubr.f32.mxu0 %v4171
  %4259 = vmatmul.mubr.f32.gmra.mrb[0].mxu0 %v4106
  %v4260 = vpop.f32.mrb[0].mxu0
  %v4261 = vadd.f32 %v4133, %v4260
  %v4262 = vpop.f32.mrb[0].mxu0
  %v4263 = vadd.f32 %v4133, %v4262
  %4264 = vmatprep.mubr.f32.mxu0 %v4174
  %4265 = vmatmul.mubr.f32.gmra.mrb[0].mxu0 %v4108
  %v4266 = vpop.f32.mrb[0].mxu0
  %v4267 = vadd.f32 %v4138, %v4266
  %v4268 = vpop.f32.mrb[0].mxu0
  %v4269 = vadd.f32 %v4138, %v4268
  %4270 = vmatprep.mubr.f32.mxu0 %v4177
  %4271 = vmatmul.mubr.f32.gmra.mrb[0].mxu0 %v4110
  %v4272 = vpop.f32.mrb[0].mxu0
  %v4273 = vadd.f32 %v4143, %v4272
  %v4274 = vpop.f32.mrb[0].mxu0
  %v4275 = vadd.f32 %v4143, %v4274
  %4276 = vmatprep.mubr.f32.mxu0 %v4180
  %4277 = vmatmul.mubr.f32.gmra.mrb[0].mxu0 %v4112
  %v4278 = vpop.f32.mrb[0].mxu0
  %v4279 = vadd.f32 %v4148, %v4278
  %v4280 = vpop.f32.mrb[0].mxu0
  %v4281 = vadd.f32 %v4148, %v4280
  %4282 = vmatprep.mubr.f32.mxu0 %v4183
  %4283 = vmatmul.mubr.f32.gmra.mrb[0].mxu0 %v4114
  %v4284 = vpop.f32.mrb[0].mxu0
  %v4285 = vadd.f32 %v4153, %v4284
  %v4286 = vpop.f32.mrb[0].mxu0
  %v4287 = vadd.f32 %v4153, %v4286
  %4288 = vmatprep.mubr.f32.mxu0 %v4186
  %4289 = vmatmul.mubr.f32.gmra.mrb[0].mxu0 %v4116
  %v4290 = vpop.f32.mrb[0].mxu0
  %v4291 = vadd.f32 %v4158, %v4290
  %v4292 = vpop.f32.mrb[0].mxu0
  %v4293 = vadd.f32 %v4158, %v4292
  %4294 = vmatprep.mubr.f32.mxu0 %v4189
  %4295 = vmatmul.mubr.f32.gmra.mrb[0].mxu0 %v4118
  %v4296 = vpop.f32.mrb[0].mxu0
  %v4297 = vadd.f32 %v4163, %v4296
  %v4298 = vpop.f32.mrb[0].mxu0
  %v4299 = vadd.f32 %v4163, %v4298
  %4300 = vmatprep.mubr.f32.mxu0 %v4192
  %4301 = vmatmul.mubr.f32.gmra.mrb[0].mxu0 %v4120
  %v4302 = vpop.f32.mrb[0].mxu0
  %v4303 = vadd.f32 %v4168, %v4302
  %v4304 = vpop.f32.mrb[0].mxu0
  %v4305 = vadd.f32 %v4168, %v4304
  %4306 = vdwg.mxu0
  %4307 = vmatprep.subr.mxu0 %v3789
  %4308 = vmatpush1.msra.mxu0 %v3788
  %4309 = vmatprep.subr.mxu0 %v3797
  %4310 = vmatpush1.msra.mxu0 %v3796
  %4311 = vmatprep.subr.mxu0 %v3805
  %4312 = vmatpush1.msra.mxu0 %v3804
  %4313 = vmatprep.subr.mxu0 %v3813
  %4314 = vmatpush1.msra.mxu0 %v3812
  %4315 = vmatprep.subr.mxu0 %v3821
  %4316 = vmatpush1.msra.mxu0 %v3820
  %4317 = vmatprep.subr.mxu0 %v3829
  %4318 = vmatpush1.msra.mxu0 %v3828
  %4319 = vmatprep.subr.mxu0 %v3837
  %4320 = vmatpush1.msra.mxu0 %v3836
  %4321 = vmatprep.subr.mxu0 %v3845
  %4322 = vmatpush1.msra.mxu0 %v3844
  %4323 = vmatprep.subr.mxu0 %v3324
  %4324 = vmatpush1.msra.mxu0 %v3322
  %4325 = vmatprep.subr.mxu0 %v3330
  %4326 = vmatpush1.msra.mxu0 %v3328
  %4327 = vmatprep.subr.mxu0 %v3336
  %4328 = vmatpush1.msra.mxu0 %v3334
  %4329 = vmatprep.subr.mxu0 %v3342
  %4330 = vmatpush1.msra.mxu0 %v3340
  %4331 = vmatprep.subr.mxu0 %v3348
  %4332 = vmatpush1.msra.mxu0 %v3346
  %4333 = vmatprep.subr.mxu0 %v3354
  %4334 = vmatpush1.msra.mxu0 %v3352
  %4335 = vmatprep.subr.mxu0 %v3360
  %4336 = vmatpush1.msra.mxu0 %v3358
  %4337 = vmatprep.subr.mxu0 %v3366
  %4338 = vmatpush1.msra.mxu0 %v3364
  %4339 = vmatprep.subr.mxu0 %v4045
  %4340 = vmatpush1.msra.mxu0 %v4044
  %4341 = vmatprep.subr.mxu0 %v4053
  %4342 = vmatpush1.msra.mxu0 %v4052
  %4343 = vmatprep.subr.mxu0 %v4061
  %4344 = vmatpush1.msra.mxu0 %v4060
  %4345 = vmatprep.subr.mxu0 %v4069
  %4346 = vmatpush1.msra.mxu0 %v4068
  %4347 = vmatprep.subr.mxu0 %v4077
  %4348 = vmatpush1.msra.mxu0 %v4076
  %4349 = vmatprep.subr.mxu0 %v4085
  %4350 = vmatpush1.msra.mxu0 %v4084
  %4351 = vmatprep.subr.mxu0 %v4093
  %4352 = vmatpush1.msra.mxu0 %v4092
  %4353 = vmatprep.subr.mxu0 %v4101
  %4354 = vmatpush1.msra.mxu0 %v4100
  %4355 = vmatprep.subr.mxu0 0.0
  %4356 = vmatpush1.msra.mxu0 0.0
  %4357 = vmatprep.subr.mxu0 0.0
  %4358 = vmatpush1.msra.mxu0 0.0
  %4359 = vmatprep.subr.mxu0 0.0
  %4360 = vmatpush1.msra.mxu0 0.0
  %4361 = vmatprep.subr.mxu0 0.0
  %4362 = vmatpush1.msra.mxu0 0.0
  %4363 = vmatprep.subr.mxu0 0.0
  %4364 = vmatpush1.msra.mxu0 0.0
  %4365 = vmatprep.subr.mxu0 0.0
  %4366 = vmatpush1.msra.mxu0 0.0
  %4367 = vmatprep.subr.mxu0 0.0
  %4368 = vmatpush1.msra.mxu0 0.0
  %4369 = vmatprep.subr.mxu0 0.0
  %4370 = vmatpush1.msra.mxu0 0.0
  %4371 = vmatprep.mubr.f32.mxu0 %v4171
  %4372 = vmatmul.mubr.f32.gmra.mrb[0].mxu0 %v4106
  %v4373 = vpop.f32.mrb[0].mxu0
  %v4374 = vadd.f32 %v4133, %v4373
  %v4375 = vpop.f32.mrb[0].mxu0
  %v4376 = vadd.f32 %v4133, %v4375
  %4377 = vmatprep.mubr.f32.mxu0 %v4174
  %4378 = vmatmul.mubr.f32.gmra.mrb[0].mxu0 %v4108
  %v4379 = vpop.f32.mrb[0].mxu0
  %v4380 = vadd.f32 %v4138, %v4379
  %v4381 = vpop.f32.mrb[0].mxu0
  %v4382 = vadd.f32 %v4138, %v4381
  %4383 = vmatprep.mubr.f32.mxu0 %v4177
  %4384 = vmatmul.mubr.f32.gmra.mrb[0].mxu0 %v4110
  %v4385 = vpop.f32.mrb[0].mxu0
  %v4386 = vadd.f32 %v4143, %v4385
  %v4387 = vpop.f32.mrb[0].mxu0
  %v4388 = vadd.f32 %v4143, %v4387
  %4389 = vmatprep.mubr.f32.mxu0 %v4180
  %4390 = vmatmul.mubr.f32.gmra.mrb[0].mxu0 %v4112
  %v4391 = vpop.f32.mrb[0].mxu0
  %v4392 = vadd.f32 %v4148, %v4391
  %v4393 = vpop.f32.mrb[0].mxu0
  %v4394 = vadd.f32 %v4148, %v4393
  %4395 = vmatprep.mubr.f32.mxu0 %v4183
  %4396 = vmatmul.mubr.f32.gmra.mrb[0].mxu0 %v4114
  %v4397 = vpop.f32.mrb[0].mxu0
  %v4398 = vadd.f32 %v4153, %v4397
  %v4399 = vpop.f32.mrb[0].mxu0
  %v4400 = vadd.f32 %v4153, %v4399
  %4401 = vmatprep.mubr.f32.mxu0 %v4186
  %4402 = vmatmul.mubr.f32.gmra.mrb[0].mxu0 %v4116
  %v4403 = vpop.f32.mrb[0].mxu0
  %v4404 = vadd.f32 %v4158, %v4403
  %v4405 = vpop.f32.mrb[0].mxu0
  %v4406 = vadd.f32 %v4158, %v4405
  %4407 = vmatprep.mubr.f32.mxu0 %v4189
  %4408 = vmatmul.mubr.f32.gmra.mrb[0].mxu0 %v4118
  %v4409 = vpop.f32.mrb[0].mxu0
  %v4410 = vadd.f32 %v4163, %v4409
  %v4411 = vpop.f32.mrb[0].mxu0
  %v4412 = vadd.f32 %v4163, %v4411
  %4413 = vmatprep.mubr.f32.mxu0 %v4192
  %4414 = vmatmul.mubr.f32.gmra.mrb[0].mxu0 %v4120
  %v4415 = vpop.f32.mrb[0].mxu0
  %v4416 = vadd.f32 %v4168, %v4415
  %v4417 = vpop.f32.mrb[0].mxu0
  %v4418 = vadd.f32 %v4168, %v4417
  %4419 = vdwg.mxu0
  %4420 = vmatprep.subr.mxu0 %v3791
  %4421 = vmatpush1.msra.mxu0 %v3790
  %4422 = vmatprep.subr.mxu0 %v3799
  %4423 = vmatpush1.msra.mxu0 %v3798
  %4424 = vmatprep.subr.mxu0 %v3807
  %4425 = vmatpush1.msra.mxu0 %v3806
  %4426 = vmatprep.subr.mxu0 %v3815
  %4427 = vmatpush1.msra.mxu0 %v3814
  %4428 = vmatprep.subr.mxu0 %v3823
  %4429 = vmatpush1.msra.mxu0 %v3822
  %4430 = vmatprep.subr.mxu0 %v3831
  %4431 = vmatpush1.msra.mxu0 %v3830
  %4432 = vmatprep.subr.mxu0 %v3839
  %4433 = vmatpush1.msra.mxu0 %v3838
  %4434 = vmatprep.subr.mxu0 %v3847
  %4435 = vmatpush1.msra.mxu0 %v3846
  %4436 = vmatprep.subr.mxu0 %v3437
  %4437 = vmatpush1.msra.mxu0 %v3435
  %4438 = vmatprep.subr.mxu0 %v3443
  %4439 = vmatpush1.msra.mxu0 %v3441
  %4440 = vmatprep.subr.mxu0 %v3449
  %4441 = vmatpush1.msra.mxu0 %v3447
  %4442 = vmatprep.subr.mxu0 %v3455
  %4443 = vmatpush1.msra.mxu0 %v3453
  %4444 = vmatprep.subr.mxu0 %v3461
  %4445 = vmatpush1.msra.mxu0 %v3459
  %4446 = vmatprep.subr.mxu0 %v3467
  %4447 = vmatpush1.msra.mxu0 %v3465
  %4448 = vmatprep.subr.mxu0 %v3473
  %4449 = vmatpush1.msra.mxu0 %v3471
  %4450 = vmatprep.subr.mxu0 %v3479
  %4451 = vmatpush1.msra.mxu0 %v3477
  %4452 = vmatprep.subr.mxu0 %v4047
  %4453 = vmatpush1.msra.mxu0 %v4046
  %4454 = vmatprep.subr.mxu0 %v4055
  %4455 = vmatpush1.msra.mxu0 %v4054
  %4456 = vmatprep.subr.mxu0 %v4063
  %4457 = vmatpush1.msra.mxu0 %v4062
  %4458 = vmatprep.subr.mxu0 %v4071
  %4459 = vmatpush1.msra.mxu0 %v4070
  %4460 = vmatprep.subr.mxu0 %v4079
  %4461 = vmatpush1.msra.mxu0 %v4078
  %4462 = vmatprep.subr.mxu0 %v4087
  %4463 = vmatpush1.msra.mxu0 %v4086
  %4464 = vmatprep.subr.mxu0 %v4095
  %4465 = vmatpush1.msra.mxu0 %v4094
  %4466 = vmatprep.subr.mxu0 %v4103
  %4467 = vmatpush1.msra.mxu0 %v4102
  %4468 = vmatprep.subr.mxu0 0.0
  %4469 = vmatpush1.msra.mxu0 0.0
  %4470 = vmatprep.subr.mxu0 0.0
  %4471 = vmatpush1.msra.mxu0 0.0
  %4472 = vmatprep.subr.mxu0 0.0
  %4473 = vmatpush1.msra.mxu0 0.0
  %4474 = vmatprep.subr.mxu0 0.0
  %4475 = vmatpush1.msra.mxu0 0.0
  %4476 = vmatprep.subr.mxu0 0.0
  %4477 = vmatpush1.msra.mxu0 0.0
  %4478 = vmatprep.subr.mxu0 0.0
  %4479 = vmatpush1.msra.mxu0 0.0
  %4480 = vmatprep.subr.mxu0 0.0
  %4481 = vmatpush1.msra.mxu0 0.0
  %4482 = vmatprep.subr.mxu0 0.0
  %4483 = vmatpush1.msra.mxu0 0.0
  %4484 = vmatprep.mubr.f32.mxu0 %v4171
  %4485 = vmatmul.mubr.f32.gmra.mrb[0].mxu0 %v4106
  %v4486 = vpop.f32.mrb[0].mxu0
  %v4487 = vadd.f32 %v4133, %v4486
  %v4488 = vpop.f32.mrb[0].mxu0
  %v4489 = vadd.f32 %v4133, %v4488
  %4490 = vmatprep.mubr.f32.mxu0 %v4174
  %4491 = vmatmul.mubr.f32.gmra.mrb[0].mxu0 %v4108
  %v4492 = vpop.f32.mrb[0].mxu0
  %v4493 = vadd.f32 %v4138, %v4492
  %v4494 = vpop.f32.mrb[0].mxu0
  %v4495 = vadd.f32 %v4138, %v4494
  %4496 = vmatprep.mubr.f32.mxu0 %v4177
  %4497 = vmatmul.mubr.f32.gmra.mrb[0].mxu0 %v4110
  %v4498 = vpop.f32.mrb[0].mxu0
  %v4499 = vadd.f32 %v4143, %v4498
  %v4500 = vpop.f32.mrb[0].mxu0
  %v4501 = vadd.f32 %v4143, %v4500
  %4502 = vmatprep.mubr.f32.mxu0 %v4180
  %4503 = vmatmul.mubr.f32.gmra.mrb[0].mxu0 %v4112
  %v4504 = vpop.f32.mrb[0].mxu0
  %v4505 = vadd.f32 %v4148, %v4504
  %v4506 = vpop.f32.mrb[0].mxu0
  %v4507 = vadd.f32 %v4148, %v4506
  %4508 = vmatprep.mubr.f32.mxu0 %v4183
  %4509 = vmatmul.mubr.f32.gmra.mrb[0].mxu0 %v4114
  %v4510 = vpop.f32.mrb[0].mxu0
  %v4511 = vadd.f32 %v4153, %v4510
  %v4512 = vpop.f32.mrb[0].mxu0
  %v4513 = vadd.f32 %v4153, %v4512
  %4514 = vmatprep.mubr.f32.mxu0 %v4186
  %4515 = vmatmul.mubr.f32.gmra.mrb[0].mxu0 %v4116
  %v4516 = vpop.f32.mrb[0].mxu0
  %v4517 = vadd.f32 %v4158, %v4516
  %v4518 = vpop.f32.mrb[0].mxu0
  %v4519 = vadd.f32 %v4158, %v4518
  %4520 = vmatprep.mubr.f32.mxu0 %v4189
  %4521 = vmatmul.mubr.f32.gmra.mrb[0].mxu0 %v4118
  %v4522 = vpop.f32.mrb[0].mxu0
  %v4523 = vadd.f32 %v4163, %v4522
  %v4524 = vpop.f32.mrb[0].mxu0
  %v4525 = vadd.f32 %v4163, %v4524
  %4526 = vmatprep.mubr.f32.mxu0 %v4192
  %4527 = vmatmul.mubr.f32.gmra.mrb[0].mxu0 %v4120
  %v4528 = vpop.f32.mrb[0].mxu0
  %v4529 = vadd.f32 %v4168, %v4528
  %v4530 = vpop.f32.mrb[0].mxu0
  %v4531 = vadd.f32 %v4168, %v4530
  %4532 = vdwg.mxu0
  %4533 = vmatprep.subr.mxu0 %v3793
  %4534 = vmatpush1.msra.mxu0 %v3792
  %4535 = vmatprep.subr.mxu0 %v3801
  %4536 = vmatpush1.msra.mxu0 %v3800
  %4537 = vmatprep.subr.mxu0 %v3809
  %4538 = vmatpush1.msra.mxu0 %v3808
  %4539 = vmatprep.subr.mxu0 %v3817
  %4540 = vmatpush1.msra.mxu0 %v3816
  %4541 = vmatprep.subr.mxu0 %v3825
  %4542 = vmatpush1.msra.mxu0 %v3824
  %4543 = vmatprep.subr.mxu0 %v3833
  %4544 = vmatpush1.msra.mxu0 %v3832
  %4545 = vmatprep.subr.mxu0 %v3841
  %4546 = vmatpush1.msra.mxu0 %v3840
  %4547 = vmatprep.subr.mxu0 %v3849
  %4548 = vmatpush1.msra.mxu0 %v3848
  %4549 = vmatprep.subr.mxu0 %v3550
  %4550 = vmatpush1.msra.mxu0 %v3548
  %4551 = vmatprep.subr.mxu0 %v3556
  %4552 = vmatpush1.msra.mxu0 %v3554
  %4553 = vmatprep.subr.mxu0 %v3562
  %4554 = vmatpush1.msra.mxu0 %v3560
  %4555 = vmatprep.subr.mxu0 %v3568
  %4556 = vmatpush1.msra.mxu0 %v3566
  %4557 = vmatprep.subr.mxu0 %v3574
  %4558 = vmatpush1.msra.mxu0 %v3572
  %4559 = vmatprep.subr.mxu0 %v3580
  %4560 = vmatpush1.msra.mxu0 %v3578
  %4561 = vmatprep.subr.mxu0 %v3586
  %4562 = vmatpush1.msra.mxu0 %v3584
  %4563 = vmatprep.subr.mxu0 %v3592
  %4564 = vmatpush1.msra.mxu0 %v3590
  %4565 = vmatprep.subr.mxu0 %v4049
  %4566 = vmatpush1.msra.mxu0 %v4048
  %4567 = vmatprep.subr.mxu0 %v4057
  %4568 = vmatpush1.msra.mxu0 %v4056
  %4569 = vmatprep.subr.mxu0 %v4065
  %4570 = vmatpush1.msra.mxu0 %v4064
  %4571 = vmatprep.subr.mxu0 %v4073
  %4572 = vmatpush1.msra.mxu0 %v4072
  %4573 = vmatprep.subr.mxu0 %v4081
  %4574 = vmatpush1.msra.mxu0 %v4080
  %4575 = vmatprep.subr.mxu0 %v4089
  %4576 = vmatpush1.msra.mxu0 %v4088
  %4577 = vmatprep.subr.mxu0 %v4097
  %4578 = vmatpush1.msra.mxu0 %v4096
  %4579 = vmatprep.subr.mxu0 %v4105
  %4580 = vmatpush1.msra.mxu0 %v4104
  %4581 = vmatprep.subr.mxu0 0.0
  %4582 = vmatpush1.msra.mxu0 0.0
  %4583 = vmatprep.subr.mxu0 0.0
  %4584 = vmatpush1.msra.mxu0 0.0
  %4585 = vmatprep.subr.mxu0 0.0
  %4586 = vmatpush1.msra.mxu0 0.0
  %4587 = vmatprep.subr.mxu0 0.0
  %4588 = vmatpush1.msra.mxu0 0.0
  %4589 = vmatprep.subr.mxu0 0.0
  %4590 = vmatpush1.msra.mxu0 0.0
  %4591 = vmatprep.subr.mxu0 0.0
  %4592 = vmatpush1.msra.mxu0 0.0
  %4593 = vmatprep.subr.mxu0 0.0
  %4594 = vmatpush1.msra.mxu0 0.0
  %4595 = vmatprep.subr.mxu0 0.0
  %4596 = vmatpush1.msra.mxu0 0.0
  %4597 = vmatprep.mubr.f32.mxu0 %v4171
  %4598 = vmatmul.mubr.f32.gmra.mrb[0].mxu0 %v4106
  %v4599 = vpop.f32.mrb[0].mxu0
  %v4600 = vadd.f32 %v4133, %v4599
  %v4601 = vpop.f32.mrb[0].mxu0
  %v4602 = vadd.f32 %v4133, %v4601
  %4603 = vmatprep.mubr.f32.mxu0 %v4174
  %4604 = vmatmul.mubr.f32.gmra.mrb[0].mxu0 %v4108
  %v4605 = vpop.f32.mrb[0].mxu0
  %v4606 = vadd.f32 %v4138, %v4605
  %v4607 = vpop.f32.mrb[0].mxu0
  %v4608 = vadd.f32 %v4138, %v4607
  %4609 = vmatprep.mubr.f32.mxu0 %v4177
  %4610 = vmatmul.mubr.f32.gmra.mrb[0].mxu0 %v4110
  %v4611 = vpop.f32.mrb[0].mxu0
  %v4612 = vadd.f32 %v4143, %v4611
  %v4613 = vpop.f32.mrb[0].mxu0
  %v4614 = vadd.f32 %v4143, %v4613
  %4615 = vmatprep.mubr.f32.mxu0 %v4180
  %4616 = vmatmul.mubr.f32.gmra.mrb[0].mxu0 %v4112
  %v4617 = vpop.f32.mrb[0].mxu0
  %v4618 = vadd.f32 %v4148, %v4617
  %v4619 = vpop.f32.mrb[0].mxu0
  %v4620 = vadd.f32 %v4148, %v4619
  %4621 = vmatprep.mubr.f32.mxu0 %v4183
  %4622 = vmatmul.mubr.f32.gmra.mrb[0].mxu0 %v4114
  %v4623 = vpop.f32.mrb[0].mxu0
  %v4624 = vadd.f32 %v4153, %v4623
  %v4625 = vpop.f32.mrb[0].mxu0
  %v4626 = vadd.f32 %v4153, %v4625
  %4627 = vmatprep.mubr.f32.mxu0 %v4186
  %4628 = vmatmul.mubr.f32.gmra.mrb[0].mxu0 %v4116
  %v4629 = vpop.f32.mrb[0].mxu0
  %v4630 = vadd.f32 %v4158, %v4629
  %v4631 = vpop.f32.mrb[0].mxu0
  %v4632 = vadd.f32 %v4158, %v4631
  %4633 = vmatprep.mubr.f32.mxu0 %v4189
  %4634 = vmatmul.mubr.f32.gmra.mrb[0].mxu0 %v4118
  %v4635 = vpop.f32.mrb[0].mxu0
  %v4636 = vadd.f32 %v4163, %v4635
  %v4637 = vpop.f32.mrb[0].mxu0
  %v4638 = vadd.f32 %v4163, %v4637
  %4639 = vmatprep.mubr.f32.mxu0 %v4192
  %4640 = vmatmul.mubr.f32.gmra.mrb[0].mxu0 %v4120
  %v4641 = vpop.f32.mrb[0].mxu0
  %v4642 = vadd.f32 %v4168, %v4641
  %v4643 = vpop.f32.mrb[0].mxu0
  %v4644 = vadd.f32 %v4168, %v4643
  %4645 = vdwg.mxu0
  %4646 = vrot.lane.b32.xlu0 %v4261, 1
  %v4647 = vpop.permute.xlu0 %4646
  %4648 = vrot.lane.b32.xlu0 %v4267, 1
  %v4649 = vpop.permute.xlu0 %4648
  %4650 = vrot.lane.b32.xlu0 %v4273, 1
  %v4651 = vpop.permute.xlu0 %4650
  %4652 = vrot.lane.b32.xlu0 %v4279, 1
  %v4653 = vpop.permute.xlu0 %4652
  %4654 = vrot.lane.b32.xlu0 %v4285, 1
  %v4655 = vpop.permute.xlu0 %4654
  %4656 = vrot.lane.b32.xlu0 %v4291, 1
  %v4657 = vpop.permute.xlu0 %4656
  %4658 = vrot.lane.b32.xlu0 %v4297, 1
  %v4659 = vpop.permute.xlu0 %4658
  %4660 = vrot.lane.b32.xlu0 %v4303, 1
  %v4661 = vpop.permute.xlu0 %4660
  %4662 = vrot.lane.b32.xlu0 %v4263, 1
  %v4663 = vpop.permute.xlu0 %4662
  %4664 = vrot.lane.b32.xlu0 %v4269, 1
  %v4665 = vpop.permute.xlu0 %4664
  %4666 = vrot.lane.b32.xlu0 %v4275, 1
  %v4667 = vpop.permute.xlu0 %4666
  %4668 = vrot.lane.b32.xlu0 %v4281, 1
  %v4669 = vpop.permute.xlu0 %4668
  %4670 = vrot.lane.b32.xlu0 %v4287, 1
  %v4671 = vpop.permute.xlu0 %4670
  %4672 = vrot.lane.b32.xlu0 %v4293, 1
  %v4673 = vpop.permute.xlu0 %4672
  %4674 = vrot.lane.b32.xlu0 %v4299, 1
  %v4675 = vpop.permute.xlu0 %4674
  %4676 = vrot.lane.b32.xlu0 %v4305, 1
  %v4677 = vpop.permute.xlu0 %4676
  %4678 = vrot.lane.b32.xlu0 %v4374, 1
  %v4679 = vpop.permute.xlu0 %4678
  %4680 = vrot.lane.b32.xlu0 %v4380, 1
  %v4681 = vpop.permute.xlu0 %4680
  %4682 = vrot.lane.b32.xlu0 %v4386, 1
  %v4683 = vpop.permute.xlu0 %4682
  %4684 = vrot.lane.b32.xlu0 %v4392, 1
  %v4685 = vpop.permute.xlu0 %4684
  %4686 = vrot.lane.b32.xlu0 %v4398, 1
  %v4687 = vpop.permute.xlu0 %4686
  %4688 = vrot.lane.b32.xlu0 %v4404, 1
  %v4689 = vpop.permute.xlu0 %4688
  %4690 = vrot.lane.b32.xlu0 %v4410, 1
  %v4691 = vpop.permute.xlu0 %4690
  %4692 = vrot.lane.b32.xlu0 %v4416, 1
  %v4693 = vpop.permute.xlu0 %4692
  %4694 = vrot.lane.b32.xlu0 %v4376, 1
  %v4695 = vpop.permute.xlu0 %4694
  %4696 = vrot.lane.b32.xlu0 %v4382, 1
  %v4697 = vpop.permute.xlu0 %4696
  %4698 = vrot.lane.b32.xlu0 %v4388, 1
  %v4699 = vpop.permute.xlu0 %4698
  %4700 = vrot.lane.b32.xlu0 %v4394, 1
  %v4701 = vpop.permute.xlu0 %4700
  %4702 = vrot.lane.b32.xlu0 %v4400, 1
  %v4703 = vpop.permute.xlu0 %4702
  %4704 = vrot.lane.b32.xlu0 %v4406, 1
  %v4705 = vpop.permute.xlu0 %4704
  %4706 = vrot.lane.b32.xlu0 %v4412, 1
  %v4707 = vpop.permute.xlu0 %4706
  %4708 = vrot.lane.b32.xlu0 %v4418, 1
  %v4709 = vpop.permute.xlu0 %4708
  %4710 = vrot.lane.b32.xlu0 %v4487, 1
  %v4711 = vpop.permute.xlu0 %4710
  %4712 = vrot.lane.b32.xlu0 %v4493, 1
  %v4713 = vpop.permute.xlu0 %4712
  %4714 = vrot.lane.b32.xlu0 %v4499, 1
  %v4715 = vpop.permute.xlu0 %4714
  %4716 = vrot.lane.b32.xlu0 %v4505, 1
  %v4717 = vpop.permute.xlu0 %4716
  %4718 = vrot.lane.b32.xlu0 %v4511, 1
  %v4719 = vpop.permute.xlu0 %4718
  %4720 = vrot.lane.b32.xlu0 %v4517, 1
  %v4721 = vpop.permute.xlu0 %4720
  %4722 = vrot.lane.b32.xlu0 %v4523, 1
  %v4723 = vpop.permute.xlu0 %4722
  %4724 = vrot.lane.b32.xlu0 %v4529, 1
  %v4725 = vpop.permute.xlu0 %4724
  %4726 = vrot.lane.b32.xlu0 %v4489, 1
  %v4727 = vpop.permute.xlu0 %4726
  %4728 = vrot.lane.b32.xlu0 %v4495, 1
  %v4729 = vpop.permute.xlu0 %4728
  %4730 = vrot.lane.b32.xlu0 %v4501, 1
  %v4731 = vpop.permute.xlu0 %4730
  %4732 = vrot.lane.b32.xlu0 %v4507, 1
  %v4733 = vpop.permute.xlu0 %4732
  %4734 = vrot.lane.b32.xlu0 %v4513, 1
  %v4735 = vpop.permute.xlu0 %4734
  %4736 = vrot.lane.b32.xlu0 %v4519, 1
  %v4737 = vpop.permute.xlu0 %4736
  %4738 = vrot.lane.b32.xlu0 %v4525, 1
  %v4739 = vpop.permute.xlu0 %4738
  %4740 = vrot.lane.b32.xlu0 %v4531, 1
  %v4741 = vpop.permute.xlu0 %4740
  %4742 = vrot.lane.b32.xlu0 %v4600, 1
  %v4743 = vpop.permute.xlu0 %4742
  %4744 = vrot.lane.b32.xlu0 %v4606, 1
  %v4745 = vpop.permute.xlu0 %4744
  %4746 = vrot.lane.b32.xlu0 %v4612, 1
  %v4747 = vpop.permute.xlu0 %4746
  %4748 = vrot.lane.b32.xlu0 %v4618, 1
  %v4749 = vpop.permute.xlu0 %4748
  %4750 = vrot.lane.b32.xlu0 %v4624, 1
  %v4751 = vpop.permute.xlu0 %4750
  %4752 = vrot.lane.b32.xlu0 %v4630, 1
  %v4753 = vpop.permute.xlu0 %4752
  %4754 = vrot.lane.b32.xlu0 %v4636, 1
  %v4755 = vpop.permute.xlu0 %4754
  %4756 = vrot.lane.b32.xlu0 %v4642, 1
  %v4757 = vpop.permute.xlu0 %4756
  %4758 = vrot.lane.b32.xlu0 %v4602, 1
  %v4759 = vpop.permute.xlu0 %4758
  %4760 = vrot.lane.b32.xlu0 %v4608, 1
  %v4761 = vpop.permute.xlu0 %4760
  %4762 = vrot.lane.b32.xlu0 %v4614, 1
  %v4763 = vpop.permute.xlu0 %4762
  %4764 = vrot.lane.b32.xlu0 %v4620, 1
  %v4765 = vpop.permute.xlu0 %4764
  %4766 = vrot.lane.b32.xlu0 %v4626, 1
  %v4767 = vpop.permute.xlu0 %4766
  %4768 = vrot.lane.b32.xlu0 %v4632, 1
  %v4769 = vpop.permute.xlu0 %4768
  %4770 = vrot.lane.b32.xlu0 %v4638, 1
  %v4771 = vpop.permute.xlu0 %4770
  %4772 = vrot.lane.b32.xlu0 %v4644, 1
  %v4773 = vpop.permute.xlu0 %4772
  %v4774 = vsel %vm200, %v4743, %v4759
  %v4775 = vsel %vm200, %v4745, %v4761
  %v4776 = vsel %vm200, %v4747, %v4763
  %v4777 = vsel %vm200, %v4749, %v4765
  %v4778 = vsel %vm200, %v4751, %v4767
  %v4779 = vsel %vm200, %v4753, %v4769
  %v4780 = vsel %vm200, %v4755, %v4771
  %v4781 = vsel %vm200, %v4757, %v4773
  %v4782 = vsel %vm200, %v4727, %v4743
  %v4783 = vsel %vm200, %v4729, %v4745
  %v4784 = vsel %vm200, %v4731, %v4747
  %v4785 = vsel %vm200, %v4733, %v4749
  %v4786 = vsel %vm200, %v4735, %v4751
  %v4787 = vsel %vm200, %v4737, %v4753
  %v4788 = vsel %vm200, %v4739, %v4755
  %v4789 = vsel %vm200, %v4741, %v4757
  %v4790 = vsel %vm200, %v4711, %v4727
  %v4791 = vsel %vm200, %v4713, %v4729
  %v4792 = vsel %vm200, %v4715, %v4731
  %v4793 = vsel %vm200, %v4717, %v4733
  %v4794 = vsel %vm200, %v4719, %v4735
  %v4795 = vsel %vm200, %v4721, %v4737
  %v4796 = vsel %vm200, %v4723, %v4739
  %v4797 = vsel %vm200, %v4725, %v4741
  %v4798 = vsel %vm200, %v4695, %v4711
  %v4799 = vsel %vm200, %v4697, %v4713
  %v4800 = vsel %vm200, %v4699, %v4715
  %v4801 = vsel %vm200, %v4701, %v4717
  %v4802 = vsel %vm200, %v4703, %v4719
  %v4803 = vsel %vm200, %v4705, %v4721
  %v4804 = vsel %vm200, %v4707, %v4723
  %v4805 = vsel %vm200, %v4709, %v4725
  %v4806 = vsel %vm200, %v4679, %v4695
  %v4807 = vsel %vm200, %v4681, %v4697
  %v4808 = vsel %vm200, %v4683, %v4699
  %v4809 = vsel %vm200, %v4685, %v4701
  %v4810 = vsel %vm200, %v4687, %v4703
  %v4811 = vsel %vm200, %v4689, %v4705
  %v4812 = vsel %vm200, %v4691, %v4707
  %v4813 = vsel %vm200, %v4693, %v4709
  %v4814 = vsel %vm200, %v4663, %v4679
  %v4815 = vsel %vm200, %v4665, %v4681
  %v4816 = vsel %vm200, %v4667, %v4683
  %v4817 = vsel %vm200, %v4669, %v4685
  %v4818 = vsel %vm200, %v4671, %v4687
  %v4819 = vsel %vm200, %v4673, %v4689
  %v4820 = vsel %vm200, %v4675, %v4691
  %v4821 = vsel %vm200, %v4677, %v4693
  %v4822 = vsel %vm200, %v4647, %v4663
  %v4823 = vsel %vm200, %v4649, %v4665
  %v4824 = vsel %vm200, %v4651, %v4667
  %v4825 = vsel %vm200, %v4653, %v4669
  %v4826 = vsel %vm200, %v4655, %v4671
  %v4827 = vsel %vm200, %v4657, %v4673
  %v4828 = vsel %vm200, %v4659, %v4675
  %v4829 = vsel %vm200, %v4661, %v4677
  %v4830 = vsel %vm200, %v4759, %v4647
  %v4831 = vsel %vm200, %v4761, %v4649
  %v4832 = vsel %vm200, %v4763, %v4651
  %v4833 = vsel %vm200, %v4765, %v4653
  %v4834 = vsel %vm200, %v4767, %v4655
  %v4835 = vsel %vm200, %v4769, %v4657
  %v4836 = vsel %vm200, %v4771, %v4659
  %v4837 = vsel %vm200, %v4773, %v4661
  %v4838 = vmul.f32 %v4830, %v2252
  %v4839 = vmul.f32 %v4822, %v2256
  %v4840 = vmul.f32 %v4814, %v2260
  %v4841 = vmul.f32 %v4806, %v2264
  %v4842 = vmul.f32 %v4798, %v2268
  %v4843 = vmul.f32 %v4790, %v2272
  %v4844 = vmul.f32 %v4782, %v2276
  %v4845 = vmul.f32 %v4774, %v2280
  %v4846 = vmul.f32 %v4831, %v2252
  %v4847 = vmul.f32 %v4823, %v2256
  %v4848 = vmul.f32 %v4815, %v2260
  %v4849 = vmul.f32 %v4807, %v2264
  %v4850 = vmul.f32 %v4799, %v2268
  %v4851 = vmul.f32 %v4791, %v2272
  %v4852 = vmul.f32 %v4783, %v2276
  %v4853 = vmul.f32 %v4775, %v2280
  %v4854 = vmul.f32 %v4832, %v2252
  %v4855 = vmul.f32 %v4824, %v2256
  %v4856 = vmul.f32 %v4816, %v2260
  %v4857 = vmul.f32 %v4808, %v2264
  %v4858 = vmul.f32 %v4800, %v2268
  %v4859 = vmul.f32 %v4792, %v2272
  %v4860 = vmul.f32 %v4784, %v2276
  %v4861 = vmul.f32 %v4776, %v2280
  %v4862 = vmul.f32 %v4833, %v2252
  %v4863 = vmul.f32 %v4825, %v2256
  %v4864 = vmul.f32 %v4817, %v2260
  %v4865 = vmul.f32 %v4809, %v2264
  %v4866 = vmul.f32 %v4801, %v2268
  %v4867 = vmul.f32 %v4793, %v2272
  %v4868 = vmul.f32 %v4785, %v2276
  %v4869 = vmul.f32 %v4777, %v2280
  %v4870 = vmul.f32 %v4834, %v2252
  %v4871 = vmul.f32 %v4826, %v2256
  %v4872 = vmul.f32 %v4818, %v2260
  %v4873 = vmul.f32 %v4810, %v2264
  %v4874 = vmul.f32 %v4802, %v2268
  %v4875 = vmul.f32 %v4794, %v2272
  %v4876 = vmul.f32 %v4786, %v2276
  %v4877 = vmul.f32 %v4778, %v2280
  %v4878 = vmul.f32 %v4835, %v2252
  %v4879 = vmul.f32 %v4827, %v2256
  %v4880 = vmul.f32 %v4819, %v2260
  %v4881 = vmul.f32 %v4811, %v2264
  %v4882 = vmul.f32 %v4803, %v2268
  %v4883 = vmul.f32 %v4795, %v2272
  %v4884 = vmul.f32 %v4787, %v2276
  %v4885 = vmul.f32 %v4779, %v2280
  %v4886 = vmul.f32 %v4836, %v2252
  %v4887 = vmul.f32 %v4828, %v2256
  %v4888 = vmul.f32 %v4820, %v2260
  %v4889 = vmul.f32 %v4812, %v2264
  %v4890 = vmul.f32 %v4804, %v2268
  %v4891 = vmul.f32 %v4796, %v2272
  %v4892 = vmul.f32 %v4788, %v2276
  %v4893 = vmul.f32 %v4780, %v2280
  %v4894 = vmul.f32 %v4837, %v2252
  %v4895 = vmul.f32 %v4829, %v2256
  %v4896 = vmul.f32 %v4821, %v2260
  %v4897 = vmul.f32 %v4813, %v2264
  %v4898 = vmul.f32 %v4805, %v2268
  %v4899 = vmul.f32 %v4797, %v2272
  %v4900 = vmul.f32 %v4789, %v2276
  %v4901 = vmul.f32 %v4781, %v2280
  %4902 = vrot.lane.b32.xlu0 %v4261, 127
  %v4903 = vpop.permute.xlu0 %4902
  %4904 = vrot.lane.b32.xlu0 %v4267, 127
  %v4905 = vpop.permute.xlu0 %4904
  %4906 = vrot.lane.b32.xlu0 %v4273, 127
  %v4907 = vpop.permute.xlu0 %4906
  %4908 = vrot.lane.b32.xlu0 %v4279, 127
  %v4909 = vpop.permute.xlu0 %4908
  %4910 = vrot.lane.b32.xlu0 %v4285, 127
  %v4911 = vpop.permute.xlu0 %4910
  %4912 = vrot.lane.b32.xlu0 %v4291, 127
  %v4913 = vpop.permute.xlu0 %4912
  %4914 = vrot.lane.b32.xlu0 %v4297, 127
  %v4915 = vpop.permute.xlu0 %4914
  %4916 = vrot.lane.b32.xlu0 %v4303, 127
  %v4917 = vpop.permute.xlu0 %4916
  %4918 = vrot.lane.b32.xlu0 %v4263, 127
  %v4919 = vpop.permute.xlu0 %4918
  %4920 = vrot.lane.b32.xlu0 %v4269, 127
  %v4921 = vpop.permute.xlu0 %4920
  %4922 = vrot.lane.b32.xlu0 %v4275, 127
  %v4923 = vpop.permute.xlu0 %4922
  %4924 = vrot.lane.b32.xlu0 %v4281, 127
  %v4925 = vpop.permute.xlu0 %4924
  %4926 = vrot.lane.b32.xlu0 %v4287, 127
  %v4927 = vpop.permute.xlu0 %4926
  %4928 = vrot.lane.b32.xlu0 %v4293, 127
  %v4929 = vpop.permute.xlu0 %4928
  %4930 = vrot.lane.b32.xlu0 %v4299, 127
  %v4931 = vpop.permute.xlu0 %4930
  %4932 = vrot.lane.b32.xlu0 %v4305, 127
  %v4933 = vpop.permute.xlu0 %4932
  %4934 = vrot.lane.b32.xlu0 %v4374, 127
  %v4935 = vpop.permute.xlu0 %4934
  %4936 = vrot.lane.b32.xlu0 %v4380, 127
  %v4937 = vpop.permute.xlu0 %4936
  %4938 = vrot.lane.b32.xlu0 %v4386, 127
  %v4939 = vpop.permute.xlu0 %4938
  %4940 = vrot.lane.b32.xlu0 %v4392, 127
  %v4941 = vpop.permute.xlu0 %4940
  %4942 = vrot.lane.b32.xlu0 %v4398, 127
  %v4943 = vpop.permute.xlu0 %4942
  %4944 = vrot.lane.b32.xlu0 %v4404, 127
  %v4945 = vpop.permute.xlu0 %4944
  %4946 = vrot.lane.b32.xlu0 %v4410, 127
  %v4947 = vpop.permute.xlu0 %4946
  %4948 = vrot.lane.b32.xlu0 %v4416, 127
  %v4949 = vpop.permute.xlu0 %4948
  %4950 = vrot.lane.b32.xlu0 %v4376, 127
  %v4951 = vpop.permute.xlu0 %4950
  %4952 = vrot.lane.b32.xlu0 %v4382, 127
  %v4953 = vpop.permute.xlu0 %4952
  %4954 = vrot.lane.b32.xlu0 %v4388, 127
  %v4955 = vpop.permute.xlu0 %4954
  %4956 = vrot.lane.b32.xlu0 %v4394, 127
  %v4957 = vpop.permute.xlu0 %4956
  %4958 = vrot.lane.b32.xlu0 %v4400, 127
  %v4959 = vpop.permute.xlu0 %4958
  %4960 = vrot.lane.b32.xlu0 %v4406, 127
  %v4961 = vpop.permute.xlu0 %4960
  %4962 = vrot.lane.b32.xlu0 %v4412, 127
  %v4963 = vpop.permute.xlu0 %4962
  %4964 = vrot.lane.b32.xlu0 %v4418, 127
  %v4965 = vpop.permute.xlu0 %4964
  %4966 = vrot.lane.b32.xlu0 %v4487, 127
  %v4967 = vpop.permute.xlu0 %4966
  %4968 = vrot.lane.b32.xlu0 %v4493, 127
  %v4969 = vpop.permute.xlu0 %4968
  %4970 = vrot.lane.b32.xlu0 %v4499, 127
  %v4971 = vpop.permute.xlu0 %4970
  %4972 = vrot.lane.b32.xlu0 %v4505, 127
  %v4973 = vpop.permute.xlu0 %4972
  %4974 = vrot.lane.b32.xlu0 %v4511, 127
  %v4975 = vpop.permute.xlu0 %4974
  %4976 = vrot.lane.b32.xlu0 %v4517, 127
  %v4977 = vpop.permute.xlu0 %4976
  %4978 = vrot.lane.b32.xlu0 %v4523, 127
  %v4979 = vpop.permute.xlu0 %4978
  %4980 = vrot.lane.b32.xlu0 %v4529, 127
  %v4981 = vpop.permute.xlu0 %4980
  %4982 = vrot.lane.b32.xlu0 %v4489, 127
  %v4983 = vpop.permute.xlu0 %4982
  %4984 = vrot.lane.b32.xlu0 %v4495, 127
  %v4985 = vpop.permute.xlu0 %4984
  %4986 = vrot.lane.b32.xlu0 %v4501, 127
  %v4987 = vpop.permute.xlu0 %4986
  %4988 = vrot.lane.b32.xlu0 %v4507, 127
  %v4989 = vpop.permute.xlu0 %4988
  %4990 = vrot.lane.b32.xlu0 %v4513, 127
  %v4991 = vpop.permute.xlu0 %4990
  %4992 = vrot.lane.b32.xlu0 %v4519, 127
  %v4993 = vpop.permute.xlu0 %4992
  %4994 = vrot.lane.b32.xlu0 %v4525, 127
  %v4995 = vpop.permute.xlu0 %4994
  %4996 = vrot.lane.b32.xlu0 %v4531, 127
  %v4997 = vpop.permute.xlu0 %4996
  %4998 = vrot.lane.b32.xlu0 %v4600, 127
  %v4999 = vpop.permute.xlu0 %4998
  %5000 = vrot.lane.b32.xlu0 %v4606, 127
  %v5001 = vpop.permute.xlu0 %5000
  %5002 = vrot.lane.b32.xlu0 %v4612, 127
  %v5003 = vpop.permute.xlu0 %5002
  %5004 = vrot.lane.b32.xlu0 %v4618, 127
  %v5005 = vpop.permute.xlu0 %5004
  %5006 = vrot.lane.b32.xlu0 %v4624, 127
  %v5007 = vpop.permute.xlu0 %5006
  %5008 = vrot.lane.b32.xlu0 %v4630, 127
  %v5009 = vpop.permute.xlu0 %5008
  %5010 = vrot.lane.b32.xlu0 %v4636, 127
  %v5011 = vpop.permute.xlu0 %5010
  %5012 = vrot.lane.b32.xlu0 %v4642, 127
  %v5013 = vpop.permute.xlu0 %5012
  %5014 = vrot.lane.b32.xlu0 %v4602, 127
  %v5015 = vpop.permute.xlu0 %5014
  %5016 = vrot.lane.b32.xlu0 %v4608, 127
  %v5017 = vpop.permute.xlu0 %5016
  %5018 = vrot.lane.b32.xlu0 %v4614, 127
  %v5019 = vpop.permute.xlu0 %5018
  %5020 = vrot.lane.b32.xlu0 %v4620, 127
  %v5021 = vpop.permute.xlu0 %5020
  %5022 = vrot.lane.b32.xlu0 %v4626, 127
  %v5023 = vpop.permute.xlu0 %5022
  %5024 = vrot.lane.b32.xlu0 %v4632, 127
  %v5025 = vpop.permute.xlu0 %5024
  %5026 = vrot.lane.b32.xlu0 %v4638, 127
  %v5027 = vpop.permute.xlu0 %5026
  %5028 = vrot.lane.b32.xlu0 %v4644, 127
  %v5029 = vpop.permute.xlu0 %5028
  %v5030 = vsel %vm267, %v4999, %v5015
  %v5031 = vsel %vm267, %v5001, %v5017
  %v5032 = vsel %vm267, %v5003, %v5019
  %v5033 = vsel %vm267, %v5005, %v5021
  %v5034 = vsel %vm267, %v5007, %v5023
  %v5035 = vsel %vm267, %v5009, %v5025
  %v5036 = vsel %vm267, %v5011, %v5027
  %v5037 = vsel %vm267, %v5013, %v5029
  %v5038 = vsel %vm267, %v4983, %v4999
  %v5039 = vsel %vm267, %v4985, %v5001
  %v5040 = vsel %vm267, %v4987, %v5003
  %v5041 = vsel %vm267, %v4989, %v5005
  %v5042 = vsel %vm267, %v4991, %v5007
  %v5043 = vsel %vm267, %v4993, %v5009
  %v5044 = vsel %vm267, %v4995, %v5011
  %v5045 = vsel %vm267, %v4997, %v5013
  %v5046 = vsel %vm267, %v4967, %v4983
  %v5047 = vsel %vm267, %v4969, %v4985
  %v5048 = vsel %vm267, %v4971, %v4987
  %v5049 = vsel %vm267, %v4973, %v4989
  %v5050 = vsel %vm267, %v4975, %v4991
  %v5051 = vsel %vm267, %v4977, %v4993
  %v5052 = vsel %vm267, %v4979, %v4995
  %v5053 = vsel %vm267, %v4981, %v4997
  %v5054 = vsel %vm267, %v4951, %v4967
  %v5055 = vsel %vm267, %v4953, %v4969
  %v5056 = vsel %vm267, %v4955, %v4971
  %v5057 = vsel %vm267, %v4957, %v4973
  %v5058 = vsel %vm267, %v4959, %v4975
  %v5059 = vsel %vm267, %v4961, %v4977
  %v5060 = vsel %vm267, %v4963, %v4979
  %v5061 = vsel %vm267, %v4965, %v4981
  %v5062 = vsel %vm267, %v4935, %v4951
  %v5063 = vsel %vm267, %v4937, %v4953
  %v5064 = vsel %vm267, %v4939, %v4955
  %v5065 = vsel %vm267, %v4941, %v4957
  %v5066 = vsel %vm267, %v4943, %v4959
  %v5067 = vsel %vm267, %v4945, %v4961
  %v5068 = vsel %vm267, %v4947, %v4963
  %v5069 = vsel %vm267, %v4949, %v4965
  %v5070 = vsel %vm267, %v4919, %v4935
  %v5071 = vsel %vm267, %v4921, %v4937
  %v5072 = vsel %vm267, %v4923, %v4939
  %v5073 = vsel %vm267, %v4925, %v4941
  %v5074 = vsel %vm267, %v4927, %v4943
  %v5075 = vsel %vm267, %v4929, %v4945
  %v5076 = vsel %vm267, %v4931, %v4947
  %v5077 = vsel %vm267, %v4933, %v4949
  %v5078 = vsel %vm267, %v4903, %v4919
  %v5079 = vsel %vm267, %v4905, %v4921
  %v5080 = vsel %vm267, %v4907, %v4923
  %v5081 = vsel %vm267, %v4909, %v4925
  %v5082 = vsel %vm267, %v4911, %v4927
  %v5083 = vsel %vm267, %v4913, %v4929
  %v5084 = vsel %vm267, %v4915, %v4931
  %v5085 = vsel %vm267, %v4917, %v4933
  %v5086 = vsel %vm267, %v5015, %v4903
  %v5087 = vsel %vm267, %v5017, %v4905
  %v5088 = vsel %vm267, %v5019, %v4907
  %v5089 = vsel %vm267, %v5021, %v4909
  %v5090 = vsel %vm267, %v5023, %v4911
  %v5091 = vsel %vm267, %v5025, %v4913
  %v5092 = vsel %vm267, %v5027, %v4915
  %v5093 = vsel %vm267, %v5029, %v4917
  %v5094 = vmul.f32 %v5078, %v2357
  %v5095 = vmul.f32 %v5070, %v2361
  %v5096 = vmul.f32 %v5062, %v2365
  %v5097 = vmul.f32 %v5054, %v2369
  %v5098 = vmul.f32 %v5046, %v2373
  %v5099 = vmul.f32 %v5038, %v2377
  %v5100 = vmul.f32 %v5030, %v2381
  %v5101 = vmul.f32 %v5086, %v2385
  %v5102 = vmul.f32 %v5079, %v2357
  %v5103 = vmul.f32 %v5071, %v2361
  %v5104 = vmul.f32 %v5063, %v2365
  %v5105 = vmul.f32 %v5055, %v2369
  %v5106 = vmul.f32 %v5047, %v2373
  %v5107 = vmul.f32 %v5039, %v2377
  %v5108 = vmul.f32 %v5031, %v2381
  %v5109 = vmul.f32 %v5087, %v2385
  %v5110 = vmul.f32 %v5080, %v2357
  %v5111 = vmul.f32 %v5072, %v2361
  %v5112 = vmul.f32 %v5064, %v2365
  %v5113 = vmul.f32 %v5056, %v2369
  %v5114 = vmul.f32 %v5048, %v2373
  %v5115 = vmul.f32 %v5040, %v2377
  %v5116 = vmul.f32 %v5032, %v2381
  %v5117 = vmul.f32 %v5088, %v2385
  %v5118 = vmul.f32 %v5081, %v2357
  %v5119 = vmul.f32 %v5073, %v2361
  %v5120 = vmul.f32 %v5065, %v2365
  %v5121 = vmul.f32 %v5057, %v2369
  %v5122 = vmul.f32 %v5049, %v2373
  %v5123 = vmul.f32 %v5041, %v2377
  %v5124 = vmul.f32 %v5033, %v2381
  %v5125 = vmul.f32 %v5089, %v2385
  %v5126 = vmul.f32 %v5082, %v2357
  %v5127 = vmul.f32 %v5074, %v2361
  %v5128 = vmul.f32 %v5066, %v2365
  %v5129 = vmul.f32 %v5058, %v2369
  %v5130 = vmul.f32 %v5050, %v2373
  %v5131 = vmul.f32 %v5042, %v2377
  %v5132 = vmul.f32 %v5034, %v2381
  %v5133 = vmul.f32 %v5090, %v2385
  %v5134 = vmul.f32 %v5083, %v2357
  %v5135 = vmul.f32 %v5075, %v2361
  %v5136 = vmul.f32 %v5067, %v2365
  %v5137 = vmul.f32 %v5059, %v2369
  %v5138 = vmul.f32 %v5051, %v2373
  %v5139 = vmul.f32 %v5043, %v2377
  %v5140 = vmul.f32 %v5035, %v2381
  %v5141 = vmul.f32 %v5091, %v2385
  %v5142 = vmul.f32 %v5084, %v2357
  %v5143 = vmul.f32 %v5076, %v2361
  %v5144 = vmul.f32 %v5068, %v2365
  %v5145 = vmul.f32 %v5060, %v2369
  %v5146 = vmul.f32 %v5052, %v2373
  %v5147 = vmul.f32 %v5044, %v2377
  %v5148 = vmul.f32 %v5036, %v2381
  %v5149 = vmul.f32 %v5092, %v2385
  %v5150 = vmul.f32 %v5085, %v2357
  %v5151 = vmul.f32 %v5077, %v2361
  %v5152 = vmul.f32 %v5069, %v2365
  %v5153 = vmul.f32 %v5061, %v2369
  %v5154 = vmul.f32 %v5053, %v2373
  %v5155 = vmul.f32 %v5045, %v2377
  %v5156 = vmul.f32 %v5037, %v2381
  %v5157 = vmul.f32 %v5093, %v2385
  %v5158 = vld [vmem:[%s20] sm:$0xff]
  %v5159 = vld [vmem:[%s20 + $0x8] sm:$0xff]
  %v5160 = vld [vmem:[%s20 + $0x10] sm:$0xff]
  %v5161 = vld [vmem:[%s20 + $0x18] sm:$0xff]
  %v5162 = vld [vmem:[%s20 + $0x20] sm:$0xff]
  %v5163 = vld [vmem:[%s20 + $0x28] sm:$0xff]
  %v5164 = vld [vmem:[%s20 + $0x30] sm:$0xff]
  %v5165 = vld [vmem:[%s20 + $0x38] sm:$0xff]
  %v5166 = vld [vmem:[%s21] sm:$0xff]
  %v5167 = vld [vmem:[%s21 + $0x8] sm:$0xff]
  %v5168 = vld [vmem:[%s21 + $0x10] sm:$0xff]
  %v5169 = vld [vmem:[%s21 + $0x18] sm:$0xff]
  %5171 = vset.pattern.permute.xlu0 0
  %5172 = vperm.xlu0 %5171, %v5166
  %v5173 = vpop.permute.xlu0 %5172
  %5176 = vset.pattern.permute.xlu0 0
  %5177 = vperm.xlu0 %5176, %v5167
  %v5178 = vpop.permute.xlu0 %5177
  %5181 = vset.pattern.permute.xlu0 0
  %5182 = vperm.xlu0 %5181, %v5168
  %v5183 = vpop.permute.xlu0 %5182
  %5186 = vset.pattern.permute.xlu0 0
  %5187 = vperm.xlu0 %5186, %v5169
  %v5188 = vpop.permute.xlu0 %5187
  %v5191 = vsel %vm1542, %v5159, 0
  %v5194 = vsel %vm1542, %v5161, 0
  %v5197 = vsel %vm1542, %v5163, 0
  %v5200 = vsel %vm1542, %v5165, 0
  %5202 = vmatprep.subr.mxu0 %v4839
  %5203 = vmatpush1.msra.mxu0 %v4838
  %5204 = vmatprep.subr.mxu0 %v4847
  %5205 = vmatpush1.msra.mxu0 %v4846
  %5206 = vmatprep.subr.mxu0 %v4855
  %5207 = vmatpush1.msra.mxu0 %v4854
  %5208 = vmatprep.subr.mxu0 %v4863
  %5209 = vmatpush1.msra.mxu0 %v4862
  %5210 = vmatprep.subr.mxu0 %v4871
  %5211 = vmatpush1.msra.mxu0 %v4870
  %5212 = vmatprep.subr.mxu0 %v4879
  %5213 = vmatpush1.msra.mxu0 %v4878
  %5214 = vmatprep.subr.mxu0 %v4887
  %5215 = vmatpush1.msra.mxu0 %v4886
  %5216 = vmatprep.subr.mxu0 %v4895
  %5217 = vmatpush1.msra.mxu0 %v4894
  %5218 = vmatprep.subr.mxu0 %v4263
  %5219 = vmatpush1.msra.mxu0 %v4261
  %5220 = vmatprep.subr.mxu0 %v4269
  %5221 = vmatpush1.msra.mxu0 %v4267
  %5222 = vmatprep.subr.mxu0 %v4275
  %5223 = vmatpush1.msra.mxu0 %v4273
  %5224 = vmatprep.subr.mxu0 %v4281
  %5225 = vmatpush1.msra.mxu0 %v4279
  %5226 = vmatprep.subr.mxu0 %v4287
  %5227 = vmatpush1.msra.mxu0 %v4285
  %5228 = vmatprep.subr.mxu0 %v4293
  %5229 = vmatpush1.msra.mxu0 %v4291
  %5230 = vmatprep.subr.mxu0 %v4299
  %5231 = vmatpush1.msra.mxu0 %v4297
  %5232 = vmatprep.subr.mxu0 %v4305
  %5233 = vmatpush1.msra.mxu0 %v4303
  %5234 = vmatprep.subr.mxu0 %v5095
  %5235 = vmatpush1.msra.mxu0 %v5094
  %5236 = vmatprep.subr.mxu0 %v5103
  %5237 = vmatpush1.msra.mxu0 %v5102
  %5238 = vmatprep.subr.mxu0 %v5111
  %5239 = vmatpush1.msra.mxu0 %v5110
  %5240 = vmatprep.subr.mxu0 %v5119
  %5241 = vmatpush1.msra.mxu0 %v5118
  %5242 = vmatprep.subr.mxu0 %v5127
  %5243 = vmatpush1.msra.mxu0 %v5126
  %5244 = vmatprep.subr.mxu0 %v5135
  %5245 = vmatpush1.msra.mxu0 %v5134
  %5246 = vmatprep.subr.mxu0 %v5143
  %5247 = vmatpush1.msra.mxu0 %v5142
  %5248 = vmatprep.subr.mxu0 %v5151
  %5249 = vmatpush1.msra.mxu0 %v5150
  %5250 = vmatprep.subr.mxu0 0.0
  %5251 = vmatpush1.msra.mxu0 0.0
  %5252 = vmatprep.subr.mxu0 0.0
  %5253 = vmatpush1.msra.mxu0 0.0
  %5254 = vmatprep.subr.mxu0 0.0
  %5255 = vmatpush1.msra.mxu0 0.0
  %5256 = vmatprep.subr.mxu0 0.0
  %5257 = vmatpush1.msra.mxu0 0.0
  %5258 = vmatprep.subr.mxu0 0.0
  %5259 = vmatpush1.msra.mxu0 0.0
  %5260 = vmatprep.subr.mxu0 0.0
  %5261 = vmatpush1.msra.mxu0 0.0
  %5262 = vmatprep.subr.mxu0 0.0
  %5263 = vmatpush1.msra.mxu0 0.0
  %5264 = vmatprep.subr.mxu0 0.0
  %5265 = vmatpush1.msra.mxu0 0.0
  %5266 = vmatprep.mubr.f32.mxu0 %v5191
  %5267 = vmatmul.mubr.f32.gmra.mrb[0].mxu0 %v5158
  %v5268 = vpop.f32.mrb[0].mxu0
  %v5269 = vadd.f32 %v5173, %v5268
  %v5270 = vpop.f32.mrb[0].mxu0
  %v5271 = vadd.f32 %v5173, %v5270
  %5272 = vmatprep.mubr.f32.mxu0 %v5194
  %5273 = vmatmul.mubr.f32.gmra.mrb[0].mxu0 %v5160
  %v5274 = vpop.f32.mrb[0].mxu0
  %v5275 = vadd.f32 %v5178, %v5274
  %v5276 = vpop.f32.mrb[0].mxu0
  %v5277 = vadd.f32 %v5178, %v5276
  %5278 = vmatprep.mubr.f32.mxu0 %v5197
  %5279 = vmatmul.mubr.f32.gmra.mrb[0].mxu0 %v5162
  %v5280 = vpop.f32.mrb[0].mxu0
  %v5281 = vadd.f32 %v5183, %v5280
  %v5282 = vpop.f32.mrb[0].mxu0
  %v5283 = vadd.f32 %v5183, %v5282
  %5284 = vmatprep.mubr.f32.mxu0 %v5200
  %5285 = vmatmul.mubr.f32.gmra.mrb[0].mxu0 %v5164
  %v5286 = vpop.f32.mrb[0].mxu0
  %v5287 = vadd.f32 %v5188, %v5286
  %v5288 = vpop.f32.mrb[0].mxu0
  %v5289 = vadd.f32 %v5188, %v5288
  %5290 = vdwg.mxu0
  %5291 = vmatprep.subr.mxu0 %v4841
  %5292 = vmatpush1.msra.mxu0 %v4840
  %5293 = vmatprep.subr.mxu0 %v4849
  %5294 = vmatpush1.msra.mxu0 %v4848
  %5295 = vmatprep.subr.mxu0 %v4857
  %5296 = vmatpush1.msra.mxu0 %v4856
  %5297 = vmatprep.subr.mxu0 %v4865
  %5298 = vmatpush1.msra.mxu0 %v4864
  %5299 = vmatprep.subr.mxu0 %v4873
  %5300 = vmatpush1.msra.mxu0 %v4872
  %5301 = vmatprep.subr.mxu0 %v4881
  %5302 = vmatpush1.msra.mxu0 %v4880
  %5303 = vmatprep.subr.mxu0 %v4889
  %5304 = vmatpush1.msra.mxu0 %v4888
  %5305 = vmatprep.subr.mxu0 %v4897
  %5306 = vmatpush1.msra.mxu0 %v4896
  %5307 = vmatprep.subr.mxu0 %v4376
  %5308 = vmatpush1.msra.mxu0 %v4374
  %5309 = vmatprep.subr.mxu0 %v4382
  %5310 = vmatpush1.msra.mxu0 %v4380
  %5311 = vmatprep.subr.mxu0 %v4388
  %5312 = vmatpush1.msra.mxu0 %v4386
  %5313 = vmatprep.subr.mxu0 %v4394
  %5314 = vmatpush1.msra.mxu0 %v4392
  %5315 = vmatprep.subr.mxu0 %v4400
  %5316 = vmatpush1.msra.mxu0 %v4398
  %5317 = vmatprep.subr.mxu0 %v4406
  %5318 = vmatpush1.msra.mxu0 %v4404
  %5319 = vmatprep.subr.mxu0 %v4412
  %5320 = vmatpush1.msra.mxu0 %v4410
  %5321 = vmatprep.subr.mxu0 %v4418
  %5322 = vmatpush1.msra.mxu0 %v4416
  %5323 = vmatprep.subr.mxu0 %v5097
  %5324 = vmatpush1.msra.mxu0 %v5096
  %5325 = vmatprep.subr.mxu0 %v5105
  %5326 = vmatpush1.msra.mxu0 %v5104
  %5327 = vmatprep.subr.mxu0 %v5113
  %5328 = vmatpush1.msra.mxu0 %v5112
  %5329 = vmatprep.subr.mxu0 %v5121
  %5330 = vmatpush1.msra.mxu0 %v5120
  %5331 = vmatprep.subr.mxu0 %v5129
  %5332 = vmatpush1.msra.mxu0 %v5128
  %5333 = vmatprep.subr.mxu0 %v5137
  %5334 = vmatpush1.msra.mxu0 %v5136
  %5335 = vmatprep.subr.mxu0 %v5145
  %5336 = vmatpush1.msra.mxu0 %v5144
  %5337 = vmatprep.subr.mxu0 %v5153
  %5338 = vmatpush1.msra.mxu0 %v5152
  %5339 = vmatprep.subr.mxu0 0.0
  %5340 = vmatpush1.msra.mxu0 0.0
  %5341 = vmatprep.subr.mxu0 0.0
  %5342 = vmatpush1.msra.mxu0 0.0
  %5343 = vmatprep.subr.mxu0 0.0
  %5344 = vmatpush1.msra.mxu0 0.0
  %5345 = vmatprep.subr.mxu0 0.0
  %5346 = vmatpush1.msra.mxu0 0.0
  %5347 = vmatprep.subr.mxu0 0.0
  %5348 = vmatpush1.msra.mxu0 0.0
  %5349 = vmatprep.subr.mxu0 0.0
  %5350 = vmatpush1.msra.mxu0 0.0
  %5351 = vmatprep.subr.mxu0 0.0
  %5352 = vmatpush1.msra.mxu0 0.0
  %5353 = vmatprep.subr.mxu0 0.0
  %5354 = vmatpush1.msra.mxu0 0.0
  %5355 = vmatprep.mubr.f32.mxu0 %v5191
  %5356 = vmatmul.mubr.f32.gmra.mrb[0].mxu0 %v5158
  %v5357 = vpop.f32.mrb[0].mxu0
  %v5358 = vadd.f32 %v5173, %v5357
  %v5359 = vpop.f32.mrb[0].mxu0
  %v5360 = vadd.f32 %v5173, %v5359
  %5361 = vmatprep.mubr.f32.mxu0 %v5194
  %5362 = vmatmul.mubr.f32.gmra.mrb[0].mxu0 %v5160
  %v5363 = vpop.f32.mrb[0].mxu0
  %v5364 = vadd.f32 %v5178, %v5363
  %v5365 = vpop.f32.mrb[0].mxu0
  %v5366 = vadd.f32 %v5178, %v5365
  %5367 = vmatprep.mubr.f32.mxu0 %v5197
  %5368 = vmatmul.mubr.f32.gmra.mrb[0].mxu0 %v5162
  %v5369 = vpop.f32.mrb[0].mxu0
  %v5370 = vadd.f32 %v5183, %v5369
  %v5371 = vpop.f32.mrb[0].mxu0
  %v5372 = vadd.f32 %v5183, %v5371
  %5373 = vmatprep.mubr.f32.mxu0 %v5200
  %5374 = vmatmul.mubr.f32.gmra.mrb[0].mxu0 %v5164
  %v5375 = vpop.f32.mrb[0].mxu0
  %v5376 = vadd.f32 %v5188, %v5375
  %v5377 = vpop.f32.mrb[0].mxu0
  %v5378 = vadd.f32 %v5188, %v5377
  %5379 = vdwg.mxu0
  %5380 = vmatprep.subr.mxu0 %v4843
  %5381 = vmatpush1.msra.mxu0 %v4842
  %5382 = vmatprep.subr.mxu0 %v4851
  %5383 = vmatpush1.msra.mxu0 %v4850
  %5384 = vmatprep.subr.mxu0 %v4859
  %5385 = vmatpush1.msra.mxu0 %v4858
  %5386 = vmatprep.subr.mxu0 %v4867
  %5387 = vmatpush1.msra.mxu0 %v4866
  %5388 = vmatprep.subr.mxu0 %v4875
  %5389 = vmatpush1.msra.mxu0 %v4874
  %5390 = vmatprep.subr.mxu0 %v4883
  %5391 = vmatpush1.msra.mxu0 %v4882
  %5392 = vmatprep.subr.mxu0 %v4891
  %5393 = vmatpush1.msra.mxu0 %v4890
  %5394 = vmatprep.subr.mxu0 %v4899
  %5395 = vmatpush1.msra.mxu0 %v4898
  %5396 = vmatprep.subr.mxu0 %v4489
  %5397 = vmatpush1.msra.mxu0 %v4487
  %5398 = vmatprep.subr.mxu0 %v4495
  %5399 = vmatpush1.msra.mxu0 %v4493
  %5400 = vmatprep.subr.mxu0 %v4501
  %5401 = vmatpush1.msra.mxu0 %v4499
  %5402 = vmatprep.subr.mxu0 %v4507
  %5403 = vmatpush1.msra.mxu0 %v4505
  %5404 = vmatprep.subr.mxu0 %v4513
  %5405 = vmatpush1.msra.mxu0 %v4511
  %5406 = vmatprep.subr.mxu0 %v4519
  %5407 = vmatpush1.msra.mxu0 %v4517
  %5408 = vmatprep.subr.mxu0 %v4525
  %5409 = vmatpush1.msra.mxu0 %v4523
  %5410 = vmatprep.subr.mxu0 %v4531
  %5411 = vmatpush1.msra.mxu0 %v4529
  %5412 = vmatprep.subr.mxu0 %v5099
  %5413 = vmatpush1.msra.mxu0 %v5098
  %5414 = vmatprep.subr.mxu0 %v5107
  %5415 = vmatpush1.msra.mxu0 %v5106
  %5416 = vmatprep.subr.mxu0 %v5115
  %5417 = vmatpush1.msra.mxu0 %v5114
  %5418 = vmatprep.subr.mxu0 %v5123
  %5419 = vmatpush1.msra.mxu0 %v5122
  %5420 = vmatprep.subr.mxu0 %v5131
  %5421 = vmatpush1.msra.mxu0 %v5130
  %5422 = vmatprep.subr.mxu0 %v5139
  %5423 = vmatpush1.msra.mxu0 %v5138
  %5424 = vmatprep.subr.mxu0 %v5147
  %5425 = vmatpush1.msra.mxu0 %v5146
  %5426 = vmatprep.subr.mxu0 %v5155
  %5427 = vmatpush1.msra.mxu0 %v5154
  %5428 = vmatprep.subr.mxu0 0.0
  %5429 = vmatpush1.msra.mxu0 0.0
  %5430 = vmatprep.subr.mxu0 0.0
  %5431 = vmatpush1.msra.mxu0 0.0
  %5432 = vmatprep.subr.mxu0 0.0
  %5433 = vmatpush1.msra.mxu0 0.0
  %5434 = vmatprep.subr.mxu0 0.0
  %5435 = vmatpush1.msra.mxu0 0.0
  %5436 = vmatprep.subr.mxu0 0.0
  %5437 = vmatpush1.msra.mxu0 0.0
  %5438 = vmatprep.subr.mxu0 0.0
  %5439 = vmatpush1.msra.mxu0 0.0
  %5440 = vmatprep.subr.mxu0 0.0
  %5441 = vmatpush1.msra.mxu0 0.0
  %5442 = vmatprep.subr.mxu0 0.0
  %5443 = vmatpush1.msra.mxu0 0.0
  %5444 = vmatprep.mubr.f32.mxu0 %v5191
  %5445 = vmatmul.mubr.f32.gmra.mrb[0].mxu0 %v5158
  %v5446 = vpop.f32.mrb[0].mxu0
  %v5447 = vadd.f32 %v5173, %v5446
  %v5448 = vpop.f32.mrb[0].mxu0
  %v5449 = vadd.f32 %v5173, %v5448
  %5450 = vmatprep.mubr.f32.mxu0 %v5194
  %5451 = vmatmul.mubr.f32.gmra.mrb[0].mxu0 %v5160
  %v5452 = vpop.f32.mrb[0].mxu0
  %v5453 = vadd.f32 %v5178, %v5452
  %v5454 = vpop.f32.mrb[0].mxu0
  %v5455 = vadd.f32 %v5178, %v5454
  %5456 = vmatprep.mubr.f32.mxu0 %v5197
  %5457 = vmatmul.mubr.f32.gmra.mrb[0].mxu0 %v5162
  %v5458 = vpop.f32.mrb[0].mxu0
  %v5459 = vadd.f32 %v5183, %v5458
  %v5460 = vpop.f32.mrb[0].mxu0
  %v5461 = vadd.f32 %v5183, %v5460
  %5462 = vmatprep.mubr.f32.mxu0 %v5200
  %5463 = vmatmul.mubr.f32.gmra.mrb[0].mxu0 %v5164
  %v5464 = vpop.f32.mrb[0].mxu0
  %v5465 = vadd.f32 %v5188, %v5464
  %v5466 = vpop.f32.mrb[0].mxu0
  %v5467 = vadd.f32 %v5188, %v5466
  %5468 = vdwg.mxu0
  %5469 = vmatprep.subr.mxu0 %v4845
  %5470 = vmatpush1.msra.mxu0 %v4844
  %5471 = vmatprep.subr.mxu0 %v4853
  %5472 = vmatpush1.msra.mxu0 %v4852
  %5473 = vmatprep.subr.mxu0 %v4861
  %5474 = vmatpush1.msra.mxu0 %v4860
  %5475 = vmatprep.subr.mxu0 %v4869
  %5476 = vmatpush1.msra.mxu0 %v4868
  %5477 = vmatprep.subr.mxu0 %v4877
  %5478 = vmatpush1.msra.mxu0 %v4876
  %5479 = vmatprep.subr.mxu0 %v4885
  %5480 = vmatpush1.msra.mxu0 %v4884
  %5481 = vmatprep.subr.mxu0 %v4893
  %5482 = vmatpush1.msra.mxu0 %v4892
  %5483 = vmatprep.subr.mxu0 %v4901
  %5484 = vmatpush1.msra.mxu0 %v4900
  %5485 = vmatprep.subr.mxu0 %v4602
  %5486 = vmatpush1.msra.mxu0 %v4600
  %5487 = vmatprep.subr.mxu0 %v4608
  %5488 = vmatpush1.msra.mxu0 %v4606
  %5489 = vmatprep.subr.mxu0 %v4614
  %5490 = vmatpush1.msra.mxu0 %v4612
  %5491 = vmatprep.subr.mxu0 %v4620
  %5492 = vmatpush1.msra.mxu0 %v4618
  %5493 = vmatprep.subr.mxu0 %v4626
  %5494 = vmatpush1.msra.mxu0 %v4624
  %5495 = vmatprep.subr.mxu0 %v4632
  %5496 = vmatpush1.msra.mxu0 %v4630
  %5497 = vmatprep.subr.mxu0 %v4638
  %5498 = vmatpush1.msra.mxu0 %v4636
  %5499 = vmatprep.subr.mxu0 %v4644
  %5500 = vmatpush1.msra.mxu0 %v4642
  %5501 = vmatprep.subr.mxu0 %v5101
  %5502 = vmatpush1.msra.mxu0 %v5100
  %5503 = vmatprep.subr.mxu0 %v5109
  %5504 = vmatpush1.msra.mxu0 %v5108
  %5505 = vmatprep.subr.mxu0 %v5117
  %5506 = vmatpush1.msra.mxu0 %v5116
  %5507 = vmatprep.subr.mxu0 %v5125
  %5508 = vmatpush1.msra.mxu0 %v5124
  %5509 = vmatprep.subr.mxu0 %v5133
  %5510 = vmatpush1.msra.mxu0 %v5132
  %5511 = vmatprep.subr.mxu0 %v5141
  %5512 = vmatpush1.msra.mxu0 %v5140
  %5513 = vmatprep.subr.mxu0 %v5149
  %5514 = vmatpush1.msra.mxu0 %v5148
  %5515 = vmatprep.subr.mxu0 %v5157
  %5516 = vmatpush1.msra.mxu0 %v5156
  %5517 = vmatprep.subr.mxu0 0.0
  %5518 = vmatpush1.msra.mxu0 0.0
  %5519 = vmatprep.subr.mxu0 0.0
  %5520 = vmatpush1.msra.mxu0 0.0
  %5521 = vmatprep.subr.mxu0 0.0
  %5522 = vmatpush1.msra.mxu0 0.0
  %5523 = vmatprep.subr.mxu0 0.0
  %5524 = vmatpush1.msra.mxu0 0.0
  %5525 = vmatprep.subr.mxu0 0.0
  %5526 = vmatpush1.msra.mxu0 0.0
  %5527 = vmatprep.subr.mxu0 0.0
  %5528 = vmatpush1.msra.mxu0 0.0
  %5529 = vmatprep.subr.mxu0 0.0
  %5530 = vmatpush1.msra.mxu0 0.0
  %5531 = vmatprep.subr.mxu0 0.0
  %5532 = vmatpush1.msra.mxu0 0.0
  %5533 = vmatprep.mubr.f32.mxu0 %v5191
  %5534 = vmatmul.mubr.f32.gmra.mrb[0].mxu0 %v5158
  %v5535 = vpop.f32.mrb[0].mxu0
  %v5536 = vadd.f32 %v5173, %v5535
  %v5537 = vpop.f32.mrb[0].mxu0
  %v5538 = vadd.f32 %v5173, %v5537
  %5539 = vmatprep.mubr.f32.mxu0 %v5194
  %5540 = vmatmul.mubr.f32.gmra.mrb[0].mxu0 %v5160
  %v5541 = vpop.f32.mrb[0].mxu0
  %v5542 = vadd.f32 %v5178, %v5541
  %v5543 = vpop.f32.mrb[0].mxu0
  %v5544 = vadd.f32 %v5178, %v5543
  %5545 = vmatprep.mubr.f32.mxu0 %v5197
  %5546 = vmatmul.mubr.f32.gmra.mrb[0].mxu0 %v5162
  %v5547 = vpop.f32.mrb[0].mxu0
  %v5548 = vadd.f32 %v5183, %v5547
  %v5549 = vpop.f32.mrb[0].mxu0
  %v5550 = vadd.f32 %v5183, %v5549
  %5551 = vmatprep.mubr.f32.mxu0 %v5200
  %5552 = vmatmul.mubr.f32.gmra.mrb[0].mxu0 %v5164
  %v5553 = vpop.f32.mrb[0].mxu0
  %v5554 = vadd.f32 %v5188, %v5553
  %v5555 = vpop.f32.mrb[0].mxu0
  %v5556 = vadd.f32 %v5188, %v5555
  %5557 = vdwg.mxu0
  %5558 = vrot.lane.b32.xlu0 %v5269, 1
  %v5559 = vpop.permute.xlu0 %5558
  %5560 = vrot.lane.b32.xlu0 %v5275, 1
  %v5561 = vpop.permute.xlu0 %5560
  %5562 = vrot.lane.b32.xlu0 %v5281, 1
  %v5563 = vpop.permute.xlu0 %5562
  %5564 = vrot.lane.b32.xlu0 %v5287, 1
  %v5565 = vpop.permute.xlu0 %5564
  %5566 = vrot.lane.b32.xlu0 %v5271, 1
  %v5567 = vpop.permute.xlu0 %5566
  %5568 = vrot.lane.b32.xlu0 %v5277, 1
  %v5569 = vpop.permute.xlu0 %5568
  %5570 = vrot.lane.b32.xlu0 %v5283, 1
  %v5571 = vpop.permute.xlu0 %5570
  %5572 = vrot.lane.b32.xlu0 %v5289, 1
  %v5573 = vpop.permute.xlu0 %5572
  %5574 = vrot.lane.b32.xlu0 %v5358, 1
  %v5575 = vpop.permute.xlu0 %5574
  %5576 = vrot.lane.b32.xlu0 %v5364, 1
  %v5577 = vpop.permute.xlu0 %5576
  %5578 = vrot.lane.b32.xlu0 %v5370, 1
  %v5579 = vpop.permute.xlu0 %5578
  %5580 = vrot.lane.b32.xlu0 %v5376, 1
  %v5581 = vpop.permute.xlu0 %5580
  %5582 = vrot.lane.b32.xlu0 %v5360, 1
  %v5583 = vpop.permute.xlu0 %5582
  %5584 = vrot.lane.b32.xlu0 %v5366, 1
  %v5585 = vpop.permute.xlu0 %5584
  %5586 = vrot.lane.b32.xlu0 %v5372, 1
  %v5587 = vpop.permute.xlu0 %5586
  %5588 = vrot.lane.b32.xlu0 %v5378, 1
  %v5589 = vpop.permute.xlu0 %5588
  %5590 = vrot.lane.b32.xlu0 %v5447, 1
  %v5591 = vpop.permute.xlu0 %5590
  %5592 = vrot.lane.b32.xlu0 %v5453, 1
  %v5593 = vpop.permute.xlu0 %5592
  %5594 = vrot.lane.b32.xlu0 %v5459, 1
  %v5595 = vpop.permute.xlu0 %5594
  %5596 = vrot.lane.b32.xlu0 %v5465, 1
  %v5597 = vpop.permute.xlu0 %5596
  %5598 = vrot.lane.b32.xlu0 %v5449, 1
  %v5599 = vpop.permute.xlu0 %5598
  %5600 = vrot.lane.b32.xlu0 %v5455, 1
  %v5601 = vpop.permute.xlu0 %5600
  %5602 = vrot.lane.b32.xlu0 %v5461, 1
  %v5603 = vpop.permute.xlu0 %5602
  %5604 = vrot.lane.b32.xlu0 %v5467, 1
  %v5605 = vpop.permute.xlu0 %5604
  %5606 = vrot.lane.b32.xlu0 %v5536, 1
  %v5607 = vpop.permute.xlu0 %5606
  %5608 = vrot.lane.b32.xlu0 %v5542, 1
  %v5609 = vpop.permute.xlu0 %5608
  %5610 = vrot.lane.b32.xlu0 %v5548, 1
  %v5611 = vpop.permute.xlu0 %5610
  %5612 = vrot.lane.b32.xlu0 %v5554, 1
  %v5613 = vpop.permute.xlu0 %5612
  %5614 = vrot.lane.b32.xlu0 %v5538, 1
  %v5615 = vpop.permute.xlu0 %5614
  %5616 = vrot.lane.b32.xlu0 %v5544, 1
  %v5617 = vpop.permute.xlu0 %5616
  %5618 = vrot.lane.b32.xlu0 %v5550, 1
  %v5619 = vpop.permute.xlu0 %5618
  %5620 = vrot.lane.b32.xlu0 %v5556, 1
  %v5621 = vpop.permute.xlu0 %5620
  %v5622 = vsel %vm200, %v5607, %v5615
  %v5623 = vsel %vm200, %v5609, %v5617
  %v5624 = vsel %vm200, %v5611, %v5619
  %v5625 = vsel %vm200, %v5613, %v5621
  %v5626 = vsel %vm200, %v5599, %v5607
  %v5627 = vsel %vm200, %v5601, %v5609
  %v5628 = vsel %vm200, %v5603, %v5611
  %v5629 = vsel %vm200, %v5605, %v5613
  %v5630 = vsel %vm200, %v5591, %v5599
  %v5631 = vsel %vm200, %v5593, %v5601
  %v5632 = vsel %vm200, %v5595, %v5603
  %v5633 = vsel %vm200, %v5597, %v5605
  %v5634 = vsel %vm200, %v5583, %v5591
  %v5635 = vsel %vm200, %v5585, %v5593
  %v5636 = vsel %vm200, %v5587, %v5595
  %v5637 = vsel %vm200, %v5589, %v5597
  %v5638 = vsel %vm200, %v5575, %v5583
  %v5639 = vsel %vm200, %v5577, %v5585
  %v5640 = vsel %vm200, %v5579, %v5587
  %v5641 = vsel %vm200, %v5581, %v5589
  %v5642 = vsel %vm200, %v5567, %v5575
  %v5643 = vsel %vm200, %v5569, %v5577
  %v5644 = vsel %vm200, %v5571, %v5579
  %v5645 = vsel %vm200, %v5573, %v5581
  %v5646 = vsel %vm200, %v5559, %v5567
  %v5647 = vsel %vm200, %v5561, %v5569
  %v5648 = vsel %vm200, %v5563, %v5571
  %v5649 = vsel %vm200, %v5565, %v5573
  %v5650 = vsel %vm200, %v5615, %v5559
  %v5651 = vsel %vm200, %v5617, %v5561
  %v5652 = vsel %vm200, %v5619, %v5563
  %v5653 = vsel %vm200, %v5621, %v5565
  %v5654 = vmul.f32 %v5650, %v2252
  %v5655 = vmul.f32 %v5646, %v2256
  %v5656 = vmul.f32 %v5642, %v2260
  %v5657 = vmul.f32 %v5638, %v2264
  %v5658 = vmul.f32 %v5634, %v2268
  %v5659 = vmul.f32 %v5630, %v2272
  %v5660 = vmul.f32 %v5626, %v2276
  %v5661 = vmul.f32 %v5622, %v2280
  %v5662 = vmul.f32 %v5651, %v2252
  %v5663 = vmul.f32 %v5647, %v2256
  %v5664 = vmul.f32 %v5643, %v2260
  %v5665 = vmul.f32 %v5639, %v2264
  %v5666 = vmul.f32 %v5635, %v2268
  %v5667 = vmul.f32 %v5631, %v2272
  %v5668 = vmul.f32 %v5627, %v2276
  %v5669 = vmul.f32 %v5623, %v2280
  %v5670 = vmul.f32 %v5652, %v2252
  %v5671 = vmul.f32 %v5648, %v2256
  %v5672 = vmul.f32 %v5644, %v2260
  %v5673 = vmul.f32 %v5640, %v2264
  %v5674 = vmul.f32 %v5636, %v2268
  %v5675 = vmul.f32 %v5632, %v2272
  %v5676 = vmul.f32 %v5628, %v2276
  %v5677 = vmul.f32 %v5624, %v2280
  %v5678 = vmul.f32 %v5653, %v2252
  %v5679 = vmul.f32 %v5649, %v2256
  %v5680 = vmul.f32 %v5645, %v2260
  %v5681 = vmul.f32 %v5641, %v2264
  %v5682 = vmul.f32 %v5637, %v2268
  %v5683 = vmul.f32 %v5633, %v2272
  %v5684 = vmul.f32 %v5629, %v2276
  %v5685 = vmul.f32 %v5625, %v2280
  %5686 = vrot.lane.b32.xlu0 %v5269, 127
  %v5687 = vpop.permute.xlu0 %5686
  %5688 = vrot.lane.b32.xlu0 %v5275, 127
  %v5689 = vpop.permute.xlu0 %5688
  %5690 = vrot.lane.b32.xlu0 %v5281, 127
  %v5691 = vpop.permute.xlu0 %5690
  %5692 = vrot.lane.b32.xlu0 %v5287, 127
  %v5693 = vpop.permute.xlu0 %5692
  %5694 = vrot.lane.b32.xlu0 %v5271, 127
  %v5695 = vpop.permute.xlu0 %5694
  %5696 = vrot.lane.b32.xlu0 %v5277, 127
  %v5697 = vpop.permute.xlu0 %5696
  %5698 = vrot.lane.b32.xlu0 %v5283, 127
  %v5699 = vpop.permute.xlu0 %5698
  %5700 = vrot.lane.b32.xlu0 %v5289, 127
  %v5701 = vpop.permute.xlu0 %5700
  %5702 = vrot.lane.b32.xlu0 %v5358, 127
  %v5703 = vpop.permute.xlu0 %5702
  %5704 = vrot.lane.b32.xlu0 %v5364, 127
  %v5705 = vpop.permute.xlu0 %5704
  %5706 = vrot.lane.b32.xlu0 %v5370, 127
  %v5707 = vpop.permute.xlu0 %5706
  %5708 = vrot.lane.b32.xlu0 %v5376, 127
  %v5709 = vpop.permute.xlu0 %5708
  %5710 = vrot.lane.b32.xlu0 %v5360, 127
  %v5711 = vpop.permute.xlu0 %5710
  %5712 = vrot.lane.b32.xlu0 %v5366, 127
  %v5713 = vpop.permute.xlu0 %5712
  %5714 = vrot.lane.b32.xlu0 %v5372, 127
  %v5715 = vpop.permute.xlu0 %5714
  %5716 = vrot.lane.b32.xlu0 %v5378, 127
  %v5717 = vpop.permute.xlu0 %5716
  %5718 = vrot.lane.b32.xlu0 %v5447, 127
  %v5719 = vpop.permute.xlu0 %5718
  %5720 = vrot.lane.b32.xlu0 %v5453, 127
  %v5721 = vpop.permute.xlu0 %5720
  %5722 = vrot.lane.b32.xlu0 %v5459, 127
  %v5723 = vpop.permute.xlu0 %5722
  %5724 = vrot.lane.b32.xlu0 %v5465, 127
  %v5725 = vpop.permute.xlu0 %5724
  %5726 = vrot.lane.b32.xlu0 %v5449, 127
  %v5727 = vpop.permute.xlu0 %5726
  %5728 = vrot.lane.b32.xlu0 %v5455, 127
  %v5729 = vpop.permute.xlu0 %5728
  %5730 = vrot.lane.b32.xlu0 %v5461, 127
  %v5731 = vpop.permute.xlu0 %5730
  %5732 = vrot.lane.b32.xlu0 %v5467, 127
  %v5733 = vpop.permute.xlu0 %5732
  %5734 = vrot.lane.b32.xlu0 %v5536, 127
  %v5735 = vpop.permute.xlu0 %5734
  %5736 = vrot.lane.b32.xlu0 %v5542, 127
  %v5737 = vpop.permute.xlu0 %5736
  %5738 = vrot.lane.b32.xlu0 %v5548, 127
  %v5739 = vpop.permute.xlu0 %5738
  %5740 = vrot.lane.b32.xlu0 %v5554, 127
  %v5741 = vpop.permute.xlu0 %5740
  %5742 = vrot.lane.b32.xlu0 %v5538, 127
  %v5743 = vpop.permute.xlu0 %5742
  %5744 = vrot.lane.b32.xlu0 %v5544, 127
  %v5745 = vpop.permute.xlu0 %5744
  %5746 = vrot.lane.b32.xlu0 %v5550, 127
  %v5747 = vpop.permute.xlu0 %5746
  %5748 = vrot.lane.b32.xlu0 %v5556, 127
  %v5749 = vpop.permute.xlu0 %5748
  %v5750 = vsel %vm267, %v5735, %v5743
  %v5751 = vsel %vm267, %v5737, %v5745
  %v5752 = vsel %vm267, %v5739, %v5747
  %v5753 = vsel %vm267, %v5741, %v5749
  %v5754 = vsel %vm267, %v5727, %v5735
  %v5755 = vsel %vm267, %v5729, %v5737
  %v5756 = vsel %vm267, %v5731, %v5739
  %v5757 = vsel %vm267, %v5733, %v5741
  %v5758 = vsel %vm267, %v5719, %v5727
  %v5759 = vsel %vm267, %v5721, %v5729
  %v5760 = vsel %vm267, %v5723, %v5731
  %v5761 = vsel %vm267, %v5725, %v5733
  %v5762 = vsel %vm267, %v5711, %v5719
  %v5763 = vsel %vm267, %v5713, %v5721
  %v5764 = vsel %vm267, %v5715, %v5723
  %v5765 = vsel %vm267, %v5717, %v5725
  %v5766 = vsel %vm267, %v5703, %v5711
  %v5767 = vsel %vm267, %v5705, %v5713
  %v5768 = vsel %vm267, %v5707, %v5715
  %v5769 = vsel %vm267, %v5709, %v5717
  %v5770 = vsel %vm267, %v5695, %v5703
  %v5771 = vsel %vm267, %v5697, %v5705
  %v5772 = vsel %vm267, %v5699, %v5707
  %v5773 = vsel %vm267, %v5701, %v5709
  %v5774 = vsel %vm267, %v5687, %v5695
  %v5775 = vsel %vm267, %v5689, %v5697
  %v5776 = vsel %vm267, %v5691, %v5699
  %v5777 = vsel %vm267, %v5693, %v5701
  %v5778 = vsel %vm267, %v5743, %v5687
  %v5779 = vsel %vm267, %v5745, %v5689
  %v5780 = vsel %vm267, %v5747, %v5691
  %v5781 = vsel %vm267, %v5749, %v5693
  %v5782 = vmul.f32 %v5774, %v2357
  %v5783 = vmul.f32 %v5770, %v2361
  %v5784 = vmul.f32 %v5766, %v2365
  %v5785 = vmul.f32 %v5762, %v2369
  %v5786 = vmul.f32 %v5758, %v2373
  %v5787 = vmul.f32 %v5754, %v2377
  %v5788 = vmul.f32 %v5750, %v2381
  %v5789 = vmul.f32 %v5778, %v2385
  %v5790 = vmul.f32 %v5775, %v2357
  %v5791 = vmul.f32 %v5771, %v2361
  %v5792 = vmul.f32 %v5767, %v2365
  %v5793 = vmul.f32 %v5763, %v2369
  %v5794 = vmul.f32 %v5759, %v2373
  %v5795 = vmul.f32 %v5755, %v2377
  %v5796 = vmul.f32 %v5751, %v2381
  %v5797 = vmul.f32 %v5779, %v2385
  %v5798 = vmul.f32 %v5776, %v2357
  %v5799 = vmul.f32 %v5772, %v2361
  %v5800 = vmul.f32 %v5768, %v2365
  %v5801 = vmul.f32 %v5764, %v2369
  %v5802 = vmul.f32 %v5760, %v2373
  %v5803 = vmul.f32 %v5756, %v2377
  %v5804 = vmul.f32 %v5752, %v2381
  %v5805 = vmul.f32 %v5780, %v2385
  %v5806 = vmul.f32 %v5777, %v2357
  %v5807 = vmul.f32 %v5773, %v2361
  %v5808 = vmul.f32 %v5769, %v2365
  %v5809 = vmul.f32 %v5765, %v2369
  %v5810 = vmul.f32 %v5761, %v2373
  %v5811 = vmul.f32 %v5757, %v2377
  %v5812 = vmul.f32 %v5753, %v2381
  %v5813 = vmul.f32 %v5781, %v2385
  %v5814 = vld [vmem:[%s22] sm:$0xff]
  %v5815 = vld [vmem:[%s23] sm:$0xff]
  %5817 = vset.pattern.permute.xlu0 0
  %5818 = vperm.xlu0 %5817, %v5815
  %v5819 = vpop.permute.xlu0 %5818
  %v5822 = vsel %vm834, %v5814, 0
  %5824 = vmatprep.subr.mxu0 %v5655
  %5825 = vmatpush1.msra.mxu0 %v5654
  %5826 = vmatprep.subr.mxu0 %v5663
  %5827 = vmatpush1.msra.mxu0 %v5662
  %5828 = vmatprep.subr.mxu0 %v5671
  %5829 = vmatpush1.msra.mxu0 %v5670
  %5830 = vmatprep.subr.mxu0 %v5679
  %5831 = vmatpush1.msra.mxu0 %v5678
  %5832 = vmatprep.subr.mxu0 %v5271
  %5833 = vmatpush1.msra.mxu0 %v5269
  %5834 = vmatprep.subr.mxu0 %v5277
  %5835 = vmatpush1.msra.mxu0 %v5275
  %5836 = vmatprep.subr.mxu0 %v5283
  %5837 = vmatpush1.msra.mxu0 %v5281
  %5838 = vmatprep.subr.mxu0 %v5289
  %5839 = vmatpush1.msra.mxu0 %v5287
  %5840 = vmatprep.subr.mxu0 %v5783
  %5841 = vmatpush1.msra.mxu0 %v5782
  %5842 = vmatprep.subr.mxu0 %v5791
  %5843 = vmatpush1.msra.mxu0 %v5790
  %5844 = vmatprep.subr.mxu0 %v5799
  %5845 = vmatpush1.msra.mxu0 %v5798
  %5846 = vmatprep.subr.mxu0 %v5807
  %5847 = vmatpush1.msra.mxu0 %v5806
  %5848 = vmatprep.subr.mxu0 0.0
  %5849 = vmatpush1.msra.mxu0 0.0
  %5850 = vmatprep.subr.mxu0 0.0
  %5851 = vmatpush1.msra.mxu0 0.0
  %5852 = vmatprep.subr.mxu0 0.0
  %5853 = vmatpush1.msra.mxu0 0.0
  %5854 = vmatprep.subr.mxu0 0.0
  %5855 = vmatpush1.msra.mxu0 0.0
  %5856 = vmatprep.subr.mxu0 0.0
  %5857 = vmatpush1.msra.mxu0 0.0
  %5858 = vmatprep.subr.mxu0 0.0
  %5859 = vmatpush1.msra.mxu0 0.0
  %5860 = vmatprep.subr.mxu0 0.0
  %5861 = vmatpush1.msra.mxu0 0.0
  %5862 = vmatprep.subr.mxu0 0.0
  %5863 = vmatpush1.msra.mxu0 0.0
  %5864 = vmatprep.subr.mxu0 0.0
  %5865 = vmatpush1.msra.mxu0 0.0
  %5866 = vmatprep.subr.mxu0 0.0
  %5867 = vmatpush1.msra.mxu0 0.0
  %5868 = vmatprep.subr.mxu0 0.0
  %5869 = vmatpush1.msra.mxu0 0.0
  %5870 = vmatprep.subr.mxu0 0.0
  %5871 = vmatpush1.msra.mxu0 0.0
  %5872 = vmatprep.subr.mxu0 0.0
  %5873 = vmatpush1.msra.mxu0 0.0
  %5874 = vmatprep.subr.mxu0 0.0
  %5875 = vmatpush1.msra.mxu0 0.0
  %5876 = vmatprep.subr.mxu0 0.0
  %5877 = vmatpush1.msra.mxu0 0.0
  %5878 = vmatprep.subr.mxu0 0.0
  %5879 = vmatpush1.msra.mxu0 0.0
  %5880 = vmatprep.subr.mxu0 0.0
  %5881 = vmatpush1.msra.mxu0 0.0
  %5882 = vmatprep.subr.mxu0 0.0
  %5883 = vmatpush1.msra.mxu0 0.0
  %5884 = vmatprep.subr.mxu0 0.0
  %5885 = vmatpush1.msra.mxu0 0.0
  %5886 = vmatprep.subr.mxu0 0.0
  %5887 = vmatpush1.msra.mxu0 0.0
  %5888 = vmatprep.mubr.f32.mxu0 0.0
  %5889 = vmatmul.mubr.f32.gmra.mrb[0].mxu0 %v5822
  %v5890 = vpop.f32.mrb[0].mxu0
  %v5891 = vadd.f32 %v5819, %v5890
  %v5892 = vpop.f32.mrb[0].mxu0
  %v5893 = vadd.f32 %v5819, %v5892
  %5894 = vdwg.mxu0
  %5895 = vmatprep.subr.mxu0 %v5657
  %5896 = vmatpush1.msra.mxu0 %v5656
  %5897 = vmatprep.subr.mxu0 %v5665
  %5898 = vmatpush1.msra.mxu0 %v5664
  %5899 = vmatprep.subr.mxu0 %v5673
  %5900 = vmatpush1.msra.mxu0 %v5672
  %5901 = vmatprep.subr.mxu0 %v5681
  %5902 = vmatpush1.msra.mxu0 %v5680
  %5903 = vmatprep.subr.mxu0 %v5360
  %5904 = vmatpush1.msra.mxu0 %v5358
  %5905 = vmatprep.subr.mxu0 %v5366
  %5906 = vmatpush1.msra.mxu0 %v5364
  %5907 = vmatprep.subr.mxu0 %v5372
  %5908 = vmatpush1.msra.mxu0 %v5370
  %5909 = vmatprep.subr.mxu0 %v5378
  %5910 = vmatpush1.msra.mxu0 %v5376
  %5911 = vmatprep.subr.mxu0 %v5785
  %5912 = vmatpush1.msra.mxu0 %v5784
  %5913 = vmatprep.subr.mxu0 %v5793
  %5914 = vmatpush1.msra.mxu0 %v5792
  %5915 = vmatprep.subr.mxu0 %v5801
  %5916 = vmatpush1.msra.mxu0 %v5800
  %5917 = vmatprep.subr.mxu0 %v5809
  %5918 = vmatpush1.msra.mxu0 %v5808
  %5919 = vmatprep.subr.mxu0 0.0
  %5920 = vmatpush1.msra.mxu0 0.0
  %5921 = vmatprep.subr.mxu0 0.0
  %5922 = vmatpush1.msra.mxu0 0.0
  %5923 = vmatprep.subr.mxu0 0.0
  %5924 = vmatpush1.msra.mxu0 0.0
  %5925 = vmatprep.subr.mxu0 0.0
  %5926 = vmatpush1.msra.mxu0 0.0
  %5927 = vmatprep.subr.mxu0 0.0
  %5928 = vmatpush1.msra.mxu0 0.0
  %5929 = vmatprep.subr.mxu0 0.0
  %5930 = vmatpush1.msra.mxu0 0.0
  %5931 = vmatprep.subr.mxu0 0.0
  %5932 = vmatpush1.msra.mxu0 0.0
  %5933 = vmatprep.subr.mxu0 0.0
  %5934 = vmatpush1.msra.mxu0 0.0
  %5935 = vmatprep.subr.mxu0 0.0
  %5936 = vmatpush1.msra.mxu0 0.0
  %5937 = vmatprep.subr.mxu0 0.0
  %5938 = vmatpush1.msra.mxu0 0.0
  %5939 = vmatprep.subr.mxu0 0.0
  %5940 = vmatpush1.msra.mxu0 0.0
  %5941 = vmatprep.subr.mxu0 0.0
  %5942 = vmatpush1.msra.mxu0 0.0
  %5943 = vmatprep.subr.mxu0 0.0
  %5944 = vmatpush1.msra.mxu0 0.0
  %5945 = vmatprep.subr.mxu0 0.0
  %5946 = vmatpush1.msra.mxu0 0.0
  %5947 = vmatprep.subr.mxu0 0.0
  %5948 = vmatpush1.msra.mxu0 0.0
  %5949 = vmatprep.subr.mxu0 0.0
  %5950 = vmatpush1.msra.mxu0 0.0
  %5951 = vmatprep.subr.mxu0 0.0
  %5952 = vmatpush1.msra.mxu0 0.0
  %5953 = vmatprep.subr.mxu0 0.0
  %5954 = vmatpush1.msra.mxu0 0.0
  %5955 = vmatprep.subr.mxu0 0.0
  %5956 = vmatpush1.msra.mxu0 0.0
  %5957 = vmatprep.subr.mxu0 0.0
  %5958 = vmatpush1.msra.mxu0 0.0
  %5959 = vmatprep.mubr.f32.mxu0 0.0
  %5960 = vmatmul.mubr.f32.gmra.mrb[0].mxu0 %v5822
  %v5961 = vpop.f32.mrb[0].mxu0
  %v5962 = vadd.f32 %v5819, %v5961
  %v5963 = vpop.f32.mrb[0].mxu0
  %v5964 = vadd.f32 %v5819, %v5963
  %5965 = vdwg.mxu0
  %5966 = vmatprep.subr.mxu0 %v5659
  %5967 = vmatpush1.msra.mxu0 %v5658
  %5968 = vmatprep.subr.mxu0 %v5667
  %5969 = vmatpush1.msra.mxu0 %v5666
  %5970 = vmatprep.subr.mxu0 %v5675
  %5971 = vmatpush1.msra.mxu0 %v5674
  %5972 = vmatprep.subr.mxu0 %v5683
  %5973 = vmatpush1.msra.mxu0 %v5682
  %5974 = vmatprep.subr.mxu0 %v5449
  %5975 = vmatpush1.msra.mxu0 %v5447
  %5976 = vmatprep.subr.mxu0 %v5455
  %5977 = vmatpush1.msra.mxu0 %v5453
  %5978 = vmatprep.subr.mxu0 %v5461
  %5979 = vmatpush1.msra.mxu0 %v5459
  %5980 = vmatprep.subr.mxu0 %v5467
  %5981 = vmatpush1.msra.mxu0 %v5465
  %5982 = vmatprep.subr.mxu0 %v5787
  %5983 = vmatpush1.msra.mxu0 %v5786
  %5984 = vmatprep.subr.mxu0 %v5795
  %5985 = vmatpush1.msra.mxu0 %v5794
  %5986 = vmatprep.subr.mxu0 %v5803
  %5987 = vmatpush1.msra.mxu0 %v5802
  %5988 = vmatprep.subr.mxu0 %v5811
  %5989 = vmatpush1.msra.mxu0 %v5810
  %5990 = vmatprep.subr.mxu0 0.0
  %5991 = vmatpush1.msra.mxu0 0.0
  %5992 = vmatprep.subr.mxu0 0.0
  %5993 = vmatpush1.msra.mxu0 0.0
  %5994 = vmatprep.subr.mxu0 0.0
  %5995 = vmatpush1.msra.mxu0 0.0
  %5996 = vmatprep.subr.mxu0 0.0
  %5997 = vmatpush1.msra.mxu0 0.0
  %5998 = vmatprep.subr.mxu0 0.0
  %5999 = vmatpush1.msra.mxu0 0.0
  %6000 = vmatprep.subr.mxu0 0.0
  %6001 = vmatpush1.msra.mxu0 0.0
  %6002 = vmatprep.subr.mxu0 0.0
  %6003 = vmatpush1.msra.mxu0 0.0
  %6004 = vmatprep.subr.mxu0 0.0
  %6005 = vmatpush1.msra.mxu0 0.0
  %6006 = vmatprep.subr.mxu0 0.0
  %6007 = vmatpush1.msra.mxu0 0.0
  %6008 = vmatprep.subr.mxu0 0.0
  %6009 = vmatpush1.msra.mxu0 0.0
  %6010 = vmatprep.subr.mxu0 0.0
  %6011 = vmatpush1.msra.mxu0 0.0
  %6012 = vmatprep.subr.mxu0 0.0
  %6013 = vmatpush1.msra.mxu0 0.0
  %6014 = vmatprep.subr.mxu0 0.0
  %6015 = vmatpush1.msra.mxu0 0.0
  %6016 = vmatprep.subr.mxu0 0.0
  %6017 = vmatpush1.msra.mxu0 0.0
  %6018 = vmatprep.subr.mxu0 0.0
  %6019 = vmatpush1.msra.mxu0 0.0
  %6020 = vmatprep.subr.mxu0 0.0
  %6021 = vmatpush1.msra.mxu0 0.0
  %6022 = vmatprep.subr.mxu0 0.0
  %6023 = vmatpush1.msra.mxu0 0.0
  %6024 = vmatprep.subr.mxu0 0.0
  %6025 = vmatpush1.msra.mxu0 0.0
  %6026 = vmatprep.subr.mxu0 0.0
  %6027 = vmatpush1.msra.mxu0 0.0
  %6028 = vmatprep.subr.mxu0 0.0
  %6029 = vmatpush1.msra.mxu0 0.0
  %6030 = vmatprep.mubr.f32.mxu0 0.0
  %6031 = vmatmul.mubr.f32.gmra.mrb[0].mxu0 %v5822
  %v6032 = vpop.f32.mrb[0].mxu0
  %v6033 = vadd.f32 %v5819, %v6032
  %v6034 = vpop.f32.mrb[0].mxu0
  %v6035 = vadd.f32 %v5819, %v6034
  %6036 = vdwg.mxu0
  %6037 = vmatprep.subr.mxu0 %v5661
  %6038 = vmatpush1.msra.mxu0 %v5660
  %6039 = vmatprep.subr.mxu0 %v5669
  %6040 = vmatpush1.msra.mxu0 %v5668
  %6041 = vmatprep.subr.mxu0 %v5677
  %6042 = vmatpush1.msra.mxu0 %v5676
  %6043 = vmatprep.subr.mxu0 %v5685
  %6044 = vmatpush1.msra.mxu0 %v5684
  %6045 = vmatprep.subr.mxu0 %v5538
  %6046 = vmatpush1.msra.mxu0 %v5536
  %6047 = vmatprep.subr.mxu0 %v5544
  %6048 = vmatpush1.msra.mxu0 %v5542
  %6049 = vmatprep.subr.mxu0 %v5550
  %6050 = vmatpush1.msra.mxu0 %v5548
  %6051 = vmatprep.subr.mxu0 %v5556
  %6052 = vmatpush1.msra.mxu0 %v5554
  %6053 = vmatprep.subr.mxu0 %v5789
  %6054 = vmatpush1.msra.mxu0 %v5788
  %6055 = vmatprep.subr.mxu0 %v5797
  %6056 = vmatpush1.msra.mxu0 %v5796
  %6057 = vmatprep.subr.mxu0 %v5805
  %6058 = vmatpush1.msra.mxu0 %v5804
  %6059 = vmatprep.subr.mxu0 %v5813
  %6060 = vmatpush1.msra.mxu0 %v5812
  %6061 = vmatprep.subr.mxu0 0.0
  %6062 = vmatpush1.msra.mxu0 0.0
  %6063 = vmatprep.subr.mxu0 0.0
  %6064 = vmatpush1.msra.mxu0 0.0
  %6065 = vmatprep.subr.mxu0 0.0
  %6066 = vmatpush1.msra.mxu0 0.0
  %6067 = vmatprep.subr.mxu0 0.0
  %6068 = vmatpush1.msra.mxu0 0.0
  %6069 = vmatprep.subr.mxu0 0.0
  %6070 = vmatpush1.msra.mxu0 0.0
  %6071 = vmatprep.subr.mxu0 0.0
  %6072 = vmatpush1.msra.mxu0 0.0
  %6073 = vmatprep.subr.mxu0 0.0
  %6074 = vmatpush1.msra.mxu0 0.0
  %6075 = vmatprep.subr.mxu0 0.0
  %6076 = vmatpush1.msra.mxu0 0.0
  %6077 = vmatprep.subr.mxu0 0.0
  %6078 = vmatpush1.msra.mxu0 0.0
  %6079 = vmatprep.subr.mxu0 0.0
  %6080 = vmatpush1.msra.mxu0 0.0
  %6081 = vmatprep.subr.mxu0 0.0
  %6082 = vmatpush1.msra.mxu0 0.0
  %6083 = vmatprep.subr.mxu0 0.0
  %6084 = vmatpush1.msra.mxu0 0.0
  %6085 = vmatprep.subr.mxu0 0.0
  %6086 = vmatpush1.msra.mxu0 0.0
  %6087 = vmatprep.subr.mxu0 0.0
  %6088 = vmatpush1.msra.mxu0 0.0
  %6089 = vmatprep.subr.mxu0 0.0
  %6090 = vmatpush1.msra.mxu0 0.0
  %6091 = vmatprep.subr.mxu0 0.0
  %6092 = vmatpush1.msra.mxu0 0.0
  %6093 = vmatprep.subr.mxu0 0.0
  %6094 = vmatpush1.msra.mxu0 0.0
  %6095 = vmatprep.subr.mxu0 0.0
  %6096 = vmatpush1.msra.mxu0 0.0
  %6097 = vmatprep.subr.mxu0 0.0
  %6098 = vmatpush1.msra.mxu0 0.0
  %6099 = vmatprep.subr.mxu0 0.0
  %6100 = vmatpush1.msra.mxu0 0.0
  %6101 = vmatprep.mubr.f32.mxu0 0.0
  %6102 = vmatmul.mubr.f32.gmra.mrb[0].mxu0 %v5822
  %v6103 = vpop.f32.mrb[0].mxu0
  %v6104 = vadd.f32 %v5819, %v6103
  %v6105 = vpop.f32.mrb[0].mxu0
  %v6106 = vadd.f32 %v5819, %v6105
  %6107 = vdwg.mxu0
  %v6108 = vlaneseq
  %v6109 = vshrl.u32 %v6108, 7
  %vm6110 = vcmp.eq.s32.totalorder %v6109, 0
  %v6111 = vsel %vm6110, %v2055, 0.0
  %vm6112 = vcmp.eq.s32.totalorder %v6109, 1
  %v6113 = vsel %vm6112, %v2057, %v6111
  %v6114 = vsel %vm6112, %v2126, 0.0
  %vm6115 = vcmp.eq.s32.totalorder %v6109, 2
  %v6116 = vsel %vm6115, %v2128, %v6114
  %vm6117 = vcmp.eq.s32.totalorder %v6109, 3
  %v6118 = vsel %vm6117, %v2197, %v6116
  %v6119 = vsel %vm6110, %v5891, 0.0
  %v6120 = vsel %vm6110, %v5893, 0.0
  %v6121 = vsel %vm6110, %v5962, 0.0
  %v6122 = vsel %vm6110, %v5964, 0.0
  %v6123 = vsel %vm6112, %v6033, %v6119
  %v6124 = vsel %vm6112, %v6035, %v6120
  %v6125 = vsel %vm6112, %v6104, %v6121
  %v6126 = vsel %vm6112, %v6106, %v6122
  %v6128 = vlaneseq
  %v6129 = vshrl.u32 %v6128, 7
  %v6130 = vsub.s32 0, %v6129
  %v6131 = vrot.slane %v177, %v6130
  %6133 = vmatprep.subr.mxu0 0.0
  %6134 = vmatpush1.msra.mxu0 %v113
  %6135 = vmatprep.subr.mxu0 0.0
  %6136 = vmatpush1.msra.mxu0 %v114
  %6137 = vmatprep.subr.mxu0 0.0
  %6138 = vmatpush1.msra.mxu0 %v115
  %6139 = vmatprep.subr.mxu0 0.0
  %6140 = vmatpush1.msra.mxu0 %v116
  %6141 = vmatprep.subr.mxu0 0.0
  %6142 = vmatpush1.msra.mxu0 %v117
  %6143 = vmatprep.subr.mxu0 0.0
  %6144 = vmatpush1.msra.mxu0 %v118
  %6145 = vmatprep.subr.mxu0 0.0
  %6146 = vmatpush1.msra.mxu0 %v119
  %6147 = vmatprep.subr.mxu0 0.0
  %6148 = vmatpush1.msra.mxu0 %v120
  %6149 = vmatprep.subr.mxu0 0.0
  %6150 = vmatpush1.msra.mxu0 %v121
  %6151 = vmatprep.subr.mxu0 0.0
  %6152 = vmatpush1.msra.mxu0 %v122
  %6153 = vmatprep.subr.mxu0 0.0
  %6154 = vmatpush1.msra.mxu0 %v123
  %6155 = vmatprep.subr.mxu0 0.0
  %6156 = vmatpush1.msra.mxu0 %v124
  %6157 = vmatprep.subr.mxu0 0.0
  %6158 = vmatpush1.msra.mxu0 %v125
  %6159 = vmatprep.subr.mxu0 0.0
  %6160 = vmatpush1.msra.mxu0 %v126
  %6161 = vmatprep.subr.mxu0 0.0
  %6162 = vmatpush1.msra.mxu0 %v127
  %6163 = vmatprep.subr.mxu0 0.0
  %6164 = vmatpush1.msra.mxu0 %v128
  %6165 = vmatprep.subr.mxu0 0.0
  %6166 = vmatpush1.msra.mxu0 %v129
  %6167 = vmatprep.subr.mxu0 0.0
  %6168 = vmatpush1.msra.mxu0 %v130
  %6169 = vmatprep.subr.mxu0 0.0
  %6170 = vmatpush1.msra.mxu0 %v131
  %6171 = vmatprep.subr.mxu0 0.0
  %6172 = vmatpush1.msra.mxu0 %v132
  %6173 = vmatprep.subr.mxu0 0.0
  %6174 = vmatpush1.msra.mxu0 %v133
  %6175 = vmatprep.subr.mxu0 0.0
  %6176 = vmatpush1.msra.mxu0 %v134
  %6177 = vmatprep.subr.mxu0 0.0
  %6178 = vmatpush1.msra.mxu0 %v135
  %6179 = vmatprep.subr.mxu0 0.0
  %6180 = vmatpush1.msra.mxu0 %v136
  %6181 = vmatprep.subr.mxu0 0.0
  %6182 = vmatpush1.msra.mxu0 %v137
  %6183 = vmatprep.subr.mxu0 0.0
  %6184 = vmatpush1.msra.mxu0 %v138
  %6185 = vmatprep.subr.mxu0 0.0
  %6186 = vmatpush1.msra.mxu0 %v139
  %6187 = vmatprep.subr.mxu0 0.0
  %6188 = vmatpush1.msra.mxu0 %v140
  %6189 = vmatprep.subr.mxu0 0.0
  %6190 = vmatpush1.msra.mxu0 %v141
  %6191 = vmatprep.subr.mxu0 0.0
  %6192 = vmatpush1.msra.mxu0 %v142
  %6193 = vmatprep.subr.mxu0 0.0
  %6194 = vmatpush1.msra.mxu0 %v143
  %6195 = vmatprep.subr.mxu0 0.0
  %6196 = vmatpush1.msra.mxu0 %v144
  %6197 = vmatprep.mubr.f32.mxu0 %v6124
  %6198 = vmatmul.mubr.f32.gmra.mrb[0].mxu0 %v6123
  %v6199 = vpop.f32.mrb[0].mxu0
  %v6200 = vadd.f32 %v6131, %v6199
  %v6201 = vpop.f32.mrb[0].mxu0
  %6202 = vdwg.mxu0
  %6203 = vmatprep.subr.mxu0 0.0
  %6204 = vmatpush1.msra.mxu0 %v145
  %6205 = vmatprep.subr.mxu0 0.0
  %6206 = vmatpush1.msra.mxu0 %v146
  %6207 = vmatprep.subr.mxu0 0.0
  %6208 = vmatpush1.msra.mxu0 %v147
  %6209 = vmatprep.subr.mxu0 0.0
  %6210 = vmatpush1.msra.mxu0 %v148
  %6211 = vmatprep.subr.mxu0 0.0
  %6212 = vmatpush1.msra.mxu0 %v149
  %6213 = vmatprep.subr.mxu0 0.0
  %6214 = vmatpush1.msra.mxu0 %v150
  %6215 = vmatprep.subr.mxu0 0.0
  %6216 = vmatpush1.msra.mxu0 %v151
  %6217 = vmatprep.subr.mxu0 0.0
  %6218 = vmatpush1.msra.mxu0 %v152
  %6219 = vmatprep.subr.mxu0 0.0
  %6220 = vmatpush1.msra.mxu0 %v153
  %6221 = vmatprep.subr.mxu0 0.0
  %6222 = vmatpush1.msra.mxu0 %v154
  %6223 = vmatprep.subr.mxu0 0.0
  %6224 = vmatpush1.msra.mxu0 %v155
  %6225 = vmatprep.subr.mxu0 0.0
  %6226 = vmatpush1.msra.mxu0 %v156
  %6227 = vmatprep.subr.mxu0 0.0
  %6228 = vmatpush1.msra.mxu0 %v157
  %6229 = vmatprep.subr.mxu0 0.0
  %6230 = vmatpush1.msra.mxu0 %v158
  %6231 = vmatprep.subr.mxu0 0.0
  %6232 = vmatpush1.msra.mxu0 %v159
  %6233 = vmatprep.subr.mxu0 0.0
  %6234 = vmatpush1.msra.mxu0 %v160
  %6235 = vmatprep.subr.mxu0 0.0
  %6236 = vmatpush1.msra.mxu0 %v161
  %6237 = vmatprep.subr.mxu0 0.0
  %6238 = vmatpush1.msra.mxu0 %v162
  %6239 = vmatprep.subr.mxu0 0.0
  %6240 = vmatpush1.msra.mxu0 %v163
  %6241 = vmatprep.subr.mxu0 0.0
  %6242 = vmatpush1.msra.mxu0 %v164
  %6243 = vmatprep.subr.mxu0 0.0
  %6244 = vmatpush1.msra.mxu0 %v165
  %6245 = vmatprep.subr.mxu0 0.0
  %6246 = vmatpush1.msra.mxu0 %v166
  %6247 = vmatprep.subr.mxu0 0.0
  %6248 = vmatpush1.msra.mxu0 %v167
  %6249 = vmatprep.subr.mxu0 0.0
  %6250 = vmatpush1.msra.mxu0 %v168
  %6251 = vmatprep.subr.mxu0 0.0
  %6252 = vmatpush1.msra.mxu0 %v169
  %6253 = vmatprep.subr.mxu0 0.0
  %6254 = vmatpush1.msra.mxu0 %v170
  %6255 = vmatprep.subr.mxu0 0.0
  %6256 = vmatpush1.msra.mxu0 %v171
  %6257 = vmatprep.subr.mxu0 0.0
  %6258 = vmatpush1.msra.mxu0 %v172
  %6259 = vmatprep.subr.mxu0 0.0
  %6260 = vmatpush1.msra.mxu0 %v173
  %6261 = vmatprep.subr.mxu0 0.0
  %6262 = vmatpush1.msra.mxu0 %v174
  %6263 = vmatprep.subr.mxu0 0.0
  %6264 = vmatpush1.msra.mxu0 %v175
  %6265 = vmatprep.subr.mxu0 0.0
  %6266 = vmatpush1.msra.mxu0 %v176
  %6267 = vmatprep.mubr.f32.mxu0 %v6126
  %6268 = vmatmul.mubr.f32.gmra.mrb[0].mxu0 %v6125
  %v6269 = vpop.f32.mrb[0].mxu0
  %v6270 = vadd.f32 %v6200, %v6269
  %v6271 = vpop.f32.mrb[0].mxu0
  %6272 = vdwg.mxu0
  %v6273 = vmul.f32 %v6270, %v6270
  %6274 = vadd.xlane.f32.xlu0 %v6273
  %v6275 = vpop.xlane.xlu0 %6274
  %v6276 = vmax.f32 %v6275, 1e-16
  %v6277 = vrsqrt.pop %v6276
  %v6278 = vmul.f32 %v6270, %v6277
  %v6279 = vmul.f32 %v6113, %v6113
  %6280 = vadd.xlane.f32.xlu0 %v6279
  %v6281 = vpop.xlane.xlu0 %6280
  %v6282 = vmax.f32 %v6281, 1e-16
  %v6283 = vrsqrt.pop %v6282
  %v6284 = vmul.f32 %v6113, %v6283
  %v6285 = vmul.f32 %v6118, %v6118
  %6286 = vadd.xlane.f32.xlu0 %v6285
  %v6287 = vpop.xlane.xlu0 %6286
  %v6288 = vmax.f32 %v6287, 1e-16
  %v6289 = vrsqrt.pop %v6288
  %v6290 = vmul.f32 %v6118, %v6289
  %v6291 = vmul.f32 %v6278, %v6284
  %6292 = vadd.xlane.f32.xlu0 %v6291
  %v6293 = vpop.xlane.xlu0 %6292
  %6294 = vmatprep.subr.mxu0 0.0
  %6295 = vmatpush1.xpose.msra.mxu0 %v6290
  %6296 = vmatprep.subr.mxu0 0.0
  %6297 = vmatpush1.xpose.msra.mxu0 0.0
  %6298 = vmatprep.subr.mxu0 0.0
  %6299 = vmatpush1.xpose.msra.mxu0 0.0
  %6300 = vmatprep.subr.mxu0 0.0
  %6301 = vmatpush1.xpose.msra.mxu0 0.0
  %6302 = vmatprep.subr.mxu0 0.0
  %6303 = vmatpush1.xpose.msra.mxu0 0.0
  %6304 = vmatprep.subr.mxu0 0.0
  %6305 = vmatpush1.xpose.msra.mxu0 0.0
  %6306 = vmatprep.subr.mxu0 0.0
  %6307 = vmatpush1.xpose.msra.mxu0 0.0
  %6308 = vmatprep.subr.mxu0 0.0
  %6309 = vmatpush1.xpose.msra.mxu0 0.0
  %6310 = vmatprep.subr.mxu0 0.0
  %6311 = vmatpush1.xpose.msra.mxu0 0.0
  %6312 = vmatprep.subr.mxu0 0.0
  %6313 = vmatpush1.xpose.msra.mxu0 0.0
  %6314 = vmatprep.subr.mxu0 0.0
  %6315 = vmatpush1.xpose.msra.mxu0 0.0
  %6316 = vmatprep.subr.mxu0 0.0
  %6317 = vmatpush1.xpose.msra.mxu0 0.0
  %6318 = vmatprep.subr.mxu0 0.0
  %6319 = vmatpush1.xpose.msra.mxu0 0.0
  %6320 = vmatprep.subr.mxu0 0.0
  %6321 = vmatpush1.xpose.msra.mxu0 0.0
  %6322 = vmatprep.subr.mxu0 0.0
  %6323 = vmatpush1.xpose.msra.mxu0 0.0
  %6324 = vmatprep.subr.mxu0 0.0
  %6325 = vmatpush1.xpose.msra.mxu0 0.0
  %6326 = vmatprep.subr.mxu0 0.0
  %6327 = vmatpush1.xpose.msra.mxu0 0.0
  %6328 = vmatprep.subr.mxu0 0.0
  %6329 = vmatpush1.xpose.msra.mxu0 0.0
  %6330 = vmatprep.subr.mxu0 0.0
  %6331 = vmatpush1.xpose.msra.mxu0 0.0
  %6332 = vmatprep.subr.mxu0 0.0
  %6333 = vmatpush1.xpose.msra.mxu0 0.0
  %6334 = vmatprep.subr.mxu0 0.0
  %6335 = vmatpush1.xpose.msra.mxu0 0.0
  %6336 = vmatprep.subr.mxu0 0.0
  %6337 = vmatpush1.xpose.msra.mxu0 0.0
  %6338 = vmatprep.subr.mxu0 0.0
  %6339 = vmatpush1.xpose.msra.mxu0 0.0
  %6340 = vmatprep.subr.mxu0 0.0
  %6341 = vmatpush1.xpose.msra.mxu0 0.0
  %6342 = vmatprep.subr.mxu0 0.0
  %6343 = vmatpush1.xpose.msra.mxu0 0.0
  %6344 = vmatprep.subr.mxu0 0.0
  %6345 = vmatpush1.xpose.msra.mxu0 0.0
  %6346 = vmatprep.subr.mxu0 0.0
  %6347 = vmatpush1.xpose.msra.mxu0 0.0
  %6348 = vmatprep.subr.mxu0 0.0
  %6349 = vmatpush1.xpose.msra.mxu0 0.0
  %6350 = vmatprep.subr.mxu0 0.0
  %6351 = vmatpush1.xpose.msra.mxu0 0.0
  %6352 = vmatprep.subr.mxu0 0.0
  %6353 = vmatpush1.xpose.msra.mxu0 0.0
  %6354 = vmatprep.subr.mxu0 0.0
  %6355 = vmatpush1.xpose.msra.mxu0 0.0
  %6356 = vmatprep.subr.mxu0 0.0
  %6357 = vmatpush1.xpose.msra.mxu0 0.0
  %6358 = vmatprep.mubr.f32.mxu0 0.0
  %6359 = vmatmul.mubr.f32.gmra.mrb[0].mxu0 %v6278
  %v6360 = vpop.f32.mrb[0].mxu0
  %v6361 = vadd.f32 0.0, %v6360
  %v6362 = vpop.f32.mrb[0].mxu0
  %6363 = vdwg.mxu0
  %vm6364 = vcmp.eq.s32.totalorder %v199, 0
  %v6365 = vsel %vm6364, %v6293, %v6361
  %vm6366 = vcmask 64512
  %6367 = vst.msk [vmem:[%s26] sm:$0xff] %vm6366, %v6365
  // Predicated region
  $region106: #{va_forward.1} parent=0 // pred_check
    _
  $region107: #{va_forward.1} parent=0 // pred_check_branch
    %6369 = sbr.rel (0) target = $region109
  $region108: #{va_forward.1} parent=0 // pred_region
    _
  $region109: #{va_forward.1} parent=0 // pred_fallthru
    _
  // Predicated region
  $region110: #{va_forward.1} parent=0 // pred_check
    _
  $region111: #{va_forward.1} parent=0 // pred_check_branch
    %6371 = sbr.rel (0) target = $region113
  $region112: #{va_forward.1} parent=0 // pred_region
    _
  $region113: #{va_forward.1} parent=0 // pred_fallthru
    _

</llo_original>
